<compile_context>
chip_gen: v7x
topology: tpu7x:2x2x1
jax: 0.10.0
libtpu: 0.0.40
codegen_flags: <defaults>
</compile_context>

<pallas_src>
import functools

import jax
import jax.numpy as jnp
from jax.experimental import pallas as pl
from jax.experimental.pallas import tpu as pltpu

_EPS = 1e-5


# --------------------------------------------------------------------------
# In-kernel helpers
# --------------------------------------------------------------------------
def _zero_halo(pad_ref):
    """Zero the 1-pixel halo of the padded scratch (interior is overwritten)."""
    NT, Hp, Wp, C = pad_ref.shape
    zrow = jnp.zeros((NT, 1, Wp, C), pad_ref.dtype)
    zcol = jnp.zeros((NT, Hp, 1, C), pad_ref.dtype)
    pad_ref[:, 0:1, :, :] = zrow
    pad_ref[:, Hp - 1:Hp, :, :] = zrow
    pad_ref[:, :, 0:1, :] = zcol
    pad_ref[:, :, Wp - 1:Wp, :] = zcol


def _conv3x3_accumulate(pad_ref, w_ref, acc_ref):
    """acc_ref (M, C) f32 = 3x3 SAME conv of pad_ref (NT,H+2,W+2,C) with
    w_ref (9, Cin, Cout) bf16, as 9 accumulating MXU dots (bf16 in, f32 acc)."""
    NT, Hp, Wp, C = pad_ref.shape
    H, W = Hp - 2, Wp - 2
    M = NT * H * W
    acc_ref[...] = jnp.zeros_like(acc_ref)
    for t in range(9):                               # static unroll: 9 MXU dots
        dh, dw = divmod(t, 3)
        lhs = pad_ref[:, dh:dh + H, dw:dw + W, :].astype(jnp.bfloat16).reshape(M, C)
        acc_ref[...] += jnp.dot(lhs, w_ref[t], preferred_element_type=jnp.float32)


# --------------------------------------------------------------------------
# Pass 1: conv1 -> ReLU, emit bn1 partial statistics
# --------------------------------------------------------------------------
def _conv1_relu_stats_kernel(x_ref, w1_ref, y1_ref, ssum_ref, ssq_ref,
                             pad_ref, acc_ref):
    NT, H, W, C = y1_ref.shape
    _zero_halo(pad_ref)
    pad_ref[:, 1:H + 1, 1:W + 1, :] = x_ref[...]
    _conv3x3_accumulate(pad_ref, w1_ref, acc_ref)
    z = jnp.maximum(acc_ref[...], 0.0)               # ReLU BEFORE bn1 (module order)
    y1_ref[...] = z.reshape(NT, H, W, C)
    ssum_ref[...] = jnp.sum(z, axis=0, keepdims=True).reshape(1, 1, C)
    ssq_ref[...] = jnp.sum(z * z, axis=0, keepdims=True).reshape(1, 1, C)


# --------------------------------------------------------------------------
# Pass 2: bn1-apply -> conv2, emit bn2 partial statistics + SE per-sample sums
# --------------------------------------------------------------------------
def _bn1_conv2_stats_kernel(y1_ref, sc1_ref, sh1_ref, w2_ref,
                            y2_ref, ssum_ref, ssq_ref, ps_ref,
                            pad_ref, acc_ref):
    NT, H, W, C = y1_ref.shape
    _zero_halo(pad_ref)
    sc = sc1_ref[...].reshape(1, 1, 1, C)
    sh = sh1_ref[...].reshape(1, 1, 1, C)
    pad_ref[:, 1:H + 1, 1:W + 1, :] = y1_ref[...] * sc + sh      # bn1 apply (f32)
    _conv3x3_accumulate(pad_ref, w2_ref, acc_ref)
    z = acc_ref[...]                                              # conv2 out (M, C) f32
    y2_ref[...] = z.reshape(NT, H, W, C)
    ssum_ref[...] = jnp.sum(z, axis=0, keepdims=True).reshape(1, 1, C)
    ssq_ref[...] = jnp.sum(z * z, axis=0, keepdims=True).reshape(1, 1, C)
    # Per-sample spatial sums for the SE global average pool (tiles are whole
    # samples, so these are complete -- no cross-step accumulation needed).
    ps_ref[...] = jnp.sum(z.reshape(NT, H * W, C), axis=1, keepdims=True)


# --------------------------------------------------------------------------
# Pass 3: bn2-apply, SE gate (two tiny FC + ReLU), channel scale, residual, ReLU
# --------------------------------------------------------------------------
def _bn2_se_residual_kernel(y2_ref, x_ref, sc2_ref, sh2_ref, pool_ref,
                            fc1w_ref, fc1b_ref, fc2w_ref, fc2b_ref, o_ref):
    NT, H, W, C = y2_ref.shape
    sc = sc2_ref[...].reshape(1, 1, 1, C)
    sh = sh2_ref[...].reshape(1, 1, 1, C)
    pool = pool_ref[...].reshape(NT, C)              # bn2-applied per-sample GAP
    g = jnp.maximum(jnp.dot(pool, fc1w_ref[...],
                            preferred_element_type=jnp.float32) + fc1b_ref[...], 0.0)
    g = jnp.maximum(jnp.dot(g, fc2w_ref[...],
                            preferred_element_type=jnp.float32) + fc2b_ref[...], 0.0)
    out = (y2_ref[...] * sc + sh) * g.reshape(NT, 1, 1, C) + x_ref[...]
    o_ref[...] = jnp.maximum(out, 0.0).astype(o_ref.dtype)


# --------------------------------------------------------------------------
# Host-side glue (tiny (C,)-sized math between the chained pallas_calls)
# --------------------------------------------------------------------------
def _bn_scale_shift(part_sum, part_sq, count, gamma, beta, eps=_EPS):
    s = jnp.sum(part_sum, axis=0)                    # (1, C)
    q = jnp.sum(part_sq, axis=0)                     # (1, C)
    mean = s / count
    var = jnp.maximum(q / count - mean * mean, 0.0)  # clamp: guards cancellation
    scale = gamma * jax.lax.rsqrt(var + eps)
    shift = beta - mean * scale
    return scale.astype(jnp.float32), shift.astype(jnp.float32)


def _pick_batch_tile(n, target=4):
    t = min(target, n)
    while n % t:
        t -= 1
    return max(t, 1)


@functools.partial(jax.jit, static_argnames=("n_tile",))
def _basic_block_nhwc(x, params, n_tile):
    """x: (N, H, W, C) float32 NHWC -> (N, H, W, C) float32."""
    N, H, W, C = x.shape
    assert N % n_tile == 0
    G = N // n_tile
    mid = params["fc1w"].shape[-1]

    x = x.astype(jnp.float32)
    # HWIO -> (tap, Cin, Cout), pre-cast to bf16 for the MXU.
    w1 = params["w1"].reshape(9, C, C).astype(jnp.bfloat16)
    w2 = params["w2"].reshape(9, C, C).astype(jnp.bfloat16)

    cparams = pltpu.CompilerParams(
        dimension_semantics=("parallel",),
        # <= 48 MiB keeps headroom on v7x's 64 MiB VMEM; v5e/v6e can raise this
        # together with a larger n_tile.
        vmem_limit_bytes=48 * 1024 * 1024,
    )

    act_spec = pl.BlockSpec((n_tile, H, W, C), lambda i: (i, 0, 0, 0))
    w_spec = pl.BlockSpec((9, C, C), lambda i: (0, 0, 0))          # VMEM-resident
    vec_spec = pl.BlockSpec((1, C), lambda i: (0, 0))              # BN scale/shift
    stat_spec = pl.BlockSpec((1, 1, C), lambda i: (i, 0, 0))       # per-tile partials
    ps_spec = pl.BlockSpec((n_tile, 1, C), lambda i: (i, 0, 0))    # per-sample pools

    pad_scratch = pltpu.VMEM((n_tile, H + 2, W + 2, C), jnp.float32)
    acc_scratch = pltpu.VMEM((n_tile * H * W, C), jnp.float32)

    # ---- pass 1: conv1 -> ReLU, bn1 partial stats ------------------------
    y1, s1, q1 = pl.pallas_call(
        _conv1_relu_stats_kernel,
        grid=(G,),
        in_specs=[act_spec, w_spec],
        out_specs=(act_spec, stat_spec, stat_spec),
        out_shape=(jax.ShapeDtypeStruct((N, H, W, C), jnp.float32),
                   jax.ShapeDtypeStruct((G, 1, C), jnp.float32),
                   jax.ShapeDtypeStruct((G, 1, C), jnp.float32)),
        scratch_shapes=[pad_scratch, acc_scratch],
        compiler_params=cparams,
    )(x, w1)

    scale1, shift1 = _bn_scale_shift(s1, q1, N * H * W, params["g1"], params["b1"])

    # ---- pass 2: bn1-apply -> conv2, bn2 partial stats + SE pools ---------
    y2, s2, q2, psum = pl.pallas_call(
        _bn1_conv2_stats_kernel,
        grid=(G,),
        in_specs=[act_spec, vec_spec, vec_spec, w_spec],
        out_specs=(act_spec, stat_spec, stat_spec, ps_spec),
        out_shape=(jax.ShapeDtypeStruct((N, H, W, C), jnp.float32),
                   jax.ShapeDtypeStruct((G, 1, C), jnp.float32),
                   jax.ShapeDtypeStruct((G, 1, C), jnp.float32),
                   jax.ShapeDtypeStruct((N, 1, C), jnp.float32)),
        scratch_shapes=[pad_scratch, acc_scratch],
        compiler_params=cparams,
    )(y1, scale1, shift1, w2)

    scale2, shift2 = _bn_scale_shift(s2, q2, N * H * W, params["g2"], params["b2"])
    # SE global average pool of bn2(out) = per-channel affine of the per-sample
    # conv2 spatial means (bn2 is affine per channel).
    pool = (psum.reshape(N, C) / float(H * W)) * scale2 + shift2   # (N, C)

    # ---- pass 3: bn2-apply, SE gate, channel scale, residual, ReLU --------
    out = pl.pallas_call(
        _bn2_se_residual_kernel,
        grid=(G,),
        in_specs=[act_spec, act_spec, vec_spec, vec_spec, ps_spec,
                  pl.BlockSpec((C, mid), lambda i: (0, 0)),
                  pl.BlockSpec((1, mid), lambda i: (0, 0)),
                  pl.BlockSpec((mid, C), lambda i: (0, 0)),
                  pl.BlockSpec((1, C), lambda i: (0, 0))],
        out_specs=act_spec,
        out_shape=jax.ShapeDtypeStruct((N, H, W, C), jnp.float32),
        compiler_params=cparams,
    )(y2, x, scale2, shift2, pool.reshape(N, 1, C),
      params["fc1w"], params["fc1b"], params["fc2w"], params["fc2b"])
    return out


def speaker_basic_block_nhwc(x_nhwc, params, n_tile=None):
    if n_tile is None:
        n_tile = _pick_batch_tile(x_nhwc.shape[0])
    return _basic_block_nhwc(x_nhwc, params, n_tile)


def speaker_encoder_basic_block(x_nchw, params, n_tile=None):
    """NCHW interface matching the PyTorch module.  In an NHWC-native model,
    call speaker_basic_block_nhwc directly and skip both transposes."""
    x = jnp.transpose(x_nchw, (0, 2, 3, 1))
    out = speaker_basic_block_nhwc(x, params, n_tile=n_tile)
    return jnp.transpose(out, (0, 3, 1, 2))


# --------------------------------------------------------------------------
# Pure-JAX reference (same math: bf16-fed convs, f32 accumulation, batch-stat BN)
# --------------------------------------------------------------------------
def _reference(x_nchw, params):
    x = jnp.transpose(x_nchw, (0, 2, 3, 1)).astype(jnp.float32)

    def conv(z, w):
        return jax.lax.conv_general_dilated(
            z.astype(jnp.bfloat16), w.astype(jnp.bfloat16), (1, 1), "SAME",
            dimension_numbers=("NHWC", "HWIO", "NHWC"),
            preferred_element_type=jnp.float32)

    def bn(z, g, b):
        m = jnp.mean(z, axis=(0, 1, 2), keepdims=True)
        v = jnp.mean((z - m) ** 2, axis=(0, 1, 2), keepdims=True)
        return (z - m) * jax.lax.rsqrt(v + _EPS) * g.reshape(1, 1, 1, -1) \
            + b.reshape(1, 1, 1, -1)

    out = jnp.maximum(conv(x, params["w1"]), 0.0)
    out = bn(out, params["g1"], params["b1"])
    out = bn(conv(out, params["w2"]), params["g2"], params["b2"])
    y = jnp.mean(out, axis=(1, 2))
    y = jnp.maximum(y @ params["fc1w"] + params["fc1b"], 0.0)
    y = jnp.maximum(y @ params["fc2w"] + params["fc2b"], 0.0)
    out = jnp.maximum(out * y[:, None, None, :] + x, 0.0)
    return jnp.transpose(out, (0, 3, 1, 2))


if __name__ == "__main__":
    # Small demo: batch=2, planes=inplanes=8, spatial 16x16, reduction=8 -> mid=1
    N, C, H, W = 2, 8, 16, 16
    reduction = 8
    mid = C // reduction

    key = jax.random.PRNGKey(0)
    ks = jax.random.split(key, 11)
    params = {
        "w1": 0.1 * jax.random.normal(ks[0], (3, 3, C, C), jnp.float32),   # HWIO
        "w2": 0.1 * jax.random.normal(ks[1], (3, 3, C, C), jnp.float32),
        "g1": 1.0 + 0.1 * jax.random.normal(ks[2], (1, C), jnp.float32),
        "b1": 0.1 * jax.random.normal(ks[3], (1, C), jnp.float32),
        "g2": 1.0 + 0.1 * jax.random.normal(ks[4], (1, C), jnp.float32),
        "b2": 0.1 * jax.random.normal(ks[5], (1, C), jnp.float32),
        "fc1w": 0.2 * jax.random.normal(ks[6], (C, mid), jnp.float32),
        "fc1b": 0.1 * jax.random.normal(ks[7], (1, mid), jnp.float32),
        "fc2w": 0.2 * jax.random.normal(ks[8], (mid, C), jnp.float32),
        "fc2b": 0.1 * jax.random.normal(ks[9], (1, C), jnp.float32),
    }
    x = jax.random.normal(ks[10], (N, C, H, W), jnp.float32)

    # n_tile=1 -> grid of 2 per pass, exercising the pipelined/tiled path.
    out = jax.block_until_ready(speaker_encoder_basic_block(x, params, n_tile=1))
    ref = jax.block_until_ready(_reference(x, params))

    assert out.shape == (N, C, H, W)
    err = float(jnp.max(jnp.abs(out - ref)))
    assert jnp.allclose(out, ref, rtol=2e-3, atol=2e-3), err
    print("KERNEL_OK")
</pallas_src>

<mosaic_0001>
module attributes {stable_mosaic.version = 11 : i64} {
  func.func @_conv1_relu_stats_kernel(%arg0: i32, %arg1: memref<1x16x16x8xf32, #tpu.memory_space<vmem>>, %arg2: memref<9x8x8xbf16, #tpu.memory_space<vmem>>, %arg3: memref<1x16x16x8xf32, #tpu.memory_space<vmem>>, %arg4: memref<1x1x8xf32, #tpu.memory_space<vmem>>, %arg5: memref<1x1x8xf32, #tpu.memory_space<vmem>>, %arg6: memref<1x18x18x8xf32, #tpu.memory_space<vmem>>, %arg7: memref<256x8xf32, #tpu.memory_space<vmem>>) attributes {dimension_semantics = [#tpu.dimension_semantics<parallel>], iteration_bounds = array<i64: 2>, scalar_prefetch = 0 : i64, scratch_operands = 2 : i64, tpu.core_type = #tpu.core_type<tc>, window_params = [{transform_indices = @transform_0, window_bounds = array<i64: 1, 16, 16, 8>}, {pipeline_mode = #tpu.pipeline_mode<synchronous>, transform_indices = @transform_1, window_bounds = array<i64: 9, 8, 8>}, {transform_indices = @transform_2, window_bounds = array<i64: 1, 16, 16, 8>}, {transform_indices = @transform_3, window_bounds = array<i64: 1, 1, 8>}, {transform_indices = @transform_4, window_bounds = array<i64: 1, 1, 8>}]} {
    %cst = arith.constant 0.000000e+00 : f32
    %0 = vector.broadcast %cst : f32 to vector<1x1x18x8xf32>
    %cst_0 = arith.constant 0.000000e+00 : f32
    %1 = vector.broadcast %cst_0 : f32 to vector<1x18x1x8xf32>
    %c0 = arith.constant 0 : index
    %c0_1 = arith.constant 0 : index
    %c0_2 = arith.constant 0 : index
    %c0_3 = arith.constant 0 : index
    %2 = vector.load %arg6[%c0, %c0_1, %c0_2, %c0_3] : memref<1x18x18x8xf32, #tpu.memory_space<vmem>>, vector<1x1x18x8xf32>
    tpu.vector_store %arg6[%c0, %c0_1, %c0_2, %c0_3], %0 {strides = array<i32>} : memref<1x18x18x8xf32, #tpu.memory_space<vmem>>, vector<1x1x18x8xf32>,
    %c0_4 = arith.constant 0 : index
    %c17 = arith.constant 17 : index
    %c0_5 = arith.constant 0 : index
    %c0_6 = arith.constant 0 : index
    %3 = vector.load %arg6[%c0_4, %c17, %c0_5, %c0_6] : memref<1x18x18x8xf32, #tpu.memory_space<vmem>>, vector<1x1x18x8xf32>
    tpu.vector_store %arg6[%c0_4, %c17, %c0_5, %c0_6], %0 {strides = array<i32>} : memref<1x18x18x8xf32, #tpu.memory_space<vmem>>, vector<1x1x18x8xf32>,
    %c0_7 = arith.constant 0 : index
    %c0_8 = arith.constant 0 : index
    %c0_9 = arith.constant 0 : index
    %c0_10 = arith.constant 0 : index
    %4 = vector.load %arg6[%c0_7, %c0_8, %c0_9, %c0_10] : memref<1x18x18x8xf32, #tpu.memory_space<vmem>>, vector<1x18x1x8xf32>
    tpu.vector_store %arg6[%c0_7, %c0_8, %c0_9, %c0_10], %1 {strides = array<i32>} : memref<1x18x18x8xf32, #tpu.memory_space<vmem>>, vector<1x18x1x8xf32>,
    %c0_11 = arith.constant 0 : index
    %c0_12 = arith.constant 0 : index
    %c17_13 = arith.constant 17 : index
    %c0_14 = arith.constant 0 : index
    %5 = vector.load %arg6[%c0_11, %c0_12, %c17_13, %c0_14] : memref<1x18x18x8xf32, #tpu.memory_space<vmem>>, vector<1x18x1x8xf32>
    tpu.vector_store %arg6[%c0_11, %c0_12, %c17_13, %c0_14], %1 {strides = array<i32>} : memref<1x18x18x8xf32, #tpu.memory_space<vmem>>, vector<1x18x1x8xf32>,
    %c0_15 = arith.constant 0 : index
    %c0_16 = arith.constant 0 : index
    %c0_17 = arith.constant 0 : index
    %c0_18 = arith.constant 0 : index
    %6 = vector.load %arg1[%c0_15, %c0_16, %c0_17, %c0_18] : memref<1x16x16x8xf32, #tpu.memory_space<vmem>>, vector<1x16x16x8xf32>
    %c0_19 = arith.constant 0 : index
    %c1 = arith.constant 1 : index
    %c1_20 = arith.constant 1 : index
    %c0_21 = arith.constant 0 : index
    %7 = vector.load %arg6[%c0_19, %c1, %c1_20, %c0_21] : memref<1x18x18x8xf32, #tpu.memory_space<vmem>>, vector<1x16x16x8xf32>
    tpu.vector_store %arg6[%c0_19, %c1, %c1_20, %c0_21], %6 {strides = array<i32>} : memref<1x18x18x8xf32, #tpu.memory_space<vmem>>, vector<1x16x16x8xf32>,
    %cst_22 = arith.constant 0.000000e+00 : f32
    %8 = vector.broadcast %cst_22 : f32 to vector<256x8xf32>
    %c0_23 = arith.constant 0 : index
    %c0_24 = arith.constant 0 : index
    %9 = vector.load %arg7[%c0_23, %c0_24] : memref<256x8xf32, #tpu.memory_space<vmem>>, vector<256x8xf32>
    tpu.vector_store %arg7[%c0_23, %c0_24], %8 {strides = array<i32>} : memref<256x8xf32, #tpu.memory_space<vmem>>, vector<256x8xf32>,
    %c0_25 = arith.constant 0 : index
    %c0_26 = arith.constant 0 : index
    %c0_27 = arith.constant 0 : index
    %c0_28 = arith.constant 0 : index
    %10 = vector.load %arg6[%c0_25, %c0_26, %c0_27, %c0_28] : memref<1x18x18x8xf32, #tpu.memory_space<vmem>>, vector<1x16x16x8xf32>
    %11 = arith.truncf %10 : vector<1x16x16x8xf32> to vector<1x16x16x8xbf16>
    %12 = vector.shape_cast %11 : vector<1x16x16x8xbf16> to vector<256x8xbf16>
    %c0_29 = arith.constant 0 : index
    %c0_30 = arith.constant 0 : index
    %13 = vector.load %arg7[%c0_29, %c0_30] : memref<256x8xf32, #tpu.memory_space<vmem>>, vector<256x8xf32>
    %c0_31 = arith.constant 0 : index
    %c0_32 = arith.constant 0 : index
    %c0_33 = arith.constant 0 : index
    %14 = vector.load %arg2[%c0_31, %c0_32, %c0_33] : memref<9x8x8xbf16, #tpu.memory_space<vmem>>, vector<1x8x8xbf16>
    %15 = vector.shape_cast %14 : vector<1x8x8xbf16> to vector<8x8xbf16>
    %cst_34 = arith.constant dense<0.000000e+00> : vector<256x8xf32>
    %16 = tpu.matmul %12, %15, %cst_34 {dimension_numbers = #tpu.dot_dimension_numbers<[1], [0], [0], [1], [0, 0, 1, 1], [], []>} : vector<256x8xbf16>, vector<8x8xbf16>, vector<256x8xf32> -> vector<256x8xf32>
    %17 = arith.addf %13, %16 : vector<256x8xf32>
    %c0_35 = arith.constant 0 : index
    %c0_36 = arith.constant 0 : index
    %18 = vector.load %arg7[%c0_35, %c0_36] : memref<256x8xf32, #tpu.memory_space<vmem>>, vector<256x8xf32>
    tpu.vector_store %arg7[%c0_35, %c0_36], %17 {strides = array<i32>} : memref<256x8xf32, #tpu.memory_space<vmem>>, vector<256x8xf32>,
    %c0_37 = arith.constant 0 : index
    %c0_38 = arith.constant 0 : index
    %c1_39 = arith.constant 1 : index
    %c0_40 = arith.constant 0 : index
    %19 = vector.load %arg6[%c0_37, %c0_38, %c1_39, %c0_40] : memref<1x18x18x8xf32, #tpu.memory_space<vmem>>, vector<1x16x16x8xf32>
    %20 = arith.truncf %19 : vector<1x16x16x8xf32> to vector<1x16x16x8xbf16>
    %21 = vector.shape_cast %20 : vector<1x16x16x8xbf16> to vector<256x8xbf16>
    %c0_41 = arith.constant 0 : index
    %c0_42 = arith.constant 0 : index
    %22 = vector.load %arg7[%c0_41, %c0_42] : memref<256x8xf32, #tpu.memory_space<vmem>>, vector<256x8xf32>
    %c1_43 = arith.constant 1 : index
    %c0_44 = arith.constant 0 : index
    %c0_45 = arith.constant 0 : index
    %23 = vector.load %arg2[%c1_43, %c0_44, %c0_45] : memref<9x8x8xbf16, #tpu.memory_space<vmem>>, vector<1x8x8xbf16>
    %24 = vector.shape_cast %23 : vector<1x8x8xbf16> to vector<8x8xbf16>
    %cst_46 = arith.constant dense<0.000000e+00> : vector<256x8xf32>
    %25 = tpu.matmul %21, %24, %cst_46 {dimension_numbers = #tpu.dot_dimension_numbers<[1], [0], [0], [1], [0, 0, 1, 1], [], []>} : vector<256x8xbf16>, vector<8x8xbf16>, vector<256x8xf32> -> vector<256x8xf32>
    %26 = arith.addf %22, %25 : vector<256x8xf32>
    %c0_47 = arith.constant 0 : index
    %c0_48 = arith.constant 0 : index
    %27 = vector.load %arg7[%c0_47, %c0_48] : memref<256x8xf32, #tpu.memory_space<vmem>>, vector<256x8xf32>
    tpu.vector_store %arg7[%c0_47, %c0_48], %26 {strides = array<i32>} : memref<256x8xf32, #tpu.memory_space<vmem>>, vector<256x8xf32>,
    %c0_49 = arith.constant 0 : index
    %c0_50 = arith.constant 0 : index
    %c2 = arith.constant 2 : index
    %c0_51 = arith.constant 0 : index
    %28 = vector.load %arg6[%c0_49, %c0_50, %c2, %c0_51] : memref<1x18x18x8xf32, #tpu.memory_space<vmem>>, vector<1x16x16x8xf32>
    %29 = arith.truncf %28 : vector<1x16x16x8xf32> to vector<1x16x16x8xbf16>
    %30 = vector.shape_cast %29 : vector<1x16x16x8xbf16> to vector<256x8xbf16>
    %c0_52 = arith.constant 0 : index
    %c0_53 = arith.constant 0 : index
    %31 = vector.load %arg7[%c0_52, %c0_53] : memref<256x8xf32, #tpu.memory_space<vmem>>, vector<256x8xf32>
    %c2_54 = arith.constant 2 : index
    %c0_55 = arith.constant 0 : index
    %c0_56 = arith.constant 0 : index
    %32 = vector.load %arg2[%c2_54, %c0_55, %c0_56] : memref<9x8x8xbf16, #tpu.memory_space<vmem>>, vector<1x8x8xbf16>
    %33 = vector.shape_cast %32 : vector<1x8x8xbf16> to vector<8x8xbf16>
    %cst_57 = arith.constant dense<0.000000e+00> : vector<256x8xf32>
    %34 = tpu.matmul %30, %33, %cst_57 {dimension_numbers = #tpu.dot_dimension_numbers<[1], [0], [0], [1], [0, 0, 1, 1], [], []>} : vector<256x8xbf16>, vector<8x8xbf16>, vector<256x8xf32> -> vector<256x8xf32>
    %35 = arith.addf %31, %34 : vector<256x8xf32>
    %c0_58 = arith.constant 0 : index
    %c0_59 = arith.constant 0 : index
    %36 = vector.load %arg7[%c0_58, %c0_59] : memref<256x8xf32, #tpu.memory_space<vmem>>, vector<256x8xf32>
    tpu.vector_store %arg7[%c0_58, %c0_59], %35 {strides = array<i32>} : memref<256x8xf32, #tpu.memory_space<vmem>>, vector<256x8xf32>,
    %c0_60 = arith.constant 0 : index
    %c1_61 = arith.constant 1 : index
    %c0_62 = arith.constant 0 : index
    %c0_63 = arith.constant 0 : index
    %37 = vector.load %arg6[%c0_60, %c1_61, %c0_62, %c0_63] : memref<1x18x18x8xf32, #tpu.memory_space<vmem>>, vector<1x16x16x8xf32>
    %38 = arith.truncf %37 : vector<1x16x16x8xf32> to vector<1x16x16x8xbf16>
    %39 = vector.shape_cast %38 : vector<1x16x16x8xbf16> to vector<256x8xbf16>
    %c0_64 = arith.constant 0 : index
    %c0_65 = arith.constant 0 : index
    %40 = vector.load %arg7[%c0_64, %c0_65] : memref<256x8xf32, #tpu.memory_space<vmem>>, vector<256x8xf32>
    %c3 = arith.constant 3 : index
    %c0_66 = arith.constant 0 : index
    %c0_67 = arith.constant 0 : index
    %41 = vector.load %arg2[%c3, %c0_66, %c0_67] : memref<9x8x8xbf16, #tpu.memory_space<vmem>>, vector<1x8x8xbf16>
    %42 = vector.shape_cast %41 : vector<1x8x8xbf16> to vector<8x8xbf16>
    %cst_68 = arith.constant dense<0.000000e+00> : vector<256x8xf32>
    %43 = tpu.matmul %39, %42, %cst_68 {dimension_numbers = #tpu.dot_dimension_numbers<[1], [0], [0], [1], [0, 0, 1, 1], [], []>} : vector<256x8xbf16>, vector<8x8xbf16>, vector<256x8xf32> -> vector<256x8xf32>
    %44 = arith.addf %40, %43 : vector<256x8xf32>
    %c0_69 = arith.constant 0 : index
    %c0_70 = arith.constant 0 : index
    %45 = vector.load %arg7[%c0_69, %c0_70] : memref<256x8xf32, #tpu.memory_space<vmem>>, vector<256x8xf32>
    tpu.vector_store %arg7[%c0_69, %c0_70], %44 {strides = array<i32>} : memref<256x8xf32, #tpu.memory_space<vmem>>, vector<256x8xf32>,
    %c0_71 = arith.constant 0 : index
    %c1_72 = arith.constant 1 : index
    %c1_73 = arith.constant 1 : index
    %c0_74 = arith.constant 0 : index
    %46 = vector.load %arg6[%c0_71, %c1_72, %c1_73, %c0_74] : memref<1x18x18x8xf32, #tpu.memory_space<vmem>>, vector<1x16x16x8xf32>
    %47 = arith.truncf %46 : vector<1x16x16x8xf32> to vector<1x16x16x8xbf16>
    %48 = vector.shape_cast %47 : vector<1x16x16x8xbf16> to vector<256x8xbf16>
    %c0_75 = arith.constant 0 : index
    %c0_76 = arith.constant 0 : index
    %49 = vector.load %arg7[%c0_75, %c0_76] : memref<256x8xf32, #tpu.memory_space<vmem>>, vector<256x8xf32>
    %c4 = arith.constant 4 : index
    %c0_77 = arith.constant 0 : index
    %c0_78 = arith.constant 0 : index
    %50 = vector.load %arg2[%c4, %c0_77, %c0_78] : memref<9x8x8xbf16, #tpu.memory_space<vmem>>, vector<1x8x8xbf16>
    %51 = vector.shape_cast %50 : vector<1x8x8xbf16> to vector<8x8xbf16>
    %cst_79 = arith.constant dense<0.000000e+00> : vector<256x8xf32>
    %52 = tpu.matmul %48, %51, %cst_79 {dimension_numbers = #tpu.dot_dimension_numbers<[1], [0], [0], [1], [0, 0, 1, 1], [], []>} : vector<256x8xbf16>, vector<8x8xbf16>, vector<256x8xf32> -> vector<256x8xf32>
    %53 = arith.addf %49, %52 : vector<256x8xf32>
    %c0_80 = arith.constant 0 : index
    %c0_81 = arith.constant 0 : index
    %54 = vector.load %arg7[%c0_80, %c0_81] : memref<256x8xf32, #tpu.memory_space<vmem>>, vector<256x8xf32>
    tpu.vector_store %arg7[%c0_80, %c0_81], %53 {strides = array<i32>} : memref<256x8xf32, #tpu.memory_space<vmem>>, vector<256x8xf32>,
    %c0_82 = arith.constant 0 : index
    %c1_83 = arith.constant 1 : index
    %c2_84 = arith.constant 2 : index
    %c0_85 = arith.constant 0 : index
    %55 = vector.load %arg6[%c0_82, %c1_83, %c2_84, %c0_85] : memref<1x18x18x8xf32, #tpu.memory_space<vmem>>, vector<1x16x16x8xf32>
    %56 = arith.truncf %55 : vector<1x16x16x8xf32> to vector<1x16x16x8xbf16>
    %57 = vector.shape_cast %56 : vector<1x16x16x8xbf16> to vector<256x8xbf16>
    %c0_86 = arith.constant 0 : index
    %c0_87 = arith.constant 0 : index
    %58 = vector.load %arg7[%c0_86, %c0_87] : memref<256x8xf32, #tpu.memory_space<vmem>>, vector<256x8xf32>
    %c5 = arith.constant 5 : index
    %c0_88 = arith.constant 0 : index
    %c0_89 = arith.constant 0 : index
    %59 = vector.load %arg2[%c5, %c0_88, %c0_89] : memref<9x8x8xbf16, #tpu.memory_space<vmem>>, vector<1x8x8xbf16>
    %60 = vector.shape_cast %59 : vector<1x8x8xbf16> to vector<8x8xbf16>
    %cst_90 = arith.constant dense<0.000000e+00> : vector<256x8xf32>
    %61 = tpu.matmul %57, %60, %cst_90 {dimension_numbers = #tpu.dot_dimension_numbers<[1], [0], [0], [1], [0, 0, 1, 1], [], []>} : vector<256x8xbf16>, vector<8x8xbf16>, vector<256x8xf32> -> vector<256x8xf32>
    %62 = arith.addf %58, %61 : vector<256x8xf32>
    %c0_91 = arith.constant 0 : index
    %c0_92 = arith.constant 0 : index
    %63 = vector.load %arg7[%c0_91, %c0_92] : memref<256x8xf32, #tpu.memory_space<vmem>>, vector<256x8xf32>
    tpu.vector_store %arg7[%c0_91, %c0_92], %62 {strides = array<i32>} : memref<256x8xf32, #tpu.memory_space<vmem>>, vector<256x8xf32>,
    %c0_93 = arith.constant 0 : index
    %c2_94 = arith.constant 2 : index
    %c0_95 = arith.constant 0 : index
    %c0_96 = arith.constant 0 : index
    %64 = vector.load %arg6[%c0_93, %c2_94, %c0_95, %c0_96] : memref<1x18x18x8xf32, #tpu.memory_space<vmem>>, vector<1x16x16x8xf32>
    %65 = arith.truncf %64 : vector<1x16x16x8xf32> to vector<1x16x16x8xbf16>
    %66 = vector.shape_cast %65 : vector<1x16x16x8xbf16> to vector<256x8xbf16>
    %c0_97 = arith.constant 0 : index
    %c0_98 = arith.constant 0 : index
    %67 = vector.load %arg7[%c0_97, %c0_98] : memref<256x8xf32, #tpu.memory_space<vmem>>, vector<256x8xf32>
    %c6 = arith.constant 6 : index
    %c0_99 = arith.constant 0 : index
    %c0_100 = arith.constant 0 : index
    %68 = vector.load %arg2[%c6, %c0_99, %c0_100] : memref<9x8x8xbf16, #tpu.memory_space<vmem>>, vector<1x8x8xbf16>
    %69 = vector.shape_cast %68 : vector<1x8x8xbf16> to vector<8x8xbf16>
    %cst_101 = arith.constant dense<0.000000e+00> : vector<256x8xf32>
    %70 = tpu.matmul %66, %69, %cst_101 {dimension_numbers = #tpu.dot_dimension_numbers<[1], [0], [0], [1], [0, 0, 1, 1], [], []>} : vector<256x8xbf16>, vector<8x8xbf16>, vector<256x8xf32> -> vector<256x8xf32>
    %71 = arith.addf %67, %70 : vector<256x8xf32>
    %c0_102 = arith.constant 0 : index
    %c0_103 = arith.constant 0 : index
    %72 = vector.load %arg7[%c0_102, %c0_103] : memref<256x8xf32, #tpu.memory_space<vmem>>, vector<256x8xf32>
    tpu.vector_store %arg7[%c0_102, %c0_103], %71 {strides = array<i32>} : memref<256x8xf32, #tpu.memory_space<vmem>>, vector<256x8xf32>,
    %c0_104 = arith.constant 0 : index
    %c2_105 = arith.constant 2 : index
    %c1_106 = arith.constant 1 : index
    %c0_107 = arith.constant 0 : index
    %73 = vector.load %arg6[%c0_104, %c2_105, %c1_106, %c0_107] : memref<1x18x18x8xf32, #tpu.memory_space<vmem>>, vector<1x16x16x8xf32>
    %74 = arith.truncf %73 : vector<1x16x16x8xf32> to vector<1x16x16x8xbf16>
    %75 = vector.shape_cast %74 : vector<1x16x16x8xbf16> to vector<256x8xbf16>
    %c0_108 = arith.constant 0 : index
    %c0_109 = arith.constant 0 : index
    %76 = vector.load %arg7[%c0_108, %c0_109] : memref<256x8xf32, #tpu.memory_space<vmem>>, vector<256x8xf32>
    %c7 = arith.constant 7 : index
    %c0_110 = arith.constant 0 : index
    %c0_111 = arith.constant 0 : index
    %77 = vector.load %arg2[%c7, %c0_110, %c0_111] : memref<9x8x8xbf16, #tpu.memory_space<vmem>>, vector<1x8x8xbf16>
    %78 = vector.shape_cast %77 : vector<1x8x8xbf16> to vector<8x8xbf16>
    %cst_112 = arith.constant dense<0.000000e+00> : vector<256x8xf32>
    %79 = tpu.matmul %75, %78, %cst_112 {dimension_numbers = #tpu.dot_dimension_numbers<[1], [0], [0], [1], [0, 0, 1, 1], [], []>} : vector<256x8xbf16>, vector<8x8xbf16>, vector<256x8xf32> -> vector<256x8xf32>
    %80 = arith.addf %76, %79 : vector<256x8xf32>
    %c0_113 = arith.constant 0 : index
    %c0_114 = arith.constant 0 : index
    %81 = vector.load %arg7[%c0_113, %c0_114] : memref<256x8xf32, #tpu.memory_space<vmem>>, vector<256x8xf32>
    tpu.vector_store %arg7[%c0_113, %c0_114], %80 {strides = array<i32>} : memref<256x8xf32, #tpu.memory_space<vmem>>, vector<256x8xf32>,
    %c0_115 = arith.constant 0 : index
    %c2_116 = arith.constant 2 : index
    %c2_117 = arith.constant 2 : index
    %c0_118 = arith.constant 0 : index
    %82 = vector.load %arg6[%c0_115, %c2_116, %c2_117, %c0_118] : memref<1x18x18x8xf32, #tpu.memory_space<vmem>>, vector<1x16x16x8xf32>
    %83 = arith.truncf %82 : vector<1x16x16x8xf32> to vector<1x16x16x8xbf16>
    %84 = vector.shape_cast %83 : vector<1x16x16x8xbf16> to vector<256x8xbf16>
    %c0_119 = arith.constant 0 : index
    %c0_120 = arith.constant 0 : index
    %85 = vector.load %arg7[%c0_119, %c0_120] : memref<256x8xf32, #tpu.memory_space<vmem>>, vector<256x8xf32>
    %c8 = arith.constant 8 : index
    %c0_121 = arith.constant 0 : index
    %c0_122 = arith.constant 0 : index
    %86 = vector.load %arg2[%c8, %c0_121, %c0_122] : memref<9x8x8xbf16, #tpu.memory_space<vmem>>, vector<1x8x8xbf16>
    %87 = vector.shape_cast %86 : vector<1x8x8xbf16> to vector<8x8xbf16>
    %cst_123 = arith.constant dense<0.000000e+00> : vector<256x8xf32>
    %88 = tpu.matmul %84, %87, %cst_123 {dimension_numbers = #tpu.dot_dimension_numbers<[1], [0], [0], [1], [0, 0, 1, 1], [], []>} : vector<256x8xbf16>, vector<8x8xbf16>, vector<256x8xf32> -> vector<256x8xf32>
    %89 = arith.addf %85, %88 : vector<256x8xf32>
    %c0_124 = arith.constant 0 : index
    %c0_125 = arith.constant 0 : index
    %90 = vector.load %arg7[%c0_124, %c0_125] : memref<256x8xf32, #tpu.memory_space<vmem>>, vector<256x8xf32>
    tpu.vector_store %arg7[%c0_124, %c0_125], %89 {strides = array<i32>} : memref<256x8xf32, #tpu.memory_space<vmem>>, vector<256x8xf32>,
    %c0_126 = arith.constant 0 : index
    %c0_127 = arith.constant 0 : index
    %91 = vector.load %arg7[%c0_126, %c0_127] : memref<256x8xf32, #tpu.memory_space<vmem>>, vector<256x8xf32>
    %cst_128 = arith.constant 0.000000e+00 : f32
    %92 = vector.broadcast %cst_128 : f32 to vector<256x8xf32>
    %93 = arith.maximumf %91, %92 : vector<256x8xf32>
    %94 = vector.shape_cast %93 : vector<256x8xf32> to vector<1x16x16x8xf32>
    %c0_129 = arith.constant 0 : index
    %c0_130 = arith.constant 0 : index
    %c0_131 = arith.constant 0 : index
    %c0_132 = arith.constant 0 : index
    %95 = vector.load %arg3[%c0_129, %c0_130, %c0_131, %c0_132] : memref<1x16x16x8xf32, #tpu.memory_space<vmem>>, vector<1x16x16x8xf32>
    tpu.vector_store %arg3[%c0_129, %c0_130, %c0_131, %c0_132], %94 {strides = array<i32>} : memref<1x16x16x8xf32, #tpu.memory_space<vmem>>, vector<1x16x16x8xf32>,
    %cst_133 = arith.constant dense<0.000000e+00> : vector<8xf32>
    %96 = vector.multi_reduction <add>, %93, %cst_133 [0] : vector<256x8xf32> to vector<8xf32>
    %97 = vector.shape_cast %96 : vector<8xf32> to vector<1x8xf32>
    %98 = vector.shape_cast %97 : vector<1x8xf32> to vector<1x1x8xf32>
    %c0_134 = arith.constant 0 : index
    %c0_135 = arith.constant 0 : index
    %c0_136 = arith.constant 0 : index
    %99 = vector.load %arg4[%c0_134, %c0_135, %c0_136] : memref<1x1x8xf32, #tpu.memory_space<vmem>>, vector<1x1x8xf32>
    tpu.vector_store %arg4[%c0_134, %c0_135, %c0_136], %98 {strides = array<i32>} : memref<1x1x8xf32, #tpu.memory_space<vmem>>, vector<1x1x8xf32>,
    %100 = arith.mulf %93, %93 : vector<256x8xf32>
    %cst_137 = arith.constant dense<0.000000e+00> : vector<8xf32>
    %101 = vector.multi_reduction <add>, %100, %cst_137 [0] : vector<256x8xf32> to vector<8xf32>
    %102 = vector.shape_cast %101 : vector<8xf32> to vector<1x8xf32>
    %103 = vector.shape_cast %102 : vector<1x8xf32> to vector<1x1x8xf32>
    %c0_138 = arith.constant 0 : index
    %c0_139 = arith.constant 0 : index
    %c0_140 = arith.constant 0 : index
    %104 = vector.load %arg5[%c0_138, %c0_139, %c0_140] : memref<1x1x8xf32, #tpu.memory_space<vmem>>, vector<1x1x8xf32>
    tpu.vector_store %arg5[%c0_138, %c0_139, %c0_140], %103 {strides = array<i32>} : memref<1x1x8xf32, #tpu.memory_space<vmem>>, vector<1x1x8xf32>,
    return
  }
  func.func @transform_0(%arg0: i32) -> (i32, i32, i32, i32) {
    %c0_i32 = arith.constant 0 : i32
    %c0_i32_0 = arith.constant 0 : i32
    %c0_i32_1 = arith.constant 0 : i32
    %c0_i32_2 = arith.constant 0 : i32
    return %arg0, %c0_i32, %c0_i32_0, %c0_i32_1 : i32, i32, i32, i32
  }
  func.func @transform_1(%arg0: i32) -> (i32, i32, i32) {
    %c0_i32 = arith.constant 0 : i32
    %c0_i32_0 = arith.constant 0 : i32
    %c0_i32_1 = arith.constant 0 : i32
    %c0_i32_2 = arith.constant 0 : i32
    return %c0_i32, %c0_i32_0, %c0_i32_1 : i32, i32, i32
  }
  func.func @transform_2(%arg0: i32) -> (i32, i32, i32, i32) {
    %c0_i32 = arith.constant 0 : i32
    %c0_i32_0 = arith.constant 0 : i32
    %c0_i32_1 = arith.constant 0 : i32
    %c0_i32_2 = arith.constant 0 : i32
    return %arg0, %c0_i32, %c0_i32_0, %c0_i32_1 : i32, i32, i32, i32
  }
  func.func @transform_3(%arg0: i32) -> (i32, i32, i32) {
    %c0_i32 = arith.constant 0 : i32
    %c0_i32_0 = arith.constant 0 : i32
    %c0_i32_1 = arith.constant 0 : i32
    return %arg0, %c0_i32, %c0_i32_0 : i32, i32, i32
  }
  func.func @transform_4(%arg0: i32) -> (i32, i32, i32) {
    %c0_i32 = arith.constant 0 : i32
    %c0_i32_0 = arith.constant 0 : i32
    %c0_i32_1 = arith.constant 0 : i32
    return %arg0, %c0_i32, %c0_i32_0 : i32, i32, i32
  }
}

module attributes {stable_mosaic.version = 11 : i64} {
  func.func @_bn2_se_residual_kernel(%arg0: i32, %arg1: memref<1x16x16x8xf32, #tpu.memory_space<vmem>>, %arg2: memref<1x16x16x8xf32, #tpu.memory_space<vmem>>, %arg3: memref<1x8xf32, #tpu.memory_space<vmem>>, %arg4: memref<1x8xf32, #tpu.memory_space<vmem>>, %arg5: memref<1x1x8xf32, #tpu.memory_space<vmem>>, %arg6: memref<8x1xf32, #tpu.memory_space<vmem>>, %arg7: memref<1x1xf32, #tpu.memory_space<vmem>>, %arg8: memref<1x8xf32, #tpu.memory_space<vmem>>, %arg9: memref<1x8xf32, #tpu.memory_space<vmem>>, %arg10: memref<1x16x16x8xf32, #tpu.memory_space<vmem>>) attributes {dimension_semantics = [#tpu.dimension_semantics<parallel>], iteration_bounds = array<i64: 2>, scalar_prefetch = 0 : i64, scratch_operands = 0 : i64, tpu.core_type = #tpu.core_type<tc>, window_params = [{transform_indices = @transform_0, window_bounds = array<i64: 1, 16, 16, 8>}, {transform_indices = @transform_1, window_bounds = array<i64: 1, 16, 16, 8>}, {pipeline_mode = #tpu.pipeline_mode<synchronous>, transform_indices = @transform_2, window_bounds = array<i64: 1, 8>}, {pipeline_mode = #tpu.pipeline_mode<synchronous>, transform_indices = @transform_3, window_bounds = array<i64: 1, 8>}, {transform_indices = @transform_4, window_bounds = array<i64: 1, 1, 8>}, {pipeline_mode = #tpu.pipeline_mode<synchronous>, transform_indices = @transform_5, window_bounds = array<i64: 8, 1>}, {pipeline_mode = #tpu.pipeline_mode<synchronous>, transform_indices = @transform_6, window_bounds = array<i64: 1, 1>}, {pipeline_mode = #tpu.pipeline_mode<synchronous>, transform_indices = @transform_7, window_bounds = array<i64: 1, 8>}, {pipeline_mode = #tpu.pipeline_mode<synchronous>, transform_indices = @transform_8, window_bounds = array<i64: 1, 8>}, {transform_indices = @transform_9, window_bounds = array<i64: 1, 16, 16, 8>}]} {
    %c0 = arith.constant 0 : index
    %c0_0 = arith.constant 0 : index
    %0 = vector.load %arg3[%c0, %c0_0] : memref<1x8xf32, #tpu.memory_space<vmem>>, vector<1x8xf32>
    %1 = vector.shape_cast %0 : vector<1x8xf32> to vector<1x1x1x8xf32>
    %c0_1 = arith.constant 0 : index
    %c0_2 = arith.constant 0 : index
    %2 = vector.load %arg4[%c0_1, %c0_2] : memref<1x8xf32, #tpu.memory_space<vmem>>, vector<1x8xf32>
    %3 = vector.shape_cast %2 : vector<1x8xf32> to vector<1x1x1x8xf32>
    %c0_3 = arith.constant 0 : index
    %c0_4 = arith.constant 0 : index
    %c0_5 = arith.constant 0 : index
    %4 = vector.load %arg5[%c0_3, %c0_4, %c0_5] : memref<1x1x8xf32, #tpu.memory_space<vmem>>, vector<1x1x8xf32>
    %5 = vector.shape_cast %4 : vector<1x1x8xf32> to vector<1x8xf32>
    %c0_6 = arith.constant 0 : index
    %c0_7 = arith.constant 0 : index
    %6 = vector.load %arg6[%c0_6, %c0_7] : memref<8x1xf32, #tpu.memory_space<vmem>>, vector<8x1xf32>
    %cst = arith.constant dense<0.000000e+00> : vector<1x1xf32>
    %7 = tpu.matmul %5, %6, %cst {dimension_numbers = #tpu.dot_dimension_numbers<[1], [0], [0], [1], [0, 0, 1, 1], [], []>} : vector<1x8xf32>, vector<8x1xf32>, vector<1x1xf32> -> vector<1x1xf32>
    %c0_8 = arith.constant 0 : index
    %c0_9 = arith.constant 0 : index
    %8 = vector.load %arg7[%c0_8, %c0_9] : memref<1x1xf32, #tpu.memory_space<vmem>>, vector<1x1xf32>
    %9 = arith.addf %7, %8 : vector<1x1xf32>
    %cst_10 = arith.constant 0.000000e+00 : f32
    %10 = vector.broadcast %cst_10 : f32 to vector<1x1xf32>
    %11 = arith.maximumf %9, %10 : vector<1x1xf32>
    %c0_11 = arith.constant 0 : index
    %c0_12 = arith.constant 0 : index
    %12 = vector.load %arg8[%c0_11, %c0_12] : memref<1x8xf32, #tpu.memory_space<vmem>>, vector<1x8xf32>
    %cst_13 = arith.constant dense<0.000000e+00> : vector<1x8xf32>
    %13 = tpu.matmul %11, %12, %cst_13 {dimension_numbers = #tpu.dot_dimension_numbers<[1], [0], [0], [1], [0, 0, 1, 1], [], []>} : vector<1x1xf32>, vector<1x8xf32>, vector<1x8xf32> -> vector<1x8xf32>
    %c0_14 = arith.constant 0 : index
    %c0_15 = arith.constant 0 : index
    %14 = vector.load %arg9[%c0_14, %c0_15] : memref<1x8xf32, #tpu.memory_space<vmem>>, vector<1x8xf32>
    %15 = arith.addf %13, %14 : vector<1x8xf32>
    %cst_16 = arith.constant 0.000000e+00 : f32
    %16 = vector.broadcast %cst_16 : f32 to vector<1x8xf32>
    %17 = arith.maximumf %15, %16 : vector<1x8xf32>
    %c0_17 = arith.constant 0 : index
    %c0_18 = arith.constant 0 : index
    %c0_19 = arith.constant 0 : index
    %c0_20 = arith.constant 0 : index
    %18 = vector.load %arg1[%c0_17, %c0_18, %c0_19, %c0_20] : memref<1x16x16x8xf32, #tpu.memory_space<vmem>>, vector<1x16x16x8xf32>
    %19 = vector.broadcast %1 : vector<1x1x1x8xf32> to vector<1x16x16x8xf32>
    %20 = arith.mulf %18, %19 : vector<1x16x16x8xf32>
    %21 = vector.broadcast %3 : vector<1x1x1x8xf32> to vector<1x16x16x8xf32>
    %22 = arith.addf %20, %21 : vector<1x16x16x8xf32>
    %23 = vector.shape_cast %17 : vector<1x8xf32> to vector<1x1x1x8xf32>
    %24 = vector.broadcast %23 : vector<1x1x1x8xf32> to vector<1x16x16x8xf32>
    %25 = arith.mulf %22, %24 : vector<1x16x16x8xf32>
    %c0_21 = arith.constant 0 : index
    %c0_22 = arith.constant 0 : index
    %c0_23 = arith.constant 0 : index
    %c0_24 = arith.constant 0 : index
    %26 = vector.load %arg2[%c0_21, %c0_22, %c0_23, %c0_24] : memref<1x16x16x8xf32, #tpu.memory_space<vmem>>, vector<1x16x16x8xf32>
    %27 = arith.addf %25, %26 : vector<1x16x16x8xf32>
    %cst_25 = arith.constant 0.000000e+00 : f32
    %28 = vector.broadcast %cst_25 : f32 to vector<1x16x16x8xf32>
    %29 = arith.maximumf %27, %28 : vector<1x16x16x8xf32>
    %c0_26 = arith.constant 0 : index
    %c0_27 = arith.constant 0 : index
    %c0_28 = arith.constant 0 : index
    %c0_29 = arith.constant 0 : index
    %30 = vector.load %arg10[%c0_26, %c0_27, %c0_28, %c0_29] : memref<1x16x16x8xf32, #tpu.memory_space<vmem>>, vector<1x16x16x8xf32>
    tpu.vector_store %arg10[%c0_26, %c0_27, %c0_28, %c0_29], %29 {strides = array<i32>} : memref<1x16x16x8xf32, #tpu.memory_space<vmem>>, vector<1x16x16x8xf32>,
    return
  }
  func.func @transform_0(%arg0: i32) -> (i32, i32, i32, i32) {
    %c0_i32 = arith.constant 0 : i32
    %c0_i32_0 = arith.constant 0 : i32
    %c0_i32_1 = arith.constant 0 : i32
    %c0_i32_2 = arith.constant 0 : i32
    return %arg0, %c0_i32, %c0_i32_0, %c0_i32_1 : i32, i32, i32, i32
  }
  func.func @transform_1(%arg0: i32) -> (i32, i32, i32, i32) {
    %c0_i32 = arith.constant 0 : i32
    %c0_i32_0 = arith.constant 0 : i32
    %c0_i32_1 = arith.constant 0 : i32
    %c0_i32_2 = arith.constant 0 : i32
    return %arg0, %c0_i32, %c0_i32_0, %c0_i32_1 : i32, i32, i32, i32
  }
  func.func @transform_2(%arg0: i32) -> (i32, i32) {
    %c0_i32 = arith.constant 0 : i32
    %c0_i32_0 = arith.constant 0 : i32
    %c0_i32_1 = arith.constant 0 : i32
    return %c0_i32, %c0_i32_0 : i32, i32
  }
  func.func @transform_3(%arg0: i32) -> (i32, i32) {
    %c0_i32 = arith.constant 0 : i32
    %c0_i32_0 = arith.constant 0 : i32
    %c0_i32_1 = arith.constant 0 : i32
    return %c0_i32, %c0_i32_0 : i32, i32
  }
  func.func @transform_4(%arg0: i32) -> (i32, i32, i32) {
    %c0_i32 = arith.constant 0 : i32
    %c0_i32_0 = arith.constant 0 : i32
    %c0_i32_1 = arith.constant 0 : i32
    return %arg0, %c0_i32, %c0_i32_0 : i32, i32, i32
  }
  func.func @transform_5(%arg0: i32) -> (i32, i32) {
    %c0_i32 = arith.constant 0 : i32
    %c0_i32_0 = arith.constant 0 : i32
    %c0_i32_1 = arith.constant 0 : i32
    return %c0_i32, %c0_i32_0 : i32, i32
  }
  func.func @transform_6(%arg0: i32) -> (i32, i32) {
    %c0_i32 = arith.constant 0 : i32
    %c0_i32_0 = arith.constant 0 : i32
    %c0_i32_1 = arith.constant 0 : i32
    return %c0_i32, %c0_i32_0 : i32, i32
  }
  func.func @transform_7(%arg0: i32) -> (i32, i32) {
    %c0_i32 = arith.constant 0 : i32
    %c0_i32_0 = arith.constant 0 : i32
    %c0_i32_1 = arith.constant 0 : i32
    return %c0_i32, %c0_i32_0 : i32, i32
  }
  func.func @transform_8(%arg0: i32) -> (i32, i32) {
    %c0_i32 = arith.constant 0 : i32
    %c0_i32_0 = arith.constant 0 : i32
    %c0_i32_1 = arith.constant 0 : i32
    return %c0_i32, %c0_i32_0 : i32, i32
  }
  func.func @transform_9(%arg0: i32) -> (i32, i32, i32, i32) {
    %c0_i32 = arith.constant 0 : i32
    %c0_i32_0 = arith.constant 0 : i32
    %c0_i32_1 = arith.constant 0 : i32
    %c0_i32_2 = arith.constant 0 : i32
    return %arg0, %c0_i32, %c0_i32_0, %c0_i32_1 : i32, i32, i32, i32
  }
}

module attributes {stable_mosaic.version = 11 : i64} {
  func.func @_bn1_conv2_stats_kernel(%arg0: i32, %arg1: memref<1x16x16x8xf32, #tpu.memory_space<vmem>>, %arg2: memref<1x8xf32, #tpu.memory_space<vmem>>, %arg3: memref<1x8xf32, #tpu.memory_space<vmem>>, %arg4: memref<9x8x8xbf16, #tpu.memory_space<vmem>>, %arg5: memref<1x16x16x8xf32, #tpu.memory_space<vmem>>, %arg6: memref<1x1x8xf32, #tpu.memory_space<vmem>>, %arg7: memref<1x1x8xf32, #tpu.memory_space<vmem>>, %arg8: memref<1x1x8xf32, #tpu.memory_space<vmem>>, %arg9: memref<1x18x18x8xf32, #tpu.memory_space<vmem>>, %arg10: memref<256x8xf32, #tpu.memory_space<vmem>>) attributes {dimension_semantics = [#tpu.dimension_semantics<parallel>], iteration_bounds = array<i64: 2>, scalar_prefetch = 0 : i64, scratch_operands = 2 : i64, tpu.core_type = #tpu.core_type<tc>, window_params = [{transform_indices = @transform_0, window_bounds = array<i64: 1, 16, 16, 8>}, {pipeline_mode = #tpu.pipeline_mode<synchronous>, transform_indices = @transform_1, window_bounds = array<i64: 1, 8>}, {pipeline_mode = #tpu.pipeline_mode<synchronous>, transform_indices = @transform_2, window_bounds = array<i64: 1, 8>}, {pipeline_mode = #tpu.pipeline_mode<synchronous>, transform_indices = @transform_3, window_bounds = array<i64: 9, 8, 8>}, {transform_indices = @transform_4, window_bounds = array<i64: 1, 16, 16, 8>}, {transform_indices = @transform_5, window_bounds = array<i64: 1, 1, 8>}, {transform_indices = @transform_6, window_bounds = array<i64: 1, 1, 8>}, {transform_indices = @transform_7, window_bounds = array<i64: 1, 1, 8>}]} {
    %cst = arith.constant 0.000000e+00 : f32
    %0 = vector.broadcast %cst : f32 to vector<1x1x18x8xf32>
    %cst_0 = arith.constant 0.000000e+00 : f32
    %1 = vector.broadcast %cst_0 : f32 to vector<1x18x1x8xf32>
    %c0 = arith.constant 0 : index
    %c0_1 = arith.constant 0 : index
    %c0_2 = arith.constant 0 : index
    %c0_3 = arith.constant 0 : index
    %2 = vector.load %arg9[%c0, %c0_1, %c0_2, %c0_3] : memref<1x18x18x8xf32, #tpu.memory_space<vmem>>, vector<1x1x18x8xf32>
    tpu.vector_store %arg9[%c0, %c0_1, %c0_2, %c0_3], %0 {strides = array<i32>} : memref<1x18x18x8xf32, #tpu.memory_space<vmem>>, vector<1x1x18x8xf32>,
    %c0_4 = arith.constant 0 : index
    %c17 = arith.constant 17 : index
    %c0_5 = arith.constant 0 : index
    %c0_6 = arith.constant 0 : index
    %3 = vector.load %arg9[%c0_4, %c17, %c0_5, %c0_6] : memref<1x18x18x8xf32, #tpu.memory_space<vmem>>, vector<1x1x18x8xf32>
    tpu.vector_store %arg9[%c0_4, %c17, %c0_5, %c0_6], %0 {strides = array<i32>} : memref<1x18x18x8xf32, #tpu.memory_space<vmem>>, vector<1x1x18x8xf32>,
    %c0_7 = arith.constant 0 : index
    %c0_8 = arith.constant 0 : index
    %c0_9 = arith.constant 0 : index
    %c0_10 = arith.constant 0 : index
    %4 = vector.load %arg9[%c0_7, %c0_8, %c0_9, %c0_10] : memref<1x18x18x8xf32, #tpu.memory_space<vmem>>, vector<1x18x1x8xf32>
    tpu.vector_store %arg9[%c0_7, %c0_8, %c0_9, %c0_10], %1 {strides = array<i32>} : memref<1x18x18x8xf32, #tpu.memory_space<vmem>>, vector<1x18x1x8xf32>,
    %c0_11 = arith.constant 0 : index
    %c0_12 = arith.constant 0 : index
    %c17_13 = arith.constant 17 : index
    %c0_14 = arith.constant 0 : index
    %5 = vector.load %arg9[%c0_11, %c0_12, %c17_13, %c0_14] : memref<1x18x18x8xf32, #tpu.memory_space<vmem>>, vector<1x18x1x8xf32>
    tpu.vector_store %arg9[%c0_11, %c0_12, %c17_13, %c0_14], %1 {strides = array<i32>} : memref<1x18x18x8xf32, #tpu.memory_space<vmem>>, vector<1x18x1x8xf32>,
    %c0_15 = arith.constant 0 : index
    %c0_16 = arith.constant 0 : index
    %6 = vector.load %arg2[%c0_15, %c0_16] : memref<1x8xf32, #tpu.memory_space<vmem>>, vector<1x8xf32>
    %7 = vector.shape_cast %6 : vector<1x8xf32> to vector<1x1x1x8xf32>
    %c0_17 = arith.constant 0 : index
    %c0_18 = arith.constant 0 : index
    %8 = vector.load %arg3[%c0_17, %c0_18] : memref<1x8xf32, #tpu.memory_space<vmem>>, vector<1x8xf32>
    %9 = vector.shape_cast %8 : vector<1x8xf32> to vector<1x1x1x8xf32>
    %c0_19 = arith.constant 0 : index
    %c0_20 = arith.constant 0 : index
    %c0_21 = arith.constant 0 : index
    %c0_22 = arith.constant 0 : index
    %10 = vector.load %arg1[%c0_19, %c0_20, %c0_21, %c0_22] : memref<1x16x16x8xf32, #tpu.memory_space<vmem>>, vector<1x16x16x8xf32>
    %11 = vector.broadcast %7 : vector<1x1x1x8xf32> to vector<1x16x16x8xf32>
    %12 = arith.mulf %10, %11 : vector<1x16x16x8xf32>
    %13 = vector.broadcast %9 : vector<1x1x1x8xf32> to vector<1x16x16x8xf32>
    %14 = arith.addf %12, %13 : vector<1x16x16x8xf32>
    %c0_23 = arith.constant 0 : index
    %c1 = arith.constant 1 : index
    %c1_24 = arith.constant 1 : index
    %c0_25 = arith.constant 0 : index
    %15 = vector.load %arg9[%c0_23, %c1, %c1_24, %c0_25] : memref<1x18x18x8xf32, #tpu.memory_space<vmem>>, vector<1x16x16x8xf32>
    tpu.vector_store %arg9[%c0_23, %c1, %c1_24, %c0_25], %14 {strides = array<i32>} : memref<1x18x18x8xf32, #tpu.memory_space<vmem>>, vector<1x16x16x8xf32>,
    %cst_26 = arith.constant 0.000000e+00 : f32
    %16 = vector.broadcast %cst_26 : f32 to vector<256x8xf32>
    %c0_27 = arith.constant 0 : index
    %c0_28 = arith.constant 0 : index
    %17 = vector.load %arg10[%c0_27, %c0_28] : memref<256x8xf32, #tpu.memory_space<vmem>>, vector<256x8xf32>
    tpu.vector_store %arg10[%c0_27, %c0_28], %16 {strides = array<i32>} : memref<256x8xf32, #tpu.memory_space<vmem>>, vector<256x8xf32>,
    %c0_29 = arith.constant 0 : index
    %c0_30 = arith.constant 0 : index
    %c0_31 = arith.constant 0 : index
    %c0_32 = arith.constant 0 : index
    %18 = vector.load %arg9[%c0_29, %c0_30, %c0_31, %c0_32] : memref<1x18x18x8xf32, #tpu.memory_space<vmem>>, vector<1x16x16x8xf32>
    %19 = arith.truncf %18 : vector<1x16x16x8xf32> to vector<1x16x16x8xbf16>
    %20 = vector.shape_cast %19 : vector<1x16x16x8xbf16> to vector<256x8xbf16>
    %c0_33 = arith.constant 0 : index
    %c0_34 = arith.constant 0 : index
    %21 = vector.load %arg10[%c0_33, %c0_34] : memref<256x8xf32, #tpu.memory_space<vmem>>, vector<256x8xf32>
    %c0_35 = arith.constant 0 : index
    %c0_36 = arith.constant 0 : index
    %c0_37 = arith.constant 0 : index
    %22 = vector.load %arg4[%c0_35, %c0_36, %c0_37] : memref<9x8x8xbf16, #tpu.memory_space<vmem>>, vector<1x8x8xbf16>
    %23 = vector.shape_cast %22 : vector<1x8x8xbf16> to vector<8x8xbf16>
    %cst_38 = arith.constant dense<0.000000e+00> : vector<256x8xf32>
    %24 = tpu.matmul %20, %23, %cst_38 {dimension_numbers = #tpu.dot_dimension_numbers<[1], [0], [0], [1], [0, 0, 1, 1], [], []>} : vector<256x8xbf16>, vector<8x8xbf16>, vector<256x8xf32> -> vector<256x8xf32>
    %25 = arith.addf %21, %24 : vector<256x8xf32>
    %c0_39 = arith.constant 0 : index
    %c0_40 = arith.constant 0 : index
    %26 = vector.load %arg10[%c0_39, %c0_40] : memref<256x8xf32, #tpu.memory_space<vmem>>, vector<256x8xf32>
    tpu.vector_store %arg10[%c0_39, %c0_40], %25 {strides = array<i32>} : memref<256x8xf32, #tpu.memory_space<vmem>>, vector<256x8xf32>,
    %c0_41 = arith.constant 0 : index
    %c0_42 = arith.constant 0 : index
    %c1_43 = arith.constant 1 : index
    %c0_44 = arith.constant 0 : index
    %27 = vector.load %arg9[%c0_41, %c0_42, %c1_43, %c0_44] : memref<1x18x18x8xf32, #tpu.memory_space<vmem>>, vector<1x16x16x8xf32>
    %28 = arith.truncf %27 : vector<1x16x16x8xf32> to vector<1x16x16x8xbf16>
    %29 = vector.shape_cast %28 : vector<1x16x16x8xbf16> to vector<256x8xbf16>
    %c0_45 = arith.constant 0 : index
    %c0_46 = arith.constant 0 : index
    %30 = vector.load %arg10[%c0_45, %c0_46] : memref<256x8xf32, #tpu.memory_space<vmem>>, vector<256x8xf32>
    %c1_47 = arith.constant 1 : index
    %c0_48 = arith.constant 0 : index
    %c0_49 = arith.constant 0 : index
    %31 = vector.load %arg4[%c1_47, %c0_48, %c0_49] : memref<9x8x8xbf16, #tpu.memory_space<vmem>>, vector<1x8x8xbf16>
    %32 = vector.shape_cast %31 : vector<1x8x8xbf16> to vector<8x8xbf16>
    %cst_50 = arith.constant dense<0.000000e+00> : vector<256x8xf32>
    %33 = tpu.matmul %29, %32, %cst_50 {dimension_numbers = #tpu.dot_dimension_numbers<[1], [0], [0], [1], [0, 0, 1, 1], [], []>} : vector<256x8xbf16>, vector<8x8xbf16>, vector<256x8xf32> -> vector<256x8xf32>
    %34 = arith.addf %30, %33 : vector<256x8xf32>
    %c0_51 = arith.constant 0 : index
    %c0_52 = arith.constant 0 : index
    %35 = vector.load %arg10[%c0_51, %c0_52] : memref<256x8xf32, #tpu.memory_space<vmem>>, vector<256x8xf32>
    tpu.vector_store %arg10[%c0_51, %c0_52], %34 {strides = array<i32>} : memref<256x8xf32, #tpu.memory_space<vmem>>, vector<256x8xf32>,
    %c0_53 = arith.constant 0 : index
    %c0_54 = arith.constant 0 : index
    %c2 = arith.constant 2 : index
    %c0_55 = arith.constant 0 : index
    %36 = vector.load %arg9[%c0_53, %c0_54, %c2, %c0_55] : memref<1x18x18x8xf32, #tpu.memory_space<vmem>>, vector<1x16x16x8xf32>
    %37 = arith.truncf %36 : vector<1x16x16x8xf32> to vector<1x16x16x8xbf16>
    %38 = vector.shape_cast %37 : vector<1x16x16x8xbf16> to vector<256x8xbf16>
    %c0_56 = arith.constant 0 : index
    %c0_57 = arith.constant 0 : index
    %39 = vector.load %arg10[%c0_56, %c0_57] : memref<256x8xf32, #tpu.memory_space<vmem>>, vector<256x8xf32>
    %c2_58 = arith.constant 2 : index
    %c0_59 = arith.constant 0 : index
    %c0_60 = arith.constant 0 : index
    %40 = vector.load %arg4[%c2_58, %c0_59, %c0_60] : memref<9x8x8xbf16, #tpu.memory_space<vmem>>, vector<1x8x8xbf16>
    %41 = vector.shape_cast %40 : vector<1x8x8xbf16> to vector<8x8xbf16>
    %cst_61 = arith.constant dense<0.000000e+00> : vector<256x8xf32>
    %42 = tpu.matmul %38, %41, %cst_61 {dimension_numbers = #tpu.dot_dimension_numbers<[1], [0], [0], [1], [0, 0, 1, 1], [], []>} : vector<256x8xbf16>, vector<8x8xbf16>, vector<256x8xf32> -> vector<256x8xf32>
    %43 = arith.addf %39, %42 : vector<256x8xf32>
    %c0_62 = arith.constant 0 : index
    %c0_63 = arith.constant 0 : index
    %44 = vector.load %arg10[%c0_62, %c0_63] : memref<256x8xf32, #tpu.memory_space<vmem>>, vector<256x8xf32>
    tpu.vector_store %arg10[%c0_62, %c0_63], %43 {strides = array<i32>} : memref<256x8xf32, #tpu.memory_space<vmem>>, vector<256x8xf32>,
    %c0_64 = arith.constant 0 : index
    %c1_65 = arith.constant 1 : index
    %c0_66 = arith.constant 0 : index
    %c0_67 = arith.constant 0 : index
    %45 = vector.load %arg9[%c0_64, %c1_65, %c0_66, %c0_67] : memref<1x18x18x8xf32, #tpu.memory_space<vmem>>, vector<1x16x16x8xf32>
    %46 = arith.truncf %45 : vector<1x16x16x8xf32> to vector<1x16x16x8xbf16>
    %47 = vector.shape_cast %46 : vector<1x16x16x8xbf16> to vector<256x8xbf16>
    %c0_68 = arith.constant 0 : index
    %c0_69 = arith.constant 0 : index
    %48 = vector.load %arg10[%c0_68, %c0_69] : memref<256x8xf32, #tpu.memory_space<vmem>>, vector<256x8xf32>
    %c3 = arith.constant 3 : index
    %c0_70 = arith.constant 0 : index
    %c0_71 = arith.constant 0 : index
    %49 = vector.load %arg4[%c3, %c0_70, %c0_71] : memref<9x8x8xbf16, #tpu.memory_space<vmem>>, vector<1x8x8xbf16>
    %50 = vector.shape_cast %49 : vector<1x8x8xbf16> to vector<8x8xbf16>
    %cst_72 = arith.constant dense<0.000000e+00> : vector<256x8xf32>
    %51 = tpu.matmul %47, %50, %cst_72 {dimension_numbers = #tpu.dot_dimension_numbers<[1], [0], [0], [1], [0, 0, 1, 1], [], []>} : vector<256x8xbf16>, vector<8x8xbf16>, vector<256x8xf32> -> vector<256x8xf32>
    %52 = arith.addf %48, %51 : vector<256x8xf32>
    %c0_73 = arith.constant 0 : index
    %c0_74 = arith.constant 0 : index
    %53 = vector.load %arg10[%c0_73, %c0_74] : memref<256x8xf32, #tpu.memory_space<vmem>>, vector<256x8xf32>
    tpu.vector_store %arg10[%c0_73, %c0_74], %52 {strides = array<i32>} : memref<256x8xf32, #tpu.memory_space<vmem>>, vector<256x8xf32>,
    %c0_75 = arith.constant 0 : index
    %c1_76 = arith.constant 1 : index
    %c1_77 = arith.constant 1 : index
    %c0_78 = arith.constant 0 : index
    %54 = vector.load %arg9[%c0_75, %c1_76, %c1_77, %c0_78] : memref<1x18x18x8xf32, #tpu.memory_space<vmem>>, vector<1x16x16x8xf32>
    %55 = arith.truncf %54 : vector<1x16x16x8xf32> to vector<1x16x16x8xbf16>
    %56 = vector.shape_cast %55 : vector<1x16x16x8xbf16> to vector<256x8xbf16>
    %c0_79 = arith.constant 0 : index
    %c0_80 = arith.constant 0 : index
    %57 = vector.load %arg10[%c0_79, %c0_80] : memref<256x8xf32, #tpu.memory_space<vmem>>, vector<256x8xf32>
    %c4 = arith.constant 4 : index
    %c0_81 = arith.constant 0 : index
    %c0_82 = arith.constant 0 : index
    %58 = vector.load %arg4[%c4, %c0_81, %c0_82] : memref<9x8x8xbf16, #tpu.memory_space<vmem>>, vector<1x8x8xbf16>
    %59 = vector.shape_cast %58 : vector<1x8x8xbf16> to vector<8x8xbf16>
    %cst_83 = arith.constant dense<0.000000e+00> : vector<256x8xf32>
    %60 = tpu.matmul %56, %59, %cst_83 {dimension_numbers = #tpu.dot_dimension_numbers<[1], [0], [0], [1], [0, 0, 1, 1], [], []>} : vector<256x8xbf16>, vector<8x8xbf16>, vector<256x8xf32> -> vector<256x8xf32>
    %61 = arith.addf %57, %60 : vector<256x8xf32>
    %c0_84 = arith.constant 0 : index
    %c0_85 = arith.constant 0 : index
    %62 = vector.load %arg10[%c0_84, %c0_85] : memref<256x8xf32, #tpu.memory_space<vmem>>, vector<256x8xf32>
    tpu.vector_store %arg10[%c0_84, %c0_85], %61 {strides = array<i32>} : memref<256x8xf32, #tpu.memory_space<vmem>>, vector<256x8xf32>,
    %c0_86 = arith.constant 0 : index
    %c1_87 = arith.constant 1 : index
    %c2_88 = arith.constant 2 : index
    %c0_89 = arith.constant 0 : index
    %63 = vector.load %arg9[%c0_86, %c1_87, %c2_88, %c0_89] : memref<1x18x18x8xf32, #tpu.memory_space<vmem>>, vector<1x16x16x8xf32>
    %64 = arith.truncf %63 : vector<1x16x16x8xf32> to vector<1x16x16x8xbf16>
    %65 = vector.shape_cast %64 : vector<1x16x16x8xbf16> to vector<256x8xbf16>
    %c0_90 = arith.constant 0 : index
    %c0_91 = arith.constant 0 : index
    %66 = vector.load %arg10[%c0_90, %c0_91] : memref<256x8xf32, #tpu.memory_space<vmem>>, vector<256x8xf32>
    %c5 = arith.constant 5 : index
    %c0_92 = arith.constant 0 : index
    %c0_93 = arith.constant 0 : index
    %67 = vector.load %arg4[%c5, %c0_92, %c0_93] : memref<9x8x8xbf16, #tpu.memory_space<vmem>>, vector<1x8x8xbf16>
    %68 = vector.shape_cast %67 : vector<1x8x8xbf16> to vector<8x8xbf16>
    %cst_94 = arith.constant dense<0.000000e+00> : vector<256x8xf32>
    %69 = tpu.matmul %65, %68, %cst_94 {dimension_numbers = #tpu.dot_dimension_numbers<[1], [0], [0], [1], [0, 0, 1, 1], [], []>} : vector<256x8xbf16>, vector<8x8xbf16>, vector<256x8xf32> -> vector<256x8xf32>
    %70 = arith.addf %66, %69 : vector<256x8xf32>
    %c0_95 = arith.constant 0 : index
    %c0_96 = arith.constant 0 : index
    %71 = vector.load %arg10[%c0_95, %c0_96] : memref<256x8xf32, #tpu.memory_space<vmem>>, vector<256x8xf32>
    tpu.vector_store %arg10[%c0_95, %c0_96], %70 {strides = array<i32>} : memref<256x8xf32, #tpu.memory_space<vmem>>, vector<256x8xf32>,
    %c0_97 = arith.constant 0 : index
    %c2_98 = arith.constant 2 : index
    %c0_99 = arith.constant 0 : index
    %c0_100 = arith.constant 0 : index
    %72 = vector.load %arg9[%c0_97, %c2_98, %c0_99, %c0_100] : memref<1x18x18x8xf32, #tpu.memory_space<vmem>>, vector<1x16x16x8xf32>
    %73 = arith.truncf %72 : vector<1x16x16x8xf32> to vector<1x16x16x8xbf16>
    %74 = vector.shape_cast %73 : vector<1x16x16x8xbf16> to vector<256x8xbf16>
    %c0_101 = arith.constant 0 : index
    %c0_102 = arith.constant 0 : index
    %75 = vector.load %arg10[%c0_101, %c0_102] : memref<256x8xf32, #tpu.memory_space<vmem>>, vector<256x8xf32>
    %c6 = arith.constant 6 : index
    %c0_103 = arith.constant 0 : index
    %c0_104 = arith.constant 0 : index
    %76 = vector.load %arg4[%c6, %c0_103, %c0_104] : memref<9x8x8xbf16, #tpu.memory_space<vmem>>, vector<1x8x8xbf16>
    %77 = vector.shape_cast %76 : vector<1x8x8xbf16> to vector<8x8xbf16>
    %cst_105 = arith.constant dense<0.000000e+00> : vector<256x8xf32>
    %78 = tpu.matmul %74, %77, %cst_105 {dimension_numbers = #tpu.dot_dimension_numbers<[1], [0], [0], [1], [0, 0, 1, 1], [], []>} : vector<256x8xbf16>, vector<8x8xbf16>, vector<256x8xf32> -> vector<256x8xf32>
    %79 = arith.addf %75, %78 : vector<256x8xf32>
    %c0_106 = arith.constant 0 : index
    %c0_107 = arith.constant 0 : index
    %80 = vector.load %arg10[%c0_106, %c0_107] : memref<256x8xf32, #tpu.memory_space<vmem>>, vector<256x8xf32>
    tpu.vector_store %arg10[%c0_106, %c0_107], %79 {strides = array<i32>} : memref<256x8xf32, #tpu.memory_space<vmem>>, vector<256x8xf32>,
    %c0_108 = arith.constant 0 : index
    %c2_109 = arith.constant 2 : index
    %c1_110 = arith.constant 1 : index
    %c0_111 = arith.constant 0 : index
    %81 = vector.load %arg9[%c0_108, %c2_109, %c1_110, %c0_111] : memref<1x18x18x8xf32, #tpu.memory_space<vmem>>, vector<1x16x16x8xf32>
    %82 = arith.truncf %81 : vector<1x16x16x8xf32> to vector<1x16x16x8xbf16>
    %83 = vector.shape_cast %82 : vector<1x16x16x8xbf16> to vector<256x8xbf16>
    %c0_112 = arith.constant 0 : index
    %c0_113 = arith.constant 0 : index
    %84 = vector.load %arg10[%c0_112, %c0_113] : memref<256x8xf32, #tpu.memory_space<vmem>>, vector<256x8xf32>
    %c7 = arith.constant 7 : index
    %c0_114 = arith.constant 0 : index
    %c0_115 = arith.constant 0 : index
    %85 = vector.load %arg4[%c7, %c0_114, %c0_115] : memref<9x8x8xbf16, #tpu.memory_space<vmem>>, vector<1x8x8xbf16>
    %86 = vector.shape_cast %85 : vector<1x8x8xbf16> to vector<8x8xbf16>
    %cst_116 = arith.constant dense<0.000000e+00> : vector<256x8xf32>
    %87 = tpu.matmul %83, %86, %cst_116 {dimension_numbers = #tpu.dot_dimension_numbers<[1], [0], [0], [1], [0, 0, 1, 1], [], []>} : vector<256x8xbf16>, vector<8x8xbf16>, vector<256x8xf32> -> vector<256x8xf32>
    %88 = arith.addf %84, %87 : vector<256x8xf32>
    %c0_117 = arith.constant 0 : index
    %c0_118 = arith.constant 0 : index
    %89 = vector.load %arg10[%c0_117, %c0_118] : memref<256x8xf32, #tpu.memory_space<vmem>>, vector<256x8xf32>
    tpu.vector_store %arg10[%c0_117, %c0_118], %88 {strides = array<i32>} : memref<256x8xf32, #tpu.memory_space<vmem>>, vector<256x8xf32>,
    %c0_119 = arith.constant 0 : index
    %c2_120 = arith.constant 2 : index
    %c2_121 = arith.constant 2 : index
    %c0_122 = arith.constant 0 : index
    %90 = vector.load %arg9[%c0_119, %c2_120, %c2_121, %c0_122] : memref<1x18x18x8xf32, #tpu.memory_space<vmem>>, vector<1x16x16x8xf32>
    %91 = arith.truncf %90 : vector<1x16x16x8xf32> to vector<1x16x16x8xbf16>
    %92 = vector.shape_cast %91 : vector<1x16x16x8xbf16> to vector<256x8xbf16>
    %c0_123 = arith.constant 0 : index
    %c0_124 = arith.constant 0 : index
    %93 = vector.load %arg10[%c0_123, %c0_124] : memref<256x8xf32, #tpu.memory_space<vmem>>, vector<256x8xf32>
    %c8 = arith.constant 8 : index
    %c0_125 = arith.constant 0 : index
    %c0_126 = arith.constant 0 : index
    %94 = vector.load %arg4[%c8, %c0_125, %c0_126] : memref<9x8x8xbf16, #tpu.memory_space<vmem>>, vector<1x8x8xbf16>
    %95 = vector.shape_cast %94 : vector<1x8x8xbf16> to vector<8x8xbf16>
    %cst_127 = arith.constant dense<0.000000e+00> : vector<256x8xf32>
    %96 = tpu.matmul %92, %95, %cst_127 {dimension_numbers = #tpu.dot_dimension_numbers<[1], [0], [0], [1], [0, 0, 1, 1], [], []>} : vector<256x8xbf16>, vector<8x8xbf16>, vector<256x8xf32> -> vector<256x8xf32>
    %97 = arith.addf %93, %96 : vector<256x8xf32>
    %c0_128 = arith.constant 0 : index
    %c0_129 = arith.constant 0 : index
    %98 = vector.load %arg10[%c0_128, %c0_129] : memref<256x8xf32, #tpu.memory_space<vmem>>, vector<256x8xf32>
    tpu.vector_store %arg10[%c0_128, %c0_129], %97 {strides = array<i32>} : memref<256x8xf32, #tpu.memory_space<vmem>>, vector<256x8xf32>,
    %c0_130 = arith.constant 0 : index
    %c0_131 = arith.constant 0 : index
    %99 = vector.load %arg10[%c0_130, %c0_131] : memref<256x8xf32, #tpu.memory_space<vmem>>, vector<256x8xf32>
    %100 = vector.shape_cast %99 : vector<256x8xf32> to vector<1x16x16x8xf32>
    %c0_132 = arith.constant 0 : index
    %c0_133 = arith.constant 0 : index
    %c0_134 = arith.constant 0 : index
    %c0_135 = arith.constant 0 : index
    %101 = vector.load %arg5[%c0_132, %c0_133, %c0_134, %c0_135] : memref<1x16x16x8xf32, #tpu.memory_space<vmem>>, vector<1x16x16x8xf32>
    tpu.vector_store %arg5[%c0_132, %c0_133, %c0_134, %c0_135], %100 {strides = array<i32>} : memref<1x16x16x8xf32, #tpu.memory_space<vmem>>, vector<1x16x16x8xf32>,
    %cst_136 = arith.constant dense<0.000000e+00> : vector<8xf32>
    %102 = vector.multi_reduction <add>, %99, %cst_136 [0] : vector<256x8xf32> to vector<8xf32>
    %103 = vector.shape_cast %102 : vector<8xf32> to vector<1x8xf32>
    %104 = vector.shape_cast %103 : vector<1x8xf32> to vector<1x1x8xf32>
    %c0_137 = arith.constant 0 : index
    %c0_138 = arith.constant 0 : index
    %c0_139 = arith.constant 0 : index
    %105 = vector.load %arg6[%c0_137, %c0_138, %c0_139] : memref<1x1x8xf32, #tpu.memory_space<vmem>>, vector<1x1x8xf32>
    tpu.vector_store %arg6[%c0_137, %c0_138, %c0_139], %104 {strides = array<i32>} : memref<1x1x8xf32, #tpu.memory_space<vmem>>, vector<1x1x8xf32>,
    %106 = arith.mulf %99, %99 : vector<256x8xf32>
    %cst_140 = arith.constant dense<0.000000e+00> : vector<8xf32>
    %107 = vector.multi_reduction <add>, %106, %cst_140 [0] : vector<256x8xf32> to vector<8xf32>
    %108 = vector.shape_cast %107 : vector<8xf32> to vector<1x8xf32>
    %109 = vector.shape_cast %108 : vector<1x8xf32> to vector<1x1x8xf32>
    %c0_141 = arith.constant 0 : index
    %c0_142 = arith.constant 0 : index
    %c0_143 = arith.constant 0 : index
    %110 = vector.load %arg7[%c0_141, %c0_142, %c0_143] : memref<1x1x8xf32, #tpu.memory_space<vmem>>, vector<1x1x8xf32>
    tpu.vector_store %arg7[%c0_141, %c0_142, %c0_143], %109 {strides = array<i32>} : memref<1x1x8xf32, #tpu.memory_space<vmem>>, vector<1x1x8xf32>,
    %111 = vector.shape_cast %99 : vector<256x8xf32> to vector<1x256x8xf32>
    %cst_144 = arith.constant dense<0.000000e+00> : vector<1x8xf32>
    %112 = vector.multi_reduction <add>, %111, %cst_144 [1] : vector<1x256x8xf32> to vector<1x8xf32>
    %113 = vector.shape_cast %112 : vector<1x8xf32> to vector<1x1x8xf32>
    %c0_145 = arith.constant 0 : index
    %c0_146 = arith.constant 0 : index
    %c0_147 = arith.constant 0 : index
    %114 = vector.load %arg8[%c0_145, %c0_146, %c0_147] : memref<1x1x8xf32, #tpu.memory_space<vmem>>, vector<1x1x8xf32>
    tpu.vector_store %arg8[%c0_145, %c0_146, %c0_147], %113 {strides = array<i32>} : memref<1x1x8xf32, #tpu.memory_space<vmem>>, vector<1x1x8xf32>,
    return
  }
  func.func @transform_0(%arg0: i32) -> (i32, i32, i32, i32) {
    %c0_i32 = arith.constant 0 : i32
    %c0_i32_0 = arith.constant 0 : i32
    %c0_i32_1 = arith.constant 0 : i32
    %c0_i32_2 = arith.constant 0 : i32
    return %arg0, %c0_i32, %c0_i32_0, %c0_i32_1 : i32, i32, i32, i32
  }
  func.func @transform_1(%arg0: i32) -> (i32, i32) {
    %c0_i32 = arith.constant 0 : i32
    %c0_i32_0 = arith.constant 0 : i32
    %c0_i32_1 = arith.constant 0 : i32
    return %c0_i32, %c0_i32_0 : i32, i32
  }
  func.func @transform_2(%arg0: i32) -> (i32, i32) {
    %c0_i32 = arith.constant 0 : i32
    %c0_i32_0 = arith.constant 0 : i32
    %c0_i32_1 = arith.constant 0 : i32
    return %c0_i32, %c0_i32_0 : i32, i32
  }
  func.func @transform_3(%arg0: i32) -> (i32, i32, i32) {
    %c0_i32 = arith.constant 0 : i32
    %c0_i32_0 = arith.constant 0 : i32
    %c0_i32_1 = arith.constant 0 : i32
    %c0_i32_2 = arith.constant 0 : i32
    return %c0_i32, %c0_i32_0, %c0_i32_1 : i32, i32, i32
  }
  func.func @transform_4(%arg0: i32) -> (i32, i32, i32, i32) {
    %c0_i32 = arith.constant 0 : i32
    %c0_i32_0 = arith.constant 0 : i32
    %c0_i32_1 = arith.constant 0 : i32
    %c0_i32_2 = arith.constant 0 : i32
    return %arg0, %c0_i32, %c0_i32_0, %c0_i32_1 : i32, i32, i32, i32
  }
  func.func @transform_5(%arg0: i32) -> (i32, i32, i32) {
    %c0_i32 = arith.constant 0 : i32
    %c0_i32_0 = arith.constant 0 : i32
    %c0_i32_1 = arith.constant 0 : i32
    return %arg0, %c0_i32, %c0_i32_0 : i32, i32, i32
  }
  func.func @transform_6(%arg0: i32) -> (i32, i32, i32) {
    %c0_i32 = arith.constant 0 : i32
    %c0_i32_0 = arith.constant 0 : i32
    %c0_i32_1 = arith.constant 0 : i32
    return %arg0, %c0_i32, %c0_i32_0 : i32, i32, i32
  }
  func.func @transform_7(%arg0: i32) -> (i32, i32, i32) {
    %c0_i32 = arith.constant 0 : i32
    %c0_i32_0 = arith.constant 0 : i32
    %c0_i32_1 = arith.constant 0 : i32
    return %arg0, %c0_i32, %c0_i32_0 : i32, i32, i32
  }
}

</mosaic_0001>

<llo_original>
// kernel: _basic_block_nhwc.5
$region0: #{_basic_block_nhwc.5}
  #allocation0 [shape = 'u32[]', space=smem, size = 0x4, offset = 0x4, fixed_abs, tag = 'smem constant byte address 0x4 - core index']
  #allocation1 [shape = 'u32[144,128]{1,0:T(1,128)}', space=vmem, size = 0x12000, scoped, tag = 'internal scratch']
  #allocation2 [shape = 'f32[1,1]{1,0:T(1,128)S(1)}', space=vmem, size = 0x200, scoped, tag = 'scoped memory for _basic_block_nhwc.5']
  %s0 = inlined_call_operand.vmem [shape: f32[2,16,16,8], index: 0, kind: input, shape index: {}]
  %s1 = inlined_call_operand.vmem [shape: f32[2,16,16,8], index: 1, kind: input, shape index: {}]
  %s2 = inlined_call_operand.vmem [shape: f32[1,8], index: 2, kind: input, shape index: {}]
  %s3 = inlined_call_operand.vmem [shape: f32[1,8], index: 3, kind: input, shape index: {}]
  %s4 = inlined_call_operand.vmem [shape: f32[2,1,8], index: 4, kind: input, shape index: {}]
  %s5 = inlined_call_operand.vmem [shape: f32[8,1], index: 5, kind: input, shape index: {}]
  %s6 = inlined_call_operand.<no memory space> [shape: f32[1,1], index: 6, kind: input, shape index: {}]
  %s7 = inlined_call_operand.vmem [shape: f32[1,8], index: 7, kind: input, shape index: {}]
  %s8 = inlined_call_operand.vmem [shape: f32[1,8], index: 8, kind: input, shape index: {}]
  %s9 = inlined_call_operand.vmem [shape: f32[2,16,16,8], index: 9, kind: output, shape index: {}]
  %s10 = sld [smem:[#allocation0]]
  $region69: #{_basic_block_nhwc.5} parent=0
    _
  %s12 = ssub.s32 1, %s10
  %s13 = scalar_select 0, %s12, %s10
  %v14 = vstv %s6
  %15 = vst [vmem:[#allocation2] sm:$0x1] %v14
  loop: start=0, step=1, limit=4
  $region2: #{_basic_block_nhwc.5} parent=0 // loop_pre_header
    _
  $region3: #{_basic_block_nhwc.5} parent=0 // loop_header
    %s17 = sphi 0, %s21
    %p18 = scmp.ge.s32.totalorder %s17, 4
    %s27 = sphi 0, %s29
    %s30 = sphi 0, %s27
    %s31 = sphi 0, %s30
    %s47 = sphi 0, %s31
    %s53 = sphi 0, %s55
    %s56 = sphi 0, %s53
    %s57 = sphi 0, %s56
    %s73 = sphi 0, %s57
    %s77 = sphi 0, %s77
    %s79 = sphi 0, %s77
    %s80 = sphi 0, %s79
    %s94 = sphi 0, %s80
    %s98 = sphi 0, %s98
    %s100 = sphi 0, %s98
    %s101 = sphi 0, %s100
    %s115 = sphi 0, %s101
    %s121 = sphi 0, %s123
    %s124 = sphi 0, %s121
    %s125 = sphi 0, %s124
    %s141 = sphi 0, %s125
    %s145 = sphi 0, %s145
    %s147 = sphi 0, %s145
    %s148 = sphi 0, %s147
    %s162 = sphi 0, %s148
    %s166 = sphi 0, %s166
    %s168 = sphi 0, %s166
    %s169 = sphi 0, %s168
    %s183 = sphi 0, %s169
    %s187 = sphi 0, %s187
    %s189 = sphi 0, %s187
    %s190 = sphi 0, %s189
    %s204 = sphi 0, %s190
    %s208 = sphi 0, %s208
    %s210 = sphi 0, %s208
    %s211 = sphi 0, %s210
    %s225 = sphi 0, %s211
    %s231 = sphi 0, %s233
    %s234 = sphi 0, %s231
    %s235 = sphi 0, %s234
    %s251 = sphi 0, %s235
  $region4: #{_basic_block_nhwc.5} parent=0 // loop_header_branch
    %20 = sbr.rel (%p18) target = $region8
  $region5: #{_basic_block_nhwc.5} parent=0 // loop_body
    %s22 = ssub.s32 %s17, 1
    %s23 = ssub.s32 %s17, 2
    %s24 = sadd.s32 %s17, 1
    %s25 = ssub.s32 %s17, %s24
    %p26 = scmp.eq.s32.totalorder %s25, 0
    %s28 = sadd.s32 %s27, 1
    %s29 = scalar_select %p26, %s27, %s28
    %p32 = pneg %p26
    %p33 = scmp.eq.s32.totalorder %s17, 1
    %p34 = por %p32, %p33
    %p35 = scmp.ne.s32.totalorder %s27, %s30
    %p36 = scmp.eq.s32.totalorder %s17, 0
    %p37 = por %p35, %p36
    %p38 = scmp.ne.s32.totalorder %s27, %s30
    %p39 = scmp.eq.s32.totalorder %s22, 1
    %p40 = por %p38, %p39
    %p41 = scmp.ne.s32.totalorder %s30, %s31
    %p42 = scmp.eq.s32.totalorder %s22, 0
    %p43 = por %p41, %p42
    %p44 = scmp.ne.s32.totalorder %s30, %s31
    %p45 = scmp.eq.s32.totalorder %s23, 1
    %p46 = por %p44, %p45
    %p48 = scmp.ne.s32.totalorder %s31, %s47
    %p49 = scmp.eq.s32.totalorder %s23, 0
    %p50 = por %p48, %p49
    %s51 = ssub.s32 %s17, %s24
    %p52 = scmp.eq.s32.totalorder %s51, 0
    %s54 = sadd.s32 %s53, 1
    %s55 = scalar_select %p52, %s53, %s54
    %p58 = pneg %p52
    %p59 = scmp.eq.s32.totalorder %s17, 1
    %p60 = por %p58, %p59
    %p61 = scmp.ne.s32.totalorder %s53, %s56
    %p62 = scmp.eq.s32.totalorder %s17, 0
    %p63 = por %p61, %p62
    %p64 = scmp.ne.s32.totalorder %s53, %s56
    %p65 = scmp.eq.s32.totalorder %s22, 1
    %p66 = por %p64, %p65
    %p67 = scmp.ne.s32.totalorder %s56, %s57
    %p68 = scmp.eq.s32.totalorder %s22, 0
    %p69 = por %p67, %p68
    %p70 = scmp.ne.s32.totalorder %s56, %s57
    %p71 = scmp.eq.s32.totalorder %s23, 1
    %p72 = por %p70, %p71
    %p74 = scmp.ne.s32.totalorder %s57, %s73
    %p75 = scmp.eq.s32.totalorder %s23, 0
    %p76 = por %p74, %p75
    %s78 = sadd.s32 %s77, 1
    %p81 = scmp.eq.s32.totalorder %s17, 1
    %p82 = scmp.ne.s32.totalorder %s77, %s79
    %p83 = scmp.eq.s32.totalorder %s17, 0
    %p84 = por %p82, %p83
    %p85 = scmp.ne.s32.totalorder %s77, %s79
    %p86 = scmp.eq.s32.totalorder %s22, 1
    %p87 = por %p85, %p86
    %p88 = scmp.ne.s32.totalorder %s79, %s80
    %p89 = scmp.eq.s32.totalorder %s22, 0
    %p90 = por %p88, %p89
    %p91 = scmp.ne.s32.totalorder %s79, %s80
    %p92 = scmp.eq.s32.totalorder %s23, 1
    %p93 = por %p91, %p92
    %p95 = scmp.ne.s32.totalorder %s80, %s94
    %p96 = scmp.eq.s32.totalorder %s23, 0
    %p97 = por %p95, %p96
    %s99 = sadd.s32 %s98, 1
    %p102 = scmp.eq.s32.totalorder %s17, 1
    %p103 = scmp.ne.s32.totalorder %s98, %s100
    %p104 = scmp.eq.s32.totalorder %s17, 0
    %p105 = por %p103, %p104
    %p106 = scmp.ne.s32.totalorder %s98, %s100
    %p107 = scmp.eq.s32.totalorder %s22, 1
    %p108 = por %p106, %p107
    %p109 = scmp.ne.s32.totalorder %s100, %s101
    %p110 = scmp.eq.s32.totalorder %s22, 0
    %p111 = por %p109, %p110
    %p112 = scmp.ne.s32.totalorder %s100, %s101
    %p113 = scmp.eq.s32.totalorder %s23, 1
    %p114 = por %p112, %p113
    %p116 = scmp.ne.s32.totalorder %s101, %s115
    %p117 = scmp.eq.s32.totalorder %s23, 0
    %p118 = por %p116, %p117
    %s119 = ssub.s32 %s17, %s24
    %p120 = scmp.eq.s32.totalorder %s119, 0
    %s122 = sadd.s32 %s121, 1
    %s123 = scalar_select %p120, %s121, %s122
    %p126 = pneg %p120
    %p127 = scmp.eq.s32.totalorder %s17, 1
    %p128 = por %p126, %p127
    %p129 = scmp.ne.s32.totalorder %s121, %s124
    %p130 = scmp.eq.s32.totalorder %s17, 0
    %p131 = por %p129, %p130
    %p132 = scmp.ne.s32.totalorder %s121, %s124
    %p133 = scmp.eq.s32.totalorder %s22, 1
    %p134 = por %p132, %p133
    %p135 = scmp.ne.s32.totalorder %s124, %s125
    %p136 = scmp.eq.s32.totalorder %s22, 0
    %p137 = por %p135, %p136
    %p138 = scmp.ne.s32.totalorder %s124, %s125
    %p139 = scmp.eq.s32.totalorder %s23, 1
    %p140 = por %p138, %p139
    %p142 = scmp.ne.s32.totalorder %s125, %s141
    %p143 = scmp.eq.s32.totalorder %s23, 0
    %p144 = por %p142, %p143
    %s146 = sadd.s32 %s145, 1
    %p149 = scmp.eq.s32.totalorder %s17, 1
    %p150 = scmp.ne.s32.totalorder %s145, %s147
    %p151 = scmp.eq.s32.totalorder %s17, 0
    %p152 = por %p150, %p151
    %p153 = scmp.ne.s32.totalorder %s145, %s147
    %p154 = scmp.eq.s32.totalorder %s22, 1
    %p155 = por %p153, %p154
    %p156 = scmp.ne.s32.totalorder %s147, %s148
    %p157 = scmp.eq.s32.totalorder %s22, 0
    %p158 = por %p156, %p157
    %p159 = scmp.ne.s32.totalorder %s147, %s148
    %p160 = scmp.eq.s32.totalorder %s23, 1
    %p161 = por %p159, %p160
    %p163 = scmp.ne.s32.totalorder %s148, %s162
    %p164 = scmp.eq.s32.totalorder %s23, 0
    %p165 = por %p163, %p164
    %s167 = sadd.s32 %s166, 1
    %p170 = scmp.eq.s32.totalorder %s17, 1
    %p171 = scmp.ne.s32.totalorder %s166, %s168
    %p172 = scmp.eq.s32.totalorder %s17, 0
    %p173 = por %p171, %p172
    %p174 = scmp.ne.s32.totalorder %s166, %s168
    %p175 = scmp.eq.s32.totalorder %s22, 1
    %p176 = por %p174, %p175
    %p177 = scmp.ne.s32.totalorder %s168, %s169
    %p178 = scmp.eq.s32.totalorder %s22, 0
    %p179 = por %p177, %p178
    %p180 = scmp.ne.s32.totalorder %s168, %s169
    %p181 = scmp.eq.s32.totalorder %s23, 1
    %p182 = por %p180, %p181
    %p184 = scmp.ne.s32.totalorder %s169, %s183
    %p185 = scmp.eq.s32.totalorder %s23, 0
    %p186 = por %p184, %p185
    %s188 = sadd.s32 %s187, 1
    %p191 = scmp.eq.s32.totalorder %s17, 1
    %p192 = scmp.ne.s32.totalorder %s187, %s189
    %p193 = scmp.eq.s32.totalorder %s17, 0
    %p194 = por %p192, %p193
    %p195 = scmp.ne.s32.totalorder %s187, %s189
    %p196 = scmp.eq.s32.totalorder %s22, 1
    %p197 = por %p195, %p196
    %p198 = scmp.ne.s32.totalorder %s189, %s190
    %p199 = scmp.eq.s32.totalorder %s22, 0
    %p200 = por %p198, %p199
    %p201 = scmp.ne.s32.totalorder %s189, %s190
    %p202 = scmp.eq.s32.totalorder %s23, 1
    %p203 = por %p201, %p202
    %p205 = scmp.ne.s32.totalorder %s190, %s204
    %p206 = scmp.eq.s32.totalorder %s23, 0
    %p207 = por %p205, %p206
    %s209 = sadd.s32 %s208, 1
    %p212 = scmp.eq.s32.totalorder %s17, 1
    %p213 = scmp.ne.s32.totalorder %s208, %s210
    %p214 = scmp.eq.s32.totalorder %s17, 0
    %p215 = por %p213, %p214
    %p216 = scmp.ne.s32.totalorder %s208, %s210
    %p217 = scmp.eq.s32.totalorder %s22, 1
    %p218 = por %p216, %p217
    %p219 = scmp.ne.s32.totalorder %s210, %s211
    %p220 = scmp.eq.s32.totalorder %s22, 0
    %p221 = por %p219, %p220
    %p222 = scmp.ne.s32.totalorder %s210, %s211
    %p223 = scmp.eq.s32.totalorder %s23, 1
    %p224 = por %p222, %p223
    %p226 = scmp.ne.s32.totalorder %s211, %s225
    %p227 = scmp.eq.s32.totalorder %s23, 0
    %p228 = por %p226, %p227
    %s229 = ssub.s32 %s17, %s24
    %p230 = scmp.eq.s32.totalorder %s229, 0
    %s232 = sadd.s32 %s231, 1
    %s233 = scalar_select %p230, %s231, %s232
    %p236 = pneg %p230
    %p237 = scmp.eq.s32.totalorder %s17, 1
    %p238 = por %p236, %p237
    %p239 = scmp.ne.s32.totalorder %s231, %s234
    %p240 = scmp.eq.s32.totalorder %s17, 0
    %p241 = por %p239, %p240
    %p242 = scmp.ne.s32.totalorder %s231, %s234
    %p243 = scmp.eq.s32.totalorder %s22, 1
    %p244 = por %p242, %p243
    %p245 = scmp.ne.s32.totalorder %s234, %s235
    %p246 = scmp.eq.s32.totalorder %s22, 0
    %p247 = por %p245, %p246
    %p248 = scmp.ne.s32.totalorder %s234, %s235
    %p249 = scmp.eq.s32.totalorder %s23, 1
    %p250 = por %p248, %p249
    %p252 = scmp.ne.s32.totalorder %s235, %s251
    %p253 = scmp.eq.s32.totalorder %s23, 0
    %p254 = por %p252, %p253
    %p255 = scmp.le.s32.totalorder 1, %s17
    %p256 = scmp.lt.s32.totalorder %s17, 3
    %p257 = pnand %p255, %p256
    %p258 = pneg %p257
    // Predicated region
    $region9: #{_basic_block_nhwc.5} parent=5 // pred_check
      _
    $region10: #{_basic_block_nhwc.5} parent=5 // pred_check_branch
      %260 = sbr.rel (%p257) target = $region12
    $region11: #{_basic_block_nhwc.5} parent=5 // pred_region
      %s261 = ssub.s32 %s17, 1
      // Predicated region
      $region13: #{_basic_block_nhwc.5} parent=11 // pred_check
        %p262 = pneg %p90
      $region14: #{_basic_block_nhwc.5} parent=11 // pred_check_branch
        %264 = sbr.rel (%p262) target = $region16
      $region15: #{_basic_block_nhwc.5} parent=11 // pred_region
        _
      $region16: #{_basic_block_nhwc.5} parent=11 // pred_fallthru
        _
      // Predicated region
      $region17: #{_basic_block_nhwc.5} parent=11 // pred_check
        %p265 = pneg %p111
      $region18: #{_basic_block_nhwc.5} parent=11 // pred_check_branch
        %267 = sbr.rel (%p265) target = $region20
      $region19: #{_basic_block_nhwc.5} parent=11 // pred_region
        _
      $region20: #{_basic_block_nhwc.5} parent=11 // pred_fallthru
        _
      // Predicated region
      $region21: #{_basic_block_nhwc.5} parent=11 // pred_check
        %p268 = pneg %p158
      $region22: #{_basic_block_nhwc.5} parent=11 // pred_check_branch
        %270 = sbr.rel (%p268) target = $region24
      $region23: #{_basic_block_nhwc.5} parent=11 // pred_region
        _
      $region24: #{_basic_block_nhwc.5} parent=11 // pred_fallthru
        _
      // Predicated region
      $region25: #{_basic_block_nhwc.5} parent=11 // pred_check
        %p271 = pneg %p179
      $region26: #{_basic_block_nhwc.5} parent=11 // pred_check_branch
        %273 = sbr.rel (%p271) target = $region28
      $region27: #{_basic_block_nhwc.5} parent=11 // pred_region
        _
      $region28: #{_basic_block_nhwc.5} parent=11 // pred_fallthru
        _
      // Predicated region
      $region29: #{_basic_block_nhwc.5} parent=11 // pred_check
        %p274 = pneg %p200
      $region30: #{_basic_block_nhwc.5} parent=11 // pred_check_branch
        %276 = sbr.rel (%p274) target = $region32
      $region31: #{_basic_block_nhwc.5} parent=11 // pred_region
        _
      $region32: #{_basic_block_nhwc.5} parent=11 // pred_fallthru
        _
      // Predicated region
      $region33: #{_basic_block_nhwc.5} parent=11 // pred_check
        %p277 = pneg %p221
      $region34: #{_basic_block_nhwc.5} parent=11 // pred_check_branch
        %279 = sbr.rel (%p277) target = $region36
      $region35: #{_basic_block_nhwc.5} parent=11 // pred_region
        _
      $region36: #{_basic_block_nhwc.5} parent=11 // pred_fallthru
        _
    $region12: #{_basic_block_nhwc.5} parent=5 // pred_fallthru
      _
    %p280 = scmp.lt.s32.totalorder %s17, 2
    // Predicated region
    $region37: #{_basic_block_nhwc.5} parent=5 // pred_check
      %p281 = pneg %p280
    $region38: #{_basic_block_nhwc.5} parent=5 // pred_check_branch
      %283 = sbr.rel (%p281) target = $region40
    $region39: #{_basic_block_nhwc.5} parent=5 // pred_region
      // Predicated region
      $region41: #{_basic_block_nhwc.5} parent=39 // pred_check
        %p284 = pneg %p37
      $region42: #{_basic_block_nhwc.5} parent=39 // pred_check_branch
        %286 = sbr.rel (%p284) target = $region44
      $region43: #{_basic_block_nhwc.5} parent=39 // pred_region
        %p287 = scmp.lt.s32.totalorder %s17, 1
        %s288 = scalar_select %p287, %s17, 1
        %s289 = smul.addr %s288, 32
        %s290 = smul.addr %s289, 8
        %s291 = scalar_lea.vmem %s0, %s290
      $region44: #{_basic_block_nhwc.5} parent=39 // pred_fallthru
        _
      // Predicated region
      $region45: #{_basic_block_nhwc.5} parent=39 // pred_check
        %p292 = pneg %p63
      $region46: #{_basic_block_nhwc.5} parent=39 // pred_check_branch
        %294 = sbr.rel (%p292) target = $region48
      $region47: #{_basic_block_nhwc.5} parent=39 // pred_region
        %p295 = scmp.lt.s32.totalorder %s17, 1
        %s296 = scalar_select %p295, %s17, 1
        %s297 = smul.addr %s296, 32
        %s298 = smul.addr %s297, 8
        %s299 = scalar_lea.vmem %s1, %s298
      $region48: #{_basic_block_nhwc.5} parent=39 // pred_fallthru
        _
      // Predicated region
      $region49: #{_basic_block_nhwc.5} parent=39 // pred_check
        %p300 = pneg %p131
      $region50: #{_basic_block_nhwc.5} parent=39 // pred_check_branch
        %302 = sbr.rel (%p300) target = $region52
      $region51: #{_basic_block_nhwc.5} parent=39 // pred_region
        %p303 = scmp.lt.s32.totalorder %s17, 1
        %s304 = scalar_select %p303, %s17, 1
        %s305 = scalar_lea.vmem %s4, %s304
      $region52: #{_basic_block_nhwc.5} parent=39 // pred_fallthru
        _
    $region40: #{_basic_block_nhwc.5} parent=5 // pred_fallthru
      _
    %p306 = scmp.le.s32.totalorder 1, %s17
    %p307 = scmp.lt.s32.totalorder %s17, 3
    %p308 = pnand %p306, %p307
    %p309 = pneg %p308
    // Predicated region
    $region53: #{_basic_block_nhwc.5} parent=5 // pred_check
      _
    $region54: #{_basic_block_nhwc.5} parent=5 // pred_check_branch
      %311 = sbr.rel (%p308) target = $region56
    $region55: #{_basic_block_nhwc.5} parent=5 // pred_region
      %s312 = ssub.s32 %s17, 1
      %p313 = scmp.lt.s32.totalorder %s22, 1
      %s314 = scalar_select %p313, %s22, 1
      %s315 = smul.addr %s314, 32
      %s316 = smul.addr %s315, 8
      %s317 = scalar_lea.vmem %s0, %s316
      %p318 = pneg %p43
      %p319 = pneg %p40
      %p320 = scmp.lt.s32.totalorder %s22, 1
      %s321 = scalar_select %p320, %s22, 1
      %s322 = smul.addr %s321, 32
      %s323 = smul.addr %s322, 8
      %s324 = scalar_lea.vmem %s1, %s323
      %p325 = pneg %p69
      %p326 = pneg %p66
      %p327 = pneg %p90
      %p328 = pneg %p87
      %p329 = pneg %p111
      %p330 = pneg %p108
      %p331 = scmp.lt.s32.totalorder %s22, 1
      %s332 = scalar_select %p331, %s22, 1
      %s333 = scalar_lea.vmem %s4, %s332
      %p334 = pneg %p137
      %p335 = pneg %p134
      %p336 = pneg %p158
      %p337 = pneg %p155
      %p338 = pneg %p179
      %p339 = pneg %p176
      %p340 = pneg %p200
      %p341 = pneg %p197
      %p342 = pneg %p221
      %p343 = pneg %p218
      %p344 = pneg %p247
      %p345 = pneg %p244
      %p346 = scmp.lt.s32.totalorder %s22, 1
      %s347 = scalar_select %p346, %s22, 1
      %s348 = smul.addr %s347, 32
      %s349 = smul.addr %s348, 8
      %s350 = scalar_lea.vmem %s9, %s349
      %p351 = scmp.lt.s32.totalorder %s22, 1
      %s352 = scalar_select %p351, %s22, 1
      %s353 = smul.addr %s352, 32
      %s354 = smul.addr %s353, 8
      %s355 = scalar_lea.vmem %s0, %s354
      %p356 = scmp.lt.s32.totalorder %s22, 1
      %s357 = scalar_select %p356, %s22, 1
      %s358 = smul.addr %s357, 32
      %s359 = smul.addr %s358, 8
      %s360 = scalar_lea.vmem %s1, %s359
      %p361 = scmp.lt.s32.totalorder %s22, 1
      %s362 = scalar_select %p361, %s22, 1
      %s363 = scalar_lea.vmem %s4, %s362
      %p364 = scmp.lt.s32.totalorder %s22, 1
      %s365 = scalar_select %p364, %s22, 1
      %s366 = smul.addr %s365, 32
      %s367 = smul.addr %s366, 8
      %s368 = scalar_lea.vmem %s9, %s367
      %v369 = vld [vmem:[%s2] sm:$0x1]
      %v370 = vld [vmem:[%s3] sm:$0x1]
      %v371 = vld [vmem:[%s363] sm:$0x1]
      %v372 = vld [vmem:[%s5] sm:$0xff]
      %v373 = vld [vmem:[#allocation2] sm:$0x1]
      %vm374 = vcmask 64512
      %v376 = vsel %vm374, %v371, 0
      %378 = vmatprep.subr.mxu0 0.0
      %379 = vmatpush1.msra.mxu0 %v372
      %380 = vmatprep.subr.mxu0 0.0
      %381 = vmatpush1.msra.mxu0 0.0
      %382 = vmatprep.subr.mxu0 0.0
      %383 = vmatpush1.msra.mxu0 0.0
      %384 = vmatprep.subr.mxu0 0.0
      %385 = vmatpush1.msra.mxu0 0.0
      %386 = vmatprep.subr.mxu0 0.0
      %387 = vmatpush1.msra.mxu0 0.0
      %388 = vmatprep.subr.mxu0 0.0
      %389 = vmatpush1.msra.mxu0 0.0
      %390 = vmatprep.subr.mxu0 0.0
      %391 = vmatpush1.msra.mxu0 0.0
      %392 = vmatprep.subr.mxu0 0.0
      %393 = vmatpush1.msra.mxu0 0.0
      %394 = vmatprep.subr.mxu0 0.0
      %395 = vmatpush1.msra.mxu0 0.0
      %396 = vmatprep.subr.mxu0 0.0
      %397 = vmatpush1.msra.mxu0 0.0
      %398 = vmatprep.subr.mxu0 0.0
      %399 = vmatpush1.msra.mxu0 0.0
      %400 = vmatprep.subr.mxu0 0.0
      %401 = vmatpush1.msra.mxu0 0.0
      %402 = vmatprep.subr.mxu0 0.0
      %403 = vmatpush1.msra.mxu0 0.0
      %404 = vmatprep.subr.mxu0 0.0
      %405 = vmatpush1.msra.mxu0 0.0
      %406 = vmatprep.subr.mxu0 0.0
      %407 = vmatpush1.msra.mxu0 0.0
      %408 = vmatprep.subr.mxu0 0.0
      %409 = vmatpush1.msra.mxu0 0.0
      %410 = vmatprep.subr.mxu0 0.0
      %411 = vmatpush1.msra.mxu0 0.0
      %412 = vmatprep.subr.mxu0 0.0
      %413 = vmatpush1.msra.mxu0 0.0
      %414 = vmatprep.subr.mxu0 0.0
      %415 = vmatpush1.msra.mxu0 0.0
      %416 = vmatprep.subr.mxu0 0.0
      %417 = vmatpush1.msra.mxu0 0.0
      %418 = vmatprep.subr.mxu0 0.0
      %419 = vmatpush1.msra.mxu0 0.0
      %420 = vmatprep.subr.mxu0 0.0
      %421 = vmatpush1.msra.mxu0 0.0
      %422 = vmatprep.subr.mxu0 0.0
      %423 = vmatpush1.msra.mxu0 0.0
      %424 = vmatprep.subr.mxu0 0.0
      %425 = vmatpush1.msra.mxu0 0.0
      %426 = vmatprep.subr.mxu0 0.0
      %427 = vmatpush1.msra.mxu0 0.0
      %428 = vmatprep.subr.mxu0 0.0
      %429 = vmatpush1.msra.mxu0 0.0
      %430 = vmatprep.subr.mxu0 0.0
      %431 = vmatpush1.msra.mxu0 0.0
      %432 = vmatprep.subr.mxu0 0.0
      %433 = vmatpush1.msra.mxu0 0.0
      %434 = vmatprep.subr.mxu0 0.0
      %435 = vmatpush1.msra.mxu0 0.0
      %436 = vmatprep.subr.mxu0 0.0
      %437 = vmatpush1.msra.mxu0 0.0
      %438 = vmatprep.subr.mxu0 0.0
      %439 = vmatpush1.msra.mxu0 0.0
      %440 = vmatprep.subr.mxu0 0.0
      %441 = vmatpush1.msra.mxu0 0.0
      %442 = vmatprep.mubr.f32.mxu0 0.0
      %443 = vmatmul.mubr.f32.gmra.mrb[0].mxu0 %v376
      %v444 = vpop.f32.mrb[0].mxu0
      %v445 = vadd.f32 %v373, %v444
      %v446 = vpop.f32.mrb[0].mxu0
      %447 = vdwg.mxu0
      %v448 = vmax.f32 %v445, 0.0
      %v449 = vld [vmem:[%s7] sm:$0x1]
      %v450 = vld [vmem:[%s8] sm:$0x1]
      %vm451 = vcmask 7168
      %v453 = vsel %vm451, %v448, 0
      %vm455 = vcmask 1040384
      %v457 = vsel %vm455, %v449, 0
      %459 = vmatprep.subr.mxu0 0.0
      %460 = vmatpush1.msra.mxu0 %v457
      %461 = vmatprep.subr.mxu0 0.0
      %462 = vmatpush1.msra.mxu0 0.0
      %463 = vmatprep.subr.mxu0 0.0
      %464 = vmatpush1.msra.mxu0 0.0
      %465 = vmatprep.subr.mxu0 0.0
      %466 = vmatpush1.msra.mxu0 0.0
      %467 = vmatprep.subr.mxu0 0.0
      %468 = vmatpush1.msra.mxu0 0.0
      %469 = vmatprep.subr.mxu0 0.0
      %470 = vmatpush1.msra.mxu0 0.0
      %471 = vmatprep.subr.mxu0 0.0
      %472 = vmatpush1.msra.mxu0 0.0
      %473 = vmatprep.subr.mxu0 0.0
      %474 = vmatpush1.msra.mxu0 0.0
      %475 = vmatprep.subr.mxu0 0.0
      %476 = vmatpush1.msra.mxu0 0.0
      %477 = vmatprep.subr.mxu0 0.0
      %478 = vmatpush1.msra.mxu0 0.0
      %479 = vmatprep.subr.mxu0 0.0
      %480 = vmatpush1.msra.mxu0 0.0
      %481 = vmatprep.subr.mxu0 0.0
      %482 = vmatpush1.msra.mxu0 0.0
      %483 = vmatprep.subr.mxu0 0.0
      %484 = vmatpush1.msra.mxu0 0.0
      %485 = vmatprep.subr.mxu0 0.0
      %486 = vmatpush1.msra.mxu0 0.0
      %487 = vmatprep.subr.mxu0 0.0
      %488 = vmatpush1.msra.mxu0 0.0
      %489 = vmatprep.subr.mxu0 0.0
      %490 = vmatpush1.msra.mxu0 0.0
      %491 = vmatprep.subr.mxu0 0.0
      %492 = vmatpush1.msra.mxu0 0.0
      %493 = vmatprep.subr.mxu0 0.0
      %494 = vmatpush1.msra.mxu0 0.0
      %495 = vmatprep.subr.mxu0 0.0
      %496 = vmatpush1.msra.mxu0 0.0
      %497 = vmatprep.subr.mxu0 0.0
      %498 = vmatpush1.msra.mxu0 0.0
      %499 = vmatprep.subr.mxu0 0.0
      %500 = vmatpush1.msra.mxu0 0.0
      %501 = vmatprep.subr.mxu0 0.0
      %502 = vmatpush1.msra.mxu0 0.0
      %503 = vmatprep.subr.mxu0 0.0
      %504 = vmatpush1.msra.mxu0 0.0
      %505 = vmatprep.subr.mxu0 0.0
      %506 = vmatpush1.msra.mxu0 0.0
      %507 = vmatprep.subr.mxu0 0.0
      %508 = vmatpush1.msra.mxu0 0.0
      %509 = vmatprep.subr.mxu0 0.0
      %510 = vmatpush1.msra.mxu0 0.0
      %511 = vmatprep.subr.mxu0 0.0
      %512 = vmatpush1.msra.mxu0 0.0
      %513 = vmatprep.subr.mxu0 0.0
      %514 = vmatpush1.msra.mxu0 0.0
      %515 = vmatprep.subr.mxu0 0.0
      %516 = vmatpush1.msra.mxu0 0.0
      %517 = vmatprep.subr.mxu0 0.0
      %518 = vmatpush1.msra.mxu0 0.0
      %519 = vmatprep.subr.mxu0 0.0
      %520 = vmatpush1.msra.mxu0 0.0
      %521 = vmatprep.subr.mxu0 0.0
      %522 = vmatpush1.msra.mxu0 0.0
      %523 = vmatprep.mubr.f32.mxu0 0.0
      %524 = vmatmul.mubr.f32.gmra.mrb[0].mxu0 %v453
      %v525 = vpop.f32.mrb[0].mxu0
      %v526 = vadd.f32 %v450, %v525
      %v527 = vpop.f32.mrb[0].mxu0
      %528 = vdwg.mxu0
      %v529 = vmax.f32 %v526, 0.0
      %v530 = vld [vmem:[%s355] sm:$0xff]
      %v531 = vld [vmem:[%s355 + $0x8] sm:$0xff]
      %v532 = vld [vmem:[%s355 + $0x10] sm:$0xff]
      %v533 = vld [vmem:[%s355 + $0x18] sm:$0xff]
      %v534 = vld [vmem:[%s355 + $0x20] sm:$0xff]
      %v535 = vld [vmem:[%s355 + $0x28] sm:$0xff]
      %v536 = vld [vmem:[%s355 + $0x30] sm:$0xff]
      %v537 = vld [vmem:[%s355 + $0x38] sm:$0xff]
      %v538 = vld [vmem:[%s355 + $0x40] sm:$0xff]
      %v539 = vld [vmem:[%s355 + $0x48] sm:$0xff]
      %v540 = vld [vmem:[%s355 + $0x50] sm:$0xff]
      %v541 = vld [vmem:[%s355 + $0x58] sm:$0xff]
      %v542 = vld [vmem:[%s355 + $0x60] sm:$0xff]
      %v543 = vld [vmem:[%s355 + $0x68] sm:$0xff]
      %v544 = vld [vmem:[%s355 + $0x70] sm:$0xff]
      %v545 = vld [vmem:[%s355 + $0x78] sm:$0xff]
      %v546 = vld [vmem:[%s355 + $0x80] sm:$0xff]
      %v547 = vld [vmem:[%s355 + $0x88] sm:$0xff]
      %v548 = vld [vmem:[%s355 + $0x90] sm:$0xff]
      %v549 = vld [vmem:[%s355 + $0x98] sm:$0xff]
      %v550 = vld [vmem:[%s355 + $0xa0] sm:$0xff]
      %v551 = vld [vmem:[%s355 + $0xa8] sm:$0xff]
      %v552 = vld [vmem:[%s355 + $0xb0] sm:$0xff]
      %v553 = vld [vmem:[%s355 + $0xb8] sm:$0xff]
      %v554 = vld [vmem:[%s355 + $0xc0] sm:$0xff]
      %v555 = vld [vmem:[%s355 + $0xc8] sm:$0xff]
      %v556 = vld [vmem:[%s355 + $0xd0] sm:$0xff]
      %v557 = vld [vmem:[%s355 + $0xd8] sm:$0xff]
      %v558 = vld [vmem:[%s355 + $0xe0] sm:$0xff]
      %v559 = vld [vmem:[%s355 + $0xe8] sm:$0xff]
      %v560 = vld [vmem:[%s355 + $0xf0] sm:$0xff]
      %v561 = vld [vmem:[%s355 + $0xf8] sm:$0xff]
      %v563 = vlaneseq
      %v564 = vshrl.u32 %v563, 7
      %v565 = vsub.s32 0, %v564
      %v566 = vrot.slane %v369, %v565
      %v568 = vmul.f32 %v530, %v566
      %v569 = vmul.f32 %v531, %v566
      %v570 = vmul.f32 %v532, %v566
      %v571 = vmul.f32 %v533, %v566
      %v572 = vmul.f32 %v534, %v566
      %v573 = vmul.f32 %v535, %v566
      %v574 = vmul.f32 %v536, %v566
      %v575 = vmul.f32 %v537, %v566
      %v576 = vmul.f32 %v538, %v566
      %v577 = vmul.f32 %v539, %v566
      %v578 = vmul.f32 %v540, %v566
      %v579 = vmul.f32 %v541, %v566
      %v580 = vmul.f32 %v542, %v566
      %v581 = vmul.f32 %v543, %v566
      %v582 = vmul.f32 %v544, %v566
      %v583 = vmul.f32 %v545, %v566
      %v584 = vmul.f32 %v546, %v566
      %v585 = vmul.f32 %v547, %v566
      %v586 = vmul.f32 %v548, %v566
      %v587 = vmul.f32 %v549, %v566
      %v588 = vmul.f32 %v550, %v566
      %v589 = vmul.f32 %v551, %v566
      %v590 = vmul.f32 %v552, %v566
      %v591 = vmul.f32 %v553, %v566
      %v592 = vmul.f32 %v554, %v566
      %v593 = vmul.f32 %v555, %v566
      %v594 = vmul.f32 %v556, %v566
      %v595 = vmul.f32 %v557, %v566
      %v596 = vmul.f32 %v558, %v566
      %v597 = vmul.f32 %v559, %v566
      %v598 = vmul.f32 %v560, %v566
      %v599 = vmul.f32 %v561, %v566
      %v601 = vlaneseq
      %v602 = vshrl.u32 %v601, 7
      %v603 = vsub.s32 0, %v602
      %v604 = vrot.slane %v370, %v603
      %v606 = vadd.f32 %v568, %v604
      %v607 = vadd.f32 %v569, %v604
      %v608 = vadd.f32 %v570, %v604
      %v609 = vadd.f32 %v571, %v604
      %v610 = vadd.f32 %v572, %v604
      %v611 = vadd.f32 %v573, %v604
      %v612 = vadd.f32 %v574, %v604
      %v613 = vadd.f32 %v575, %v604
      %v614 = vadd.f32 %v576, %v604
      %v615 = vadd.f32 %v577, %v604
      %v616 = vadd.f32 %v578, %v604
      %v617 = vadd.f32 %v579, %v604
      %v618 = vadd.f32 %v580, %v604
      %v619 = vadd.f32 %v581, %v604
      %v620 = vadd.f32 %v582, %v604
      %v621 = vadd.f32 %v583, %v604
      %v622 = vadd.f32 %v584, %v604
      %v623 = vadd.f32 %v585, %v604
      %v624 = vadd.f32 %v586, %v604
      %v625 = vadd.f32 %v587, %v604
      %v626 = vadd.f32 %v588, %v604
      %v627 = vadd.f32 %v589, %v604
      %v628 = vadd.f32 %v590, %v604
      %v629 = vadd.f32 %v591, %v604
      %v630 = vadd.f32 %v592, %v604
      %v631 = vadd.f32 %v593, %v604
      %v632 = vadd.f32 %v594, %v604
      %v633 = vadd.f32 %v595, %v604
      %v634 = vadd.f32 %v596, %v604
      %v635 = vadd.f32 %v597, %v604
      %v636 = vadd.f32 %v598, %v604
      %v637 = vadd.f32 %v599, %v604
      %v638 = vlaneseq
      %v639 = vshrl.u32 %v638, 7
      %v640 = vsub.s32 0, %v639
      %v641 = vrot.slane %v529, %v640
      %v642 = vmul.f32 %v606, %v641
      %v643 = vmul.f32 %v607, %v641
      %v644 = vmul.f32 %v608, %v641
      %v645 = vmul.f32 %v609, %v641
      %v646 = vmul.f32 %v610, %v641
      %v647 = vmul.f32 %v611, %v641
      %v648 = vmul.f32 %v612, %v641
      %v649 = vmul.f32 %v613, %v641
      %v650 = vmul.f32 %v614, %v641
      %v651 = vmul.f32 %v615, %v641
      %v652 = vmul.f32 %v616, %v641
      %v653 = vmul.f32 %v617, %v641
      %v654 = vmul.f32 %v618, %v641
      %v655 = vmul.f32 %v619, %v641
      %v656 = vmul.f32 %v620, %v641
      %v657 = vmul.f32 %v621, %v641
      %v658 = vmul.f32 %v622, %v641
      %v659 = vmul.f32 %v623, %v641
      %v660 = vmul.f32 %v624, %v641
      %v661 = vmul.f32 %v625, %v641
      %v662 = vmul.f32 %v626, %v641
      %v663 = vmul.f32 %v627, %v641
      %v664 = vmul.f32 %v628, %v641
      %v665 = vmul.f32 %v629, %v641
      %v666 = vmul.f32 %v630, %v641
      %v667 = vmul.f32 %v631, %v641
      %v668 = vmul.f32 %v632, %v641
      %v669 = vmul.f32 %v633, %v641
      %v670 = vmul.f32 %v634, %v641
      %v671 = vmul.f32 %v635, %v641
      %v672 = vmul.f32 %v636, %v641
      %v673 = vmul.f32 %v637, %v641
      %v674 = vld [vmem:[%s360] sm:$0xff]
      %v675 = vld [vmem:[%s360 + $0x8] sm:$0xff]
      %v676 = vld [vmem:[%s360 + $0x10] sm:$0xff]
      %v677 = vld [vmem:[%s360 + $0x18] sm:$0xff]
      %v678 = vld [vmem:[%s360 + $0x20] sm:$0xff]
      %v679 = vld [vmem:[%s360 + $0x28] sm:$0xff]
      %v680 = vld [vmem:[%s360 + $0x30] sm:$0xff]
      %v681 = vld [vmem:[%s360 + $0x38] sm:$0xff]
      %v682 = vld [vmem:[%s360 + $0x40] sm:$0xff]
      %v683 = vld [vmem:[%s360 + $0x48] sm:$0xff]
      %v684 = vld [vmem:[%s360 + $0x50] sm:$0xff]
      %v685 = vld [vmem:[%s360 + $0x58] sm:$0xff]
      %v686 = vld [vmem:[%s360 + $0x60] sm:$0xff]
      %v687 = vld [vmem:[%s360 + $0x68] sm:$0xff]
      %v688 = vld [vmem:[%s360 + $0x70] sm:$0xff]
      %v689 = vld [vmem:[%s360 + $0x78] sm:$0xff]
      %v690 = vld [vmem:[%s360 + $0x80] sm:$0xff]
      %v691 = vld [vmem:[%s360 + $0x88] sm:$0xff]
      %v692 = vld [vmem:[%s360 + $0x90] sm:$0xff]
      %v693 = vld [vmem:[%s360 + $0x98] sm:$0xff]
      %v694 = vld [vmem:[%s360 + $0xa0] sm:$0xff]
      %v695 = vld [vmem:[%s360 + $0xa8] sm:$0xff]
      %v696 = vld [vmem:[%s360 + $0xb0] sm:$0xff]
      %v697 = vld [vmem:[%s360 + $0xb8] sm:$0xff]
      %v698 = vld [vmem:[%s360 + $0xc0] sm:$0xff]
      %v699 = vld [vmem:[%s360 + $0xc8] sm:$0xff]
      %v700 = vld [vmem:[%s360 + $0xd0] sm:$0xff]
      %v701 = vld [vmem:[%s360 + $0xd8] sm:$0xff]
      %v702 = vld [vmem:[%s360 + $0xe0] sm:$0xff]
      %v703 = vld [vmem:[%s360 + $0xe8] sm:$0xff]
      %v704 = vld [vmem:[%s360 + $0xf0] sm:$0xff]
      %v705 = vld [vmem:[%s360 + $0xf8] sm:$0xff]
      %v706 = vadd.f32 %v642, %v674
      %v707 = vadd.f32 %v643, %v675
      %v708 = vadd.f32 %v644, %v676
      %v709 = vadd.f32 %v645, %v677
      %v710 = vadd.f32 %v646, %v678
      %v711 = vadd.f32 %v647, %v679
      %v712 = vadd.f32 %v648, %v680
      %v713 = vadd.f32 %v649, %v681
      %v714 = vadd.f32 %v650, %v682
      %v715 = vadd.f32 %v651, %v683
      %v716 = vadd.f32 %v652, %v684
      %v717 = vadd.f32 %v653, %v685
      %v718 = vadd.f32 %v654, %v686
      %v719 = vadd.f32 %v655, %v687
      %v720 = vadd.f32 %v656, %v688
      %v721 = vadd.f32 %v657, %v689
      %v722 = vadd.f32 %v658, %v690
      %v723 = vadd.f32 %v659, %v691
      %v724 = vadd.f32 %v660, %v692
      %v725 = vadd.f32 %v661, %v693
      %v726 = vadd.f32 %v662, %v694
      %v727 = vadd.f32 %v663, %v695
      %v728 = vadd.f32 %v664, %v696
      %v729 = vadd.f32 %v665, %v697
      %v730 = vadd.f32 %v666, %v698
      %v731 = vadd.f32 %v667, %v699
      %v732 = vadd.f32 %v668, %v700
      %v733 = vadd.f32 %v669, %v701
      %v734 = vadd.f32 %v670, %v702
      %v735 = vadd.f32 %v671, %v703
      %v736 = vadd.f32 %v672, %v704
      %v737 = vadd.f32 %v673, %v705
      %v738 = vmax.f32 %v706, 0.0
      %v739 = vmax.f32 %v707, 0.0
      %v740 = vmax.f32 %v708, 0.0
      %v741 = vmax.f32 %v709, 0.0
      %v742 = vmax.f32 %v710, 0.0
      %v743 = vmax.f32 %v711, 0.0
      %v744 = vmax.f32 %v712, 0.0
      %v745 = vmax.f32 %v713, 0.0
      %v746 = vmax.f32 %v714, 0.0
      %v747 = vmax.f32 %v715, 0.0
      %v748 = vmax.f32 %v716, 0.0
      %v749 = vmax.f32 %v717, 0.0
      %v750 = vmax.f32 %v718, 0.0
      %v751 = vmax.f32 %v719, 0.0
      %v752 = vmax.f32 %v720, 0.0
      %v753 = vmax.f32 %v721, 0.0
      %v754 = vmax.f32 %v722, 0.0
      %v755 = vmax.f32 %v723, 0.0
      %v756 = vmax.f32 %v724, 0.0
      %v757 = vmax.f32 %v725, 0.0
      %v758 = vmax.f32 %v726, 0.0
      %v759 = vmax.f32 %v727, 0.0
      %v760 = vmax.f32 %v728, 0.0
      %v761 = vmax.f32 %v729, 0.0
      %v762 = vmax.f32 %v730, 0.0
      %v763 = vmax.f32 %v731, 0.0
      %v764 = vmax.f32 %v732, 0.0
      %v765 = vmax.f32 %v733, 0.0
      %v766 = vmax.f32 %v734, 0.0
      %v767 = vmax.f32 %v735, 0.0
      %v768 = vmax.f32 %v736, 0.0
      %v769 = vmax.f32 %v737, 0.0
      %770 = vst.msk [vmem:[%s368] sm:$0xff] %vm374, %v738
      %771 = vst.msk [vmem:[%s368 + $0x8] sm:$0xff] %vm374, %v739
      %772 = vst.msk [vmem:[%s368 + $0x10] sm:$0xff] %vm374, %v740
      %773 = vst.msk [vmem:[%s368 + $0x18] sm:$0xff] %vm374, %v741
      %774 = vst.msk [vmem:[%s368 + $0x20] sm:$0xff] %vm374, %v742
      %775 = vst.msk [vmem:[%s368 + $0x28] sm:$0xff] %vm374, %v743
      %776 = vst.msk [vmem:[%s368 + $0x30] sm:$0xff] %vm374, %v744
      %777 = vst.msk [vmem:[%s368 + $0x38] sm:$0xff] %vm374, %v745
      %778 = vst.msk [vmem:[%s368 + $0x40] sm:$0xff] %vm374, %v746
      %779 = vst.msk [vmem:[%s368 + $0x48] sm:$0xff] %vm374, %v747
      %780 = vst.msk [vmem:[%s368 + $0x50] sm:$0xff] %vm374, %v748
      %781 = vst.msk [vmem:[%s368 + $0x58] sm:$0xff] %vm374, %v749
      %782 = vst.msk [vmem:[%s368 + $0x60] sm:$0xff] %vm374, %v750
      %783 = vst.msk [vmem:[%s368 + $0x68] sm:$0xff] %vm374, %v751
      %784 = vst.msk [vmem:[%s368 + $0x70] sm:$0xff] %vm374, %v752
      %785 = vst.msk [vmem:[%s368 + $0x78] sm:$0xff] %vm374, %v753
      %786 = vst.msk [vmem:[%s368 + $0x80] sm:$0xff] %vm374, %v754
      %787 = vst.msk [vmem:[%s368 + $0x88] sm:$0xff] %vm374, %v755
      %788 = vst.msk [vmem:[%s368 + $0x90] sm:$0xff] %vm374, %v756
      %789 = vst.msk [vmem:[%s368 + $0x98] sm:$0xff] %vm374, %v757
      %790 = vst.msk [vmem:[%s368 + $0xa0] sm:$0xff] %vm374, %v758
      %791 = vst.msk [vmem:[%s368 + $0xa8] sm:$0xff] %vm374, %v759
      %792 = vst.msk [vmem:[%s368 + $0xb0] sm:$0xff] %vm374, %v760
      %793 = vst.msk [vmem:[%s368 + $0xb8] sm:$0xff] %vm374, %v761
      %794 = vst.msk [vmem:[%s368 + $0xc0] sm:$0xff] %vm374, %v762
      %795 = vst.msk [vmem:[%s368 + $0xc8] sm:$0xff] %vm374, %v763
      %796 = vst.msk [vmem:[%s368 + $0xd0] sm:$0xff] %vm374, %v764
      %797 = vst.msk [vmem:[%s368 + $0xd8] sm:$0xff] %vm374, %v765
      %798 = vst.msk [vmem:[%s368 + $0xe0] sm:$0xff] %vm374, %v766
      %799 = vst.msk [vmem:[%s368 + $0xe8] sm:$0xff] %vm374, %v767
      %800 = vst.msk [vmem:[%s368 + $0xf0] sm:$0xff] %vm374, %v768
      %801 = vst.msk [vmem:[%s368 + $0xf8] sm:$0xff] %vm374, %v769
      %p802 = scmp.lt.s32.totalorder %s22, 1
      %s803 = scalar_select %p802, %s22, 1
      %s804 = smul.addr %s803, 32
      %s805 = smul.addr %s804, 8
      %s806 = scalar_lea.vmem %s9, %s805
      // Predicated region
      $region57: #{_basic_block_nhwc.5} parent=55 // pred_check
        %p807 = pneg %p244
      $region58: #{_basic_block_nhwc.5} parent=55 // pred_check_branch
        %809 = sbr.rel (%p807) target = $region60
      $region59: #{_basic_block_nhwc.5} parent=55 // pred_region
        _
      $region60: #{_basic_block_nhwc.5} parent=55 // pred_fallthru
        _
    $region56: #{_basic_block_nhwc.5} parent=5 // pred_fallthru
      _
    %p810 = scmp.le.s32.totalorder 2, %s17
    // Predicated region
    $region61: #{_basic_block_nhwc.5} parent=5 // pred_check
      %p811 = pneg %p810
    $region62: #{_basic_block_nhwc.5} parent=5 // pred_check_branch
      %813 = sbr.rel (%p811) target = $region64
    $region63: #{_basic_block_nhwc.5} parent=5 // pred_region
      %s814 = ssub.s32 %s17, 2
      // Predicated region
      $region65: #{_basic_block_nhwc.5} parent=63 // pred_check
        %p815 = pneg %p250
      $region66: #{_basic_block_nhwc.5} parent=63 // pred_check_branch
        %817 = sbr.rel (%p815) target = $region68
      $region67: #{_basic_block_nhwc.5} parent=63 // pred_region
        %p818 = scmp.lt.s32.totalorder %s23, 1
        %s819 = scalar_select %p818, %s23, 1
        %s820 = smul.addr %s819, 32
        %s821 = smul.addr %s820, 8
        %s822 = scalar_lea.vmem %s9, %s821
      $region68: #{_basic_block_nhwc.5} parent=63 // pred_fallthru
        _
    $region64: #{_basic_block_nhwc.5} parent=5 // pred_fallthru
      _
  $region6: #{_basic_block_nhwc.5} parent=0 // loop_footer
    %s21 = sadd.s32 1, %s17
  $region7: #{_basic_block_nhwc.5} parent=0 // loop_footer_branch
    %16 = sbr.rel target = $region3
  $region8: #{_basic_block_nhwc.5} parent=0 // loop_exit
    _

// kernel: _basic_block_nhwc.3
$region0: #{_basic_block_nhwc.3}
  #allocation0 [shape = 'u32[]', space=smem, size = 0x4, offset = 0x4, fixed_abs, tag = 'smem constant byte address 0x4 - core index']
  #allocation1 [shape = 'u32[144,128]{1,0:T(1,128)}', space=vmem, size = 0x12000, scoped, tag = 'internal scratch']
  #allocation2 [shape = 'f32[1,18,18,8]{3,2,1,0:T(8,128)}', space=vmem, size = 0x36000, scoped, tag = 'scratch operand']
  #allocation3 [shape = 'f32[256,8]{1,0:T(8,128)}', space=vmem, size = 0x20000, scoped, tag = 'scratch operand']
  %s0 = inlined_call_operand.vmem [shape: f32[2,16,16,8], index: 0, kind: input, shape index: {}]
  %s1 = inlined_call_operand.vmem [shape: bf16[9,8,8], index: 1, kind: input, shape index: {}]
  %s2 = inlined_call_operand.vmem [shape: f32[2,16,16,8], index: 2, kind: output, shape index: {0}]
  %s3 = inlined_call_operand.vmem [shape: f32[2,1,8], index: 3, kind: output, shape index: {1}]
  %s4 = inlined_call_operand.vmem [shape: f32[2,1,8], index: 4, kind: output, shape index: {2}]
  %5 = xla_tuple %s2, %s3, %s4
  %s6 = sld [smem:[#allocation0]]
  $region57: #{_basic_block_nhwc.3} parent=0
    _
  %s8 = ssub.s32 1, %s6
  %s9 = scalar_select 0, %s8, %s6
  loop: start=0, step=1, limit=4
  $region2: #{_basic_block_nhwc.3} parent=0 // loop_pre_header
    _
  $region3: #{_basic_block_nhwc.3} parent=0 // loop_header
    %s11 = sphi 0, %s15
    %p12 = scmp.ge.s32.totalorder %s11, 4
    %s21 = sphi 0, %s23
    %s24 = sphi 0, %s21
    %s25 = sphi 0, %s24
    %s41 = sphi 0, %s25
    %s45 = sphi 0, %s45
    %s47 = sphi 0, %s45
    %s48 = sphi 0, %s47
    %s62 = sphi 0, %s48
    %s68 = sphi 0, %s70
    %s71 = sphi 0, %s68
    %s72 = sphi 0, %s71
    %s88 = sphi 0, %s72
    %s94 = sphi 0, %s96
    %s97 = sphi 0, %s94
    %s98 = sphi 0, %s97
    %s114 = sphi 0, %s98
    %s120 = sphi 0, %s122
    %s123 = sphi 0, %s120
    %s124 = sphi 0, %s123
    %s140 = sphi 0, %s124
  $region4: #{_basic_block_nhwc.3} parent=0 // loop_header_branch
    %14 = sbr.rel (%p12) target = $region8
  $region5: #{_basic_block_nhwc.3} parent=0 // loop_body
    %s16 = ssub.s32 %s11, 1
    %s17 = ssub.s32 %s11, 2
    %s18 = sadd.s32 %s11, 1
    %s19 = ssub.s32 %s11, %s18
    %p20 = scmp.eq.s32.totalorder %s19, 0
    %s22 = sadd.s32 %s21, 1
    %s23 = scalar_select %p20, %s21, %s22
    %p26 = pneg %p20
    %p27 = scmp.eq.s32.totalorder %s11, 1
    %p28 = por %p26, %p27
    %p29 = scmp.ne.s32.totalorder %s21, %s24
    %p30 = scmp.eq.s32.totalorder %s11, 0
    %p31 = por %p29, %p30
    %p32 = scmp.ne.s32.totalorder %s21, %s24
    %p33 = scmp.eq.s32.totalorder %s16, 1
    %p34 = por %p32, %p33
    %p35 = scmp.ne.s32.totalorder %s24, %s25
    %p36 = scmp.eq.s32.totalorder %s16, 0
    %p37 = por %p35, %p36
    %p38 = scmp.ne.s32.totalorder %s24, %s25
    %p39 = scmp.eq.s32.totalorder %s17, 1
    %p40 = por %p38, %p39
    %p42 = scmp.ne.s32.totalorder %s25, %s41
    %p43 = scmp.eq.s32.totalorder %s17, 0
    %p44 = por %p42, %p43
    %s46 = sadd.s32 %s45, 1
    %p49 = scmp.eq.s32.totalorder %s11, 1
    %p50 = scmp.ne.s32.totalorder %s45, %s47
    %p51 = scmp.eq.s32.totalorder %s11, 0
    %p52 = por %p50, %p51
    %p53 = scmp.ne.s32.totalorder %s45, %s47
    %p54 = scmp.eq.s32.totalorder %s16, 1
    %p55 = por %p53, %p54
    %p56 = scmp.ne.s32.totalorder %s47, %s48
    %p57 = scmp.eq.s32.totalorder %s16, 0
    %p58 = por %p56, %p57
    %p59 = scmp.ne.s32.totalorder %s47, %s48
    %p60 = scmp.eq.s32.totalorder %s17, 1
    %p61 = por %p59, %p60
    %p63 = scmp.ne.s32.totalorder %s48, %s62
    %p64 = scmp.eq.s32.totalorder %s17, 0
    %p65 = por %p63, %p64
    %s66 = ssub.s32 %s11, %s18
    %p67 = scmp.eq.s32.totalorder %s66, 0
    %s69 = sadd.s32 %s68, 1
    %s70 = scalar_select %p67, %s68, %s69
    %p73 = pneg %p67
    %p74 = scmp.eq.s32.totalorder %s11, 1
    %p75 = por %p73, %p74
    %p76 = scmp.ne.s32.totalorder %s68, %s71
    %p77 = scmp.eq.s32.totalorder %s11, 0
    %p78 = por %p76, %p77
    %p79 = scmp.ne.s32.totalorder %s68, %s71
    %p80 = scmp.eq.s32.totalorder %s16, 1
    %p81 = por %p79, %p80
    %p82 = scmp.ne.s32.totalorder %s71, %s72
    %p83 = scmp.eq.s32.totalorder %s16, 0
    %p84 = por %p82, %p83
    %p85 = scmp.ne.s32.totalorder %s71, %s72
    %p86 = scmp.eq.s32.totalorder %s17, 1
    %p87 = por %p85, %p86
    %p89 = scmp.ne.s32.totalorder %s72, %s88
    %p90 = scmp.eq.s32.totalorder %s17, 0
    %p91 = por %p89, %p90
    %s92 = ssub.s32 %s11, %s18
    %p93 = scmp.eq.s32.totalorder %s92, 0
    %s95 = sadd.s32 %s94, 1
    %s96 = scalar_select %p93, %s94, %s95
    %p99 = pneg %p93
    %p100 = scmp.eq.s32.totalorder %s11, 1
    %p101 = por %p99, %p100
    %p102 = scmp.ne.s32.totalorder %s94, %s97
    %p103 = scmp.eq.s32.totalorder %s11, 0
    %p104 = por %p102, %p103
    %p105 = scmp.ne.s32.totalorder %s94, %s97
    %p106 = scmp.eq.s32.totalorder %s16, 1
    %p107 = por %p105, %p106
    %p108 = scmp.ne.s32.totalorder %s97, %s98
    %p109 = scmp.eq.s32.totalorder %s16, 0
    %p110 = por %p108, %p109
    %p111 = scmp.ne.s32.totalorder %s97, %s98
    %p112 = scmp.eq.s32.totalorder %s17, 1
    %p113 = por %p111, %p112
    %p115 = scmp.ne.s32.totalorder %s98, %s114
    %p116 = scmp.eq.s32.totalorder %s17, 0
    %p117 = por %p115, %p116
    %s118 = ssub.s32 %s11, %s18
    %p119 = scmp.eq.s32.totalorder %s118, 0
    %s121 = sadd.s32 %s120, 1
    %s122 = scalar_select %p119, %s120, %s121
    %p125 = pneg %p119
    %p126 = scmp.eq.s32.totalorder %s11, 1
    %p127 = por %p125, %p126
    %p128 = scmp.ne.s32.totalorder %s120, %s123
    %p129 = scmp.eq.s32.totalorder %s11, 0
    %p130 = por %p128, %p129
    %p131 = scmp.ne.s32.totalorder %s120, %s123
    %p132 = scmp.eq.s32.totalorder %s16, 1
    %p133 = por %p131, %p132
    %p134 = scmp.ne.s32.totalorder %s123, %s124
    %p135 = scmp.eq.s32.totalorder %s16, 0
    %p136 = por %p134, %p135
    %p137 = scmp.ne.s32.totalorder %s123, %s124
    %p138 = scmp.eq.s32.totalorder %s17, 1
    %p139 = por %p137, %p138
    %p141 = scmp.ne.s32.totalorder %s124, %s140
    %p142 = scmp.eq.s32.totalorder %s17, 0
    %p143 = por %p141, %p142
    %p144 = scmp.le.s32.totalorder 1, %s11
    %p145 = scmp.lt.s32.totalorder %s11, 3
    %p146 = pnand %p144, %p145
    %p147 = pneg %p146
    // Predicated region
    $region9: #{_basic_block_nhwc.3} parent=5 // pred_check
      _
    $region10: #{_basic_block_nhwc.3} parent=5 // pred_check_branch
      %149 = sbr.rel (%p146) target = $region12
    $region11: #{_basic_block_nhwc.3} parent=5 // pred_region
      %s150 = ssub.s32 %s11, 1
      // Predicated region
      $region13: #{_basic_block_nhwc.3} parent=11 // pred_check
        %p151 = pneg %p58
      $region14: #{_basic_block_nhwc.3} parent=11 // pred_check_branch
        %153 = sbr.rel (%p151) target = $region16
      $region15: #{_basic_block_nhwc.3} parent=11 // pred_region
        _
      $region16: #{_basic_block_nhwc.3} parent=11 // pred_fallthru
        _
    $region12: #{_basic_block_nhwc.3} parent=5 // pred_fallthru
      _
    %p154 = scmp.lt.s32.totalorder %s11, 2
    // Predicated region
    $region17: #{_basic_block_nhwc.3} parent=5 // pred_check
      %p155 = pneg %p154
    $region18: #{_basic_block_nhwc.3} parent=5 // pred_check_branch
      %157 = sbr.rel (%p155) target = $region20
    $region19: #{_basic_block_nhwc.3} parent=5 // pred_region
      // Predicated region
      $region21: #{_basic_block_nhwc.3} parent=19 // pred_check
        %p158 = pneg %p31
      $region22: #{_basic_block_nhwc.3} parent=19 // pred_check_branch
        %160 = sbr.rel (%p158) target = $region24
      $region23: #{_basic_block_nhwc.3} parent=19 // pred_region
        %p161 = scmp.lt.s32.totalorder %s11, 1
        %s162 = scalar_select %p161, %s11, 1
        %s163 = smul.addr %s162, 32
        %s164 = smul.addr %s163, 8
        %s165 = scalar_lea.vmem %s0, %s164
      $region24: #{_basic_block_nhwc.3} parent=19 // pred_fallthru
        _
    $region20: #{_basic_block_nhwc.3} parent=5 // pred_fallthru
      _
    %p166 = scmp.le.s32.totalorder 1, %s11
    %p167 = scmp.lt.s32.totalorder %s11, 3
    %p168 = pnand %p166, %p167
    %p169 = pneg %p168
    // Predicated region
    $region25: #{_basic_block_nhwc.3} parent=5 // pred_check
      _
    $region26: #{_basic_block_nhwc.3} parent=5 // pred_check_branch
      %171 = sbr.rel (%p168) target = $region28
    $region27: #{_basic_block_nhwc.3} parent=5 // pred_region
      %s172 = ssub.s32 %s11, 1
      %p173 = scmp.lt.s32.totalorder %s16, 1
      %s174 = scalar_select %p173, %s16, 1
      %s175 = smul.addr %s174, 32
      %s176 = smul.addr %s175, 8
      %s177 = scalar_lea.vmem %s0, %s176
      %p178 = pneg %p37
      %p179 = pneg %p34
      %p180 = pneg %p58
      %p181 = pneg %p55
      %p182 = pneg %p84
      %p183 = pneg %p81
      %p184 = scmp.lt.s32.totalorder %s16, 1
      %s185 = scalar_select %p184, %s16, 1
      %s186 = smul.addr %s185, 32
      %s187 = smul.addr %s186, 8
      %s188 = scalar_lea.vmem %s2, %s187
      %p189 = pneg %p110
      %p190 = pneg %p107
      %p191 = scmp.lt.s32.totalorder %s16, 1
      %s192 = scalar_select %p191, %s16, 1
      %s193 = scalar_lea.vmem %s3, %s192
      %p194 = pneg %p136
      %p195 = pneg %p133
      %p196 = scmp.lt.s32.totalorder %s16, 1
      %s197 = scalar_select %p196, %s16, 1
      %s198 = scalar_lea.vmem %s4, %s197
      %p199 = scmp.lt.s32.totalorder %s16, 1
      %s200 = scalar_select %p199, %s16, 1
      %s201 = smul.addr %s200, 32
      %s202 = smul.addr %s201, 8
      %s203 = scalar_lea.vmem %s0, %s202
      %p204 = scmp.lt.s32.totalorder %s16, 1
      %s205 = scalar_select %p204, %s16, 1
      %s206 = smul.addr %s205, 32
      %s207 = smul.addr %s206, 8
      %s208 = scalar_lea.vmem %s2, %s207
      %p209 = scmp.lt.s32.totalorder %s16, 1
      %s210 = scalar_select %p209, %s16, 1
      %s211 = scalar_lea.vmem %s3, %s210
      %p212 = scmp.lt.s32.totalorder %s16, 1
      %s213 = scalar_select %p212, %s16, 1
      %s214 = scalar_lea.vmem %s4, %s213
      %vm216 = vcmask 64512
      %217 = vst.msk [vmem:[#allocation2] sm:$0xff] %vm216, 0.0
      %218 = vst.msk [vmem:[#allocation2 + $0x8] sm:$0xff] %vm216, 0.0
      %vm219 = vcmask 58368
      %220 = vst.msk [vmem:[#allocation2 + $0x10] sm:$0x3] %vm219, 0.0
      %s221 = scalar_lea.vmem [#allocation2], 408
      %222 = vst.msk [vmem:[%s221] sm:$0xff] %vm216, 0.0
      %223 = vst.msk [vmem:[%s221 + $0x8] sm:$0xff] %vm216, 0.0
      %224 = vst.msk [vmem:[%s221 + $0x10] sm:$0x3] %vm219, 0.0
      %vm225 = vcmask 57344
      %226 = vst.msk [vmem:[#allocation2] sm:$0x1] %vm225, 0.0
      %227 = vst.msk [vmem:[#allocation2 + $0x18] sm:$0x1] %vm225, 0.0
      %228 = vst.msk [vmem:[#allocation2 + $0x30] sm:$0x1] %vm225, 0.0
      %229 = vst.msk [vmem:[#allocation2 + $0x48] sm:$0x1] %vm225, 0.0
      %230 = vst.msk [vmem:[#allocation2 + $0x60] sm:$0x1] %vm225, 0.0
      %231 = vst.msk [vmem:[#allocation2 + $0x78] sm:$0x1] %vm225, 0.0
      %232 = vst.msk [vmem:[#allocation2 + $0x90] sm:$0x1] %vm225, 0.0
      %233 = vst.msk [vmem:[#allocation2 + $0xa8] sm:$0x1] %vm225, 0.0
      %234 = vst.msk [vmem:[#allocation2 + $0xc0] sm:$0x1] %vm225, 0.0
      %235 = vst.msk [vmem:[#allocation2 + $0xd8] sm:$0x1] %vm225, 0.0
      %236 = vst.msk [vmem:[#allocation2 + $0xf0] sm:$0x1] %vm225, 0.0
      %237 = vst.msk [vmem:[#allocation2 + $0x108] sm:$0x1] %vm225, 0.0
      %238 = vst.msk [vmem:[#allocation2 + $0x120] sm:$0x1] %vm225, 0.0
      %239 = vst.msk [vmem:[#allocation2 + $0x138] sm:$0x1] %vm225, 0.0
      %240 = vst.msk [vmem:[#allocation2 + $0x150] sm:$0x1] %vm225, 0.0
      %241 = vst.msk [vmem:[#allocation2 + $0x168] sm:$0x1] %vm225, 0.0
      %242 = vst.msk [vmem:[#allocation2 + $0x180] sm:$0x1] %vm225, 0.0
      %243 = vst.msk [vmem:[#allocation2 + $0x198] sm:$0x1] %vm225, 0.0
      %244 = vst.msk [vmem:[#allocation2 + $0x11] sm:$0x1] %vm225, 0.0
      %245 = vst.msk [vmem:[#allocation2 + $0x29] sm:$0x1] %vm225, 0.0
      %246 = vst.msk [vmem:[#allocation2 + $0x41] sm:$0x1] %vm225, 0.0
      %247 = vst.msk [vmem:[#allocation2 + $0x59] sm:$0x1] %vm225, 0.0
      %248 = vst.msk [vmem:[#allocation2 + $0x71] sm:$0x1] %vm225, 0.0
      %249 = vst.msk [vmem:[#allocation2 + $0x89] sm:$0x1] %vm225, 0.0
      %250 = vst.msk [vmem:[#allocation2 + $0xa1] sm:$0x1] %vm225, 0.0
      %251 = vst.msk [vmem:[#allocation2 + $0xb9] sm:$0x1] %vm225, 0.0
      %252 = vst.msk [vmem:[#allocation2 + $0xd1] sm:$0x1] %vm225, 0.0
      %253 = vst.msk [vmem:[#allocation2 + $0xe9] sm:$0x1] %vm225, 0.0
      %254 = vst.msk [vmem:[#allocation2 + $0x101] sm:$0x1] %vm225, 0.0
      %255 = vst.msk [vmem:[#allocation2 + $0x119] sm:$0x1] %vm225, 0.0
      %256 = vst.msk [vmem:[#allocation2 + $0x131] sm:$0x1] %vm225, 0.0
      %257 = vst.msk [vmem:[#allocation2 + $0x149] sm:$0x1] %vm225, 0.0
      %258 = vst.msk [vmem:[#allocation2 + $0x161] sm:$0x1] %vm225, 0.0
      %259 = vst.msk [vmem:[#allocation2 + $0x179] sm:$0x1] %vm225, 0.0
      %260 = vst.msk [vmem:[#allocation2 + $0x191] sm:$0x1] %vm225, 0.0
      %261 = vst.msk [vmem:[#allocation2 + $0x1a9] sm:$0x1] %vm225, 0.0
      %v262 = vld [vmem:[%s203] sm:$0xff]
      %v263 = vld [vmem:[%s203 + $0x8] sm:$0xff]
      %v264 = vld [vmem:[%s203 + $0x10] sm:$0xff]
      %v265 = vld [vmem:[%s203 + $0x18] sm:$0xff]
      %v266 = vld [vmem:[%s203 + $0x20] sm:$0xff]
      %v267 = vld [vmem:[%s203 + $0x28] sm:$0xff]
      %v268 = vld [vmem:[%s203 + $0x30] sm:$0xff]
      %v269 = vld [vmem:[%s203 + $0x38] sm:$0xff]
      %v270 = vld [vmem:[%s203 + $0x40] sm:$0xff]
      %v271 = vld [vmem:[%s203 + $0x48] sm:$0xff]
      %v272 = vld [vmem:[%s203 + $0x50] sm:$0xff]
      %v273 = vld [vmem:[%s203 + $0x58] sm:$0xff]
      %v274 = vld [vmem:[%s203 + $0x60] sm:$0xff]
      %v275 = vld [vmem:[%s203 + $0x68] sm:$0xff]
      %v276 = vld [vmem:[%s203 + $0x70] sm:$0xff]
      %v277 = vld [vmem:[%s203 + $0x78] sm:$0xff]
      %v278 = vld [vmem:[%s203 + $0x80] sm:$0xff]
      %v279 = vld [vmem:[%s203 + $0x88] sm:$0xff]
      %v280 = vld [vmem:[%s203 + $0x90] sm:$0xff]
      %v281 = vld [vmem:[%s203 + $0x98] sm:$0xff]
      %v282 = vld [vmem:[%s203 + $0xa0] sm:$0xff]
      %v283 = vld [vmem:[%s203 + $0xa8] sm:$0xff]
      %v284 = vld [vmem:[%s203 + $0xb0] sm:$0xff]
      %v285 = vld [vmem:[%s203 + $0xb8] sm:$0xff]
      %v286 = vld [vmem:[%s203 + $0xc0] sm:$0xff]
      %v287 = vld [vmem:[%s203 + $0xc8] sm:$0xff]
      %v288 = vld [vmem:[%s203 + $0xd0] sm:$0xff]
      %v289 = vld [vmem:[%s203 + $0xd8] sm:$0xff]
      %v290 = vld [vmem:[%s203 + $0xe0] sm:$0xff]
      %v291 = vld [vmem:[%s203 + $0xe8] sm:$0xff]
      %v292 = vld [vmem:[%s203 + $0xf0] sm:$0xff]
      %v293 = vld [vmem:[%s203 + $0xf8] sm:$0xff]
      %s294 = scalar_lea.vmem [#allocation2], 24
      %295 = vst.msk [vmem:[%s294 + $0x1] sm:$0xff] %vm216, %v262
      %296 = vst.msk [vmem:[%s294 + $0x9] sm:$0xff] %vm216, %v263
      %297 = vst.msk [vmem:[%s294 + $0x19] sm:$0xff] %vm216, %v264
      %298 = vst.msk [vmem:[%s294 + $0x21] sm:$0xff] %vm216, %v265
      %299 = vst.msk [vmem:[%s294 + $0x31] sm:$0xff] %vm216, %v266
      %300 = vst.msk [vmem:[%s294 + $0x39] sm:$0xff] %vm216, %v267
      %301 = vst.msk [vmem:[%s294 + $0x49] sm:$0xff] %vm216, %v268
      %302 = vst.msk [vmem:[%s294 + $0x51] sm:$0xff] %vm216, %v269
      %303 = vst.msk [vmem:[%s294 + $0x61] sm:$0xff] %vm216, %v270
      %304 = vst.msk [vmem:[%s294 + $0x69] sm:$0xff] %vm216, %v271
      %305 = vst.msk [vmem:[%s294 + $0x79] sm:$0xff] %vm216, %v272
      %306 = vst.msk [vmem:[%s294 + $0x81] sm:$0xff] %vm216, %v273
      %307 = vst.msk [vmem:[%s294 + $0x91] sm:$0xff] %vm216, %v274
      %308 = vst.msk [vmem:[%s294 + $0x99] sm:$0xff] %vm216, %v275
      %309 = vst.msk [vmem:[%s294 + $0xa9] sm:$0xff] %vm216, %v276
      %310 = vst.msk [vmem:[%s294 + $0xb1] sm:$0xff] %vm216, %v277
      %311 = vst.msk [vmem:[%s294 + $0xc1] sm:$0xff] %vm216, %v278
      %312 = vst.msk [vmem:[%s294 + $0xc9] sm:$0xff] %vm216, %v279
      %313 = vst.msk [vmem:[%s294 + $0xd9] sm:$0xff] %vm216, %v280
      %314 = vst.msk [vmem:[%s294 + $0xe1] sm:$0xff] %vm216, %v281
      %315 = vst.msk [vmem:[%s294 + $0xf1] sm:$0xff] %vm216, %v282
      %316 = vst.msk [vmem:[%s294 + $0xf9] sm:$0xff] %vm216, %v283
      %317 = vst.msk [vmem:[%s294 + $0x109] sm:$0xff] %vm216, %v284
      %318 = vst.msk [vmem:[%s294 + $0x111] sm:$0xff] %vm216, %v285
      %319 = vst.msk [vmem:[%s294 + $0x121] sm:$0xff] %vm216, %v286
      %320 = vst.msk [vmem:[%s294 + $0x129] sm:$0xff] %vm216, %v287
      %321 = vst.msk [vmem:[%s294 + $0x139] sm:$0xff] %vm216, %v288
      %322 = vst.msk [vmem:[%s294 + $0x141] sm:$0xff] %vm216, %v289
      %323 = vst.msk [vmem:[%s294 + $0x151] sm:$0xff] %vm216, %v290
      %324 = vst.msk [vmem:[%s294 + $0x159] sm:$0xff] %vm216, %v291
      %325 = vst.msk [vmem:[%s294 + $0x169] sm:$0xff] %vm216, %v292
      %326 = vst.msk [vmem:[%s294 + $0x171] sm:$0xff] %vm216, %v293
      %327 = vst.msk [vmem:[#allocation3] sm:$0xff] %vm216, 0.0
      %328 = vst.msk [vmem:[#allocation3 + $0x8] sm:$0xff] %vm216, 0.0
      %329 = vst.msk [vmem:[#allocation3 + $0x10] sm:$0xff] %vm216, 0.0
      %330 = vst.msk [vmem:[#allocation3 + $0x18] sm:$0xff] %vm216, 0.0
      %331 = vst.msk [vmem:[#allocation3 + $0x20] sm:$0xff] %vm216, 0.0
      %332 = vst.msk [vmem:[#allocation3 + $0x28] sm:$0xff] %vm216, 0.0
      %333 = vst.msk [vmem:[#allocation3 + $0x30] sm:$0xff] %vm216, 0.0
      %334 = vst.msk [vmem:[#allocation3 + $0x38] sm:$0xff] %vm216, 0.0
      %335 = vst.msk [vmem:[#allocation3 + $0x40] sm:$0xff] %vm216, 0.0
      %336 = vst.msk [vmem:[#allocation3 + $0x48] sm:$0xff] %vm216, 0.0
      %337 = vst.msk [vmem:[#allocation3 + $0x50] sm:$0xff] %vm216, 0.0
      %338 = vst.msk [vmem:[#allocation3 + $0x58] sm:$0xff] %vm216, 0.0
      %339 = vst.msk [vmem:[#allocation3 + $0x60] sm:$0xff] %vm216, 0.0
      %340 = vst.msk [vmem:[#allocation3 + $0x68] sm:$0xff] %vm216, 0.0
      %341 = vst.msk [vmem:[#allocation3 + $0x70] sm:$0xff] %vm216, 0.0
      %342 = vst.msk [vmem:[#allocation3 + $0x78] sm:$0xff] %vm216, 0.0
      %343 = vst.msk [vmem:[#allocation3 + $0x80] sm:$0xff] %vm216, 0.0
      %344 = vst.msk [vmem:[#allocation3 + $0x88] sm:$0xff] %vm216, 0.0
      %345 = vst.msk [vmem:[#allocation3 + $0x90] sm:$0xff] %vm216, 0.0
      %346 = vst.msk [vmem:[#allocation3 + $0x98] sm:$0xff] %vm216, 0.0
      %347 = vst.msk [vmem:[#allocation3 + $0xa0] sm:$0xff] %vm216, 0.0
      %348 = vst.msk [vmem:[#allocation3 + $0xa8] sm:$0xff] %vm216, 0.0
      %349 = vst.msk [vmem:[#allocation3 + $0xb0] sm:$0xff] %vm216, 0.0
      %350 = vst.msk [vmem:[#allocation3 + $0xb8] sm:$0xff] %vm216, 0.0
      %351 = vst.msk [vmem:[#allocation3 + $0xc0] sm:$0xff] %vm216, 0.0
      %352 = vst.msk [vmem:[#allocation3 + $0xc8] sm:$0xff] %vm216, 0.0
      %353 = vst.msk [vmem:[#allocation3 + $0xd0] sm:$0xff] %vm216, 0.0
      %354 = vst.msk [vmem:[#allocation3 + $0xd8] sm:$0xff] %vm216, 0.0
      %355 = vst.msk [vmem:[#allocation3 + $0xe0] sm:$0xff] %vm216, 0.0
      %356 = vst.msk [vmem:[#allocation3 + $0xe8] sm:$0xff] %vm216, 0.0
      %357 = vst.msk [vmem:[#allocation3 + $0xf0] sm:$0xff] %vm216, 0.0
      %358 = vst.msk [vmem:[#allocation3 + $0xf8] sm:$0xff] %vm216, 0.0
      %v359 = vld [vmem:[#allocation2] sm:$0xff]
      %v360 = vld [vmem:[#allocation2 + $0x8] sm:$0xff]
      %v361 = vld [vmem:[#allocation2 + $0x18] sm:$0xff]
      %v362 = vld [vmem:[#allocation2 + $0x20] sm:$0xff]
      %v363 = vld [vmem:[#allocation2 + $0x30] sm:$0xff]
      %v364 = vld [vmem:[#allocation2 + $0x38] sm:$0xff]
      %v365 = vld [vmem:[#allocation2 + $0x48] sm:$0xff]
      %v366 = vld [vmem:[#allocation2 + $0x50] sm:$0xff]
      %v367 = vld [vmem:[#allocation2 + $0x60] sm:$0xff]
      %v368 = vld [vmem:[#allocation2 + $0x68] sm:$0xff]
      %v369 = vld [vmem:[#allocation2 + $0x78] sm:$0xff]
      %v370 = vld [vmem:[#allocation2 + $0x80] sm:$0xff]
      %v371 = vld [vmem:[#allocation2 + $0x90] sm:$0xff]
      %v372 = vld [vmem:[#allocation2 + $0x98] sm:$0xff]
      %v373 = vld [vmem:[#allocation2 + $0xa8] sm:$0xff]
      %v374 = vld [vmem:[#allocation2 + $0xb0] sm:$0xff]
      %v375 = vld [vmem:[#allocation2 + $0xc0] sm:$0xff]
      %v376 = vld [vmem:[#allocation2 + $0xc8] sm:$0xff]
      %v377 = vld [vmem:[#allocation2 + $0xd8] sm:$0xff]
      %v378 = vld [vmem:[#allocation2 + $0xe0] sm:$0xff]
      %v379 = vld [vmem:[#allocation2 + $0xf0] sm:$0xff]
      %v380 = vld [vmem:[#allocation2 + $0xf8] sm:$0xff]
      %v381 = vld [vmem:[#allocation2 + $0x108] sm:$0xff]
      %v382 = vld [vmem:[#allocation2 + $0x110] sm:$0xff]
      %v383 = vld [vmem:[#allocation2 + $0x120] sm:$0xff]
      %v384 = vld [vmem:[#allocation2 + $0x128] sm:$0xff]
      %v385 = vld [vmem:[#allocation2 + $0x138] sm:$0xff]
      %v386 = vld [vmem:[#allocation2 + $0x140] sm:$0xff]
      %v387 = vld [vmem:[#allocation2 + $0x150] sm:$0xff]
      %v388 = vld [vmem:[#allocation2 + $0x158] sm:$0xff]
      %v389 = vld [vmem:[#allocation2 + $0x168] sm:$0xff]
      %v390 = vld [vmem:[#allocation2 + $0x170] sm:$0xff]
      %v391 = vpack.c.bf16 %v360, %v359
      %v392 = vpack.c.bf16 %v362, %v361
      %v393 = vpack.c.bf16 %v364, %v363
      %v394 = vpack.c.bf16 %v366, %v365
      %v395 = vpack.c.bf16 %v368, %v367
      %v396 = vpack.c.bf16 %v370, %v369
      %v397 = vpack.c.bf16 %v372, %v371
      %v398 = vpack.c.bf16 %v374, %v373
      %v399 = vpack.c.bf16 %v376, %v375
      %v400 = vpack.c.bf16 %v378, %v377
      %v401 = vpack.c.bf16 %v380, %v379
      %v402 = vpack.c.bf16 %v382, %v381
      %v403 = vpack.c.bf16 %v384, %v383
      %v404 = vpack.c.bf16 %v386, %v385
      %v405 = vpack.c.bf16 %v388, %v387
      %v406 = vpack.c.bf16 %v390, %v389
      %v407 = vld [vmem:[#allocation3] sm:$0xff]
      %v408 = vld [vmem:[#allocation3 + $0x8] sm:$0xff]
      %v409 = vld [vmem:[#allocation3 + $0x10] sm:$0xff]
      %v410 = vld [vmem:[#allocation3 + $0x18] sm:$0xff]
      %v411 = vld [vmem:[#allocation3 + $0x20] sm:$0xff]
      %v412 = vld [vmem:[#allocation3 + $0x28] sm:$0xff]
      %v413 = vld [vmem:[#allocation3 + $0x30] sm:$0xff]
      %v414 = vld [vmem:[#allocation3 + $0x38] sm:$0xff]
      %v415 = vld [vmem:[#allocation3 + $0x40] sm:$0xff]
      %v416 = vld [vmem:[#allocation3 + $0x48] sm:$0xff]
      %v417 = vld [vmem:[#allocation3 + $0x50] sm:$0xff]
      %v418 = vld [vmem:[#allocation3 + $0x58] sm:$0xff]
      %v419 = vld [vmem:[#allocation3 + $0x60] sm:$0xff]
      %v420 = vld [vmem:[#allocation3 + $0x68] sm:$0xff]
      %v421 = vld [vmem:[#allocation3 + $0x70] sm:$0xff]
      %v422 = vld [vmem:[#allocation3 + $0x78] sm:$0xff]
      %v423 = vld [vmem:[#allocation3 + $0x80] sm:$0xff]
      %v424 = vld [vmem:[#allocation3 + $0x88] sm:$0xff]
      %v425 = vld [vmem:[#allocation3 + $0x90] sm:$0xff]
      %v426 = vld [vmem:[#allocation3 + $0x98] sm:$0xff]
      %v427 = vld [vmem:[#allocation3 + $0xa0] sm:$0xff]
      %v428 = vld [vmem:[#allocation3 + $0xa8] sm:$0xff]
      %v429 = vld [vmem:[#allocation3 + $0xb0] sm:$0xff]
      %v430 = vld [vmem:[#allocation3 + $0xb8] sm:$0xff]
      %v431 = vld [vmem:[#allocation3 + $0xc0] sm:$0xff]
      %v432 = vld [vmem:[#allocation3 + $0xc8] sm:$0xff]
      %v433 = vld [vmem:[#allocation3 + $0xd0] sm:$0xff]
      %v434 = vld [vmem:[#allocation3 + $0xd8] sm:$0xff]
      %v435 = vld [vmem:[#allocation3 + $0xe0] sm:$0xff]
      %v436 = vld [vmem:[#allocation3 + $0xe8] sm:$0xff]
      %v437 = vld [vmem:[#allocation3 + $0xf0] sm:$0xff]
      %v438 = vld [vmem:[#allocation3 + $0xf8] sm:$0xff]
      %v439 = vld [vmem:[%s1] sm:$0xf]
      %v441 = vsel %vm216, %v391, 0
      %v444 = vsel %vm216, %v392, 0
      %v447 = vsel %vm216, %v393, 0
      %v450 = vsel %vm216, %v394, 0
      %v453 = vsel %vm216, %v395, 0
      %v456 = vsel %vm216, %v396, 0
      %v459 = vsel %vm216, %v397, 0
      %v462 = vsel %vm216, %v398, 0
      %v465 = vsel %vm216, %v399, 0
      %v468 = vsel %vm216, %v400, 0
      %v471 = vsel %vm216, %v401, 0
      %v474 = vsel %vm216, %v402, 0
      %v477 = vsel %vm216, %v403, 0
      %v480 = vsel %vm216, %v404, 0
      %v483 = vsel %vm216, %v405, 0
      %v486 = vsel %vm216, %v406, 0
      %vm488 = vcmask 1043456
      %v490 = vsel %vm488, %v439, 0
      %492 = vmatprep.subr.bf16.mxu0 0
      %493 = vmatpush1.bf16.msra.mxu0 %v490
      %494 = vmatprep.subr.bf16.mxu0 0
      %495 = vmatpush1.bf16.msra.mxu0 0
      %496 = vmatprep.subr.bf16.mxu0 0
      %497 = vmatpush1.bf16.msra.mxu0 0
      %498 = vmatprep.subr.bf16.mxu0 0
      %499 = vmatpush1.bf16.msra.mxu0 0
      %500 = vmatprep.subr.bf16.mxu0 0
      %501 = vmatpush1.bf16.msra.mxu0 0
      %502 = vmatprep.subr.bf16.mxu0 0
      %503 = vmatpush1.bf16.msra.mxu0 0
      %504 = vmatprep.subr.bf16.mxu0 0
      %505 = vmatpush1.bf16.msra.mxu0 0
      %506 = vmatprep.subr.bf16.mxu0 0
      %507 = vmatpush1.bf16.msra.mxu0 0
      %508 = vmatprep.subr.bf16.mxu0 0
      %509 = vmatpush1.bf16.msra.mxu0 0
      %510 = vmatprep.subr.bf16.mxu0 0
      %511 = vmatpush1.bf16.msra.mxu0 0
      %512 = vmatprep.subr.bf16.mxu0 0
      %513 = vmatpush1.bf16.msra.mxu0 0
      %514 = vmatprep.subr.bf16.mxu0 0
      %515 = vmatpush1.bf16.msra.mxu0 0
      %516 = vmatprep.subr.bf16.mxu0 0
      %517 = vmatpush1.bf16.msra.mxu0 0
      %518 = vmatprep.subr.bf16.mxu0 0
      %519 = vmatpush1.bf16.msra.mxu0 0
      %520 = vmatprep.subr.bf16.mxu0 0
      %521 = vmatpush1.bf16.msra.mxu0 0
      %522 = vmatprep.subr.bf16.mxu0 0
      %523 = vmatpush1.bf16.msra.mxu0 0
      %524 = vmatprep.mubr.bf16.mxu0 0
      %525 = vmatmul.mubr.bf16.gmra.mrb[0].mxu0 %v441
      %v526 = vpop.f32.mrb[0].mxu0
      %v527 = vadd.f32 0.0, %v526
      %v528 = vpop.f32.mrb[0].mxu0
      %v529 = vpop.f32.mrb[0].mxu0
      %v530 = vadd.f32 0.0, %v529
      %v531 = vpop.f32.mrb[0].mxu0
      %532 = vmatprep.mubr.bf16.mxu0 0
      %533 = vmatmul.mubr.bf16.gmra.mrb[0].mxu0 %v444
      %v534 = vpop.f32.mrb[0].mxu0
      %v535 = vadd.f32 0.0, %v534
      %v536 = vpop.f32.mrb[0].mxu0
      %v537 = vpop.f32.mrb[0].mxu0
      %v538 = vadd.f32 0.0, %v537
      %v539 = vpop.f32.mrb[0].mxu0
      %540 = vmatprep.mubr.bf16.mxu0 0
      %541 = vmatmul.mubr.bf16.gmra.mrb[0].mxu0 %v447
      %v542 = vpop.f32.mrb[0].mxu0
      %v543 = vadd.f32 0.0, %v542
      %v544 = vpop.f32.mrb[0].mxu0
      %v545 = vpop.f32.mrb[0].mxu0
      %v546 = vadd.f32 0.0, %v545
      %v547 = vpop.f32.mrb[0].mxu0
      %548 = vmatprep.mubr.bf16.mxu0 0
      %549 = vmatmul.mubr.bf16.gmra.mrb[0].mxu0 %v450
      %v550 = vpop.f32.mrb[0].mxu0
      %v551 = vadd.f32 0.0, %v550
      %v552 = vpop.f32.mrb[0].mxu0
      %v553 = vpop.f32.mrb[0].mxu0
      %v554 = vadd.f32 0.0, %v553
      %v555 = vpop.f32.mrb[0].mxu0
      %556 = vmatprep.mubr.bf16.mxu0 0
      %557 = vmatmul.mubr.bf16.gmra.mrb[0].mxu0 %v453
      %v558 = vpop.f32.mrb[0].mxu0
      %v559 = vadd.f32 0.0, %v558
      %v560 = vpop.f32.mrb[0].mxu0
      %v561 = vpop.f32.mrb[0].mxu0
      %v562 = vadd.f32 0.0, %v561
      %v563 = vpop.f32.mrb[0].mxu0
      %564 = vmatprep.mubr.bf16.mxu0 0
      %565 = vmatmul.mubr.bf16.gmra.mrb[0].mxu0 %v456
      %v566 = vpop.f32.mrb[0].mxu0
      %v567 = vadd.f32 0.0, %v566
      %v568 = vpop.f32.mrb[0].mxu0
      %v569 = vpop.f32.mrb[0].mxu0
      %v570 = vadd.f32 0.0, %v569
      %v571 = vpop.f32.mrb[0].mxu0
      %572 = vmatprep.mubr.bf16.mxu0 0
      %573 = vmatmul.mubr.bf16.gmra.mrb[0].mxu0 %v459
      %v574 = vpop.f32.mrb[0].mxu0
      %v575 = vadd.f32 0.0, %v574
      %v576 = vpop.f32.mrb[0].mxu0
      %v577 = vpop.f32.mrb[0].mxu0
      %v578 = vadd.f32 0.0, %v577
      %v579 = vpop.f32.mrb[0].mxu0
      %580 = vmatprep.mubr.bf16.mxu0 0
      %581 = vmatmul.mubr.bf16.gmra.mrb[0].mxu0 %v462
      %v582 = vpop.f32.mrb[0].mxu0
      %v583 = vadd.f32 0.0, %v582
      %v584 = vpop.f32.mrb[0].mxu0
      %v585 = vpop.f32.mrb[0].mxu0
      %v586 = vadd.f32 0.0, %v585
      %v587 = vpop.f32.mrb[0].mxu0
      %588 = vmatprep.mubr.bf16.mxu0 0
      %589 = vmatmul.mubr.bf16.gmra.mrb[0].mxu0 %v465
      %v590 = vpop.f32.mrb[0].mxu0
      %v591 = vadd.f32 0.0, %v590
      %v592 = vpop.f32.mrb[0].mxu0
      %v593 = vpop.f32.mrb[0].mxu0
      %v594 = vadd.f32 0.0, %v593
      %v595 = vpop.f32.mrb[0].mxu0
      %596 = vmatprep.mubr.bf16.mxu0 0
      %597 = vmatmul.mubr.bf16.gmra.mrb[0].mxu0 %v468
      %v598 = vpop.f32.mrb[0].mxu0
      %v599 = vadd.f32 0.0, %v598
      %v600 = vpop.f32.mrb[0].mxu0
      %v601 = vpop.f32.mrb[0].mxu0
      %v602 = vadd.f32 0.0, %v601
      %v603 = vpop.f32.mrb[0].mxu0
      %604 = vmatprep.mubr.bf16.mxu0 0
      %605 = vmatmul.mubr.bf16.gmra.mrb[0].mxu0 %v471
      %v606 = vpop.f32.mrb[0].mxu0
      %v607 = vadd.f32 0.0, %v606
      %v608 = vpop.f32.mrb[0].mxu0
      %v609 = vpop.f32.mrb[0].mxu0
      %v610 = vadd.f32 0.0, %v609
      %v611 = vpop.f32.mrb[0].mxu0
      %612 = vmatprep.mubr.bf16.mxu0 0
      %613 = vmatmul.mubr.bf16.gmra.mrb[0].mxu0 %v474
      %v614 = vpop.f32.mrb[0].mxu0
      %v615 = vadd.f32 0.0, %v614
      %v616 = vpop.f32.mrb[0].mxu0
      %v617 = vpop.f32.mrb[0].mxu0
      %v618 = vadd.f32 0.0, %v617
      %v619 = vpop.f32.mrb[0].mxu0
      %620 = vmatprep.mubr.bf16.mxu0 0
      %621 = vmatmul.mubr.bf16.gmra.mrb[0].mxu0 %v477
      %v622 = vpop.f32.mrb[0].mxu0
      %v623 = vadd.f32 0.0, %v622
      %v624 = vpop.f32.mrb[0].mxu0
      %v625 = vpop.f32.mrb[0].mxu0
      %v626 = vadd.f32 0.0, %v625
      %v627 = vpop.f32.mrb[0].mxu0
      %628 = vmatprep.mubr.bf16.mxu0 0
      %629 = vmatmul.mubr.bf16.gmra.mrb[0].mxu0 %v480
      %v630 = vpop.f32.mrb[0].mxu0
      %v631 = vadd.f32 0.0, %v630
      %v632 = vpop.f32.mrb[0].mxu0
      %v633 = vpop.f32.mrb[0].mxu0
      %v634 = vadd.f32 0.0, %v633
      %v635 = vpop.f32.mrb[0].mxu0
      %636 = vmatprep.mubr.bf16.mxu0 0
      %637 = vmatmul.mubr.bf16.gmra.mrb[0].mxu0 %v483
      %v638 = vpop.f32.mrb[0].mxu0
      %v639 = vadd.f32 0.0, %v638
      %v640 = vpop.f32.mrb[0].mxu0
      %v641 = vpop.f32.mrb[0].mxu0
      %v642 = vadd.f32 0.0, %v641
      %v643 = vpop.f32.mrb[0].mxu0
      %644 = vmatprep.mubr.bf16.mxu0 0
      %645 = vmatmul.mubr.bf16.gmra.mrb[0].mxu0 %v486
      %v646 = vpop.f32.mrb[0].mxu0
      %v647 = vadd.f32 0.0, %v646
      %v648 = vpop.f32.mrb[0].mxu0
      %v649 = vpop.f32.mrb[0].mxu0
      %v650 = vadd.f32 0.0, %v649
      %v651 = vpop.f32.mrb[0].mxu0
      %652 = vdwg.mxu0
      %v653 = vadd.f32 %v407, %v527
      %v654 = vadd.f32 %v408, %v530
      %v655 = vadd.f32 %v409, %v535
      %v656 = vadd.f32 %v410, %v538
      %v657 = vadd.f32 %v411, %v543
      %v658 = vadd.f32 %v412, %v546
      %v659 = vadd.f32 %v413, %v551
      %v660 = vadd.f32 %v414, %v554
      %v661 = vadd.f32 %v415, %v559
      %v662 = vadd.f32 %v416, %v562
      %v663 = vadd.f32 %v417, %v567
      %v664 = vadd.f32 %v418, %v570
      %v665 = vadd.f32 %v419, %v575
      %v666 = vadd.f32 %v420, %v578
      %v667 = vadd.f32 %v421, %v583
      %v668 = vadd.f32 %v422, %v586
      %v669 = vadd.f32 %v423, %v591
      %v670 = vadd.f32 %v424, %v594
      %v671 = vadd.f32 %v425, %v599
      %v672 = vadd.f32 %v426, %v602
      %v673 = vadd.f32 %v427, %v607
      %v674 = vadd.f32 %v428, %v610
      %v675 = vadd.f32 %v429, %v615
      %v676 = vadd.f32 %v430, %v618
      %v677 = vadd.f32 %v431, %v623
      %v678 = vadd.f32 %v432, %v626
      %v679 = vadd.f32 %v433, %v631
      %v680 = vadd.f32 %v434, %v634
      %v681 = vadd.f32 %v435, %v639
      %v682 = vadd.f32 %v436, %v642
      %v683 = vadd.f32 %v437, %v647
      %v684 = vadd.f32 %v438, %v650
      %685 = vst.msk [vmem:[#allocation3] sm:$0xff] %vm216, %v653
      %686 = vst.msk [vmem:[#allocation3 + $0x8] sm:$0xff] %vm216, %v654
      %687 = vst.msk [vmem:[#allocation3 + $0x10] sm:$0xff] %vm216, %v655
      %688 = vst.msk [vmem:[#allocation3 + $0x18] sm:$0xff] %vm216, %v656
      %689 = vst.msk [vmem:[#allocation3 + $0x20] sm:$0xff] %vm216, %v657
      %690 = vst.msk [vmem:[#allocation3 + $0x28] sm:$0xff] %vm216, %v658
      %691 = vst.msk [vmem:[#allocation3 + $0x30] sm:$0xff] %vm216, %v659
      %692 = vst.msk [vmem:[#allocation3 + $0x38] sm:$0xff] %vm216, %v660
      %693 = vst.msk [vmem:[#allocation3 + $0x40] sm:$0xff] %vm216, %v661
      %694 = vst.msk [vmem:[#allocation3 + $0x48] sm:$0xff] %vm216, %v662
      %695 = vst.msk [vmem:[#allocation3 + $0x50] sm:$0xff] %vm216, %v663
      %696 = vst.msk [vmem:[#allocation3 + $0x58] sm:$0xff] %vm216, %v664
      %697 = vst.msk [vmem:[#allocation3 + $0x60] sm:$0xff] %vm216, %v665
      %698 = vst.msk [vmem:[#allocation3 + $0x68] sm:$0xff] %vm216, %v666
      %699 = vst.msk [vmem:[#allocation3 + $0x70] sm:$0xff] %vm216, %v667
      %700 = vst.msk [vmem:[#allocation3 + $0x78] sm:$0xff] %vm216, %v668
      %701 = vst.msk [vmem:[#allocation3 + $0x80] sm:$0xff] %vm216, %v669
      %702 = vst.msk [vmem:[#allocation3 + $0x88] sm:$0xff] %vm216, %v670
      %703 = vst.msk [vmem:[#allocation3 + $0x90] sm:$0xff] %vm216, %v671
      %704 = vst.msk [vmem:[#allocation3 + $0x98] sm:$0xff] %vm216, %v672
      %705 = vst.msk [vmem:[#allocation3 + $0xa0] sm:$0xff] %vm216, %v673
      %706 = vst.msk [vmem:[#allocation3 + $0xa8] sm:$0xff] %vm216, %v674
      %707 = vst.msk [vmem:[#allocation3 + $0xb0] sm:$0xff] %vm216, %v675
      %708 = vst.msk [vmem:[#allocation3 + $0xb8] sm:$0xff] %vm216, %v676
      %709 = vst.msk [vmem:[#allocation3 + $0xc0] sm:$0xff] %vm216, %v677
      %710 = vst.msk [vmem:[#allocation3 + $0xc8] sm:$0xff] %vm216, %v678
      %711 = vst.msk [vmem:[#allocation3 + $0xd0] sm:$0xff] %vm216, %v679
      %712 = vst.msk [vmem:[#allocation3 + $0xd8] sm:$0xff] %vm216, %v680
      %713 = vst.msk [vmem:[#allocation3 + $0xe0] sm:$0xff] %vm216, %v681
      %714 = vst.msk [vmem:[#allocation3 + $0xe8] sm:$0xff] %vm216, %v682
      %715 = vst.msk [vmem:[#allocation3 + $0xf0] sm:$0xff] %vm216, %v683
      %716 = vst.msk [vmem:[#allocation3 + $0xf8] sm:$0xff] %vm216, %v684
      %v717 = vld [vmem:[#allocation2 + $0x1] sm:$0xff]
      %v718 = vld [vmem:[#allocation2 + $0x9] sm:$0xff]
      %v719 = vld [vmem:[#allocation2 + $0x19] sm:$0xff]
      %v720 = vld [vmem:[#allocation2 + $0x21] sm:$0xff]
      %v721 = vld [vmem:[#allocation2 + $0x31] sm:$0xff]
      %v722 = vld [vmem:[#allocation2 + $0x39] sm:$0xff]
      %v723 = vld [vmem:[#allocation2 + $0x49] sm:$0xff]
      %v724 = vld [vmem:[#allocation2 + $0x51] sm:$0xff]
      %v725 = vld [vmem:[#allocation2 + $0x61] sm:$0xff]
      %v726 = vld [vmem:[#allocation2 + $0x69] sm:$0xff]
      %v727 = vld [vmem:[#allocation2 + $0x79] sm:$0xff]
      %v728 = vld [vmem:[#allocation2 + $0x81] sm:$0xff]
      %v729 = vld [vmem:[#allocation2 + $0x91] sm:$0xff]
      %v730 = vld [vmem:[#allocation2 + $0x99] sm:$0xff]
      %v731 = vld [vmem:[#allocation2 + $0xa9] sm:$0xff]
      %v732 = vld [vmem:[#allocation2 + $0xb1] sm:$0xff]
      %v733 = vld [vmem:[#allocation2 + $0xc1] sm:$0xff]
      %v734 = vld [vmem:[#allocation2 + $0xc9] sm:$0xff]
      %v735 = vld [vmem:[#allocation2 + $0xd9] sm:$0xff]
      %v736 = vld [vmem:[#allocation2 + $0xe1] sm:$0xff]
      %v737 = vld [vmem:[#allocation2 + $0xf1] sm:$0xff]
      %v738 = vld [vmem:[#allocation2 + $0xf9] sm:$0xff]
      %v739 = vld [vmem:[#allocation2 + $0x109] sm:$0xff]
      %v740 = vld [vmem:[#allocation2 + $0x111] sm:$0xff]
      %v741 = vld [vmem:[#allocation2 + $0x121] sm:$0xff]
      %v742 = vld [vmem:[#allocation2 + $0x129] sm:$0xff]
      %v743 = vld [vmem:[#allocation2 + $0x139] sm:$0xff]
      %v744 = vld [vmem:[#allocation2 + $0x141] sm:$0xff]
      %v745 = vld [vmem:[#allocation2 + $0x151] sm:$0xff]
      %v746 = vld [vmem:[#allocation2 + $0x159] sm:$0xff]
      %v747 = vld [vmem:[#allocation2 + $0x169] sm:$0xff]
      %v748 = vld [vmem:[#allocation2 + $0x171] sm:$0xff]
      %v749 = vpack.c.bf16 %v718, %v717
      %v750 = vpack.c.bf16 %v720, %v719
      %v751 = vpack.c.bf16 %v722, %v721
      %v752 = vpack.c.bf16 %v724, %v723
      %v753 = vpack.c.bf16 %v726, %v725
      %v754 = vpack.c.bf16 %v728, %v727
      %v755 = vpack.c.bf16 %v730, %v729
      %v756 = vpack.c.bf16 %v732, %v731
      %v757 = vpack.c.bf16 %v734, %v733
      %v758 = vpack.c.bf16 %v736, %v735
      %v759 = vpack.c.bf16 %v738, %v737
      %v760 = vpack.c.bf16 %v740, %v739
      %v761 = vpack.c.bf16 %v742, %v741
      %v762 = vpack.c.bf16 %v744, %v743
      %v763 = vpack.c.bf16 %v746, %v745
      %v764 = vpack.c.bf16 %v748, %v747
      %v765 = vld [vmem:[#allocation3] sm:$0xff]
      %v766 = vld [vmem:[#allocation3 + $0x8] sm:$0xff]
      %v767 = vld [vmem:[#allocation3 + $0x10] sm:$0xff]
      %v768 = vld [vmem:[#allocation3 + $0x18] sm:$0xff]
      %v769 = vld [vmem:[#allocation3 + $0x20] sm:$0xff]
      %v770 = vld [vmem:[#allocation3 + $0x28] sm:$0xff]
      %v771 = vld [vmem:[#allocation3 + $0x30] sm:$0xff]
      %v772 = vld [vmem:[#allocation3 + $0x38] sm:$0xff]
      %v773 = vld [vmem:[#allocation3 + $0x40] sm:$0xff]
      %v774 = vld [vmem:[#allocation3 + $0x48] sm:$0xff]
      %v775 = vld [vmem:[#allocation3 + $0x50] sm:$0xff]
      %v776 = vld [vmem:[#allocation3 + $0x58] sm:$0xff]
      %v777 = vld [vmem:[#allocation3 + $0x60] sm:$0xff]
      %v778 = vld [vmem:[#allocation3 + $0x68] sm:$0xff]
      %v779 = vld [vmem:[#allocation3 + $0x70] sm:$0xff]
      %v780 = vld [vmem:[#allocation3 + $0x78] sm:$0xff]
      %v781 = vld [vmem:[#allocation3 + $0x80] sm:$0xff]
      %v782 = vld [vmem:[#allocation3 + $0x88] sm:$0xff]
      %v783 = vld [vmem:[#allocation3 + $0x90] sm:$0xff]
      %v784 = vld [vmem:[#allocation3 + $0x98] sm:$0xff]
      %v785 = vld [vmem:[#allocation3 + $0xa0] sm:$0xff]
      %v786 = vld [vmem:[#allocation3 + $0xa8] sm:$0xff]
      %v787 = vld [vmem:[#allocation3 + $0xb0] sm:$0xff]
      %v788 = vld [vmem:[#allocation3 + $0xb8] sm:$0xff]
      %v789 = vld [vmem:[#allocation3 + $0xc0] sm:$0xff]
      %v790 = vld [vmem:[#allocation3 + $0xc8] sm:$0xff]
      %v791 = vld [vmem:[#allocation3 + $0xd0] sm:$0xff]
      %v792 = vld [vmem:[#allocation3 + $0xd8] sm:$0xff]
      %v793 = vld [vmem:[#allocation3 + $0xe0] sm:$0xff]
      %v794 = vld [vmem:[#allocation3 + $0xe8] sm:$0xff]
      %v795 = vld [vmem:[#allocation3 + $0xf0] sm:$0xff]
      %v796 = vld [vmem:[#allocation3 + $0xf8] sm:$0xff]
      %s797 = scalar_lea.vmem %s1, 4
      %v798 = vld [vmem:[%s797] sm:$0xf]
      %v800 = vsel %vm216, %v749, 0
      %v803 = vsel %vm216, %v750, 0
      %v806 = vsel %vm216, %v751, 0
      %v809 = vsel %vm216, %v752, 0
      %v812 = vsel %vm216, %v753, 0
      %v815 = vsel %vm216, %v754, 0
      %v818 = vsel %vm216, %v755, 0
      %v821 = vsel %vm216, %v756, 0
      %v824 = vsel %vm216, %v757, 0
      %v827 = vsel %vm216, %v758, 0
      %v830 = vsel %vm216, %v759, 0
      %v833 = vsel %vm216, %v760, 0
      %v836 = vsel %vm216, %v761, 0
      %v839 = vsel %vm216, %v762, 0
      %v842 = vsel %vm216, %v763, 0
      %v845 = vsel %vm216, %v764, 0
      %v848 = vsel %vm488, %v798, 0
      %850 = vmatprep.subr.bf16.mxu0 0
      %851 = vmatpush1.bf16.msra.mxu0 %v848
      %852 = vmatprep.subr.bf16.mxu0 0
      %853 = vmatpush1.bf16.msra.mxu0 0
      %854 = vmatprep.subr.bf16.mxu0 0
      %855 = vmatpush1.bf16.msra.mxu0 0
      %856 = vmatprep.subr.bf16.mxu0 0
      %857 = vmatpush1.bf16.msra.mxu0 0
      %858 = vmatprep.subr.bf16.mxu0 0
      %859 = vmatpush1.bf16.msra.mxu0 0
      %860 = vmatprep.subr.bf16.mxu0 0
      %861 = vmatpush1.bf16.msra.mxu0 0
      %862 = vmatprep.subr.bf16.mxu0 0
      %863 = vmatpush1.bf16.msra.mxu0 0
      %864 = vmatprep.subr.bf16.mxu0 0
      %865 = vmatpush1.bf16.msra.mxu0 0
      %866 = vmatprep.subr.bf16.mxu0 0
      %867 = vmatpush1.bf16.msra.mxu0 0
      %868 = vmatprep.subr.bf16.mxu0 0
      %869 = vmatpush1.bf16.msra.mxu0 0
      %870 = vmatprep.subr.bf16.mxu0 0
      %871 = vmatpush1.bf16.msra.mxu0 0
      %872 = vmatprep.subr.bf16.mxu0 0
      %873 = vmatpush1.bf16.msra.mxu0 0
      %874 = vmatprep.subr.bf16.mxu0 0
      %875 = vmatpush1.bf16.msra.mxu0 0
      %876 = vmatprep.subr.bf16.mxu0 0
      %877 = vmatpush1.bf16.msra.mxu0 0
      %878 = vmatprep.subr.bf16.mxu0 0
      %879 = vmatpush1.bf16.msra.mxu0 0
      %880 = vmatprep.subr.bf16.mxu0 0
      %881 = vmatpush1.bf16.msra.mxu0 0
      %882 = vmatprep.mubr.bf16.mxu0 0
      %883 = vmatmul.mubr.bf16.gmra.mrb[0].mxu0 %v800
      %v884 = vpop.f32.mrb[0].mxu0
      %v885 = vadd.f32 0.0, %v884
      %v886 = vpop.f32.mrb[0].mxu0
      %v887 = vpop.f32.mrb[0].mxu0
      %v888 = vadd.f32 0.0, %v887
      %v889 = vpop.f32.mrb[0].mxu0
      %890 = vmatprep.mubr.bf16.mxu0 0
      %891 = vmatmul.mubr.bf16.gmra.mrb[0].mxu0 %v803
      %v892 = vpop.f32.mrb[0].mxu0
      %v893 = vadd.f32 0.0, %v892
      %v894 = vpop.f32.mrb[0].mxu0
      %v895 = vpop.f32.mrb[0].mxu0
      %v896 = vadd.f32 0.0, %v895
      %v897 = vpop.f32.mrb[0].mxu0
      %898 = vmatprep.mubr.bf16.mxu0 0
      %899 = vmatmul.mubr.bf16.gmra.mrb[0].mxu0 %v806
      %v900 = vpop.f32.mrb[0].mxu0
      %v901 = vadd.f32 0.0, %v900
      %v902 = vpop.f32.mrb[0].mxu0
      %v903 = vpop.f32.mrb[0].mxu0
      %v904 = vadd.f32 0.0, %v903
      %v905 = vpop.f32.mrb[0].mxu0
      %906 = vmatprep.mubr.bf16.mxu0 0
      %907 = vmatmul.mubr.bf16.gmra.mrb[0].mxu0 %v809
      %v908 = vpop.f32.mrb[0].mxu0
      %v909 = vadd.f32 0.0, %v908
      %v910 = vpop.f32.mrb[0].mxu0
      %v911 = vpop.f32.mrb[0].mxu0
      %v912 = vadd.f32 0.0, %v911
      %v913 = vpop.f32.mrb[0].mxu0
      %914 = vmatprep.mubr.bf16.mxu0 0
      %915 = vmatmul.mubr.bf16.gmra.mrb[0].mxu0 %v812
      %v916 = vpop.f32.mrb[0].mxu0
      %v917 = vadd.f32 0.0, %v916
      %v918 = vpop.f32.mrb[0].mxu0
      %v919 = vpop.f32.mrb[0].mxu0
      %v920 = vadd.f32 0.0, %v919
      %v921 = vpop.f32.mrb[0].mxu0
      %922 = vmatprep.mubr.bf16.mxu0 0
      %923 = vmatmul.mubr.bf16.gmra.mrb[0].mxu0 %v815
      %v924 = vpop.f32.mrb[0].mxu0
      %v925 = vadd.f32 0.0, %v924
      %v926 = vpop.f32.mrb[0].mxu0
      %v927 = vpop.f32.mrb[0].mxu0
      %v928 = vadd.f32 0.0, %v927
      %v929 = vpop.f32.mrb[0].mxu0
      %930 = vmatprep.mubr.bf16.mxu0 0
      %931 = vmatmul.mubr.bf16.gmra.mrb[0].mxu0 %v818
      %v932 = vpop.f32.mrb[0].mxu0
      %v933 = vadd.f32 0.0, %v932
      %v934 = vpop.f32.mrb[0].mxu0
      %v935 = vpop.f32.mrb[0].mxu0
      %v936 = vadd.f32 0.0, %v935
      %v937 = vpop.f32.mrb[0].mxu0
      %938 = vmatprep.mubr.bf16.mxu0 0
      %939 = vmatmul.mubr.bf16.gmra.mrb[0].mxu0 %v821
      %v940 = vpop.f32.mrb[0].mxu0
      %v941 = vadd.f32 0.0, %v940
      %v942 = vpop.f32.mrb[0].mxu0
      %v943 = vpop.f32.mrb[0].mxu0
      %v944 = vadd.f32 0.0, %v943
      %v945 = vpop.f32.mrb[0].mxu0
      %946 = vmatprep.mubr.bf16.mxu0 0
      %947 = vmatmul.mubr.bf16.gmra.mrb[0].mxu0 %v824
      %v948 = vpop.f32.mrb[0].mxu0
      %v949 = vadd.f32 0.0, %v948
      %v950 = vpop.f32.mrb[0].mxu0
      %v951 = vpop.f32.mrb[0].mxu0
      %v952 = vadd.f32 0.0, %v951
      %v953 = vpop.f32.mrb[0].mxu0
      %954 = vmatprep.mubr.bf16.mxu0 0
      %955 = vmatmul.mubr.bf16.gmra.mrb[0].mxu0 %v827
      %v956 = vpop.f32.mrb[0].mxu0
      %v957 = vadd.f32 0.0, %v956
      %v958 = vpop.f32.mrb[0].mxu0
      %v959 = vpop.f32.mrb[0].mxu0
      %v960 = vadd.f32 0.0, %v959
      %v961 = vpop.f32.mrb[0].mxu0
      %962 = vmatprep.mubr.bf16.mxu0 0
      %963 = vmatmul.mubr.bf16.gmra.mrb[0].mxu0 %v830
      %v964 = vpop.f32.mrb[0].mxu0
      %v965 = vadd.f32 0.0, %v964
      %v966 = vpop.f32.mrb[0].mxu0
      %v967 = vpop.f32.mrb[0].mxu0
      %v968 = vadd.f32 0.0, %v967
      %v969 = vpop.f32.mrb[0].mxu0
      %970 = vmatprep.mubr.bf16.mxu0 0
      %971 = vmatmul.mubr.bf16.gmra.mrb[0].mxu0 %v833
      %v972 = vpop.f32.mrb[0].mxu0
      %v973 = vadd.f32 0.0, %v972
      %v974 = vpop.f32.mrb[0].mxu0
      %v975 = vpop.f32.mrb[0].mxu0
      %v976 = vadd.f32 0.0, %v975
      %v977 = vpop.f32.mrb[0].mxu0
      %978 = vmatprep.mubr.bf16.mxu0 0
      %979 = vmatmul.mubr.bf16.gmra.mrb[0].mxu0 %v836
      %v980 = vpop.f32.mrb[0].mxu0
      %v981 = vadd.f32 0.0, %v980
      %v982 = vpop.f32.mrb[0].mxu0
      %v983 = vpop.f32.mrb[0].mxu0
      %v984 = vadd.f32 0.0, %v983
      %v985 = vpop.f32.mrb[0].mxu0
      %986 = vmatprep.mubr.bf16.mxu0 0
      %987 = vmatmul.mubr.bf16.gmra.mrb[0].mxu0 %v839
      %v988 = vpop.f32.mrb[0].mxu0
      %v989 = vadd.f32 0.0, %v988
      %v990 = vpop.f32.mrb[0].mxu0
      %v991 = vpop.f32.mrb[0].mxu0
      %v992 = vadd.f32 0.0, %v991
      %v993 = vpop.f32.mrb[0].mxu0
      %994 = vmatprep.mubr.bf16.mxu0 0
      %995 = vmatmul.mubr.bf16.gmra.mrb[0].mxu0 %v842
      %v996 = vpop.f32.mrb[0].mxu0
      %v997 = vadd.f32 0.0, %v996
      %v998 = vpop.f32.mrb[0].mxu0
      %v999 = vpop.f32.mrb[0].mxu0
      %v1000 = vadd.f32 0.0, %v999
      %v1001 = vpop.f32.mrb[0].mxu0
      %1002 = vmatprep.mubr.bf16.mxu0 0
      %1003 = vmatmul.mubr.bf16.gmra.mrb[0].mxu0 %v845
      %v1004 = vpop.f32.mrb[0].mxu0
      %v1005 = vadd.f32 0.0, %v1004
      %v1006 = vpop.f32.mrb[0].mxu0
      %v1007 = vpop.f32.mrb[0].mxu0
      %v1008 = vadd.f32 0.0, %v1007
      %v1009 = vpop.f32.mrb[0].mxu0
      %1010 = vdwg.mxu0
      %v1011 = vadd.f32 %v765, %v885
      %v1012 = vadd.f32 %v766, %v888
      %v1013 = vadd.f32 %v767, %v893
      %v1014 = vadd.f32 %v768, %v896
      %v1015 = vadd.f32 %v769, %v901
      %v1016 = vadd.f32 %v770, %v904
      %v1017 = vadd.f32 %v771, %v909
      %v1018 = vadd.f32 %v772, %v912
      %v1019 = vadd.f32 %v773, %v917
      %v1020 = vadd.f32 %v774, %v920
      %v1021 = vadd.f32 %v775, %v925
      %v1022 = vadd.f32 %v776, %v928
      %v1023 = vadd.f32 %v777, %v933
      %v1024 = vadd.f32 %v778, %v936
      %v1025 = vadd.f32 %v779, %v941
      %v1026 = vadd.f32 %v780, %v944
      %v1027 = vadd.f32 %v781, %v949
      %v1028 = vadd.f32 %v782, %v952
      %v1029 = vadd.f32 %v783, %v957
      %v1030 = vadd.f32 %v784, %v960
      %v1031 = vadd.f32 %v785, %v965
      %v1032 = vadd.f32 %v786, %v968
      %v1033 = vadd.f32 %v787, %v973
      %v1034 = vadd.f32 %v788, %v976
      %v1035 = vadd.f32 %v789, %v981
      %v1036 = vadd.f32 %v790, %v984
      %v1037 = vadd.f32 %v791, %v989
      %v1038 = vadd.f32 %v792, %v992
      %v1039 = vadd.f32 %v793, %v997
      %v1040 = vadd.f32 %v794, %v1000
      %v1041 = vadd.f32 %v795, %v1005
      %v1042 = vadd.f32 %v796, %v1008
      %1043 = vst.msk [vmem:[#allocation3] sm:$0xff] %vm216, %v1011
      %1044 = vst.msk [vmem:[#allocation3 + $0x8] sm:$0xff] %vm216, %v1012
      %1045 = vst.msk [vmem:[#allocation3 + $0x10] sm:$0xff] %vm216, %v1013
      %1046 = vst.msk [vmem:[#allocation3 + $0x18] sm:$0xff] %vm216, %v1014
      %1047 = vst.msk [vmem:[#allocation3 + $0x20] sm:$0xff] %vm216, %v1015
      %1048 = vst.msk [vmem:[#allocation3 + $0x28] sm:$0xff] %vm216, %v1016
      %1049 = vst.msk [vmem:[#allocation3 + $0x30] sm:$0xff] %vm216, %v1017
      %1050 = vst.msk [vmem:[#allocation3 + $0x38] sm:$0xff] %vm216, %v1018
      %1051 = vst.msk [vmem:[#allocation3 + $0x40] sm:$0xff] %vm216, %v1019
      %1052 = vst.msk [vmem:[#allocation3 + $0x48] sm:$0xff] %vm216, %v1020
      %1053 = vst.msk [vmem:[#allocation3 + $0x50] sm:$0xff] %vm216, %v1021
      %1054 = vst.msk [vmem:[#allocation3 + $0x58] sm:$0xff] %vm216, %v1022
      %1055 = vst.msk [vmem:[#allocation3 + $0x60] sm:$0xff] %vm216, %v1023
      %1056 = vst.msk [vmem:[#allocation3 + $0x68] sm:$0xff] %vm216, %v1024
      %1057 = vst.msk [vmem:[#allocation3 + $0x70] sm:$0xff] %vm216, %v1025
      %1058 = vst.msk [vmem:[#allocation3 + $0x78] sm:$0xff] %vm216, %v1026
      %1059 = vst.msk [vmem:[#allocation3 + $0x80] sm:$0xff] %vm216, %v1027
      %1060 = vst.msk [vmem:[#allocation3 + $0x88] sm:$0xff] %vm216, %v1028
      %1061 = vst.msk [vmem:[#allocation3 + $0x90] sm:$0xff] %vm216, %v1029
      %1062 = vst.msk [vmem:[#allocation3 + $0x98] sm:$0xff] %vm216, %v1030
      %1063 = vst.msk [vmem:[#allocation3 + $0xa0] sm:$0xff] %vm216, %v1031
      %1064 = vst.msk [vmem:[#allocation3 + $0xa8] sm:$0xff] %vm216, %v1032
      %1065 = vst.msk [vmem:[#allocation3 + $0xb0] sm:$0xff] %vm216, %v1033
      %1066 = vst.msk [vmem:[#allocation3 + $0xb8] sm:$0xff] %vm216, %v1034
      %1067 = vst.msk [vmem:[#allocation3 + $0xc0] sm:$0xff] %vm216, %v1035
      %1068 = vst.msk [vmem:[#allocation3 + $0xc8] sm:$0xff] %vm216, %v1036
      %1069 = vst.msk [vmem:[#allocation3 + $0xd0] sm:$0xff] %vm216, %v1037
      %1070 = vst.msk [vmem:[#allocation3 + $0xd8] sm:$0xff] %vm216, %v1038
      %1071 = vst.msk [vmem:[#allocation3 + $0xe0] sm:$0xff] %vm216, %v1039
      %1072 = vst.msk [vmem:[#allocation3 + $0xe8] sm:$0xff] %vm216, %v1040
      %1073 = vst.msk [vmem:[#allocation3 + $0xf0] sm:$0xff] %vm216, %v1041
      %1074 = vst.msk [vmem:[#allocation3 + $0xf8] sm:$0xff] %vm216, %v1042
      %v1075 = vld [vmem:[#allocation2 + $0x2] sm:$0xff]
      %v1076 = vld [vmem:[#allocation2 + $0xa] sm:$0xff]
      %v1077 = vld [vmem:[#allocation2 + $0x1a] sm:$0xff]
      %v1078 = vld [vmem:[#allocation2 + $0x22] sm:$0xff]
      %v1079 = vld [vmem:[#allocation2 + $0x32] sm:$0xff]
      %v1080 = vld [vmem:[#allocation2 + $0x3a] sm:$0xff]
      %v1081 = vld [vmem:[#allocation2 + $0x4a] sm:$0xff]
      %v1082 = vld [vmem:[#allocation2 + $0x52] sm:$0xff]
      %v1083 = vld [vmem:[#allocation2 + $0x62] sm:$0xff]
      %v1084 = vld [vmem:[#allocation2 + $0x6a] sm:$0xff]
      %v1085 = vld [vmem:[#allocation2 + $0x7a] sm:$0xff]
      %v1086 = vld [vmem:[#allocation2 + $0x82] sm:$0xff]
      %v1087 = vld [vmem:[#allocation2 + $0x92] sm:$0xff]
      %v1088 = vld [vmem:[#allocation2 + $0x9a] sm:$0xff]
      %v1089 = vld [vmem:[#allocation2 + $0xaa] sm:$0xff]
      %v1090 = vld [vmem:[#allocation2 + $0xb2] sm:$0xff]
      %v1091 = vld [vmem:[#allocation2 + $0xc2] sm:$0xff]
      %v1092 = vld [vmem:[#allocation2 + $0xca] sm:$0xff]
      %v1093 = vld [vmem:[#allocation2 + $0xda] sm:$0xff]
      %v1094 = vld [vmem:[#allocation2 + $0xe2] sm:$0xff]
      %v1095 = vld [vmem:[#allocation2 + $0xf2] sm:$0xff]
      %v1096 = vld [vmem:[#allocation2 + $0xfa] sm:$0xff]
      %v1097 = vld [vmem:[#allocation2 + $0x10a] sm:$0xff]
      %v1098 = vld [vmem:[#allocation2 + $0x112] sm:$0xff]
      %v1099 = vld [vmem:[#allocation2 + $0x122] sm:$0xff]
      %v1100 = vld [vmem:[#allocation2 + $0x12a] sm:$0xff]
      %v1101 = vld [vmem:[#allocation2 + $0x13a] sm:$0xff]
      %v1102 = vld [vmem:[#allocation2 + $0x142] sm:$0xff]
      %v1103 = vld [vmem:[#allocation2 + $0x152] sm:$0xff]
      %v1104 = vld [vmem:[#allocation2 + $0x15a] sm:$0xff]
      %v1105 = vld [vmem:[#allocation2 + $0x16a] sm:$0xff]
      %v1106 = vld [vmem:[#allocation2 + $0x172] sm:$0xff]
      %v1107 = vpack.c.bf16 %v1076, %v1075
      %v1108 = vpack.c.bf16 %v1078, %v1077
      %v1109 = vpack.c.bf16 %v1080, %v1079
      %v1110 = vpack.c.bf16 %v1082, %v1081
      %v1111 = vpack.c.bf16 %v1084, %v1083
      %v1112 = vpack.c.bf16 %v1086, %v1085
      %v1113 = vpack.c.bf16 %v1088, %v1087
      %v1114 = vpack.c.bf16 %v1090, %v1089
      %v1115 = vpack.c.bf16 %v1092, %v1091
      %v1116 = vpack.c.bf16 %v1094, %v1093
      %v1117 = vpack.c.bf16 %v1096, %v1095
      %v1118 = vpack.c.bf16 %v1098, %v1097
      %v1119 = vpack.c.bf16 %v1100, %v1099
      %v1120 = vpack.c.bf16 %v1102, %v1101
      %v1121 = vpack.c.bf16 %v1104, %v1103
      %v1122 = vpack.c.bf16 %v1106, %v1105
      %v1123 = vld [vmem:[#allocation3] sm:$0xff]
      %v1124 = vld [vmem:[#allocation3 + $0x8] sm:$0xff]
      %v1125 = vld [vmem:[#allocation3 + $0x10] sm:$0xff]
      %v1126 = vld [vmem:[#allocation3 + $0x18] sm:$0xff]
      %v1127 = vld [vmem:[#allocation3 + $0x20] sm:$0xff]
      %v1128 = vld [vmem:[#allocation3 + $0x28] sm:$0xff]
      %v1129 = vld [vmem:[#allocation3 + $0x30] sm:$0xff]
      %v1130 = vld [vmem:[#allocation3 + $0x38] sm:$0xff]
      %v1131 = vld [vmem:[#allocation3 + $0x40] sm:$0xff]
      %v1132 = vld [vmem:[#allocation3 + $0x48] sm:$0xff]
      %v1133 = vld [vmem:[#allocation3 + $0x50] sm:$0xff]
      %v1134 = vld [vmem:[#allocation3 + $0x58] sm:$0xff]
      %v1135 = vld [vmem:[#allocation3 + $0x60] sm:$0xff]
      %v1136 = vld [vmem:[#allocation3 + $0x68] sm:$0xff]
      %v1137 = vld [vmem:[#allocation3 + $0x70] sm:$0xff]
      %v1138 = vld [vmem:[#allocation3 + $0x78] sm:$0xff]
      %v1139 = vld [vmem:[#allocation3 + $0x80] sm:$0xff]
      %v1140 = vld [vmem:[#allocation3 + $0x88] sm:$0xff]
      %v1141 = vld [vmem:[#allocation3 + $0x90] sm:$0xff]
      %v1142 = vld [vmem:[#allocation3 + $0x98] sm:$0xff]
      %v1143 = vld [vmem:[#allocation3 + $0xa0] sm:$0xff]
      %v1144 = vld [vmem:[#allocation3 + $0xa8] sm:$0xff]
      %v1145 = vld [vmem:[#allocation3 + $0xb0] sm:$0xff]
      %v1146 = vld [vmem:[#allocation3 + $0xb8] sm:$0xff]
      %v1147 = vld [vmem:[#allocation3 + $0xc0] sm:$0xff]
      %v1148 = vld [vmem:[#allocation3 + $0xc8] sm:$0xff]
      %v1149 = vld [vmem:[#allocation3 + $0xd0] sm:$0xff]
      %v1150 = vld [vmem:[#allocation3 + $0xd8] sm:$0xff]
      %v1151 = vld [vmem:[#allocation3 + $0xe0] sm:$0xff]
      %v1152 = vld [vmem:[#allocation3 + $0xe8] sm:$0xff]
      %v1153 = vld [vmem:[#allocation3 + $0xf0] sm:$0xff]
      %v1154 = vld [vmem:[#allocation3 + $0xf8] sm:$0xff]
      %s1155 = scalar_lea.vmem %s1, 8
      %v1156 = vld [vmem:[%s1155] sm:$0xf]
      %v1158 = vsel %vm216, %v1107, 0
      %v1161 = vsel %vm216, %v1108, 0
      %v1164 = vsel %vm216, %v1109, 0
      %v1167 = vsel %vm216, %v1110, 0
      %v1170 = vsel %vm216, %v1111, 0
      %v1173 = vsel %vm216, %v1112, 0
      %v1176 = vsel %vm216, %v1113, 0
      %v1179 = vsel %vm216, %v1114, 0
      %v1182 = vsel %vm216, %v1115, 0
      %v1185 = vsel %vm216, %v1116, 0
      %v1188 = vsel %vm216, %v1117, 0
      %v1191 = vsel %vm216, %v1118, 0
      %v1194 = vsel %vm216, %v1119, 0
      %v1197 = vsel %vm216, %v1120, 0
      %v1200 = vsel %vm216, %v1121, 0
      %v1203 = vsel %vm216, %v1122, 0
      %v1206 = vsel %vm488, %v1156, 0
      %1208 = vmatprep.subr.bf16.mxu0 0
      %1209 = vmatpush1.bf16.msra.mxu0 %v1206
      %1210 = vmatprep.subr.bf16.mxu0 0
      %1211 = vmatpush1.bf16.msra.mxu0 0
      %1212 = vmatprep.subr.bf16.mxu0 0
      %1213 = vmatpush1.bf16.msra.mxu0 0
      %1214 = vmatprep.subr.bf16.mxu0 0
      %1215 = vmatpush1.bf16.msra.mxu0 0
      %1216 = vmatprep.subr.bf16.mxu0 0
      %1217 = vmatpush1.bf16.msra.mxu0 0
      %1218 = vmatprep.subr.bf16.mxu0 0
      %1219 = vmatpush1.bf16.msra.mxu0 0
      %1220 = vmatprep.subr.bf16.mxu0 0
      %1221 = vmatpush1.bf16.msra.mxu0 0
      %1222 = vmatprep.subr.bf16.mxu0 0
      %1223 = vmatpush1.bf16.msra.mxu0 0
      %1224 = vmatprep.subr.bf16.mxu0 0
      %1225 = vmatpush1.bf16.msra.mxu0 0
      %1226 = vmatprep.subr.bf16.mxu0 0
      %1227 = vmatpush1.bf16.msra.mxu0 0
      %1228 = vmatprep.subr.bf16.mxu0 0
      %1229 = vmatpush1.bf16.msra.mxu0 0
      %1230 = vmatprep.subr.bf16.mxu0 0
      %1231 = vmatpush1.bf16.msra.mxu0 0
      %1232 = vmatprep.subr.bf16.mxu0 0
      %1233 = vmatpush1.bf16.msra.mxu0 0
      %1234 = vmatprep.subr.bf16.mxu0 0
      %1235 = vmatpush1.bf16.msra.mxu0 0
      %1236 = vmatprep.subr.bf16.mxu0 0
      %1237 = vmatpush1.bf16.msra.mxu0 0
      %1238 = vmatprep.subr.bf16.mxu0 0
      %1239 = vmatpush1.bf16.msra.mxu0 0
      %1240 = vmatprep.mubr.bf16.mxu0 0
      %1241 = vmatmul.mubr.bf16.gmra.mrb[0].mxu0 %v1158
      %v1242 = vpop.f32.mrb[0].mxu0
      %v1243 = vadd.f32 0.0, %v1242
      %v1244 = vpop.f32.mrb[0].mxu0
      %v1245 = vpop.f32.mrb[0].mxu0
      %v1246 = vadd.f32 0.0, %v1245
      %v1247 = vpop.f32.mrb[0].mxu0
      %1248 = vmatprep.mubr.bf16.mxu0 0
      %1249 = vmatmul.mubr.bf16.gmra.mrb[0].mxu0 %v1161
      %v1250 = vpop.f32.mrb[0].mxu0
      %v1251 = vadd.f32 0.0, %v1250
      %v1252 = vpop.f32.mrb[0].mxu0
      %v1253 = vpop.f32.mrb[0].mxu0
      %v1254 = vadd.f32 0.0, %v1253
      %v1255 = vpop.f32.mrb[0].mxu0
      %1256 = vmatprep.mubr.bf16.mxu0 0
      %1257 = vmatmul.mubr.bf16.gmra.mrb[0].mxu0 %v1164
      %v1258 = vpop.f32.mrb[0].mxu0
      %v1259 = vadd.f32 0.0, %v1258
      %v1260 = vpop.f32.mrb[0].mxu0
      %v1261 = vpop.f32.mrb[0].mxu0
      %v1262 = vadd.f32 0.0, %v1261
      %v1263 = vpop.f32.mrb[0].mxu0
      %1264 = vmatprep.mubr.bf16.mxu0 0
      %1265 = vmatmul.mubr.bf16.gmra.mrb[0].mxu0 %v1167
      %v1266 = vpop.f32.mrb[0].mxu0
      %v1267 = vadd.f32 0.0, %v1266
      %v1268 = vpop.f32.mrb[0].mxu0
      %v1269 = vpop.f32.mrb[0].mxu0
      %v1270 = vadd.f32 0.0, %v1269
      %v1271 = vpop.f32.mrb[0].mxu0
      %1272 = vmatprep.mubr.bf16.mxu0 0
      %1273 = vmatmul.mubr.bf16.gmra.mrb[0].mxu0 %v1170
      %v1274 = vpop.f32.mrb[0].mxu0
      %v1275 = vadd.f32 0.0, %v1274
      %v1276 = vpop.f32.mrb[0].mxu0
      %v1277 = vpop.f32.mrb[0].mxu0
      %v1278 = vadd.f32 0.0, %v1277
      %v1279 = vpop.f32.mrb[0].mxu0
      %1280 = vmatprep.mubr.bf16.mxu0 0
      %1281 = vmatmul.mubr.bf16.gmra.mrb[0].mxu0 %v1173
      %v1282 = vpop.f32.mrb[0].mxu0
      %v1283 = vadd.f32 0.0, %v1282
      %v1284 = vpop.f32.mrb[0].mxu0
      %v1285 = vpop.f32.mrb[0].mxu0
      %v1286 = vadd.f32 0.0, %v1285
      %v1287 = vpop.f32.mrb[0].mxu0
      %1288 = vmatprep.mubr.bf16.mxu0 0
      %1289 = vmatmul.mubr.bf16.gmra.mrb[0].mxu0 %v1176
      %v1290 = vpop.f32.mrb[0].mxu0
      %v1291 = vadd.f32 0.0, %v1290
      %v1292 = vpop.f32.mrb[0].mxu0
      %v1293 = vpop.f32.mrb[0].mxu0
      %v1294 = vadd.f32 0.0, %v1293
      %v1295 = vpop.f32.mrb[0].mxu0
      %1296 = vmatprep.mubr.bf16.mxu0 0
      %1297 = vmatmul.mubr.bf16.gmra.mrb[0].mxu0 %v1179
      %v1298 = vpop.f32.mrb[0].mxu0
      %v1299 = vadd.f32 0.0, %v1298
      %v1300 = vpop.f32.mrb[0].mxu0
      %v1301 = vpop.f32.mrb[0].mxu0
      %v1302 = vadd.f32 0.0, %v1301
      %v1303 = vpop.f32.mrb[0].mxu0
      %1304 = vmatprep.mubr.bf16.mxu0 0
      %1305 = vmatmul.mubr.bf16.gmra.mrb[0].mxu0 %v1182
      %v1306 = vpop.f32.mrb[0].mxu0
      %v1307 = vadd.f32 0.0, %v1306
      %v1308 = vpop.f32.mrb[0].mxu0
      %v1309 = vpop.f32.mrb[0].mxu0
      %v1310 = vadd.f32 0.0, %v1309
      %v1311 = vpop.f32.mrb[0].mxu0
      %1312 = vmatprep.mubr.bf16.mxu0 0
      %1313 = vmatmul.mubr.bf16.gmra.mrb[0].mxu0 %v1185
      %v1314 = vpop.f32.mrb[0].mxu0
      %v1315 = vadd.f32 0.0, %v1314
      %v1316 = vpop.f32.mrb[0].mxu0
      %v1317 = vpop.f32.mrb[0].mxu0
      %v1318 = vadd.f32 0.0, %v1317
      %v1319 = vpop.f32.mrb[0].mxu0
      %1320 = vmatprep.mubr.bf16.mxu0 0
      %1321 = vmatmul.mubr.bf16.gmra.mrb[0].mxu0 %v1188
      %v1322 = vpop.f32.mrb[0].mxu0
      %v1323 = vadd.f32 0.0, %v1322
      %v1324 = vpop.f32.mrb[0].mxu0
      %v1325 = vpop.f32.mrb[0].mxu0
      %v1326 = vadd.f32 0.0, %v1325
      %v1327 = vpop.f32.mrb[0].mxu0
      %1328 = vmatprep.mubr.bf16.mxu0 0
      %1329 = vmatmul.mubr.bf16.gmra.mrb[0].mxu0 %v1191
      %v1330 = vpop.f32.mrb[0].mxu0
      %v1331 = vadd.f32 0.0, %v1330
      %v1332 = vpop.f32.mrb[0].mxu0
      %v1333 = vpop.f32.mrb[0].mxu0
      %v1334 = vadd.f32 0.0, %v1333
      %v1335 = vpop.f32.mrb[0].mxu0
      %1336 = vmatprep.mubr.bf16.mxu0 0
      %1337 = vmatmul.mubr.bf16.gmra.mrb[0].mxu0 %v1194
      %v1338 = vpop.f32.mrb[0].mxu0
      %v1339 = vadd.f32 0.0, %v1338
      %v1340 = vpop.f32.mrb[0].mxu0
      %v1341 = vpop.f32.mrb[0].mxu0
      %v1342 = vadd.f32 0.0, %v1341
      %v1343 = vpop.f32.mrb[0].mxu0
      %1344 = vmatprep.mubr.bf16.mxu0 0
      %1345 = vmatmul.mubr.bf16.gmra.mrb[0].mxu0 %v1197
      %v1346 = vpop.f32.mrb[0].mxu0
      %v1347 = vadd.f32 0.0, %v1346
      %v1348 = vpop.f32.mrb[0].mxu0
      %v1349 = vpop.f32.mrb[0].mxu0
      %v1350 = vadd.f32 0.0, %v1349
      %v1351 = vpop.f32.mrb[0].mxu0
      %1352 = vmatprep.mubr.bf16.mxu0 0
      %1353 = vmatmul.mubr.bf16.gmra.mrb[0].mxu0 %v1200
      %v1354 = vpop.f32.mrb[0].mxu0
      %v1355 = vadd.f32 0.0, %v1354
      %v1356 = vpop.f32.mrb[0].mxu0
      %v1357 = vpop.f32.mrb[0].mxu0
      %v1358 = vadd.f32 0.0, %v1357
      %v1359 = vpop.f32.mrb[0].mxu0
      %1360 = vmatprep.mubr.bf16.mxu0 0
      %1361 = vmatmul.mubr.bf16.gmra.mrb[0].mxu0 %v1203
      %v1362 = vpop.f32.mrb[0].mxu0
      %v1363 = vadd.f32 0.0, %v1362
      %v1364 = vpop.f32.mrb[0].mxu0
      %v1365 = vpop.f32.mrb[0].mxu0
      %v1366 = vadd.f32 0.0, %v1365
      %v1367 = vpop.f32.mrb[0].mxu0
      %1368 = vdwg.mxu0
      %v1369 = vadd.f32 %v1123, %v1243
      %v1370 = vadd.f32 %v1124, %v1246
      %v1371 = vadd.f32 %v1125, %v1251
      %v1372 = vadd.f32 %v1126, %v1254
      %v1373 = vadd.f32 %v1127, %v1259
      %v1374 = vadd.f32 %v1128, %v1262
      %v1375 = vadd.f32 %v1129, %v1267
      %v1376 = vadd.f32 %v1130, %v1270
      %v1377 = vadd.f32 %v1131, %v1275
      %v1378 = vadd.f32 %v1132, %v1278
      %v1379 = vadd.f32 %v1133, %v1283
      %v1380 = vadd.f32 %v1134, %v1286
      %v1381 = vadd.f32 %v1135, %v1291
      %v1382 = vadd.f32 %v1136, %v1294
      %v1383 = vadd.f32 %v1137, %v1299
      %v1384 = vadd.f32 %v1138, %v1302
      %v1385 = vadd.f32 %v1139, %v1307
      %v1386 = vadd.f32 %v1140, %v1310
      %v1387 = vadd.f32 %v1141, %v1315
      %v1388 = vadd.f32 %v1142, %v1318
      %v1389 = vadd.f32 %v1143, %v1323
      %v1390 = vadd.f32 %v1144, %v1326
      %v1391 = vadd.f32 %v1145, %v1331
      %v1392 = vadd.f32 %v1146, %v1334
      %v1393 = vadd.f32 %v1147, %v1339
      %v1394 = vadd.f32 %v1148, %v1342
      %v1395 = vadd.f32 %v1149, %v1347
      %v1396 = vadd.f32 %v1150, %v1350
      %v1397 = vadd.f32 %v1151, %v1355
      %v1398 = vadd.f32 %v1152, %v1358
      %v1399 = vadd.f32 %v1153, %v1363
      %v1400 = vadd.f32 %v1154, %v1366
      %1401 = vst.msk [vmem:[#allocation3] sm:$0xff] %vm216, %v1369
      %1402 = vst.msk [vmem:[#allocation3 + $0x8] sm:$0xff] %vm216, %v1370
      %1403 = vst.msk [vmem:[#allocation3 + $0x10] sm:$0xff] %vm216, %v1371
      %1404 = vst.msk [vmem:[#allocation3 + $0x18] sm:$0xff] %vm216, %v1372
      %1405 = vst.msk [vmem:[#allocation3 + $0x20] sm:$0xff] %vm216, %v1373
      %1406 = vst.msk [vmem:[#allocation3 + $0x28] sm:$0xff] %vm216, %v1374
      %1407 = vst.msk [vmem:[#allocation3 + $0x30] sm:$0xff] %vm216, %v1375
      %1408 = vst.msk [vmem:[#allocation3 + $0x38] sm:$0xff] %vm216, %v1376
      %1409 = vst.msk [vmem:[#allocation3 + $0x40] sm:$0xff] %vm216, %v1377
      %1410 = vst.msk [vmem:[#allocation3 + $0x48] sm:$0xff] %vm216, %v1378
      %1411 = vst.msk [vmem:[#allocation3 + $0x50] sm:$0xff] %vm216, %v1379
      %1412 = vst.msk [vmem:[#allocation3 + $0x58] sm:$0xff] %vm216, %v1380
      %1413 = vst.msk [vmem:[#allocation3 + $0x60] sm:$0xff] %vm216, %v1381
      %1414 = vst.msk [vmem:[#allocation3 + $0x68] sm:$0xff] %vm216, %v1382
      %1415 = vst.msk [vmem:[#allocation3 + $0x70] sm:$0xff] %vm216, %v1383
      %1416 = vst.msk [vmem:[#allocation3 + $0x78] sm:$0xff] %vm216, %v1384
      %1417 = vst.msk [vmem:[#allocation3 + $0x80] sm:$0xff] %vm216, %v1385
      %1418 = vst.msk [vmem:[#allocation3 + $0x88] sm:$0xff] %vm216, %v1386
      %1419 = vst.msk [vmem:[#allocation3 + $0x90] sm:$0xff] %vm216, %v1387
      %1420 = vst.msk [vmem:[#allocation3 + $0x98] sm:$0xff] %vm216, %v1388
      %1421 = vst.msk [vmem:[#allocation3 + $0xa0] sm:$0xff] %vm216, %v1389
      %1422 = vst.msk [vmem:[#allocation3 + $0xa8] sm:$0xff] %vm216, %v1390
      %1423 = vst.msk [vmem:[#allocation3 + $0xb0] sm:$0xff] %vm216, %v1391
      %1424 = vst.msk [vmem:[#allocation3 + $0xb8] sm:$0xff] %vm216, %v1392
      %1425 = vst.msk [vmem:[#allocation3 + $0xc0] sm:$0xff] %vm216, %v1393
      %1426 = vst.msk [vmem:[#allocation3 + $0xc8] sm:$0xff] %vm216, %v1394
      %1427 = vst.msk [vmem:[#allocation3 + $0xd0] sm:$0xff] %vm216, %v1395
      %1428 = vst.msk [vmem:[#allocation3 + $0xd8] sm:$0xff] %vm216, %v1396
      %1429 = vst.msk [vmem:[#allocation3 + $0xe0] sm:$0xff] %vm216, %v1397
      %1430 = vst.msk [vmem:[#allocation3 + $0xe8] sm:$0xff] %vm216, %v1398
      %1431 = vst.msk [vmem:[#allocation3 + $0xf0] sm:$0xff] %vm216, %v1399
      %1432 = vst.msk [vmem:[#allocation3 + $0xf8] sm:$0xff] %vm216, %v1400
      %v1433 = vld [vmem:[%s294] sm:$0xff]
      %v1434 = vld [vmem:[%s294 + $0x8] sm:$0xff]
      %v1435 = vld [vmem:[%s294 + $0x18] sm:$0xff]
      %v1436 = vld [vmem:[%s294 + $0x20] sm:$0xff]
      %v1437 = vld [vmem:[%s294 + $0x30] sm:$0xff]
      %v1438 = vld [vmem:[%s294 + $0x38] sm:$0xff]
      %v1439 = vld [vmem:[%s294 + $0x48] sm:$0xff]
      %v1440 = vld [vmem:[%s294 + $0x50] sm:$0xff]
      %v1441 = vld [vmem:[%s294 + $0x60] sm:$0xff]
      %v1442 = vld [vmem:[%s294 + $0x68] sm:$0xff]
      %v1443 = vld [vmem:[%s294 + $0x78] sm:$0xff]
      %v1444 = vld [vmem:[%s294 + $0x80] sm:$0xff]
      %v1445 = vld [vmem:[%s294 + $0x90] sm:$0xff]
      %v1446 = vld [vmem:[%s294 + $0x98] sm:$0xff]
      %v1447 = vld [vmem:[%s294 + $0xa8] sm:$0xff]
      %v1448 = vld [vmem:[%s294 + $0xb0] sm:$0xff]
      %v1449 = vld [vmem:[%s294 + $0xc0] sm:$0xff]
      %v1450 = vld [vmem:[%s294 + $0xc8] sm:$0xff]
      %v1451 = vld [vmem:[%s294 + $0xd8] sm:$0xff]
      %v1452 = vld [vmem:[%s294 + $0xe0] sm:$0xff]
      %v1453 = vld [vmem:[%s294 + $0xf0] sm:$0xff]
      %v1454 = vld [vmem:[%s294 + $0xf8] sm:$0xff]
      %v1455 = vld [vmem:[%s294 + $0x108] sm:$0xff]
      %v1456 = vld [vmem:[%s294 + $0x110] sm:$0xff]
      %v1457 = vld [vmem:[%s294 + $0x120] sm:$0xff]
      %v1458 = vld [vmem:[%s294 + $0x128] sm:$0xff]
      %v1459 = vld [vmem:[%s294 + $0x138] sm:$0xff]
      %v1460 = vld [vmem:[%s294 + $0x140] sm:$0xff]
      %v1461 = vld [vmem:[%s294 + $0x150] sm:$0xff]
      %v1462 = vld [vmem:[%s294 + $0x158] sm:$0xff]
      %v1463 = vld [vmem:[%s294 + $0x168] sm:$0xff]
      %v1464 = vld [vmem:[%s294 + $0x170] sm:$0xff]
      %v1465 = vpack.c.bf16 %v1434, %v1433
      %v1466 = vpack.c.bf16 %v1436, %v1435
      %v1467 = vpack.c.bf16 %v1438, %v1437
      %v1468 = vpack.c.bf16 %v1440, %v1439
      %v1469 = vpack.c.bf16 %v1442, %v1441
      %v1470 = vpack.c.bf16 %v1444, %v1443
      %v1471 = vpack.c.bf16 %v1446, %v1445
      %v1472 = vpack.c.bf16 %v1448, %v1447
      %v1473 = vpack.c.bf16 %v1450, %v1449
      %v1474 = vpack.c.bf16 %v1452, %v1451
      %v1475 = vpack.c.bf16 %v1454, %v1453
      %v1476 = vpack.c.bf16 %v1456, %v1455
      %v1477 = vpack.c.bf16 %v1458, %v1457
      %v1478 = vpack.c.bf16 %v1460, %v1459
      %v1479 = vpack.c.bf16 %v1462, %v1461
      %v1480 = vpack.c.bf16 %v1464, %v1463
      %v1481 = vld [vmem:[#allocation3] sm:$0xff]
      %v1482 = vld [vmem:[#allocation3 + $0x8] sm:$0xff]
      %v1483 = vld [vmem:[#allocation3 + $0x10] sm:$0xff]
      %v1484 = vld [vmem:[#allocation3 + $0x18] sm:$0xff]
      %v1485 = vld [vmem:[#allocation3 + $0x20] sm:$0xff]
      %v1486 = vld [vmem:[#allocation3 + $0x28] sm:$0xff]
      %v1487 = vld [vmem:[#allocation3 + $0x30] sm:$0xff]
      %v1488 = vld [vmem:[#allocation3 + $0x38] sm:$0xff]
      %v1489 = vld [vmem:[#allocation3 + $0x40] sm:$0xff]
      %v1490 = vld [vmem:[#allocation3 + $0x48] sm:$0xff]
      %v1491 = vld [vmem:[#allocation3 + $0x50] sm:$0xff]
      %v1492 = vld [vmem:[#allocation3 + $0x58] sm:$0xff]
      %v1493 = vld [vmem:[#allocation3 + $0x60] sm:$0xff]
      %v1494 = vld [vmem:[#allocation3 + $0x68] sm:$0xff]
      %v1495 = vld [vmem:[#allocation3 + $0x70] sm:$0xff]
      %v1496 = vld [vmem:[#allocation3 + $0x78] sm:$0xff]
      %v1497 = vld [vmem:[#allocation3 + $0x80] sm:$0xff]
      %v1498 = vld [vmem:[#allocation3 + $0x88] sm:$0xff]
      %v1499 = vld [vmem:[#allocation3 + $0x90] sm:$0xff]
      %v1500 = vld [vmem:[#allocation3 + $0x98] sm:$0xff]
      %v1501 = vld [vmem:[#allocation3 + $0xa0] sm:$0xff]
      %v1502 = vld [vmem:[#allocation3 + $0xa8] sm:$0xff]
      %v1503 = vld [vmem:[#allocation3 + $0xb0] sm:$0xff]
      %v1504 = vld [vmem:[#allocation3 + $0xb8] sm:$0xff]
      %v1505 = vld [vmem:[#allocation3 + $0xc0] sm:$0xff]
      %v1506 = vld [vmem:[#allocation3 + $0xc8] sm:$0xff]
      %v1507 = vld [vmem:[#allocation3 + $0xd0] sm:$0xff]
      %v1508 = vld [vmem:[#allocation3 + $0xd8] sm:$0xff]
      %v1509 = vld [vmem:[#allocation3 + $0xe0] sm:$0xff]
      %v1510 = vld [vmem:[#allocation3 + $0xe8] sm:$0xff]
      %v1511 = vld [vmem:[#allocation3 + $0xf0] sm:$0xff]
      %v1512 = vld [vmem:[#allocation3 + $0xf8] sm:$0xff]
      %s1513 = scalar_lea.vmem %s1, 12
      %v1514 = vld [vmem:[%s1513] sm:$0xf]
      %v1516 = vsel %vm216, %v1465, 0
      %v1519 = vsel %vm216, %v1466, 0
      %v1522 = vsel %vm216, %v1467, 0
      %v1525 = vsel %vm216, %v1468, 0
      %v1528 = vsel %vm216, %v1469, 0
      %v1531 = vsel %vm216, %v1470, 0
      %v1534 = vsel %vm216, %v1471, 0
      %v1537 = vsel %vm216, %v1472, 0
      %v1540 = vsel %vm216, %v1473, 0
      %v1543 = vsel %vm216, %v1474, 0
      %v1546 = vsel %vm216, %v1475, 0
      %v1549 = vsel %vm216, %v1476, 0
      %v1552 = vsel %vm216, %v1477, 0
      %v1555 = vsel %vm216, %v1478, 0
      %v1558 = vsel %vm216, %v1479, 0
      %v1561 = vsel %vm216, %v1480, 0
      %v1564 = vsel %vm488, %v1514, 0
      %1566 = vmatprep.subr.bf16.mxu0 0
      %1567 = vmatpush1.bf16.msra.mxu0 %v1564
      %1568 = vmatprep.subr.bf16.mxu0 0
      %1569 = vmatpush1.bf16.msra.mxu0 0
      %1570 = vmatprep.subr.bf16.mxu0 0
      %1571 = vmatpush1.bf16.msra.mxu0 0
      %1572 = vmatprep.subr.bf16.mxu0 0
      %1573 = vmatpush1.bf16.msra.mxu0 0
      %1574 = vmatprep.subr.bf16.mxu0 0
      %1575 = vmatpush1.bf16.msra.mxu0 0
      %1576 = vmatprep.subr.bf16.mxu0 0
      %1577 = vmatpush1.bf16.msra.mxu0 0
      %1578 = vmatprep.subr.bf16.mxu0 0
      %1579 = vmatpush1.bf16.msra.mxu0 0
      %1580 = vmatprep.subr.bf16.mxu0 0
      %1581 = vmatpush1.bf16.msra.mxu0 0
      %1582 = vmatprep.subr.bf16.mxu0 0
      %1583 = vmatpush1.bf16.msra.mxu0 0
      %1584 = vmatprep.subr.bf16.mxu0 0
      %1585 = vmatpush1.bf16.msra.mxu0 0
      %1586 = vmatprep.subr.bf16.mxu0 0
      %1587 = vmatpush1.bf16.msra.mxu0 0
      %1588 = vmatprep.subr.bf16.mxu0 0
      %1589 = vmatpush1.bf16.msra.mxu0 0
      %1590 = vmatprep.subr.bf16.mxu0 0
      %1591 = vmatpush1.bf16.msra.mxu0 0
      %1592 = vmatprep.subr.bf16.mxu0 0
      %1593 = vmatpush1.bf16.msra.mxu0 0
      %1594 = vmatprep.subr.bf16.mxu0 0
      %1595 = vmatpush1.bf16.msra.mxu0 0
      %1596 = vmatprep.subr.bf16.mxu0 0
      %1597 = vmatpush1.bf16.msra.mxu0 0
      %1598 = vmatprep.mubr.bf16.mxu0 0
      %1599 = vmatmul.mubr.bf16.gmra.mrb[0].mxu0 %v1516
      %v1600 = vpop.f32.mrb[0].mxu0
      %v1601 = vadd.f32 0.0, %v1600
      %v1602 = vpop.f32.mrb[0].mxu0
      %v1603 = vpop.f32.mrb[0].mxu0
      %v1604 = vadd.f32 0.0, %v1603
      %v1605 = vpop.f32.mrb[0].mxu0
      %1606 = vmatprep.mubr.bf16.mxu0 0
      %1607 = vmatmul.mubr.bf16.gmra.mrb[0].mxu0 %v1519
      %v1608 = vpop.f32.mrb[0].mxu0
      %v1609 = vadd.f32 0.0, %v1608
      %v1610 = vpop.f32.mrb[0].mxu0
      %v1611 = vpop.f32.mrb[0].mxu0
      %v1612 = vadd.f32 0.0, %v1611
      %v1613 = vpop.f32.mrb[0].mxu0
      %1614 = vmatprep.mubr.bf16.mxu0 0
      %1615 = vmatmul.mubr.bf16.gmra.mrb[0].mxu0 %v1522
      %v1616 = vpop.f32.mrb[0].mxu0
      %v1617 = vadd.f32 0.0, %v1616
      %v1618 = vpop.f32.mrb[0].mxu0
      %v1619 = vpop.f32.mrb[0].mxu0
      %v1620 = vadd.f32 0.0, %v1619
      %v1621 = vpop.f32.mrb[0].mxu0
      %1622 = vmatprep.mubr.bf16.mxu0 0
      %1623 = vmatmul.mubr.bf16.gmra.mrb[0].mxu0 %v1525
      %v1624 = vpop.f32.mrb[0].mxu0
      %v1625 = vadd.f32 0.0, %v1624
      %v1626 = vpop.f32.mrb[0].mxu0
      %v1627 = vpop.f32.mrb[0].mxu0
      %v1628 = vadd.f32 0.0, %v1627
      %v1629 = vpop.f32.mrb[0].mxu0
      %1630 = vmatprep.mubr.bf16.mxu0 0
      %1631 = vmatmul.mubr.bf16.gmra.mrb[0].mxu0 %v1528
      %v1632 = vpop.f32.mrb[0].mxu0
      %v1633 = vadd.f32 0.0, %v1632
      %v1634 = vpop.f32.mrb[0].mxu0
      %v1635 = vpop.f32.mrb[0].mxu0
      %v1636 = vadd.f32 0.0, %v1635
      %v1637 = vpop.f32.mrb[0].mxu0
      %1638 = vmatprep.mubr.bf16.mxu0 0
      %1639 = vmatmul.mubr.bf16.gmra.mrb[0].mxu0 %v1531
      %v1640 = vpop.f32.mrb[0].mxu0
      %v1641 = vadd.f32 0.0, %v1640
      %v1642 = vpop.f32.mrb[0].mxu0
      %v1643 = vpop.f32.mrb[0].mxu0
      %v1644 = vadd.f32 0.0, %v1643
      %v1645 = vpop.f32.mrb[0].mxu0
      %1646 = vmatprep.mubr.bf16.mxu0 0
      %1647 = vmatmul.mubr.bf16.gmra.mrb[0].mxu0 %v1534
      %v1648 = vpop.f32.mrb[0].mxu0
      %v1649 = vadd.f32 0.0, %v1648
      %v1650 = vpop.f32.mrb[0].mxu0
      %v1651 = vpop.f32.mrb[0].mxu0
      %v1652 = vadd.f32 0.0, %v1651
      %v1653 = vpop.f32.mrb[0].mxu0
      %1654 = vmatprep.mubr.bf16.mxu0 0
      %1655 = vmatmul.mubr.bf16.gmra.mrb[0].mxu0 %v1537
      %v1656 = vpop.f32.mrb[0].mxu0
      %v1657 = vadd.f32 0.0, %v1656
      %v1658 = vpop.f32.mrb[0].mxu0
      %v1659 = vpop.f32.mrb[0].mxu0
      %v1660 = vadd.f32 0.0, %v1659
      %v1661 = vpop.f32.mrb[0].mxu0
      %1662 = vmatprep.mubr.bf16.mxu0 0
      %1663 = vmatmul.mubr.bf16.gmra.mrb[0].mxu0 %v1540
      %v1664 = vpop.f32.mrb[0].mxu0
      %v1665 = vadd.f32 0.0, %v1664
      %v1666 = vpop.f32.mrb[0].mxu0
      %v1667 = vpop.f32.mrb[0].mxu0
      %v1668 = vadd.f32 0.0, %v1667
      %v1669 = vpop.f32.mrb[0].mxu0
      %1670 = vmatprep.mubr.bf16.mxu0 0
      %1671 = vmatmul.mubr.bf16.gmra.mrb[0].mxu0 %v1543
      %v1672 = vpop.f32.mrb[0].mxu0
      %v1673 = vadd.f32 0.0, %v1672
      %v1674 = vpop.f32.mrb[0].mxu0
      %v1675 = vpop.f32.mrb[0].mxu0
      %v1676 = vadd.f32 0.0, %v1675
      %v1677 = vpop.f32.mrb[0].mxu0
      %1678 = vmatprep.mubr.bf16.mxu0 0
      %1679 = vmatmul.mubr.bf16.gmra.mrb[0].mxu0 %v1546
      %v1680 = vpop.f32.mrb[0].mxu0
      %v1681 = vadd.f32 0.0, %v1680
      %v1682 = vpop.f32.mrb[0].mxu0
      %v1683 = vpop.f32.mrb[0].mxu0
      %v1684 = vadd.f32 0.0, %v1683
      %v1685 = vpop.f32.mrb[0].mxu0
      %1686 = vmatprep.mubr.bf16.mxu0 0
      %1687 = vmatmul.mubr.bf16.gmra.mrb[0].mxu0 %v1549
      %v1688 = vpop.f32.mrb[0].mxu0
      %v1689 = vadd.f32 0.0, %v1688
      %v1690 = vpop.f32.mrb[0].mxu0
      %v1691 = vpop.f32.mrb[0].mxu0
      %v1692 = vadd.f32 0.0, %v1691
      %v1693 = vpop.f32.mrb[0].mxu0
      %1694 = vmatprep.mubr.bf16.mxu0 0
      %1695 = vmatmul.mubr.bf16.gmra.mrb[0].mxu0 %v1552
      %v1696 = vpop.f32.mrb[0].mxu0
      %v1697 = vadd.f32 0.0, %v1696
      %v1698 = vpop.f32.mrb[0].mxu0
      %v1699 = vpop.f32.mrb[0].mxu0
      %v1700 = vadd.f32 0.0, %v1699
      %v1701 = vpop.f32.mrb[0].mxu0
      %1702 = vmatprep.mubr.bf16.mxu0 0
      %1703 = vmatmul.mubr.bf16.gmra.mrb[0].mxu0 %v1555
      %v1704 = vpop.f32.mrb[0].mxu0
      %v1705 = vadd.f32 0.0, %v1704
      %v1706 = vpop.f32.mrb[0].mxu0
      %v1707 = vpop.f32.mrb[0].mxu0
      %v1708 = vadd.f32 0.0, %v1707
      %v1709 = vpop.f32.mrb[0].mxu0
      %1710 = vmatprep.mubr.bf16.mxu0 0
      %1711 = vmatmul.mubr.bf16.gmra.mrb[0].mxu0 %v1558
      %v1712 = vpop.f32.mrb[0].mxu0
      %v1713 = vadd.f32 0.0, %v1712
      %v1714 = vpop.f32.mrb[0].mxu0
      %v1715 = vpop.f32.mrb[0].mxu0
      %v1716 = vadd.f32 0.0, %v1715
      %v1717 = vpop.f32.mrb[0].mxu0
      %1718 = vmatprep.mubr.bf16.mxu0 0
      %1719 = vmatmul.mubr.bf16.gmra.mrb[0].mxu0 %v1561
      %v1720 = vpop.f32.mrb[0].mxu0
      %v1721 = vadd.f32 0.0, %v1720
      %v1722 = vpop.f32.mrb[0].mxu0
      %v1723 = vpop.f32.mrb[0].mxu0
      %v1724 = vadd.f32 0.0, %v1723
      %v1725 = vpop.f32.mrb[0].mxu0
      %1726 = vdwg.mxu0
      %v1727 = vadd.f32 %v1481, %v1601
      %v1728 = vadd.f32 %v1482, %v1604
      %v1729 = vadd.f32 %v1483, %v1609
      %v1730 = vadd.f32 %v1484, %v1612
      %v1731 = vadd.f32 %v1485, %v1617
      %v1732 = vadd.f32 %v1486, %v1620
      %v1733 = vadd.f32 %v1487, %v1625
      %v1734 = vadd.f32 %v1488, %v1628
      %v1735 = vadd.f32 %v1489, %v1633
      %v1736 = vadd.f32 %v1490, %v1636
      %v1737 = vadd.f32 %v1491, %v1641
      %v1738 = vadd.f32 %v1492, %v1644
      %v1739 = vadd.f32 %v1493, %v1649
      %v1740 = vadd.f32 %v1494, %v1652
      %v1741 = vadd.f32 %v1495, %v1657
      %v1742 = vadd.f32 %v1496, %v1660
      %v1743 = vadd.f32 %v1497, %v1665
      %v1744 = vadd.f32 %v1498, %v1668
      %v1745 = vadd.f32 %v1499, %v1673
      %v1746 = vadd.f32 %v1500, %v1676
      %v1747 = vadd.f32 %v1501, %v1681
      %v1748 = vadd.f32 %v1502, %v1684
      %v1749 = vadd.f32 %v1503, %v1689
      %v1750 = vadd.f32 %v1504, %v1692
      %v1751 = vadd.f32 %v1505, %v1697
      %v1752 = vadd.f32 %v1506, %v1700
      %v1753 = vadd.f32 %v1507, %v1705
      %v1754 = vadd.f32 %v1508, %v1708
      %v1755 = vadd.f32 %v1509, %v1713
      %v1756 = vadd.f32 %v1510, %v1716
      %v1757 = vadd.f32 %v1511, %v1721
      %v1758 = vadd.f32 %v1512, %v1724
      %1759 = vst.msk [vmem:[#allocation3] sm:$0xff] %vm216, %v1727
      %1760 = vst.msk [vmem:[#allocation3 + $0x8] sm:$0xff] %vm216, %v1728
      %1761 = vst.msk [vmem:[#allocation3 + $0x10] sm:$0xff] %vm216, %v1729
      %1762 = vst.msk [vmem:[#allocation3 + $0x18] sm:$0xff] %vm216, %v1730
      %1763 = vst.msk [vmem:[#allocation3 + $0x20] sm:$0xff] %vm216, %v1731
      %1764 = vst.msk [vmem:[#allocation3 + $0x28] sm:$0xff] %vm216, %v1732
      %1765 = vst.msk [vmem:[#allocation3 + $0x30] sm:$0xff] %vm216, %v1733
      %1766 = vst.msk [vmem:[#allocation3 + $0x38] sm:$0xff] %vm216, %v1734
      %1767 = vst.msk [vmem:[#allocation3 + $0x40] sm:$0xff] %vm216, %v1735
      %1768 = vst.msk [vmem:[#allocation3 + $0x48] sm:$0xff] %vm216, %v1736
      %1769 = vst.msk [vmem:[#allocation3 + $0x50] sm:$0xff] %vm216, %v1737
      %1770 = vst.msk [vmem:[#allocation3 + $0x58] sm:$0xff] %vm216, %v1738
      %1771 = vst.msk [vmem:[#allocation3 + $0x60] sm:$0xff] %vm216, %v1739
      %1772 = vst.msk [vmem:[#allocation3 + $0x68] sm:$0xff] %vm216, %v1740
      %1773 = vst.msk [vmem:[#allocation3 + $0x70] sm:$0xff] %vm216, %v1741
      %1774 = vst.msk [vmem:[#allocation3 + $0x78] sm:$0xff] %vm216, %v1742
      %1775 = vst.msk [vmem:[#allocation3 + $0x80] sm:$0xff] %vm216, %v1743
      %1776 = vst.msk [vmem:[#allocation3 + $0x88] sm:$0xff] %vm216, %v1744
      %1777 = vst.msk [vmem:[#allocation3 + $0x90] sm:$0xff] %vm216, %v1745
      %1778 = vst.msk [vmem:[#allocation3 + $0x98] sm:$0xff] %vm216, %v1746
      %1779 = vst.msk [vmem:[#allocation3 + $0xa0] sm:$0xff] %vm216, %v1747
      %1780 = vst.msk [vmem:[#allocation3 + $0xa8] sm:$0xff] %vm216, %v1748
      %1781 = vst.msk [vmem:[#allocation3 + $0xb0] sm:$0xff] %vm216, %v1749
      %1782 = vst.msk [vmem:[#allocation3 + $0xb8] sm:$0xff] %vm216, %v1750
      %1783 = vst.msk [vmem:[#allocation3 + $0xc0] sm:$0xff] %vm216, %v1751
      %1784 = vst.msk [vmem:[#allocation3 + $0xc8] sm:$0xff] %vm216, %v1752
      %1785 = vst.msk [vmem:[#allocation3 + $0xd0] sm:$0xff] %vm216, %v1753
      %1786 = vst.msk [vmem:[#allocation3 + $0xd8] sm:$0xff] %vm216, %v1754
      %1787 = vst.msk [vmem:[#allocation3 + $0xe0] sm:$0xff] %vm216, %v1755
      %1788 = vst.msk [vmem:[#allocation3 + $0xe8] sm:$0xff] %vm216, %v1756
      %1789 = vst.msk [vmem:[#allocation3 + $0xf0] sm:$0xff] %vm216, %v1757
      %1790 = vst.msk [vmem:[#allocation3 + $0xf8] sm:$0xff] %vm216, %v1758
      %v1791 = vld [vmem:[%s294 + $0x1] sm:$0xff]
      %v1792 = vld [vmem:[%s294 + $0x9] sm:$0xff]
      %v1793 = vld [vmem:[%s294 + $0x19] sm:$0xff]
      %v1794 = vld [vmem:[%s294 + $0x21] sm:$0xff]
      %v1795 = vld [vmem:[%s294 + $0x31] sm:$0xff]
      %v1796 = vld [vmem:[%s294 + $0x39] sm:$0xff]
      %v1797 = vld [vmem:[%s294 + $0x49] sm:$0xff]
      %v1798 = vld [vmem:[%s294 + $0x51] sm:$0xff]
      %v1799 = vld [vmem:[%s294 + $0x61] sm:$0xff]
      %v1800 = vld [vmem:[%s294 + $0x69] sm:$0xff]
      %v1801 = vld [vmem:[%s294 + $0x79] sm:$0xff]
      %v1802 = vld [vmem:[%s294 + $0x81] sm:$0xff]
      %v1803 = vld [vmem:[%s294 + $0x91] sm:$0xff]
      %v1804 = vld [vmem:[%s294 + $0x99] sm:$0xff]
      %v1805 = vld [vmem:[%s294 + $0xa9] sm:$0xff]
      %v1806 = vld [vmem:[%s294 + $0xb1] sm:$0xff]
      %v1807 = vld [vmem:[%s294 + $0xc1] sm:$0xff]
      %v1808 = vld [vmem:[%s294 + $0xc9] sm:$0xff]
      %v1809 = vld [vmem:[%s294 + $0xd9] sm:$0xff]
      %v1810 = vld [vmem:[%s294 + $0xe1] sm:$0xff]
      %v1811 = vld [vmem:[%s294 + $0xf1] sm:$0xff]
      %v1812 = vld [vmem:[%s294 + $0xf9] sm:$0xff]
      %v1813 = vld [vmem:[%s294 + $0x109] sm:$0xff]
      %v1814 = vld [vmem:[%s294 + $0x111] sm:$0xff]
      %v1815 = vld [vmem:[%s294 + $0x121] sm:$0xff]
      %v1816 = vld [vmem:[%s294 + $0x129] sm:$0xff]
      %v1817 = vld [vmem:[%s294 + $0x139] sm:$0xff]
      %v1818 = vld [vmem:[%s294 + $0x141] sm:$0xff]
      %v1819 = vld [vmem:[%s294 + $0x151] sm:$0xff]
      %v1820 = vld [vmem:[%s294 + $0x159] sm:$0xff]
      %v1821 = vld [vmem:[%s294 + $0x169] sm:$0xff]
      %v1822 = vld [vmem:[%s294 + $0x171] sm:$0xff]
      %v1823 = vpack.c.bf16 %v1792, %v1791
      %v1824 = vpack.c.bf16 %v1794, %v1793
      %v1825 = vpack.c.bf16 %v1796, %v1795
      %v1826 = vpack.c.bf16 %v1798, %v1797
      %v1827 = vpack.c.bf16 %v1800, %v1799
      %v1828 = vpack.c.bf16 %v1802, %v1801
      %v1829 = vpack.c.bf16 %v1804, %v1803
      %v1830 = vpack.c.bf16 %v1806, %v1805
      %v1831 = vpack.c.bf16 %v1808, %v1807
      %v1832 = vpack.c.bf16 %v1810, %v1809
      %v1833 = vpack.c.bf16 %v1812, %v1811
      %v1834 = vpack.c.bf16 %v1814, %v1813
      %v1835 = vpack.c.bf16 %v1816, %v1815
      %v1836 = vpack.c.bf16 %v1818, %v1817
      %v1837 = vpack.c.bf16 %v1820, %v1819
      %v1838 = vpack.c.bf16 %v1822, %v1821
      %v1839 = vld [vmem:[#allocation3] sm:$0xff]
      %v1840 = vld [vmem:[#allocation3 + $0x8] sm:$0xff]
      %v1841 = vld [vmem:[#allocation3 + $0x10] sm:$0xff]
      %v1842 = vld [vmem:[#allocation3 + $0x18] sm:$0xff]
      %v1843 = vld [vmem:[#allocation3 + $0x20] sm:$0xff]
      %v1844 = vld [vmem:[#allocation3 + $0x28] sm:$0xff]
      %v1845 = vld [vmem:[#allocation3 + $0x30] sm:$0xff]
      %v1846 = vld [vmem:[#allocation3 + $0x38] sm:$0xff]
      %v1847 = vld [vmem:[#allocation3 + $0x40] sm:$0xff]
      %v1848 = vld [vmem:[#allocation3 + $0x48] sm:$0xff]
      %v1849 = vld [vmem:[#allocation3 + $0x50] sm:$0xff]
      %v1850 = vld [vmem:[#allocation3 + $0x58] sm:$0xff]
      %v1851 = vld [vmem:[#allocation3 + $0x60] sm:$0xff]
      %v1852 = vld [vmem:[#allocation3 + $0x68] sm:$0xff]
      %v1853 = vld [vmem:[#allocation3 + $0x70] sm:$0xff]
      %v1854 = vld [vmem:[#allocation3 + $0x78] sm:$0xff]
      %v1855 = vld [vmem:[#allocation3 + $0x80] sm:$0xff]
      %v1856 = vld [vmem:[#allocation3 + $0x88] sm:$0xff]
      %v1857 = vld [vmem:[#allocation3 + $0x90] sm:$0xff]
      %v1858 = vld [vmem:[#allocation3 + $0x98] sm:$0xff]
      %v1859 = vld [vmem:[#allocation3 + $0xa0] sm:$0xff]
      %v1860 = vld [vmem:[#allocation3 + $0xa8] sm:$0xff]
      %v1861 = vld [vmem:[#allocation3 + $0xb0] sm:$0xff]
      %v1862 = vld [vmem:[#allocation3 + $0xb8] sm:$0xff]
      %v1863 = vld [vmem:[#allocation3 + $0xc0] sm:$0xff]
      %v1864 = vld [vmem:[#allocation3 + $0xc8] sm:$0xff]
      %v1865 = vld [vmem:[#allocation3 + $0xd0] sm:$0xff]
      %v1866 = vld [vmem:[#allocation3 + $0xd8] sm:$0xff]
      %v1867 = vld [vmem:[#allocation3 + $0xe0] sm:$0xff]
      %v1868 = vld [vmem:[#allocation3 + $0xe8] sm:$0xff]
      %v1869 = vld [vmem:[#allocation3 + $0xf0] sm:$0xff]
      %v1870 = vld [vmem:[#allocation3 + $0xf8] sm:$0xff]
      %s1871 = scalar_lea.vmem %s1, 16
      %v1872 = vld [vmem:[%s1871] sm:$0xf]
      %v1874 = vsel %vm216, %v1823, 0
      %v1877 = vsel %vm216, %v1824, 0
      %v1880 = vsel %vm216, %v1825, 0
      %v1883 = vsel %vm216, %v1826, 0
      %v1886 = vsel %vm216, %v1827, 0
      %v1889 = vsel %vm216, %v1828, 0
      %v1892 = vsel %vm216, %v1829, 0
      %v1895 = vsel %vm216, %v1830, 0
      %v1898 = vsel %vm216, %v1831, 0
      %v1901 = vsel %vm216, %v1832, 0
      %v1904 = vsel %vm216, %v1833, 0
      %v1907 = vsel %vm216, %v1834, 0
      %v1910 = vsel %vm216, %v1835, 0
      %v1913 = vsel %vm216, %v1836, 0
      %v1916 = vsel %vm216, %v1837, 0
      %v1919 = vsel %vm216, %v1838, 0
      %v1922 = vsel %vm488, %v1872, 0
      %1924 = vmatprep.subr.bf16.mxu0 0
      %1925 = vmatpush1.bf16.msra.mxu0 %v1922
      %1926 = vmatprep.subr.bf16.mxu0 0
      %1927 = vmatpush1.bf16.msra.mxu0 0
      %1928 = vmatprep.subr.bf16.mxu0 0
      %1929 = vmatpush1.bf16.msra.mxu0 0
      %1930 = vmatprep.subr.bf16.mxu0 0
      %1931 = vmatpush1.bf16.msra.mxu0 0
      %1932 = vmatprep.subr.bf16.mxu0 0
      %1933 = vmatpush1.bf16.msra.mxu0 0
      %1934 = vmatprep.subr.bf16.mxu0 0
      %1935 = vmatpush1.bf16.msra.mxu0 0
      %1936 = vmatprep.subr.bf16.mxu0 0
      %1937 = vmatpush1.bf16.msra.mxu0 0
      %1938 = vmatprep.subr.bf16.mxu0 0
      %1939 = vmatpush1.bf16.msra.mxu0 0
      %1940 = vmatprep.subr.bf16.mxu0 0
      %1941 = vmatpush1.bf16.msra.mxu0 0
      %1942 = vmatprep.subr.bf16.mxu0 0
      %1943 = vmatpush1.bf16.msra.mxu0 0
      %1944 = vmatprep.subr.bf16.mxu0 0
      %1945 = vmatpush1.bf16.msra.mxu0 0
      %1946 = vmatprep.subr.bf16.mxu0 0
      %1947 = vmatpush1.bf16.msra.mxu0 0
      %1948 = vmatprep.subr.bf16.mxu0 0
      %1949 = vmatpush1.bf16.msra.mxu0 0
      %1950 = vmatprep.subr.bf16.mxu0 0
      %1951 = vmatpush1.bf16.msra.mxu0 0
      %1952 = vmatprep.subr.bf16.mxu0 0
      %1953 = vmatpush1.bf16.msra.mxu0 0
      %1954 = vmatprep.subr.bf16.mxu0 0
      %1955 = vmatpush1.bf16.msra.mxu0 0
      %1956 = vmatprep.mubr.bf16.mxu0 0
      %1957 = vmatmul.mubr.bf16.gmra.mrb[0].mxu0 %v1874
      %v1958 = vpop.f32.mrb[0].mxu0
      %v1959 = vadd.f32 0.0, %v1958
      %v1960 = vpop.f32.mrb[0].mxu0
      %v1961 = vpop.f32.mrb[0].mxu0
      %v1962 = vadd.f32 0.0, %v1961
      %v1963 = vpop.f32.mrb[0].mxu0
      %1964 = vmatprep.mubr.bf16.mxu0 0
      %1965 = vmatmul.mubr.bf16.gmra.mrb[0].mxu0 %v1877
      %v1966 = vpop.f32.mrb[0].mxu0
      %v1967 = vadd.f32 0.0, %v1966
      %v1968 = vpop.f32.mrb[0].mxu0
      %v1969 = vpop.f32.mrb[0].mxu0
      %v1970 = vadd.f32 0.0, %v1969
      %v1971 = vpop.f32.mrb[0].mxu0
      %1972 = vmatprep.mubr.bf16.mxu0 0
      %1973 = vmatmul.mubr.bf16.gmra.mrb[0].mxu0 %v1880
      %v1974 = vpop.f32.mrb[0].mxu0
      %v1975 = vadd.f32 0.0, %v1974
      %v1976 = vpop.f32.mrb[0].mxu0
      %v1977 = vpop.f32.mrb[0].mxu0
      %v1978 = vadd.f32 0.0, %v1977
      %v1979 = vpop.f32.mrb[0].mxu0
      %1980 = vmatprep.mubr.bf16.mxu0 0
      %1981 = vmatmul.mubr.bf16.gmra.mrb[0].mxu0 %v1883
      %v1982 = vpop.f32.mrb[0].mxu0
      %v1983 = vadd.f32 0.0, %v1982
      %v1984 = vpop.f32.mrb[0].mxu0
      %v1985 = vpop.f32.mrb[0].mxu0
      %v1986 = vadd.f32 0.0, %v1985
      %v1987 = vpop.f32.mrb[0].mxu0
      %1988 = vmatprep.mubr.bf16.mxu0 0
      %1989 = vmatmul.mubr.bf16.gmra.mrb[0].mxu0 %v1886
      %v1990 = vpop.f32.mrb[0].mxu0
      %v1991 = vadd.f32 0.0, %v1990
      %v1992 = vpop.f32.mrb[0].mxu0
      %v1993 = vpop.f32.mrb[0].mxu0
      %v1994 = vadd.f32 0.0, %v1993
      %v1995 = vpop.f32.mrb[0].mxu0
      %1996 = vmatprep.mubr.bf16.mxu0 0
      %1997 = vmatmul.mubr.bf16.gmra.mrb[0].mxu0 %v1889
      %v1998 = vpop.f32.mrb[0].mxu0
      %v1999 = vadd.f32 0.0, %v1998
      %v2000 = vpop.f32.mrb[0].mxu0
      %v2001 = vpop.f32.mrb[0].mxu0
      %v2002 = vadd.f32 0.0, %v2001
      %v2003 = vpop.f32.mrb[0].mxu0
      %2004 = vmatprep.mubr.bf16.mxu0 0
      %2005 = vmatmul.mubr.bf16.gmra.mrb[0].mxu0 %v1892
      %v2006 = vpop.f32.mrb[0].mxu0
      %v2007 = vadd.f32 0.0, %v2006
      %v2008 = vpop.f32.mrb[0].mxu0
      %v2009 = vpop.f32.mrb[0].mxu0
      %v2010 = vadd.f32 0.0, %v2009
      %v2011 = vpop.f32.mrb[0].mxu0
      %2012 = vmatprep.mubr.bf16.mxu0 0
      %2013 = vmatmul.mubr.bf16.gmra.mrb[0].mxu0 %v1895
      %v2014 = vpop.f32.mrb[0].mxu0
      %v2015 = vadd.f32 0.0, %v2014
      %v2016 = vpop.f32.mrb[0].mxu0
      %v2017 = vpop.f32.mrb[0].mxu0
      %v2018 = vadd.f32 0.0, %v2017
      %v2019 = vpop.f32.mrb[0].mxu0
      %2020 = vmatprep.mubr.bf16.mxu0 0
      %2021 = vmatmul.mubr.bf16.gmra.mrb[0].mxu0 %v1898
      %v2022 = vpop.f32.mrb[0].mxu0
      %v2023 = vadd.f32 0.0, %v2022
      %v2024 = vpop.f32.mrb[0].mxu0
      %v2025 = vpop.f32.mrb[0].mxu0
      %v2026 = vadd.f32 0.0, %v2025
      %v2027 = vpop.f32.mrb[0].mxu0
      %2028 = vmatprep.mubr.bf16.mxu0 0
      %2029 = vmatmul.mubr.bf16.gmra.mrb[0].mxu0 %v1901
      %v2030 = vpop.f32.mrb[0].mxu0
      %v2031 = vadd.f32 0.0, %v2030
      %v2032 = vpop.f32.mrb[0].mxu0
      %v2033 = vpop.f32.mrb[0].mxu0
      %v2034 = vadd.f32 0.0, %v2033
      %v2035 = vpop.f32.mrb[0].mxu0
      %2036 = vmatprep.mubr.bf16.mxu0 0
      %2037 = vmatmul.mubr.bf16.gmra.mrb[0].mxu0 %v1904
      %v2038 = vpop.f32.mrb[0].mxu0
      %v2039 = vadd.f32 0.0, %v2038
      %v2040 = vpop.f32.mrb[0].mxu0
      %v2041 = vpop.f32.mrb[0].mxu0
      %v2042 = vadd.f32 0.0, %v2041
      %v2043 = vpop.f32.mrb[0].mxu0
      %2044 = vmatprep.mubr.bf16.mxu0 0
      %2045 = vmatmul.mubr.bf16.gmra.mrb[0].mxu0 %v1907
      %v2046 = vpop.f32.mrb[0].mxu0
      %v2047 = vadd.f32 0.0, %v2046
      %v2048 = vpop.f32.mrb[0].mxu0
      %v2049 = vpop.f32.mrb[0].mxu0
      %v2050 = vadd.f32 0.0, %v2049
      %v2051 = vpop.f32.mrb[0].mxu0
      %2052 = vmatprep.mubr.bf16.mxu0 0
      %2053 = vmatmul.mubr.bf16.gmra.mrb[0].mxu0 %v1910
      %v2054 = vpop.f32.mrb[0].mxu0
      %v2055 = vadd.f32 0.0, %v2054
      %v2056 = vpop.f32.mrb[0].mxu0
      %v2057 = vpop.f32.mrb[0].mxu0
      %v2058 = vadd.f32 0.0, %v2057
      %v2059 = vpop.f32.mrb[0].mxu0
      %2060 = vmatprep.mubr.bf16.mxu0 0
      %2061 = vmatmul.mubr.bf16.gmra.mrb[0].mxu0 %v1913
      %v2062 = vpop.f32.mrb[0].mxu0
      %v2063 = vadd.f32 0.0, %v2062
      %v2064 = vpop.f32.mrb[0].mxu0
      %v2065 = vpop.f32.mrb[0].mxu0
      %v2066 = vadd.f32 0.0, %v2065
      %v2067 = vpop.f32.mrb[0].mxu0
      %2068 = vmatprep.mubr.bf16.mxu0 0
      %2069 = vmatmul.mubr.bf16.gmra.mrb[0].mxu0 %v1916
      %v2070 = vpop.f32.mrb[0].mxu0
      %v2071 = vadd.f32 0.0, %v2070
      %v2072 = vpop.f32.mrb[0].mxu0
      %v2073 = vpop.f32.mrb[0].mxu0
      %v2074 = vadd.f32 0.0, %v2073
      %v2075 = vpop.f32.mrb[0].mxu0
      %2076 = vmatprep.mubr.bf16.mxu0 0
      %2077 = vmatmul.mubr.bf16.gmra.mrb[0].mxu0 %v1919
      %v2078 = vpop.f32.mrb[0].mxu0
      %v2079 = vadd.f32 0.0, %v2078
      %v2080 = vpop.f32.mrb[0].mxu0
      %v2081 = vpop.f32.mrb[0].mxu0
      %v2082 = vadd.f32 0.0, %v2081
      %v2083 = vpop.f32.mrb[0].mxu0
      %2084 = vdwg.mxu0
      %v2085 = vadd.f32 %v1839, %v1959
      %v2086 = vadd.f32 %v1840, %v1962
      %v2087 = vadd.f32 %v1841, %v1967
      %v2088 = vadd.f32 %v1842, %v1970
      %v2089 = vadd.f32 %v1843, %v1975
      %v2090 = vadd.f32 %v1844, %v1978
      %v2091 = vadd.f32 %v1845, %v1983
      %v2092 = vadd.f32 %v1846, %v1986
      %v2093 = vadd.f32 %v1847, %v1991
      %v2094 = vadd.f32 %v1848, %v1994
      %v2095 = vadd.f32 %v1849, %v1999
      %v2096 = vadd.f32 %v1850, %v2002
      %v2097 = vadd.f32 %v1851, %v2007
      %v2098 = vadd.f32 %v1852, %v2010
      %v2099 = vadd.f32 %v1853, %v2015
      %v2100 = vadd.f32 %v1854, %v2018
      %v2101 = vadd.f32 %v1855, %v2023
      %v2102 = vadd.f32 %v1856, %v2026
      %v2103 = vadd.f32 %v1857, %v2031
      %v2104 = vadd.f32 %v1858, %v2034
      %v2105 = vadd.f32 %v1859, %v2039
      %v2106 = vadd.f32 %v1860, %v2042
      %v2107 = vadd.f32 %v1861, %v2047
      %v2108 = vadd.f32 %v1862, %v2050
      %v2109 = vadd.f32 %v1863, %v2055
      %v2110 = vadd.f32 %v1864, %v2058
      %v2111 = vadd.f32 %v1865, %v2063
      %v2112 = vadd.f32 %v1866, %v2066
      %v2113 = vadd.f32 %v1867, %v2071
      %v2114 = vadd.f32 %v1868, %v2074
      %v2115 = vadd.f32 %v1869, %v2079
      %v2116 = vadd.f32 %v1870, %v2082
      %2117 = vst.msk [vmem:[#allocation3] sm:$0xff] %vm216, %v2085
      %2118 = vst.msk [vmem:[#allocation3 + $0x8] sm:$0xff] %vm216, %v2086
      %2119 = vst.msk [vmem:[#allocation3 + $0x10] sm:$0xff] %vm216, %v2087
      %2120 = vst.msk [vmem:[#allocation3 + $0x18] sm:$0xff] %vm216, %v2088
      %2121 = vst.msk [vmem:[#allocation3 + $0x20] sm:$0xff] %vm216, %v2089
      %2122 = vst.msk [vmem:[#allocation3 + $0x28] sm:$0xff] %vm216, %v2090
      %2123 = vst.msk [vmem:[#allocation3 + $0x30] sm:$0xff] %vm216, %v2091
      %2124 = vst.msk [vmem:[#allocation3 + $0x38] sm:$0xff] %vm216, %v2092
      %2125 = vst.msk [vmem:[#allocation3 + $0x40] sm:$0xff] %vm216, %v2093
      %2126 = vst.msk [vmem:[#allocation3 + $0x48] sm:$0xff] %vm216, %v2094
      %2127 = vst.msk [vmem:[#allocation3 + $0x50] sm:$0xff] %vm216, %v2095
      %2128 = vst.msk [vmem:[#allocation3 + $0x58] sm:$0xff] %vm216, %v2096
      %2129 = vst.msk [vmem:[#allocation3 + $0x60] sm:$0xff] %vm216, %v2097
      %2130 = vst.msk [vmem:[#allocation3 + $0x68] sm:$0xff] %vm216, %v2098
      %2131 = vst.msk [vmem:[#allocation3 + $0x70] sm:$0xff] %vm216, %v2099
      %2132 = vst.msk [vmem:[#allocation3 + $0x78] sm:$0xff] %vm216, %v2100
      %2133 = vst.msk [vmem:[#allocation3 + $0x80] sm:$0xff] %vm216, %v2101
      %2134 = vst.msk [vmem:[#allocation3 + $0x88] sm:$0xff] %vm216, %v2102
      %2135 = vst.msk [vmem:[#allocation3 + $0x90] sm:$0xff] %vm216, %v2103
      %2136 = vst.msk [vmem:[#allocation3 + $0x98] sm:$0xff] %vm216, %v2104
      %2137 = vst.msk [vmem:[#allocation3 + $0xa0] sm:$0xff] %vm216, %v2105
      %2138 = vst.msk [vmem:[#allocation3 + $0xa8] sm:$0xff] %vm216, %v2106
      %2139 = vst.msk [vmem:[#allocation3 + $0xb0] sm:$0xff] %vm216, %v2107
      %2140 = vst.msk [vmem:[#allocation3 + $0xb8] sm:$0xff] %vm216, %v2108
      %2141 = vst.msk [vmem:[#allocation3 + $0xc0] sm:$0xff] %vm216, %v2109
      %2142 = vst.msk [vmem:[#allocation3 + $0xc8] sm:$0xff] %vm216, %v2110
      %2143 = vst.msk [vmem:[#allocation3 + $0xd0] sm:$0xff] %vm216, %v2111
      %2144 = vst.msk [vmem:[#allocation3 + $0xd8] sm:$0xff] %vm216, %v2112
      %2145 = vst.msk [vmem:[#allocation3 + $0xe0] sm:$0xff] %vm216, %v2113
      %2146 = vst.msk [vmem:[#allocation3 + $0xe8] sm:$0xff] %vm216, %v2114
      %2147 = vst.msk [vmem:[#allocation3 + $0xf0] sm:$0xff] %vm216, %v2115
      %2148 = vst.msk [vmem:[#allocation3 + $0xf8] sm:$0xff] %vm216, %v2116
      %v2149 = vld [vmem:[%s294 + $0x2] sm:$0xff]
      %v2150 = vld [vmem:[%s294 + $0xa] sm:$0xff]
      %v2151 = vld [vmem:[%s294 + $0x1a] sm:$0xff]
      %v2152 = vld [vmem:[%s294 + $0x22] sm:$0xff]
      %v2153 = vld [vmem:[%s294 + $0x32] sm:$0xff]
      %v2154 = vld [vmem:[%s294 + $0x3a] sm:$0xff]
      %v2155 = vld [vmem:[%s294 + $0x4a] sm:$0xff]
      %v2156 = vld [vmem:[%s294 + $0x52] sm:$0xff]
      %v2157 = vld [vmem:[%s294 + $0x62] sm:$0xff]
      %v2158 = vld [vmem:[%s294 + $0x6a] sm:$0xff]
      %v2159 = vld [vmem:[%s294 + $0x7a] sm:$0xff]
      %v2160 = vld [vmem:[%s294 + $0x82] sm:$0xff]
      %v2161 = vld [vmem:[%s294 + $0x92] sm:$0xff]
      %v2162 = vld [vmem:[%s294 + $0x9a] sm:$0xff]
      %v2163 = vld [vmem:[%s294 + $0xaa] sm:$0xff]
      %v2164 = vld [vmem:[%s294 + $0xb2] sm:$0xff]
      %v2165 = vld [vmem:[%s294 + $0xc2] sm:$0xff]
      %v2166 = vld [vmem:[%s294 + $0xca] sm:$0xff]
      %v2167 = vld [vmem:[%s294 + $0xda] sm:$0xff]
      %v2168 = vld [vmem:[%s294 + $0xe2] sm:$0xff]
      %v2169 = vld [vmem:[%s294 + $0xf2] sm:$0xff]
      %v2170 = vld [vmem:[%s294 + $0xfa] sm:$0xff]
      %v2171 = vld [vmem:[%s294 + $0x10a] sm:$0xff]
      %v2172 = vld [vmem:[%s294 + $0x112] sm:$0xff]
      %v2173 = vld [vmem:[%s294 + $0x122] sm:$0xff]
      %v2174 = vld [vmem:[%s294 + $0x12a] sm:$0xff]
      %v2175 = vld [vmem:[%s294 + $0x13a] sm:$0xff]
      %v2176 = vld [vmem:[%s294 + $0x142] sm:$0xff]
      %v2177 = vld [vmem:[%s294 + $0x152] sm:$0xff]
      %v2178 = vld [vmem:[%s294 + $0x15a] sm:$0xff]
      %v2179 = vld [vmem:[%s294 + $0x16a] sm:$0xff]
      %v2180 = vld [vmem:[%s294 + $0x172] sm:$0xff]
      %v2181 = vpack.c.bf16 %v2150, %v2149
      %v2182 = vpack.c.bf16 %v2152, %v2151
      %v2183 = vpack.c.bf16 %v2154, %v2153
      %v2184 = vpack.c.bf16 %v2156, %v2155
      %v2185 = vpack.c.bf16 %v2158, %v2157
      %v2186 = vpack.c.bf16 %v2160, %v2159
      %v2187 = vpack.c.bf16 %v2162, %v2161
      %v2188 = vpack.c.bf16 %v2164, %v2163
      %v2189 = vpack.c.bf16 %v2166, %v2165
      %v2190 = vpack.c.bf16 %v2168, %v2167
      %v2191 = vpack.c.bf16 %v2170, %v2169
      %v2192 = vpack.c.bf16 %v2172, %v2171
      %v2193 = vpack.c.bf16 %v2174, %v2173
      %v2194 = vpack.c.bf16 %v2176, %v2175
      %v2195 = vpack.c.bf16 %v2178, %v2177
      %v2196 = vpack.c.bf16 %v2180, %v2179
      %v2197 = vld [vmem:[#allocation3] sm:$0xff]
      %v2198 = vld [vmem:[#allocation3 + $0x8] sm:$0xff]
      %v2199 = vld [vmem:[#allocation3 + $0x10] sm:$0xff]
      %v2200 = vld [vmem:[#allocation3 + $0x18] sm:$0xff]
      %v2201 = vld [vmem:[#allocation3 + $0x20] sm:$0xff]
      %v2202 = vld [vmem:[#allocation3 + $0x28] sm:$0xff]
      %v2203 = vld [vmem:[#allocation3 + $0x30] sm:$0xff]
      %v2204 = vld [vmem:[#allocation3 + $0x38] sm:$0xff]
      %v2205 = vld [vmem:[#allocation3 + $0x40] sm:$0xff]
      %v2206 = vld [vmem:[#allocation3 + $0x48] sm:$0xff]
      %v2207 = vld [vmem:[#allocation3 + $0x50] sm:$0xff]
      %v2208 = vld [vmem:[#allocation3 + $0x58] sm:$0xff]
      %v2209 = vld [vmem:[#allocation3 + $0x60] sm:$0xff]
      %v2210 = vld [vmem:[#allocation3 + $0x68] sm:$0xff]
      %v2211 = vld [vmem:[#allocation3 + $0x70] sm:$0xff]
      %v2212 = vld [vmem:[#allocation3 + $0x78] sm:$0xff]
      %v2213 = vld [vmem:[#allocation3 + $0x80] sm:$0xff]
      %v2214 = vld [vmem:[#allocation3 + $0x88] sm:$0xff]
      %v2215 = vld [vmem:[#allocation3 + $0x90] sm:$0xff]
      %v2216 = vld [vmem:[#allocation3 + $0x98] sm:$0xff]
      %v2217 = vld [vmem:[#allocation3 + $0xa0] sm:$0xff]
      %v2218 = vld [vmem:[#allocation3 + $0xa8] sm:$0xff]
      %v2219 = vld [vmem:[#allocation3 + $0xb0] sm:$0xff]
      %v2220 = vld [vmem:[#allocation3 + $0xb8] sm:$0xff]
      %v2221 = vld [vmem:[#allocation3 + $0xc0] sm:$0xff]
      %v2222 = vld [vmem:[#allocation3 + $0xc8] sm:$0xff]
      %v2223 = vld [vmem:[#allocation3 + $0xd0] sm:$0xff]
      %v2224 = vld [vmem:[#allocation3 + $0xd8] sm:$0xff]
      %v2225 = vld [vmem:[#allocation3 + $0xe0] sm:$0xff]
      %v2226 = vld [vmem:[#allocation3 + $0xe8] sm:$0xff]
      %v2227 = vld [vmem:[#allocation3 + $0xf0] sm:$0xff]
      %v2228 = vld [vmem:[#allocation3 + $0xf8] sm:$0xff]
      %s2229 = scalar_lea.vmem %s1, 20
      %v2230 = vld [vmem:[%s2229] sm:$0xf]
      %v2232 = vsel %vm216, %v2181, 0
      %v2235 = vsel %vm216, %v2182, 0
      %v2238 = vsel %vm216, %v2183, 0
      %v2241 = vsel %vm216, %v2184, 0
      %v2244 = vsel %vm216, %v2185, 0
      %v2247 = vsel %vm216, %v2186, 0
      %v2250 = vsel %vm216, %v2187, 0
      %v2253 = vsel %vm216, %v2188, 0
      %v2256 = vsel %vm216, %v2189, 0
      %v2259 = vsel %vm216, %v2190, 0
      %v2262 = vsel %vm216, %v2191, 0
      %v2265 = vsel %vm216, %v2192, 0
      %v2268 = vsel %vm216, %v2193, 0
      %v2271 = vsel %vm216, %v2194, 0
      %v2274 = vsel %vm216, %v2195, 0
      %v2277 = vsel %vm216, %v2196, 0
      %v2280 = vsel %vm488, %v2230, 0
      %2282 = vmatprep.subr.bf16.mxu0 0
      %2283 = vmatpush1.bf16.msra.mxu0 %v2280
      %2284 = vmatprep.subr.bf16.mxu0 0
      %2285 = vmatpush1.bf16.msra.mxu0 0
      %2286 = vmatprep.subr.bf16.mxu0 0
      %2287 = vmatpush1.bf16.msra.mxu0 0
      %2288 = vmatprep.subr.bf16.mxu0 0
      %2289 = vmatpush1.bf16.msra.mxu0 0
      %2290 = vmatprep.subr.bf16.mxu0 0
      %2291 = vmatpush1.bf16.msra.mxu0 0
      %2292 = vmatprep.subr.bf16.mxu0 0
      %2293 = vmatpush1.bf16.msra.mxu0 0
      %2294 = vmatprep.subr.bf16.mxu0 0
      %2295 = vmatpush1.bf16.msra.mxu0 0
      %2296 = vmatprep.subr.bf16.mxu0 0
      %2297 = vmatpush1.bf16.msra.mxu0 0
      %2298 = vmatprep.subr.bf16.mxu0 0
      %2299 = vmatpush1.bf16.msra.mxu0 0
      %2300 = vmatprep.subr.bf16.mxu0 0
      %2301 = vmatpush1.bf16.msra.mxu0 0
      %2302 = vmatprep.subr.bf16.mxu0 0
      %2303 = vmatpush1.bf16.msra.mxu0 0
      %2304 = vmatprep.subr.bf16.mxu0 0
      %2305 = vmatpush1.bf16.msra.mxu0 0
      %2306 = vmatprep.subr.bf16.mxu0 0
      %2307 = vmatpush1.bf16.msra.mxu0 0
      %2308 = vmatprep.subr.bf16.mxu0 0
      %2309 = vmatpush1.bf16.msra.mxu0 0
      %2310 = vmatprep.subr.bf16.mxu0 0
      %2311 = vmatpush1.bf16.msra.mxu0 0
      %2312 = vmatprep.subr.bf16.mxu0 0
      %2313 = vmatpush1.bf16.msra.mxu0 0
      %2314 = vmatprep.mubr.bf16.mxu0 0
      %2315 = vmatmul.mubr.bf16.gmra.mrb[0].mxu0 %v2232
      %v2316 = vpop.f32.mrb[0].mxu0
      %v2317 = vadd.f32 0.0, %v2316
      %v2318 = vpop.f32.mrb[0].mxu0
      %v2319 = vpop.f32.mrb[0].mxu0
      %v2320 = vadd.f32 0.0, %v2319
      %v2321 = vpop.f32.mrb[0].mxu0
      %2322 = vmatprep.mubr.bf16.mxu0 0
      %2323 = vmatmul.mubr.bf16.gmra.mrb[0].mxu0 %v2235
      %v2324 = vpop.f32.mrb[0].mxu0
      %v2325 = vadd.f32 0.0, %v2324
      %v2326 = vpop.f32.mrb[0].mxu0
      %v2327 = vpop.f32.mrb[0].mxu0
      %v2328 = vadd.f32 0.0, %v2327
      %v2329 = vpop.f32.mrb[0].mxu0
      %2330 = vmatprep.mubr.bf16.mxu0 0
      %2331 = vmatmul.mubr.bf16.gmra.mrb[0].mxu0 %v2238
      %v2332 = vpop.f32.mrb[0].mxu0
      %v2333 = vadd.f32 0.0, %v2332
      %v2334 = vpop.f32.mrb[0].mxu0
      %v2335 = vpop.f32.mrb[0].mxu0
      %v2336 = vadd.f32 0.0, %v2335
      %v2337 = vpop.f32.mrb[0].mxu0
      %2338 = vmatprep.mubr.bf16.mxu0 0
      %2339 = vmatmul.mubr.bf16.gmra.mrb[0].mxu0 %v2241
      %v2340 = vpop.f32.mrb[0].mxu0
      %v2341 = vadd.f32 0.0, %v2340
      %v2342 = vpop.f32.mrb[0].mxu0
      %v2343 = vpop.f32.mrb[0].mxu0
      %v2344 = vadd.f32 0.0, %v2343
      %v2345 = vpop.f32.mrb[0].mxu0
      %2346 = vmatprep.mubr.bf16.mxu0 0
      %2347 = vmatmul.mubr.bf16.gmra.mrb[0].mxu0 %v2244
      %v2348 = vpop.f32.mrb[0].mxu0
      %v2349 = vadd.f32 0.0, %v2348
      %v2350 = vpop.f32.mrb[0].mxu0
      %v2351 = vpop.f32.mrb[0].mxu0
      %v2352 = vadd.f32 0.0, %v2351
      %v2353 = vpop.f32.mrb[0].mxu0
      %2354 = vmatprep.mubr.bf16.mxu0 0
      %2355 = vmatmul.mubr.bf16.gmra.mrb[0].mxu0 %v2247
      %v2356 = vpop.f32.mrb[0].mxu0
      %v2357 = vadd.f32 0.0, %v2356
      %v2358 = vpop.f32.mrb[0].mxu0
      %v2359 = vpop.f32.mrb[0].mxu0
      %v2360 = vadd.f32 0.0, %v2359
      %v2361 = vpop.f32.mrb[0].mxu0
      %2362 = vmatprep.mubr.bf16.mxu0 0
      %2363 = vmatmul.mubr.bf16.gmra.mrb[0].mxu0 %v2250
      %v2364 = vpop.f32.mrb[0].mxu0
      %v2365 = vadd.f32 0.0, %v2364
      %v2366 = vpop.f32.mrb[0].mxu0
      %v2367 = vpop.f32.mrb[0].mxu0
      %v2368 = vadd.f32 0.0, %v2367
      %v2369 = vpop.f32.mrb[0].mxu0
      %2370 = vmatprep.mubr.bf16.mxu0 0
      %2371 = vmatmul.mubr.bf16.gmra.mrb[0].mxu0 %v2253
      %v2372 = vpop.f32.mrb[0].mxu0
      %v2373 = vadd.f32 0.0, %v2372
      %v2374 = vpop.f32.mrb[0].mxu0
      %v2375 = vpop.f32.mrb[0].mxu0
      %v2376 = vadd.f32 0.0, %v2375
      %v2377 = vpop.f32.mrb[0].mxu0
      %2378 = vmatprep.mubr.bf16.mxu0 0
      %2379 = vmatmul.mubr.bf16.gmra.mrb[0].mxu0 %v2256
      %v2380 = vpop.f32.mrb[0].mxu0
      %v2381 = vadd.f32 0.0, %v2380
      %v2382 = vpop.f32.mrb[0].mxu0
      %v2383 = vpop.f32.mrb[0].mxu0
      %v2384 = vadd.f32 0.0, %v2383
      %v2385 = vpop.f32.mrb[0].mxu0
      %2386 = vmatprep.mubr.bf16.mxu0 0
      %2387 = vmatmul.mubr.bf16.gmra.mrb[0].mxu0 %v2259
      %v2388 = vpop.f32.mrb[0].mxu0
      %v2389 = vadd.f32 0.0, %v2388
      %v2390 = vpop.f32.mrb[0].mxu0
      %v2391 = vpop.f32.mrb[0].mxu0
      %v2392 = vadd.f32 0.0, %v2391
      %v2393 = vpop.f32.mrb[0].mxu0
      %2394 = vmatprep.mubr.bf16.mxu0 0
      %2395 = vmatmul.mubr.bf16.gmra.mrb[0].mxu0 %v2262
      %v2396 = vpop.f32.mrb[0].mxu0
      %v2397 = vadd.f32 0.0, %v2396
      %v2398 = vpop.f32.mrb[0].mxu0
      %v2399 = vpop.f32.mrb[0].mxu0
      %v2400 = vadd.f32 0.0, %v2399
      %v2401 = vpop.f32.mrb[0].mxu0
      %2402 = vmatprep.mubr.bf16.mxu0 0
      %2403 = vmatmul.mubr.bf16.gmra.mrb[0].mxu0 %v2265
      %v2404 = vpop.f32.mrb[0].mxu0
      %v2405 = vadd.f32 0.0, %v2404
      %v2406 = vpop.f32.mrb[0].mxu0
      %v2407 = vpop.f32.mrb[0].mxu0
      %v2408 = vadd.f32 0.0, %v2407
      %v2409 = vpop.f32.mrb[0].mxu0
      %2410 = vmatprep.mubr.bf16.mxu0 0
      %2411 = vmatmul.mubr.bf16.gmra.mrb[0].mxu0 %v2268
      %v2412 = vpop.f32.mrb[0].mxu0
      %v2413 = vadd.f32 0.0, %v2412
      %v2414 = vpop.f32.mrb[0].mxu0
      %v2415 = vpop.f32.mrb[0].mxu0
      %v2416 = vadd.f32 0.0, %v2415
      %v2417 = vpop.f32.mrb[0].mxu0
      %2418 = vmatprep.mubr.bf16.mxu0 0
      %2419 = vmatmul.mubr.bf16.gmra.mrb[0].mxu0 %v2271
      %v2420 = vpop.f32.mrb[0].mxu0
      %v2421 = vadd.f32 0.0, %v2420
      %v2422 = vpop.f32.mrb[0].mxu0
      %v2423 = vpop.f32.mrb[0].mxu0
      %v2424 = vadd.f32 0.0, %v2423
      %v2425 = vpop.f32.mrb[0].mxu0
      %2426 = vmatprep.mubr.bf16.mxu0 0
      %2427 = vmatmul.mubr.bf16.gmra.mrb[0].mxu0 %v2274
      %v2428 = vpop.f32.mrb[0].mxu0
      %v2429 = vadd.f32 0.0, %v2428
      %v2430 = vpop.f32.mrb[0].mxu0
      %v2431 = vpop.f32.mrb[0].mxu0
      %v2432 = vadd.f32 0.0, %v2431
      %v2433 = vpop.f32.mrb[0].mxu0
      %2434 = vmatprep.mubr.bf16.mxu0 0
      %2435 = vmatmul.mubr.bf16.gmra.mrb[0].mxu0 %v2277
      %v2436 = vpop.f32.mrb[0].mxu0
      %v2437 = vadd.f32 0.0, %v2436
      %v2438 = vpop.f32.mrb[0].mxu0
      %v2439 = vpop.f32.mrb[0].mxu0
      %v2440 = vadd.f32 0.0, %v2439
      %v2441 = vpop.f32.mrb[0].mxu0
      %2442 = vdwg.mxu0
      %v2443 = vadd.f32 %v2197, %v2317
      %v2444 = vadd.f32 %v2198, %v2320
      %v2445 = vadd.f32 %v2199, %v2325
      %v2446 = vadd.f32 %v2200, %v2328
      %v2447 = vadd.f32 %v2201, %v2333
      %v2448 = vadd.f32 %v2202, %v2336
      %v2449 = vadd.f32 %v2203, %v2341
      %v2450 = vadd.f32 %v2204, %v2344
      %v2451 = vadd.f32 %v2205, %v2349
      %v2452 = vadd.f32 %v2206, %v2352
      %v2453 = vadd.f32 %v2207, %v2357
      %v2454 = vadd.f32 %v2208, %v2360
      %v2455 = vadd.f32 %v2209, %v2365
      %v2456 = vadd.f32 %v2210, %v2368
      %v2457 = vadd.f32 %v2211, %v2373
      %v2458 = vadd.f32 %v2212, %v2376
      %v2459 = vadd.f32 %v2213, %v2381
      %v2460 = vadd.f32 %v2214, %v2384
      %v2461 = vadd.f32 %v2215, %v2389
      %v2462 = vadd.f32 %v2216, %v2392
      %v2463 = vadd.f32 %v2217, %v2397
      %v2464 = vadd.f32 %v2218, %v2400
      %v2465 = vadd.f32 %v2219, %v2405
      %v2466 = vadd.f32 %v2220, %v2408
      %v2467 = vadd.f32 %v2221, %v2413
      %v2468 = vadd.f32 %v2222, %v2416
      %v2469 = vadd.f32 %v2223, %v2421
      %v2470 = vadd.f32 %v2224, %v2424
      %v2471 = vadd.f32 %v2225, %v2429
      %v2472 = vadd.f32 %v2226, %v2432
      %v2473 = vadd.f32 %v2227, %v2437
      %v2474 = vadd.f32 %v2228, %v2440
      %2475 = vst.msk [vmem:[#allocation3] sm:$0xff] %vm216, %v2443
      %2476 = vst.msk [vmem:[#allocation3 + $0x8] sm:$0xff] %vm216, %v2444
      %2477 = vst.msk [vmem:[#allocation3 + $0x10] sm:$0xff] %vm216, %v2445
      %2478 = vst.msk [vmem:[#allocation3 + $0x18] sm:$0xff] %vm216, %v2446
      %2479 = vst.msk [vmem:[#allocation3 + $0x20] sm:$0xff] %vm216, %v2447
      %2480 = vst.msk [vmem:[#allocation3 + $0x28] sm:$0xff] %vm216, %v2448
      %2481 = vst.msk [vmem:[#allocation3 + $0x30] sm:$0xff] %vm216, %v2449
      %2482 = vst.msk [vmem:[#allocation3 + $0x38] sm:$0xff] %vm216, %v2450
      %2483 = vst.msk [vmem:[#allocation3 + $0x40] sm:$0xff] %vm216, %v2451
      %2484 = vst.msk [vmem:[#allocation3 + $0x48] sm:$0xff] %vm216, %v2452
      %2485 = vst.msk [vmem:[#allocation3 + $0x50] sm:$0xff] %vm216, %v2453
      %2486 = vst.msk [vmem:[#allocation3 + $0x58] sm:$0xff] %vm216, %v2454
      %2487 = vst.msk [vmem:[#allocation3 + $0x60] sm:$0xff] %vm216, %v2455
      %2488 = vst.msk [vmem:[#allocation3 + $0x68] sm:$0xff] %vm216, %v2456
      %2489 = vst.msk [vmem:[#allocation3 + $0x70] sm:$0xff] %vm216, %v2457
      %2490 = vst.msk [vmem:[#allocation3 + $0x78] sm:$0xff] %vm216, %v2458
      %2491 = vst.msk [vmem:[#allocation3 + $0x80] sm:$0xff] %vm216, %v2459
      %2492 = vst.msk [vmem:[#allocation3 + $0x88] sm:$0xff] %vm216, %v2460
      %2493 = vst.msk [vmem:[#allocation3 + $0x90] sm:$0xff] %vm216, %v2461
      %2494 = vst.msk [vmem:[#allocation3 + $0x98] sm:$0xff] %vm216, %v2462
      %2495 = vst.msk [vmem:[#allocation3 + $0xa0] sm:$0xff] %vm216, %v2463
      %2496 = vst.msk [vmem:[#allocation3 + $0xa8] sm:$0xff] %vm216, %v2464
      %2497 = vst.msk [vmem:[#allocation3 + $0xb0] sm:$0xff] %vm216, %v2465
      %2498 = vst.msk [vmem:[#allocation3 + $0xb8] sm:$0xff] %vm216, %v2466
      %2499 = vst.msk [vmem:[#allocation3 + $0xc0] sm:$0xff] %vm216, %v2467
      %2500 = vst.msk [vmem:[#allocation3 + $0xc8] sm:$0xff] %vm216, %v2468
      %2501 = vst.msk [vmem:[#allocation3 + $0xd0] sm:$0xff] %vm216, %v2469
      %2502 = vst.msk [vmem:[#allocation3 + $0xd8] sm:$0xff] %vm216, %v2470
      %2503 = vst.msk [vmem:[#allocation3 + $0xe0] sm:$0xff] %vm216, %v2471
      %2504 = vst.msk [vmem:[#allocation3 + $0xe8] sm:$0xff] %vm216, %v2472
      %2505 = vst.msk [vmem:[#allocation3 + $0xf0] sm:$0xff] %vm216, %v2473
      %2506 = vst.msk [vmem:[#allocation3 + $0xf8] sm:$0xff] %vm216, %v2474
      %s2507 = scalar_lea.vmem [#allocation2], 48
      %v2508 = vld [vmem:[%s2507] sm:$0xff]
      %v2509 = vld [vmem:[%s2507 + $0x8] sm:$0xff]
      %v2510 = vld [vmem:[%s2507 + $0x18] sm:$0xff]
      %v2511 = vld [vmem:[%s2507 + $0x20] sm:$0xff]
      %v2512 = vld [vmem:[%s2507 + $0x30] sm:$0xff]
      %v2513 = vld [vmem:[%s2507 + $0x38] sm:$0xff]
      %v2514 = vld [vmem:[%s2507 + $0x48] sm:$0xff]
      %v2515 = vld [vmem:[%s2507 + $0x50] sm:$0xff]
      %v2516 = vld [vmem:[%s2507 + $0x60] sm:$0xff]
      %v2517 = vld [vmem:[%s2507 + $0x68] sm:$0xff]
      %v2518 = vld [vmem:[%s2507 + $0x78] sm:$0xff]
      %v2519 = vld [vmem:[%s2507 + $0x80] sm:$0xff]
      %v2520 = vld [vmem:[%s2507 + $0x90] sm:$0xff]
      %v2521 = vld [vmem:[%s2507 + $0x98] sm:$0xff]
      %v2522 = vld [vmem:[%s2507 + $0xa8] sm:$0xff]
      %v2523 = vld [vmem:[%s2507 + $0xb0] sm:$0xff]
      %v2524 = vld [vmem:[%s2507 + $0xc0] sm:$0xff]
      %v2525 = vld [vmem:[%s2507 + $0xc8] sm:$0xff]
      %v2526 = vld [vmem:[%s2507 + $0xd8] sm:$0xff]
      %v2527 = vld [vmem:[%s2507 + $0xe0] sm:$0xff]
      %v2528 = vld [vmem:[%s2507 + $0xf0] sm:$0xff]
      %v2529 = vld [vmem:[%s2507 + $0xf8] sm:$0xff]
      %v2530 = vld [vmem:[%s2507 + $0x108] sm:$0xff]
      %v2531 = vld [vmem:[%s2507 + $0x110] sm:$0xff]
      %v2532 = vld [vmem:[%s2507 + $0x120] sm:$0xff]
      %v2533 = vld [vmem:[%s2507 + $0x128] sm:$0xff]
      %v2534 = vld [vmem:[%s2507 + $0x138] sm:$0xff]
      %v2535 = vld [vmem:[%s2507 + $0x140] sm:$0xff]
      %v2536 = vld [vmem:[%s2507 + $0x150] sm:$0xff]
      %v2537 = vld [vmem:[%s2507 + $0x158] sm:$0xff]
      %v2538 = vld [vmem:[%s2507 + $0x168] sm:$0xff]
      %v2539 = vld [vmem:[%s2507 + $0x170] sm:$0xff]
      %v2540 = vpack.c.bf16 %v2509, %v2508
      %v2541 = vpack.c.bf16 %v2511, %v2510
      %v2542 = vpack.c.bf16 %v2513, %v2512
      %v2543 = vpack.c.bf16 %v2515, %v2514
      %v2544 = vpack.c.bf16 %v2517, %v2516
      %v2545 = vpack.c.bf16 %v2519, %v2518
      %v2546 = vpack.c.bf16 %v2521, %v2520
      %v2547 = vpack.c.bf16 %v2523, %v2522
      %v2548 = vpack.c.bf16 %v2525, %v2524
      %v2549 = vpack.c.bf16 %v2527, %v2526
      %v2550 = vpack.c.bf16 %v2529, %v2528
      %v2551 = vpack.c.bf16 %v2531, %v2530
      %v2552 = vpack.c.bf16 %v2533, %v2532
      %v2553 = vpack.c.bf16 %v2535, %v2534
      %v2554 = vpack.c.bf16 %v2537, %v2536
      %v2555 = vpack.c.bf16 %v2539, %v2538
      %v2556 = vld [vmem:[#allocation3] sm:$0xff]
      %v2557 = vld [vmem:[#allocation3 + $0x8] sm:$0xff]
      %v2558 = vld [vmem:[#allocation3 + $0x10] sm:$0xff]
      %v2559 = vld [vmem:[#allocation3 + $0x18] sm:$0xff]
      %v2560 = vld [vmem:[#allocation3 + $0x20] sm:$0xff]
      %v2561 = vld [vmem:[#allocation3 + $0x28] sm:$0xff]
      %v2562 = vld [vmem:[#allocation3 + $0x30] sm:$0xff]
      %v2563 = vld [vmem:[#allocation3 + $0x38] sm:$0xff]
      %v2564 = vld [vmem:[#allocation3 + $0x40] sm:$0xff]
      %v2565 = vld [vmem:[#allocation3 + $0x48] sm:$0xff]
      %v2566 = vld [vmem:[#allocation3 + $0x50] sm:$0xff]
      %v2567 = vld [vmem:[#allocation3 + $0x58] sm:$0xff]
      %v2568 = vld [vmem:[#allocation3 + $0x60] sm:$0xff]
      %v2569 = vld [vmem:[#allocation3 + $0x68] sm:$0xff]
      %v2570 = vld [vmem:[#allocation3 + $0x70] sm:$0xff]
      %v2571 = vld [vmem:[#allocation3 + $0x78] sm:$0xff]
      %v2572 = vld [vmem:[#allocation3 + $0x80] sm:$0xff]
      %v2573 = vld [vmem:[#allocation3 + $0x88] sm:$0xff]
      %v2574 = vld [vmem:[#allocation3 + $0x90] sm:$0xff]
      %v2575 = vld [vmem:[#allocation3 + $0x98] sm:$0xff]
      %v2576 = vld [vmem:[#allocation3 + $0xa0] sm:$0xff]
      %v2577 = vld [vmem:[#allocation3 + $0xa8] sm:$0xff]
      %v2578 = vld [vmem:[#allocation3 + $0xb0] sm:$0xff]
      %v2579 = vld [vmem:[#allocation3 + $0xb8] sm:$0xff]
      %v2580 = vld [vmem:[#allocation3 + $0xc0] sm:$0xff]
      %v2581 = vld [vmem:[#allocation3 + $0xc8] sm:$0xff]
      %v2582 = vld [vmem:[#allocation3 + $0xd0] sm:$0xff]
      %v2583 = vld [vmem:[#allocation3 + $0xd8] sm:$0xff]
      %v2584 = vld [vmem:[#allocation3 + $0xe0] sm:$0xff]
      %v2585 = vld [vmem:[#allocation3 + $0xe8] sm:$0xff]
      %v2586 = vld [vmem:[#allocation3 + $0xf0] sm:$0xff]
      %v2587 = vld [vmem:[#allocation3 + $0xf8] sm:$0xff]
      %s2588 = scalar_lea.vmem %s1, 24
      %v2589 = vld [vmem:[%s2588] sm:$0xf]
      %v2591 = vsel %vm216, %v2540, 0
      %v2594 = vsel %vm216, %v2541, 0
      %v2597 = vsel %vm216, %v2542, 0
      %v2600 = vsel %vm216, %v2543, 0
      %v2603 = vsel %vm216, %v2544, 0
      %v2606 = vsel %vm216, %v2545, 0
      %v2609 = vsel %vm216, %v2546, 0
      %v2612 = vsel %vm216, %v2547, 0
      %v2615 = vsel %vm216, %v2548, 0
      %v2618 = vsel %vm216, %v2549, 0
      %v2621 = vsel %vm216, %v2550, 0
      %v2624 = vsel %vm216, %v2551, 0
      %v2627 = vsel %vm216, %v2552, 0
      %v2630 = vsel %vm216, %v2553, 0
      %v2633 = vsel %vm216, %v2554, 0
      %v2636 = vsel %vm216, %v2555, 0
      %v2639 = vsel %vm488, %v2589, 0
      %2641 = vmatprep.subr.bf16.mxu0 0
      %2642 = vmatpush1.bf16.msra.mxu0 %v2639
      %2643 = vmatprep.subr.bf16.mxu0 0
      %2644 = vmatpush1.bf16.msra.mxu0 0
      %2645 = vmatprep.subr.bf16.mxu0 0
      %2646 = vmatpush1.bf16.msra.mxu0 0
      %2647 = vmatprep.subr.bf16.mxu0 0
      %2648 = vmatpush1.bf16.msra.mxu0 0
      %2649 = vmatprep.subr.bf16.mxu0 0
      %2650 = vmatpush1.bf16.msra.mxu0 0
      %2651 = vmatprep.subr.bf16.mxu0 0
      %2652 = vmatpush1.bf16.msra.mxu0 0
      %2653 = vmatprep.subr.bf16.mxu0 0
      %2654 = vmatpush1.bf16.msra.mxu0 0
      %2655 = vmatprep.subr.bf16.mxu0 0
      %2656 = vmatpush1.bf16.msra.mxu0 0
      %2657 = vmatprep.subr.bf16.mxu0 0
      %2658 = vmatpush1.bf16.msra.mxu0 0
      %2659 = vmatprep.subr.bf16.mxu0 0
      %2660 = vmatpush1.bf16.msra.mxu0 0
      %2661 = vmatprep.subr.bf16.mxu0 0
      %2662 = vmatpush1.bf16.msra.mxu0 0
      %2663 = vmatprep.subr.bf16.mxu0 0
      %2664 = vmatpush1.bf16.msra.mxu0 0
      %2665 = vmatprep.subr.bf16.mxu0 0
      %2666 = vmatpush1.bf16.msra.mxu0 0
      %2667 = vmatprep.subr.bf16.mxu0 0
      %2668 = vmatpush1.bf16.msra.mxu0 0
      %2669 = vmatprep.subr.bf16.mxu0 0
      %2670 = vmatpush1.bf16.msra.mxu0 0
      %2671 = vmatprep.subr.bf16.mxu0 0
      %2672 = vmatpush1.bf16.msra.mxu0 0
      %2673 = vmatprep.mubr.bf16.mxu0 0
      %2674 = vmatmul.mubr.bf16.gmra.mrb[0].mxu0 %v2591
      %v2675 = vpop.f32.mrb[0].mxu0
      %v2676 = vadd.f32 0.0, %v2675
      %v2677 = vpop.f32.mrb[0].mxu0
      %v2678 = vpop.f32.mrb[0].mxu0
      %v2679 = vadd.f32 0.0, %v2678
      %v2680 = vpop.f32.mrb[0].mxu0
      %2681 = vmatprep.mubr.bf16.mxu0 0
      %2682 = vmatmul.mubr.bf16.gmra.mrb[0].mxu0 %v2594
      %v2683 = vpop.f32.mrb[0].mxu0
      %v2684 = vadd.f32 0.0, %v2683
      %v2685 = vpop.f32.mrb[0].mxu0
      %v2686 = vpop.f32.mrb[0].mxu0
      %v2687 = vadd.f32 0.0, %v2686
      %v2688 = vpop.f32.mrb[0].mxu0
      %2689 = vmatprep.mubr.bf16.mxu0 0
      %2690 = vmatmul.mubr.bf16.gmra.mrb[0].mxu0 %v2597
      %v2691 = vpop.f32.mrb[0].mxu0
      %v2692 = vadd.f32 0.0, %v2691
      %v2693 = vpop.f32.mrb[0].mxu0
      %v2694 = vpop.f32.mrb[0].mxu0
      %v2695 = vadd.f32 0.0, %v2694
      %v2696 = vpop.f32.mrb[0].mxu0
      %2697 = vmatprep.mubr.bf16.mxu0 0
      %2698 = vmatmul.mubr.bf16.gmra.mrb[0].mxu0 %v2600
      %v2699 = vpop.f32.mrb[0].mxu0
      %v2700 = vadd.f32 0.0, %v2699
      %v2701 = vpop.f32.mrb[0].mxu0
      %v2702 = vpop.f32.mrb[0].mxu0
      %v2703 = vadd.f32 0.0, %v2702
      %v2704 = vpop.f32.mrb[0].mxu0
      %2705 = vmatprep.mubr.bf16.mxu0 0
      %2706 = vmatmul.mubr.bf16.gmra.mrb[0].mxu0 %v2603
      %v2707 = vpop.f32.mrb[0].mxu0
      %v2708 = vadd.f32 0.0, %v2707
      %v2709 = vpop.f32.mrb[0].mxu0
      %v2710 = vpop.f32.mrb[0].mxu0
      %v2711 = vadd.f32 0.0, %v2710
      %v2712 = vpop.f32.mrb[0].mxu0
      %2713 = vmatprep.mubr.bf16.mxu0 0
      %2714 = vmatmul.mubr.bf16.gmra.mrb[0].mxu0 %v2606
      %v2715 = vpop.f32.mrb[0].mxu0
      %v2716 = vadd.f32 0.0, %v2715
      %v2717 = vpop.f32.mrb[0].mxu0
      %v2718 = vpop.f32.mrb[0].mxu0
      %v2719 = vadd.f32 0.0, %v2718
      %v2720 = vpop.f32.mrb[0].mxu0
      %2721 = vmatprep.mubr.bf16.mxu0 0
      %2722 = vmatmul.mubr.bf16.gmra.mrb[0].mxu0 %v2609
      %v2723 = vpop.f32.mrb[0].mxu0
      %v2724 = vadd.f32 0.0, %v2723
      %v2725 = vpop.f32.mrb[0].mxu0
      %v2726 = vpop.f32.mrb[0].mxu0
      %v2727 = vadd.f32 0.0, %v2726
      %v2728 = vpop.f32.mrb[0].mxu0
      %2729 = vmatprep.mubr.bf16.mxu0 0
      %2730 = vmatmul.mubr.bf16.gmra.mrb[0].mxu0 %v2612
      %v2731 = vpop.f32.mrb[0].mxu0
      %v2732 = vadd.f32 0.0, %v2731
      %v2733 = vpop.f32.mrb[0].mxu0
      %v2734 = vpop.f32.mrb[0].mxu0
      %v2735 = vadd.f32 0.0, %v2734
      %v2736 = vpop.f32.mrb[0].mxu0
      %2737 = vmatprep.mubr.bf16.mxu0 0
      %2738 = vmatmul.mubr.bf16.gmra.mrb[0].mxu0 %v2615
      %v2739 = vpop.f32.mrb[0].mxu0
      %v2740 = vadd.f32 0.0, %v2739
      %v2741 = vpop.f32.mrb[0].mxu0
      %v2742 = vpop.f32.mrb[0].mxu0
      %v2743 = vadd.f32 0.0, %v2742
      %v2744 = vpop.f32.mrb[0].mxu0
      %2745 = vmatprep.mubr.bf16.mxu0 0
      %2746 = vmatmul.mubr.bf16.gmra.mrb[0].mxu0 %v2618
      %v2747 = vpop.f32.mrb[0].mxu0
      %v2748 = vadd.f32 0.0, %v2747
      %v2749 = vpop.f32.mrb[0].mxu0
      %v2750 = vpop.f32.mrb[0].mxu0
      %v2751 = vadd.f32 0.0, %v2750
      %v2752 = vpop.f32.mrb[0].mxu0
      %2753 = vmatprep.mubr.bf16.mxu0 0
      %2754 = vmatmul.mubr.bf16.gmra.mrb[0].mxu0 %v2621
      %v2755 = vpop.f32.mrb[0].mxu0
      %v2756 = vadd.f32 0.0, %v2755
      %v2757 = vpop.f32.mrb[0].mxu0
      %v2758 = vpop.f32.mrb[0].mxu0
      %v2759 = vadd.f32 0.0, %v2758
      %v2760 = vpop.f32.mrb[0].mxu0
      %2761 = vmatprep.mubr.bf16.mxu0 0
      %2762 = vmatmul.mubr.bf16.gmra.mrb[0].mxu0 %v2624
      %v2763 = vpop.f32.mrb[0].mxu0
      %v2764 = vadd.f32 0.0, %v2763
      %v2765 = vpop.f32.mrb[0].mxu0
      %v2766 = vpop.f32.mrb[0].mxu0
      %v2767 = vadd.f32 0.0, %v2766
      %v2768 = vpop.f32.mrb[0].mxu0
      %2769 = vmatprep.mubr.bf16.mxu0 0
      %2770 = vmatmul.mubr.bf16.gmra.mrb[0].mxu0 %v2627
      %v2771 = vpop.f32.mrb[0].mxu0
      %v2772 = vadd.f32 0.0, %v2771
      %v2773 = vpop.f32.mrb[0].mxu0
      %v2774 = vpop.f32.mrb[0].mxu0
      %v2775 = vadd.f32 0.0, %v2774
      %v2776 = vpop.f32.mrb[0].mxu0
      %2777 = vmatprep.mubr.bf16.mxu0 0
      %2778 = vmatmul.mubr.bf16.gmra.mrb[0].mxu0 %v2630
      %v2779 = vpop.f32.mrb[0].mxu0
      %v2780 = vadd.f32 0.0, %v2779
      %v2781 = vpop.f32.mrb[0].mxu0
      %v2782 = vpop.f32.mrb[0].mxu0
      %v2783 = vadd.f32 0.0, %v2782
      %v2784 = vpop.f32.mrb[0].mxu0
      %2785 = vmatprep.mubr.bf16.mxu0 0
      %2786 = vmatmul.mubr.bf16.gmra.mrb[0].mxu0 %v2633
      %v2787 = vpop.f32.mrb[0].mxu0
      %v2788 = vadd.f32 0.0, %v2787
      %v2789 = vpop.f32.mrb[0].mxu0
      %v2790 = vpop.f32.mrb[0].mxu0
      %v2791 = vadd.f32 0.0, %v2790
      %v2792 = vpop.f32.mrb[0].mxu0
      %2793 = vmatprep.mubr.bf16.mxu0 0
      %2794 = vmatmul.mubr.bf16.gmra.mrb[0].mxu0 %v2636
      %v2795 = vpop.f32.mrb[0].mxu0
      %v2796 = vadd.f32 0.0, %v2795
      %v2797 = vpop.f32.mrb[0].mxu0
      %v2798 = vpop.f32.mrb[0].mxu0
      %v2799 = vadd.f32 0.0, %v2798
      %v2800 = vpop.f32.mrb[0].mxu0
      %2801 = vdwg.mxu0
      %v2802 = vadd.f32 %v2556, %v2676
      %v2803 = vadd.f32 %v2557, %v2679
      %v2804 = vadd.f32 %v2558, %v2684
      %v2805 = vadd.f32 %v2559, %v2687
      %v2806 = vadd.f32 %v2560, %v2692
      %v2807 = vadd.f32 %v2561, %v2695
      %v2808 = vadd.f32 %v2562, %v2700
      %v2809 = vadd.f32 %v2563, %v2703
      %v2810 = vadd.f32 %v2564, %v2708
      %v2811 = vadd.f32 %v2565, %v2711
      %v2812 = vadd.f32 %v2566, %v2716
      %v2813 = vadd.f32 %v2567, %v2719
      %v2814 = vadd.f32 %v2568, %v2724
      %v2815 = vadd.f32 %v2569, %v2727
      %v2816 = vadd.f32 %v2570, %v2732
      %v2817 = vadd.f32 %v2571, %v2735
      %v2818 = vadd.f32 %v2572, %v2740
      %v2819 = vadd.f32 %v2573, %v2743
      %v2820 = vadd.f32 %v2574, %v2748
      %v2821 = vadd.f32 %v2575, %v2751
      %v2822 = vadd.f32 %v2576, %v2756
      %v2823 = vadd.f32 %v2577, %v2759
      %v2824 = vadd.f32 %v2578, %v2764
      %v2825 = vadd.f32 %v2579, %v2767
      %v2826 = vadd.f32 %v2580, %v2772
      %v2827 = vadd.f32 %v2581, %v2775
      %v2828 = vadd.f32 %v2582, %v2780
      %v2829 = vadd.f32 %v2583, %v2783
      %v2830 = vadd.f32 %v2584, %v2788
      %v2831 = vadd.f32 %v2585, %v2791
      %v2832 = vadd.f32 %v2586, %v2796
      %v2833 = vadd.f32 %v2587, %v2799
      %2834 = vst.msk [vmem:[#allocation3] sm:$0xff] %vm216, %v2802
      %2835 = vst.msk [vmem:[#allocation3 + $0x8] sm:$0xff] %vm216, %v2803
      %2836 = vst.msk [vmem:[#allocation3 + $0x10] sm:$0xff] %vm216, %v2804
      %2837 = vst.msk [vmem:[#allocation3 + $0x18] sm:$0xff] %vm216, %v2805
      %2838 = vst.msk [vmem:[#allocation3 + $0x20] sm:$0xff] %vm216, %v2806
      %2839 = vst.msk [vmem:[#allocation3 + $0x28] sm:$0xff] %vm216, %v2807
      %2840 = vst.msk [vmem:[#allocation3 + $0x30] sm:$0xff] %vm216, %v2808
      %2841 = vst.msk [vmem:[#allocation3 + $0x38] sm:$0xff] %vm216, %v2809
      %2842 = vst.msk [vmem:[#allocation3 + $0x40] sm:$0xff] %vm216, %v2810
      %2843 = vst.msk [vmem:[#allocation3 + $0x48] sm:$0xff] %vm216, %v2811
      %2844 = vst.msk [vmem:[#allocation3 + $0x50] sm:$0xff] %vm216, %v2812
      %2845 = vst.msk [vmem:[#allocation3 + $0x58] sm:$0xff] %vm216, %v2813
      %2846 = vst.msk [vmem:[#allocation3 + $0x60] sm:$0xff] %vm216, %v2814
      %2847 = vst.msk [vmem:[#allocation3 + $0x68] sm:$0xff] %vm216, %v2815
      %2848 = vst.msk [vmem:[#allocation3 + $0x70] sm:$0xff] %vm216, %v2816
      %2849 = vst.msk [vmem:[#allocation3 + $0x78] sm:$0xff] %vm216, %v2817
      %2850 = vst.msk [vmem:[#allocation3 + $0x80] sm:$0xff] %vm216, %v2818
      %2851 = vst.msk [vmem:[#allocation3 + $0x88] sm:$0xff] %vm216, %v2819
      %2852 = vst.msk [vmem:[#allocation3 + $0x90] sm:$0xff] %vm216, %v2820
      %2853 = vst.msk [vmem:[#allocation3 + $0x98] sm:$0xff] %vm216, %v2821
      %2854 = vst.msk [vmem:[#allocation3 + $0xa0] sm:$0xff] %vm216, %v2822
      %2855 = vst.msk [vmem:[#allocation3 + $0xa8] sm:$0xff] %vm216, %v2823
      %2856 = vst.msk [vmem:[#allocation3 + $0xb0] sm:$0xff] %vm216, %v2824
      %2857 = vst.msk [vmem:[#allocation3 + $0xb8] sm:$0xff] %vm216, %v2825
      %2858 = vst.msk [vmem:[#allocation3 + $0xc0] sm:$0xff] %vm216, %v2826
      %2859 = vst.msk [vmem:[#allocation3 + $0xc8] sm:$0xff] %vm216, %v2827
      %2860 = vst.msk [vmem:[#allocation3 + $0xd0] sm:$0xff] %vm216, %v2828
      %2861 = vst.msk [vmem:[#allocation3 + $0xd8] sm:$0xff] %vm216, %v2829
      %2862 = vst.msk [vmem:[#allocation3 + $0xe0] sm:$0xff] %vm216, %v2830
      %2863 = vst.msk [vmem:[#allocation3 + $0xe8] sm:$0xff] %vm216, %v2831
      %2864 = vst.msk [vmem:[#allocation3 + $0xf0] sm:$0xff] %vm216, %v2832
      %2865 = vst.msk [vmem:[#allocation3 + $0xf8] sm:$0xff] %vm216, %v2833
      %v2866 = vld [vmem:[%s2507 + $0x1] sm:$0xff]
      %v2867 = vld [vmem:[%s2507 + $0x9] sm:$0xff]
      %v2868 = vld [vmem:[%s2507 + $0x19] sm:$0xff]
      %v2869 = vld [vmem:[%s2507 + $0x21] sm:$0xff]
      %v2870 = vld [vmem:[%s2507 + $0x31] sm:$0xff]
      %v2871 = vld [vmem:[%s2507 + $0x39] sm:$0xff]
      %v2872 = vld [vmem:[%s2507 + $0x49] sm:$0xff]
      %v2873 = vld [vmem:[%s2507 + $0x51] sm:$0xff]
      %v2874 = vld [vmem:[%s2507 + $0x61] sm:$0xff]
      %v2875 = vld [vmem:[%s2507 + $0x69] sm:$0xff]
      %v2876 = vld [vmem:[%s2507 + $0x79] sm:$0xff]
      %v2877 = vld [vmem:[%s2507 + $0x81] sm:$0xff]
      %v2878 = vld [vmem:[%s2507 + $0x91] sm:$0xff]
      %v2879 = vld [vmem:[%s2507 + $0x99] sm:$0xff]
      %v2880 = vld [vmem:[%s2507 + $0xa9] sm:$0xff]
      %v2881 = vld [vmem:[%s2507 + $0xb1] sm:$0xff]
      %v2882 = vld [vmem:[%s2507 + $0xc1] sm:$0xff]
      %v2883 = vld [vmem:[%s2507 + $0xc9] sm:$0xff]
      %v2884 = vld [vmem:[%s2507 + $0xd9] sm:$0xff]
      %v2885 = vld [vmem:[%s2507 + $0xe1] sm:$0xff]
      %v2886 = vld [vmem:[%s2507 + $0xf1] sm:$0xff]
      %v2887 = vld [vmem:[%s2507 + $0xf9] sm:$0xff]
      %v2888 = vld [vmem:[%s2507 + $0x109] sm:$0xff]
      %v2889 = vld [vmem:[%s2507 + $0x111] sm:$0xff]
      %v2890 = vld [vmem:[%s2507 + $0x121] sm:$0xff]
      %v2891 = vld [vmem:[%s2507 + $0x129] sm:$0xff]
      %v2892 = vld [vmem:[%s2507 + $0x139] sm:$0xff]
      %v2893 = vld [vmem:[%s2507 + $0x141] sm:$0xff]
      %v2894 = vld [vmem:[%s2507 + $0x151] sm:$0xff]
      %v2895 = vld [vmem:[%s2507 + $0x159] sm:$0xff]
      %v2896 = vld [vmem:[%s2507 + $0x169] sm:$0xff]
      %v2897 = vld [vmem:[%s2507 + $0x171] sm:$0xff]
      %v2898 = vpack.c.bf16 %v2867, %v2866
      %v2899 = vpack.c.bf16 %v2869, %v2868
      %v2900 = vpack.c.bf16 %v2871, %v2870
      %v2901 = vpack.c.bf16 %v2873, %v2872
      %v2902 = vpack.c.bf16 %v2875, %v2874
      %v2903 = vpack.c.bf16 %v2877, %v2876
      %v2904 = vpack.c.bf16 %v2879, %v2878
      %v2905 = vpack.c.bf16 %v2881, %v2880
      %v2906 = vpack.c.bf16 %v2883, %v2882
      %v2907 = vpack.c.bf16 %v2885, %v2884
      %v2908 = vpack.c.bf16 %v2887, %v2886
      %v2909 = vpack.c.bf16 %v2889, %v2888
      %v2910 = vpack.c.bf16 %v2891, %v2890
      %v2911 = vpack.c.bf16 %v2893, %v2892
      %v2912 = vpack.c.bf16 %v2895, %v2894
      %v2913 = vpack.c.bf16 %v2897, %v2896
      %v2914 = vld [vmem:[#allocation3] sm:$0xff]
      %v2915 = vld [vmem:[#allocation3 + $0x8] sm:$0xff]
      %v2916 = vld [vmem:[#allocation3 + $0x10] sm:$0xff]
      %v2917 = vld [vmem:[#allocation3 + $0x18] sm:$0xff]
      %v2918 = vld [vmem:[#allocation3 + $0x20] sm:$0xff]
      %v2919 = vld [vmem:[#allocation3 + $0x28] sm:$0xff]
      %v2920 = vld [vmem:[#allocation3 + $0x30] sm:$0xff]
      %v2921 = vld [vmem:[#allocation3 + $0x38] sm:$0xff]
      %v2922 = vld [vmem:[#allocation3 + $0x40] sm:$0xff]
      %v2923 = vld [vmem:[#allocation3 + $0x48] sm:$0xff]
      %v2924 = vld [vmem:[#allocation3 + $0x50] sm:$0xff]
      %v2925 = vld [vmem:[#allocation3 + $0x58] sm:$0xff]
      %v2926 = vld [vmem:[#allocation3 + $0x60] sm:$0xff]
      %v2927 = vld [vmem:[#allocation3 + $0x68] sm:$0xff]
      %v2928 = vld [vmem:[#allocation3 + $0x70] sm:$0xff]
      %v2929 = vld [vmem:[#allocation3 + $0x78] sm:$0xff]
      %v2930 = vld [vmem:[#allocation3 + $0x80] sm:$0xff]
      %v2931 = vld [vmem:[#allocation3 + $0x88] sm:$0xff]
      %v2932 = vld [vmem:[#allocation3 + $0x90] sm:$0xff]
      %v2933 = vld [vmem:[#allocation3 + $0x98] sm:$0xff]
      %v2934 = vld [vmem:[#allocation3 + $0xa0] sm:$0xff]
      %v2935 = vld [vmem:[#allocation3 + $0xa8] sm:$0xff]
      %v2936 = vld [vmem:[#allocation3 + $0xb0] sm:$0xff]
      %v2937 = vld [vmem:[#allocation3 + $0xb8] sm:$0xff]
      %v2938 = vld [vmem:[#allocation3 + $0xc0] sm:$0xff]
      %v2939 = vld [vmem:[#allocation3 + $0xc8] sm:$0xff]
      %v2940 = vld [vmem:[#allocation3 + $0xd0] sm:$0xff]
      %v2941 = vld [vmem:[#allocation3 + $0xd8] sm:$0xff]
      %v2942 = vld [vmem:[#allocation3 + $0xe0] sm:$0xff]
      %v2943 = vld [vmem:[#allocation3 + $0xe8] sm:$0xff]
      %v2944 = vld [vmem:[#allocation3 + $0xf0] sm:$0xff]
      %v2945 = vld [vmem:[#allocation3 + $0xf8] sm:$0xff]
      %s2946 = scalar_lea.vmem %s1, 28
      %v2947 = vld [vmem:[%s2946] sm:$0xf]
      %v2949 = vsel %vm216, %v2898, 0
      %v2952 = vsel %vm216, %v2899, 0
      %v2955 = vsel %vm216, %v2900, 0
      %v2958 = vsel %vm216, %v2901, 0
      %v2961 = vsel %vm216, %v2902, 0
      %v2964 = vsel %vm216, %v2903, 0
      %v2967 = vsel %vm216, %v2904, 0
      %v2970 = vsel %vm216, %v2905, 0
      %v2973 = vsel %vm216, %v2906, 0
      %v2976 = vsel %vm216, %v2907, 0
      %v2979 = vsel %vm216, %v2908, 0
      %v2982 = vsel %vm216, %v2909, 0
      %v2985 = vsel %vm216, %v2910, 0
      %v2988 = vsel %vm216, %v2911, 0
      %v2991 = vsel %vm216, %v2912, 0
      %v2994 = vsel %vm216, %v2913, 0
      %v2997 = vsel %vm488, %v2947, 0
      %2999 = vmatprep.subr.bf16.mxu0 0
      %3000 = vmatpush1.bf16.msra.mxu0 %v2997
      %3001 = vmatprep.subr.bf16.mxu0 0
      %3002 = vmatpush1.bf16.msra.mxu0 0
      %3003 = vmatprep.subr.bf16.mxu0 0
      %3004 = vmatpush1.bf16.msra.mxu0 0
      %3005 = vmatprep.subr.bf16.mxu0 0
      %3006 = vmatpush1.bf16.msra.mxu0 0
      %3007 = vmatprep.subr.bf16.mxu0 0
      %3008 = vmatpush1.bf16.msra.mxu0 0
      %3009 = vmatprep.subr.bf16.mxu0 0
      %3010 = vmatpush1.bf16.msra.mxu0 0
      %3011 = vmatprep.subr.bf16.mxu0 0
      %3012 = vmatpush1.bf16.msra.mxu0 0
      %3013 = vmatprep.subr.bf16.mxu0 0
      %3014 = vmatpush1.bf16.msra.mxu0 0
      %3015 = vmatprep.subr.bf16.mxu0 0
      %3016 = vmatpush1.bf16.msra.mxu0 0
      %3017 = vmatprep.subr.bf16.mxu0 0
      %3018 = vmatpush1.bf16.msra.mxu0 0
      %3019 = vmatprep.subr.bf16.mxu0 0
      %3020 = vmatpush1.bf16.msra.mxu0 0
      %3021 = vmatprep.subr.bf16.mxu0 0
      %3022 = vmatpush1.bf16.msra.mxu0 0
      %3023 = vmatprep.subr.bf16.mxu0 0
      %3024 = vmatpush1.bf16.msra.mxu0 0
      %3025 = vmatprep.subr.bf16.mxu0 0
      %3026 = vmatpush1.bf16.msra.mxu0 0
      %3027 = vmatprep.subr.bf16.mxu0 0
      %3028 = vmatpush1.bf16.msra.mxu0 0
      %3029 = vmatprep.subr.bf16.mxu0 0
      %3030 = vmatpush1.bf16.msra.mxu0 0
      %3031 = vmatprep.mubr.bf16.mxu0 0
      %3032 = vmatmul.mubr.bf16.gmra.mrb[0].mxu0 %v2949
      %v3033 = vpop.f32.mrb[0].mxu0
      %v3034 = vadd.f32 0.0, %v3033
      %v3035 = vpop.f32.mrb[0].mxu0
      %v3036 = vpop.f32.mrb[0].mxu0
      %v3037 = vadd.f32 0.0, %v3036
      %v3038 = vpop.f32.mrb[0].mxu0
      %3039 = vmatprep.mubr.bf16.mxu0 0
      %3040 = vmatmul.mubr.bf16.gmra.mrb[0].mxu0 %v2952
      %v3041 = vpop.f32.mrb[0].mxu0
      %v3042 = vadd.f32 0.0, %v3041
      %v3043 = vpop.f32.mrb[0].mxu0
      %v3044 = vpop.f32.mrb[0].mxu0
      %v3045 = vadd.f32 0.0, %v3044
      %v3046 = vpop.f32.mrb[0].mxu0
      %3047 = vmatprep.mubr.bf16.mxu0 0
      %3048 = vmatmul.mubr.bf16.gmra.mrb[0].mxu0 %v2955
      %v3049 = vpop.f32.mrb[0].mxu0
      %v3050 = vadd.f32 0.0, %v3049
      %v3051 = vpop.f32.mrb[0].mxu0
      %v3052 = vpop.f32.mrb[0].mxu0
      %v3053 = vadd.f32 0.0, %v3052
      %v3054 = vpop.f32.mrb[0].mxu0
      %3055 = vmatprep.mubr.bf16.mxu0 0
      %3056 = vmatmul.mubr.bf16.gmra.mrb[0].mxu0 %v2958
      %v3057 = vpop.f32.mrb[0].mxu0
      %v3058 = vadd.f32 0.0, %v3057
      %v3059 = vpop.f32.mrb[0].mxu0
      %v3060 = vpop.f32.mrb[0].mxu0
      %v3061 = vadd.f32 0.0, %v3060
      %v3062 = vpop.f32.mrb[0].mxu0
      %3063 = vmatprep.mubr.bf16.mxu0 0
      %3064 = vmatmul.mubr.bf16.gmra.mrb[0].mxu0 %v2961
      %v3065 = vpop.f32.mrb[0].mxu0
      %v3066 = vadd.f32 0.0, %v3065
      %v3067 = vpop.f32.mrb[0].mxu0
      %v3068 = vpop.f32.mrb[0].mxu0
      %v3069 = vadd.f32 0.0, %v3068
      %v3070 = vpop.f32.mrb[0].mxu0
      %3071 = vmatprep.mubr.bf16.mxu0 0
      %3072 = vmatmul.mubr.bf16.gmra.mrb[0].mxu0 %v2964
      %v3073 = vpop.f32.mrb[0].mxu0
      %v3074 = vadd.f32 0.0, %v3073
      %v3075 = vpop.f32.mrb[0].mxu0
      %v3076 = vpop.f32.mrb[0].mxu0
      %v3077 = vadd.f32 0.0, %v3076
      %v3078 = vpop.f32.mrb[0].mxu0
      %3079 = vmatprep.mubr.bf16.mxu0 0
      %3080 = vmatmul.mubr.bf16.gmra.mrb[0].mxu0 %v2967
      %v3081 = vpop.f32.mrb[0].mxu0
      %v3082 = vadd.f32 0.0, %v3081
      %v3083 = vpop.f32.mrb[0].mxu0
      %v3084 = vpop.f32.mrb[0].mxu0
      %v3085 = vadd.f32 0.0, %v3084
      %v3086 = vpop.f32.mrb[0].mxu0
      %3087 = vmatprep.mubr.bf16.mxu0 0
      %3088 = vmatmul.mubr.bf16.gmra.mrb[0].mxu0 %v2970
      %v3089 = vpop.f32.mrb[0].mxu0
      %v3090 = vadd.f32 0.0, %v3089
      %v3091 = vpop.f32.mrb[0].mxu0
      %v3092 = vpop.f32.mrb[0].mxu0
      %v3093 = vadd.f32 0.0, %v3092
      %v3094 = vpop.f32.mrb[0].mxu0
      %3095 = vmatprep.mubr.bf16.mxu0 0
      %3096 = vmatmul.mubr.bf16.gmra.mrb[0].mxu0 %v2973
      %v3097 = vpop.f32.mrb[0].mxu0
      %v3098 = vadd.f32 0.0, %v3097
      %v3099 = vpop.f32.mrb[0].mxu0
      %v3100 = vpop.f32.mrb[0].mxu0
      %v3101 = vadd.f32 0.0, %v3100
      %v3102 = vpop.f32.mrb[0].mxu0
      %3103 = vmatprep.mubr.bf16.mxu0 0
      %3104 = vmatmul.mubr.bf16.gmra.mrb[0].mxu0 %v2976
      %v3105 = vpop.f32.mrb[0].mxu0
      %v3106 = vadd.f32 0.0, %v3105
      %v3107 = vpop.f32.mrb[0].mxu0
      %v3108 = vpop.f32.mrb[0].mxu0
      %v3109 = vadd.f32 0.0, %v3108
      %v3110 = vpop.f32.mrb[0].mxu0
      %3111 = vmatprep.mubr.bf16.mxu0 0
      %3112 = vmatmul.mubr.bf16.gmra.mrb[0].mxu0 %v2979
      %v3113 = vpop.f32.mrb[0].mxu0
      %v3114 = vadd.f32 0.0, %v3113
      %v3115 = vpop.f32.mrb[0].mxu0
      %v3116 = vpop.f32.mrb[0].mxu0
      %v3117 = vadd.f32 0.0, %v3116
      %v3118 = vpop.f32.mrb[0].mxu0
      %3119 = vmatprep.mubr.bf16.mxu0 0
      %3120 = vmatmul.mubr.bf16.gmra.mrb[0].mxu0 %v2982
      %v3121 = vpop.f32.mrb[0].mxu0
      %v3122 = vadd.f32 0.0, %v3121
      %v3123 = vpop.f32.mrb[0].mxu0
      %v3124 = vpop.f32.mrb[0].mxu0
      %v3125 = vadd.f32 0.0, %v3124
      %v3126 = vpop.f32.mrb[0].mxu0
      %3127 = vmatprep.mubr.bf16.mxu0 0
      %3128 = vmatmul.mubr.bf16.gmra.mrb[0].mxu0 %v2985
      %v3129 = vpop.f32.mrb[0].mxu0
      %v3130 = vadd.f32 0.0, %v3129
      %v3131 = vpop.f32.mrb[0].mxu0
      %v3132 = vpop.f32.mrb[0].mxu0
      %v3133 = vadd.f32 0.0, %v3132
      %v3134 = vpop.f32.mrb[0].mxu0
      %3135 = vmatprep.mubr.bf16.mxu0 0
      %3136 = vmatmul.mubr.bf16.gmra.mrb[0].mxu0 %v2988
      %v3137 = vpop.f32.mrb[0].mxu0
      %v3138 = vadd.f32 0.0, %v3137
      %v3139 = vpop.f32.mrb[0].mxu0
      %v3140 = vpop.f32.mrb[0].mxu0
      %v3141 = vadd.f32 0.0, %v3140
      %v3142 = vpop.f32.mrb[0].mxu0
      %3143 = vmatprep.mubr.bf16.mxu0 0
      %3144 = vmatmul.mubr.bf16.gmra.mrb[0].mxu0 %v2991
      %v3145 = vpop.f32.mrb[0].mxu0
      %v3146 = vadd.f32 0.0, %v3145
      %v3147 = vpop.f32.mrb[0].mxu0
      %v3148 = vpop.f32.mrb[0].mxu0
      %v3149 = vadd.f32 0.0, %v3148
      %v3150 = vpop.f32.mrb[0].mxu0
      %3151 = vmatprep.mubr.bf16.mxu0 0
      %3152 = vmatmul.mubr.bf16.gmra.mrb[0].mxu0 %v2994
      %v3153 = vpop.f32.mrb[0].mxu0
      %v3154 = vadd.f32 0.0, %v3153
      %v3155 = vpop.f32.mrb[0].mxu0
      %v3156 = vpop.f32.mrb[0].mxu0
      %v3157 = vadd.f32 0.0, %v3156
      %v3158 = vpop.f32.mrb[0].mxu0
      %3159 = vdwg.mxu0
      %v3160 = vadd.f32 %v2914, %v3034
      %v3161 = vadd.f32 %v2915, %v3037
      %v3162 = vadd.f32 %v2916, %v3042
      %v3163 = vadd.f32 %v2917, %v3045
      %v3164 = vadd.f32 %v2918, %v3050
      %v3165 = vadd.f32 %v2919, %v3053
      %v3166 = vadd.f32 %v2920, %v3058
      %v3167 = vadd.f32 %v2921, %v3061
      %v3168 = vadd.f32 %v2922, %v3066
      %v3169 = vadd.f32 %v2923, %v3069
      %v3170 = vadd.f32 %v2924, %v3074
      %v3171 = vadd.f32 %v2925, %v3077
      %v3172 = vadd.f32 %v2926, %v3082
      %v3173 = vadd.f32 %v2927, %v3085
      %v3174 = vadd.f32 %v2928, %v3090
      %v3175 = vadd.f32 %v2929, %v3093
      %v3176 = vadd.f32 %v2930, %v3098
      %v3177 = vadd.f32 %v2931, %v3101
      %v3178 = vadd.f32 %v2932, %v3106
      %v3179 = vadd.f32 %v2933, %v3109
      %v3180 = vadd.f32 %v2934, %v3114
      %v3181 = vadd.f32 %v2935, %v3117
      %v3182 = vadd.f32 %v2936, %v3122
      %v3183 = vadd.f32 %v2937, %v3125
      %v3184 = vadd.f32 %v2938, %v3130
      %v3185 = vadd.f32 %v2939, %v3133
      %v3186 = vadd.f32 %v2940, %v3138
      %v3187 = vadd.f32 %v2941, %v3141
      %v3188 = vadd.f32 %v2942, %v3146
      %v3189 = vadd.f32 %v2943, %v3149
      %v3190 = vadd.f32 %v2944, %v3154
      %v3191 = vadd.f32 %v2945, %v3157
      %3192 = vst.msk [vmem:[#allocation3] sm:$0xff] %vm216, %v3160
      %3193 = vst.msk [vmem:[#allocation3 + $0x8] sm:$0xff] %vm216, %v3161
      %3194 = vst.msk [vmem:[#allocation3 + $0x10] sm:$0xff] %vm216, %v3162
      %3195 = vst.msk [vmem:[#allocation3 + $0x18] sm:$0xff] %vm216, %v3163
      %3196 = vst.msk [vmem:[#allocation3 + $0x20] sm:$0xff] %vm216, %v3164
      %3197 = vst.msk [vmem:[#allocation3 + $0x28] sm:$0xff] %vm216, %v3165
      %3198 = vst.msk [vmem:[#allocation3 + $0x30] sm:$0xff] %vm216, %v3166
      %3199 = vst.msk [vmem:[#allocation3 + $0x38] sm:$0xff] %vm216, %v3167
      %3200 = vst.msk [vmem:[#allocation3 + $0x40] sm:$0xff] %vm216, %v3168
      %3201 = vst.msk [vmem:[#allocation3 + $0x48] sm:$0xff] %vm216, %v3169
      %3202 = vst.msk [vmem:[#allocation3 + $0x50] sm:$0xff] %vm216, %v3170
      %3203 = vst.msk [vmem:[#allocation3 + $0x58] sm:$0xff] %vm216, %v3171
      %3204 = vst.msk [vmem:[#allocation3 + $0x60] sm:$0xff] %vm216, %v3172
      %3205 = vst.msk [vmem:[#allocation3 + $0x68] sm:$0xff] %vm216, %v3173
      %3206 = vst.msk [vmem:[#allocation3 + $0x70] sm:$0xff] %vm216, %v3174
      %3207 = vst.msk [vmem:[#allocation3 + $0x78] sm:$0xff] %vm216, %v3175
      %3208 = vst.msk [vmem:[#allocation3 + $0x80] sm:$0xff] %vm216, %v3176
      %3209 = vst.msk [vmem:[#allocation3 + $0x88] sm:$0xff] %vm216, %v3177
      %3210 = vst.msk [vmem:[#allocation3 + $0x90] sm:$0xff] %vm216, %v3178
      %3211 = vst.msk [vmem:[#allocation3 + $0x98] sm:$0xff] %vm216, %v3179
      %3212 = vst.msk [vmem:[#allocation3 + $0xa0] sm:$0xff] %vm216, %v3180
      %3213 = vst.msk [vmem:[#allocation3 + $0xa8] sm:$0xff] %vm216, %v3181
      %3214 = vst.msk [vmem:[#allocation3 + $0xb0] sm:$0xff] %vm216, %v3182
      %3215 = vst.msk [vmem:[#allocation3 + $0xb8] sm:$0xff] %vm216, %v3183
      %3216 = vst.msk [vmem:[#allocation3 + $0xc0] sm:$0xff] %vm216, %v3184
      %3217 = vst.msk [vmem:[#allocation3 + $0xc8] sm:$0xff] %vm216, %v3185
      %3218 = vst.msk [vmem:[#allocation3 + $0xd0] sm:$0xff] %vm216, %v3186
      %3219 = vst.msk [vmem:[#allocation3 + $0xd8] sm:$0xff] %vm216, %v3187
      %3220 = vst.msk [vmem:[#allocation3 + $0xe0] sm:$0xff] %vm216, %v3188
      %3221 = vst.msk [vmem:[#allocation3 + $0xe8] sm:$0xff] %vm216, %v3189
      %3222 = vst.msk [vmem:[#allocation3 + $0xf0] sm:$0xff] %vm216, %v3190
      %3223 = vst.msk [vmem:[#allocation3 + $0xf8] sm:$0xff] %vm216, %v3191
      %v3224 = vld [vmem:[%s2507 + $0x2] sm:$0xff]
      %v3225 = vld [vmem:[%s2507 + $0xa] sm:$0xff]
      %v3226 = vld [vmem:[%s2507 + $0x1a] sm:$0xff]
      %v3227 = vld [vmem:[%s2507 + $0x22] sm:$0xff]
      %v3228 = vld [vmem:[%s2507 + $0x32] sm:$0xff]
      %v3229 = vld [vmem:[%s2507 + $0x3a] sm:$0xff]
      %v3230 = vld [vmem:[%s2507 + $0x4a] sm:$0xff]
      %v3231 = vld [vmem:[%s2507 + $0x52] sm:$0xff]
      %v3232 = vld [vmem:[%s2507 + $0x62] sm:$0xff]
      %v3233 = vld [vmem:[%s2507 + $0x6a] sm:$0xff]
      %v3234 = vld [vmem:[%s2507 + $0x7a] sm:$0xff]
      %v3235 = vld [vmem:[%s2507 + $0x82] sm:$0xff]
      %v3236 = vld [vmem:[%s2507 + $0x92] sm:$0xff]
      %v3237 = vld [vmem:[%s2507 + $0x9a] sm:$0xff]
      %v3238 = vld [vmem:[%s2507 + $0xaa] sm:$0xff]
      %v3239 = vld [vmem:[%s2507 + $0xb2] sm:$0xff]
      %v3240 = vld [vmem:[%s2507 + $0xc2] sm:$0xff]
      %v3241 = vld [vmem:[%s2507 + $0xca] sm:$0xff]
      %v3242 = vld [vmem:[%s2507 + $0xda] sm:$0xff]
      %v3243 = vld [vmem:[%s2507 + $0xe2] sm:$0xff]
      %v3244 = vld [vmem:[%s2507 + $0xf2] sm:$0xff]
      %v3245 = vld [vmem:[%s2507 + $0xfa] sm:$0xff]
      %v3246 = vld [vmem:[%s2507 + $0x10a] sm:$0xff]
      %v3247 = vld [vmem:[%s2507 + $0x112] sm:$0xff]
      %v3248 = vld [vmem:[%s2507 + $0x122] sm:$0xff]
      %v3249 = vld [vmem:[%s2507 + $0x12a] sm:$0xff]
      %v3250 = vld [vmem:[%s2507 + $0x13a] sm:$0xff]
      %v3251 = vld [vmem:[%s2507 + $0x142] sm:$0xff]
      %v3252 = vld [vmem:[%s2507 + $0x152] sm:$0xff]
      %v3253 = vld [vmem:[%s2507 + $0x15a] sm:$0xff]
      %v3254 = vld [vmem:[%s2507 + $0x16a] sm:$0xff]
      %v3255 = vld [vmem:[%s2507 + $0x172] sm:$0xff]
      %v3256 = vpack.c.bf16 %v3225, %v3224
      %v3257 = vpack.c.bf16 %v3227, %v3226
      %v3258 = vpack.c.bf16 %v3229, %v3228
      %v3259 = vpack.c.bf16 %v3231, %v3230
      %v3260 = vpack.c.bf16 %v3233, %v3232
      %v3261 = vpack.c.bf16 %v3235, %v3234
      %v3262 = vpack.c.bf16 %v3237, %v3236
      %v3263 = vpack.c.bf16 %v3239, %v3238
      %v3264 = vpack.c.bf16 %v3241, %v3240
      %v3265 = vpack.c.bf16 %v3243, %v3242
      %v3266 = vpack.c.bf16 %v3245, %v3244
      %v3267 = vpack.c.bf16 %v3247, %v3246
      %v3268 = vpack.c.bf16 %v3249, %v3248
      %v3269 = vpack.c.bf16 %v3251, %v3250
      %v3270 = vpack.c.bf16 %v3253, %v3252
      %v3271 = vpack.c.bf16 %v3255, %v3254
      %v3272 = vld [vmem:[#allocation3] sm:$0xff]
      %v3273 = vld [vmem:[#allocation3 + $0x8] sm:$0xff]
      %v3274 = vld [vmem:[#allocation3 + $0x10] sm:$0xff]
      %v3275 = vld [vmem:[#allocation3 + $0x18] sm:$0xff]
      %v3276 = vld [vmem:[#allocation3 + $0x20] sm:$0xff]
      %v3277 = vld [vmem:[#allocation3 + $0x28] sm:$0xff]
      %v3278 = vld [vmem:[#allocation3 + $0x30] sm:$0xff]
      %v3279 = vld [vmem:[#allocation3 + $0x38] sm:$0xff]
      %v3280 = vld [vmem:[#allocation3 + $0x40] sm:$0xff]
      %v3281 = vld [vmem:[#allocation3 + $0x48] sm:$0xff]
      %v3282 = vld [vmem:[#allocation3 + $0x50] sm:$0xff]
      %v3283 = vld [vmem:[#allocation3 + $0x58] sm:$0xff]
      %v3284 = vld [vmem:[#allocation3 + $0x60] sm:$0xff]
      %v3285 = vld [vmem:[#allocation3 + $0x68] sm:$0xff]
      %v3286 = vld [vmem:[#allocation3 + $0x70] sm:$0xff]
      %v3287 = vld [vmem:[#allocation3 + $0x78] sm:$0xff]
      %v3288 = vld [vmem:[#allocation3 + $0x80] sm:$0xff]
      %v3289 = vld [vmem:[#allocation3 + $0x88] sm:$0xff]
      %v3290 = vld [vmem:[#allocation3 + $0x90] sm:$0xff]
      %v3291 = vld [vmem:[#allocation3 + $0x98] sm:$0xff]
      %v3292 = vld [vmem:[#allocation3 + $0xa0] sm:$0xff]
      %v3293 = vld [vmem:[#allocation3 + $0xa8] sm:$0xff]
      %v3294 = vld [vmem:[#allocation3 + $0xb0] sm:$0xff]
      %v3295 = vld [vmem:[#allocation3 + $0xb8] sm:$0xff]
      %v3296 = vld [vmem:[#allocation3 + $0xc0] sm:$0xff]
      %v3297 = vld [vmem:[#allocation3 + $0xc8] sm:$0xff]
      %v3298 = vld [vmem:[#allocation3 + $0xd0] sm:$0xff]
      %v3299 = vld [vmem:[#allocation3 + $0xd8] sm:$0xff]
      %v3300 = vld [vmem:[#allocation3 + $0xe0] sm:$0xff]
      %v3301 = vld [vmem:[#allocation3 + $0xe8] sm:$0xff]
      %v3302 = vld [vmem:[#allocation3 + $0xf0] sm:$0xff]
      %v3303 = vld [vmem:[#allocation3 + $0xf8] sm:$0xff]
      %s3304 = scalar_lea.vmem %s1, 32
      %v3305 = vld [vmem:[%s3304] sm:$0xf]
      %v3307 = vsel %vm216, %v3256, 0
      %v3310 = vsel %vm216, %v3257, 0
      %v3313 = vsel %vm216, %v3258, 0
      %v3316 = vsel %vm216, %v3259, 0
      %v3319 = vsel %vm216, %v3260, 0
      %v3322 = vsel %vm216, %v3261, 0
      %v3325 = vsel %vm216, %v3262, 0
      %v3328 = vsel %vm216, %v3263, 0
      %v3331 = vsel %vm216, %v3264, 0
      %v3334 = vsel %vm216, %v3265, 0
      %v3337 = vsel %vm216, %v3266, 0
      %v3340 = vsel %vm216, %v3267, 0
      %v3343 = vsel %vm216, %v3268, 0
      %v3346 = vsel %vm216, %v3269, 0
      %v3349 = vsel %vm216, %v3270, 0
      %v3352 = vsel %vm216, %v3271, 0
      %v3355 = vsel %vm488, %v3305, 0
      %3357 = vmatprep.subr.bf16.mxu0 0
      %3358 = vmatpush1.bf16.msra.mxu0 %v3355
      %3359 = vmatprep.subr.bf16.mxu0 0
      %3360 = vmatpush1.bf16.msra.mxu0 0
      %3361 = vmatprep.subr.bf16.mxu0 0
      %3362 = vmatpush1.bf16.msra.mxu0 0
      %3363 = vmatprep.subr.bf16.mxu0 0
      %3364 = vmatpush1.bf16.msra.mxu0 0
      %3365 = vmatprep.subr.bf16.mxu0 0
      %3366 = vmatpush1.bf16.msra.mxu0 0
      %3367 = vmatprep.subr.bf16.mxu0 0
      %3368 = vmatpush1.bf16.msra.mxu0 0
      %3369 = vmatprep.subr.bf16.mxu0 0
      %3370 = vmatpush1.bf16.msra.mxu0 0
      %3371 = vmatprep.subr.bf16.mxu0 0
      %3372 = vmatpush1.bf16.msra.mxu0 0
      %3373 = vmatprep.subr.bf16.mxu0 0
      %3374 = vmatpush1.bf16.msra.mxu0 0
      %3375 = vmatprep.subr.bf16.mxu0 0
      %3376 = vmatpush1.bf16.msra.mxu0 0
      %3377 = vmatprep.subr.bf16.mxu0 0
      %3378 = vmatpush1.bf16.msra.mxu0 0
      %3379 = vmatprep.subr.bf16.mxu0 0
      %3380 = vmatpush1.bf16.msra.mxu0 0
      %3381 = vmatprep.subr.bf16.mxu0 0
      %3382 = vmatpush1.bf16.msra.mxu0 0
      %3383 = vmatprep.subr.bf16.mxu0 0
      %3384 = vmatpush1.bf16.msra.mxu0 0
      %3385 = vmatprep.subr.bf16.mxu0 0
      %3386 = vmatpush1.bf16.msra.mxu0 0
      %3387 = vmatprep.subr.bf16.mxu0 0
      %3388 = vmatpush1.bf16.msra.mxu0 0
      %3389 = vmatprep.mubr.bf16.mxu0 0
      %3390 = vmatmul.mubr.bf16.gmra.mrb[0].mxu0 %v3307
      %v3391 = vpop.f32.mrb[0].mxu0
      %v3392 = vadd.f32 0.0, %v3391
      %v3393 = vpop.f32.mrb[0].mxu0
      %v3394 = vpop.f32.mrb[0].mxu0
      %v3395 = vadd.f32 0.0, %v3394
      %v3396 = vpop.f32.mrb[0].mxu0
      %3397 = vmatprep.mubr.bf16.mxu0 0
      %3398 = vmatmul.mubr.bf16.gmra.mrb[0].mxu0 %v3310
      %v3399 = vpop.f32.mrb[0].mxu0
      %v3400 = vadd.f32 0.0, %v3399
      %v3401 = vpop.f32.mrb[0].mxu0
      %v3402 = vpop.f32.mrb[0].mxu0
      %v3403 = vadd.f32 0.0, %v3402
      %v3404 = vpop.f32.mrb[0].mxu0
      %3405 = vmatprep.mubr.bf16.mxu0 0
      %3406 = vmatmul.mubr.bf16.gmra.mrb[0].mxu0 %v3313
      %v3407 = vpop.f32.mrb[0].mxu0
      %v3408 = vadd.f32 0.0, %v3407
      %v3409 = vpop.f32.mrb[0].mxu0
      %v3410 = vpop.f32.mrb[0].mxu0
      %v3411 = vadd.f32 0.0, %v3410
      %v3412 = vpop.f32.mrb[0].mxu0
      %3413 = vmatprep.mubr.bf16.mxu0 0
      %3414 = vmatmul.mubr.bf16.gmra.mrb[0].mxu0 %v3316
      %v3415 = vpop.f32.mrb[0].mxu0
      %v3416 = vadd.f32 0.0, %v3415
      %v3417 = vpop.f32.mrb[0].mxu0
      %v3418 = vpop.f32.mrb[0].mxu0
      %v3419 = vadd.f32 0.0, %v3418
      %v3420 = vpop.f32.mrb[0].mxu0
      %3421 = vmatprep.mubr.bf16.mxu0 0
      %3422 = vmatmul.mubr.bf16.gmra.mrb[0].mxu0 %v3319
      %v3423 = vpop.f32.mrb[0].mxu0
      %v3424 = vadd.f32 0.0, %v3423
      %v3425 = vpop.f32.mrb[0].mxu0
      %v3426 = vpop.f32.mrb[0].mxu0
      %v3427 = vadd.f32 0.0, %v3426
      %v3428 = vpop.f32.mrb[0].mxu0
      %3429 = vmatprep.mubr.bf16.mxu0 0
      %3430 = vmatmul.mubr.bf16.gmra.mrb[0].mxu0 %v3322
      %v3431 = vpop.f32.mrb[0].mxu0
      %v3432 = vadd.f32 0.0, %v3431
      %v3433 = vpop.f32.mrb[0].mxu0
      %v3434 = vpop.f32.mrb[0].mxu0
      %v3435 = vadd.f32 0.0, %v3434
      %v3436 = vpop.f32.mrb[0].mxu0
      %3437 = vmatprep.mubr.bf16.mxu0 0
      %3438 = vmatmul.mubr.bf16.gmra.mrb[0].mxu0 %v3325
      %v3439 = vpop.f32.mrb[0].mxu0
      %v3440 = vadd.f32 0.0, %v3439
      %v3441 = vpop.f32.mrb[0].mxu0
      %v3442 = vpop.f32.mrb[0].mxu0
      %v3443 = vadd.f32 0.0, %v3442
      %v3444 = vpop.f32.mrb[0].mxu0
      %3445 = vmatprep.mubr.bf16.mxu0 0
      %3446 = vmatmul.mubr.bf16.gmra.mrb[0].mxu0 %v3328
      %v3447 = vpop.f32.mrb[0].mxu0
      %v3448 = vadd.f32 0.0, %v3447
      %v3449 = vpop.f32.mrb[0].mxu0
      %v3450 = vpop.f32.mrb[0].mxu0
      %v3451 = vadd.f32 0.0, %v3450
      %v3452 = vpop.f32.mrb[0].mxu0
      %3453 = vmatprep.mubr.bf16.mxu0 0
      %3454 = vmatmul.mubr.bf16.gmra.mrb[0].mxu0 %v3331
      %v3455 = vpop.f32.mrb[0].mxu0
      %v3456 = vadd.f32 0.0, %v3455
      %v3457 = vpop.f32.mrb[0].mxu0
      %v3458 = vpop.f32.mrb[0].mxu0
      %v3459 = vadd.f32 0.0, %v3458
      %v3460 = vpop.f32.mrb[0].mxu0
      %3461 = vmatprep.mubr.bf16.mxu0 0
      %3462 = vmatmul.mubr.bf16.gmra.mrb[0].mxu0 %v3334
      %v3463 = vpop.f32.mrb[0].mxu0
      %v3464 = vadd.f32 0.0, %v3463
      %v3465 = vpop.f32.mrb[0].mxu0
      %v3466 = vpop.f32.mrb[0].mxu0
      %v3467 = vadd.f32 0.0, %v3466
      %v3468 = vpop.f32.mrb[0].mxu0
      %3469 = vmatprep.mubr.bf16.mxu0 0
      %3470 = vmatmul.mubr.bf16.gmra.mrb[0].mxu0 %v3337
      %v3471 = vpop.f32.mrb[0].mxu0
      %v3472 = vadd.f32 0.0, %v3471
      %v3473 = vpop.f32.mrb[0].mxu0
      %v3474 = vpop.f32.mrb[0].mxu0
      %v3475 = vadd.f32 0.0, %v3474
      %v3476 = vpop.f32.mrb[0].mxu0
      %3477 = vmatprep.mubr.bf16.mxu0 0
      %3478 = vmatmul.mubr.bf16.gmra.mrb[0].mxu0 %v3340
      %v3479 = vpop.f32.mrb[0].mxu0
      %v3480 = vadd.f32 0.0, %v3479
      %v3481 = vpop.f32.mrb[0].mxu0
      %v3482 = vpop.f32.mrb[0].mxu0
      %v3483 = vadd.f32 0.0, %v3482
      %v3484 = vpop.f32.mrb[0].mxu0
      %3485 = vmatprep.mubr.bf16.mxu0 0
      %3486 = vmatmul.mubr.bf16.gmra.mrb[0].mxu0 %v3343
      %v3487 = vpop.f32.mrb[0].mxu0
      %v3488 = vadd.f32 0.0, %v3487
      %v3489 = vpop.f32.mrb[0].mxu0
      %v3490 = vpop.f32.mrb[0].mxu0
      %v3491 = vadd.f32 0.0, %v3490
      %v3492 = vpop.f32.mrb[0].mxu0
      %3493 = vmatprep.mubr.bf16.mxu0 0
      %3494 = vmatmul.mubr.bf16.gmra.mrb[0].mxu0 %v3346
      %v3495 = vpop.f32.mrb[0].mxu0
      %v3496 = vadd.f32 0.0, %v3495
      %v3497 = vpop.f32.mrb[0].mxu0
      %v3498 = vpop.f32.mrb[0].mxu0
      %v3499 = vadd.f32 0.0, %v3498
      %v3500 = vpop.f32.mrb[0].mxu0
      %3501 = vmatprep.mubr.bf16.mxu0 0
      %3502 = vmatmul.mubr.bf16.gmra.mrb[0].mxu0 %v3349
      %v3503 = vpop.f32.mrb[0].mxu0
      %v3504 = vadd.f32 0.0, %v3503
      %v3505 = vpop.f32.mrb[0].mxu0
      %v3506 = vpop.f32.mrb[0].mxu0
      %v3507 = vadd.f32 0.0, %v3506
      %v3508 = vpop.f32.mrb[0].mxu0
      %3509 = vmatprep.mubr.bf16.mxu0 0
      %3510 = vmatmul.mubr.bf16.gmra.mrb[0].mxu0 %v3352
      %v3511 = vpop.f32.mrb[0].mxu0
      %v3512 = vadd.f32 0.0, %v3511
      %v3513 = vpop.f32.mrb[0].mxu0
      %v3514 = vpop.f32.mrb[0].mxu0
      %v3515 = vadd.f32 0.0, %v3514
      %v3516 = vpop.f32.mrb[0].mxu0
      %3517 = vdwg.mxu0
      %v3518 = vadd.f32 %v3272, %v3392
      %v3519 = vadd.f32 %v3273, %v3395
      %v3520 = vadd.f32 %v3274, %v3400
      %v3521 = vadd.f32 %v3275, %v3403
      %v3522 = vadd.f32 %v3276, %v3408
      %v3523 = vadd.f32 %v3277, %v3411
      %v3524 = vadd.f32 %v3278, %v3416
      %v3525 = vadd.f32 %v3279, %v3419
      %v3526 = vadd.f32 %v3280, %v3424
      %v3527 = vadd.f32 %v3281, %v3427
      %v3528 = vadd.f32 %v3282, %v3432
      %v3529 = vadd.f32 %v3283, %v3435
      %v3530 = vadd.f32 %v3284, %v3440
      %v3531 = vadd.f32 %v3285, %v3443
      %v3532 = vadd.f32 %v3286, %v3448
      %v3533 = vadd.f32 %v3287, %v3451
      %v3534 = vadd.f32 %v3288, %v3456
      %v3535 = vadd.f32 %v3289, %v3459
      %v3536 = vadd.f32 %v3290, %v3464
      %v3537 = vadd.f32 %v3291, %v3467
      %v3538 = vadd.f32 %v3292, %v3472
      %v3539 = vadd.f32 %v3293, %v3475
      %v3540 = vadd.f32 %v3294, %v3480
      %v3541 = vadd.f32 %v3295, %v3483
      %v3542 = vadd.f32 %v3296, %v3488
      %v3543 = vadd.f32 %v3297, %v3491
      %v3544 = vadd.f32 %v3298, %v3496
      %v3545 = vadd.f32 %v3299, %v3499
      %v3546 = vadd.f32 %v3300, %v3504
      %v3547 = vadd.f32 %v3301, %v3507
      %v3548 = vadd.f32 %v3302, %v3512
      %v3549 = vadd.f32 %v3303, %v3515
      %3550 = vst.msk [vmem:[#allocation3] sm:$0xff] %vm216, %v3518
      %3551 = vst.msk [vmem:[#allocation3 + $0x8] sm:$0xff] %vm216, %v3519
      %3552 = vst.msk [vmem:[#allocation3 + $0x10] sm:$0xff] %vm216, %v3520
      %3553 = vst.msk [vmem:[#allocation3 + $0x18] sm:$0xff] %vm216, %v3521
      %3554 = vst.msk [vmem:[#allocation3 + $0x20] sm:$0xff] %vm216, %v3522
      %3555 = vst.msk [vmem:[#allocation3 + $0x28] sm:$0xff] %vm216, %v3523
      %3556 = vst.msk [vmem:[#allocation3 + $0x30] sm:$0xff] %vm216, %v3524
      %3557 = vst.msk [vmem:[#allocation3 + $0x38] sm:$0xff] %vm216, %v3525
      %3558 = vst.msk [vmem:[#allocation3 + $0x40] sm:$0xff] %vm216, %v3526
      %3559 = vst.msk [vmem:[#allocation3 + $0x48] sm:$0xff] %vm216, %v3527
      %3560 = vst.msk [vmem:[#allocation3 + $0x50] sm:$0xff] %vm216, %v3528
      %3561 = vst.msk [vmem:[#allocation3 + $0x58] sm:$0xff] %vm216, %v3529
      %3562 = vst.msk [vmem:[#allocation3 + $0x60] sm:$0xff] %vm216, %v3530
      %3563 = vst.msk [vmem:[#allocation3 + $0x68] sm:$0xff] %vm216, %v3531
      %3564 = vst.msk [vmem:[#allocation3 + $0x70] sm:$0xff] %vm216, %v3532
      %3565 = vst.msk [vmem:[#allocation3 + $0x78] sm:$0xff] %vm216, %v3533
      %3566 = vst.msk [vmem:[#allocation3 + $0x80] sm:$0xff] %vm216, %v3534
      %3567 = vst.msk [vmem:[#allocation3 + $0x88] sm:$0xff] %vm216, %v3535
      %3568 = vst.msk [vmem:[#allocation3 + $0x90] sm:$0xff] %vm216, %v3536
      %3569 = vst.msk [vmem:[#allocation3 + $0x98] sm:$0xff] %vm216, %v3537
      %3570 = vst.msk [vmem:[#allocation3 + $0xa0] sm:$0xff] %vm216, %v3538
      %3571 = vst.msk [vmem:[#allocation3 + $0xa8] sm:$0xff] %vm216, %v3539
      %3572 = vst.msk [vmem:[#allocation3 + $0xb0] sm:$0xff] %vm216, %v3540
      %3573 = vst.msk [vmem:[#allocation3 + $0xb8] sm:$0xff] %vm216, %v3541
      %3574 = vst.msk [vmem:[#allocation3 + $0xc0] sm:$0xff] %vm216, %v3542
      %3575 = vst.msk [vmem:[#allocation3 + $0xc8] sm:$0xff] %vm216, %v3543
      %3576 = vst.msk [vmem:[#allocation3 + $0xd0] sm:$0xff] %vm216, %v3544
      %3577 = vst.msk [vmem:[#allocation3 + $0xd8] sm:$0xff] %vm216, %v3545
      %3578 = vst.msk [vmem:[#allocation3 + $0xe0] sm:$0xff] %vm216, %v3546
      %3579 = vst.msk [vmem:[#allocation3 + $0xe8] sm:$0xff] %vm216, %v3547
      %3580 = vst.msk [vmem:[#allocation3 + $0xf0] sm:$0xff] %vm216, %v3548
      %3581 = vst.msk [vmem:[#allocation3 + $0xf8] sm:$0xff] %vm216, %v3549
      %v3582 = vld [vmem:[#allocation3] sm:$0xff]
      %v3583 = vld [vmem:[#allocation3 + $0x8] sm:$0xff]
      %v3584 = vld [vmem:[#allocation3 + $0x10] sm:$0xff]
      %v3585 = vld [vmem:[#allocation3 + $0x18] sm:$0xff]
      %v3586 = vld [vmem:[#allocation3 + $0x20] sm:$0xff]
      %v3587 = vld [vmem:[#allocation3 + $0x28] sm:$0xff]
      %v3588 = vld [vmem:[#allocation3 + $0x30] sm:$0xff]
      %v3589 = vld [vmem:[#allocation3 + $0x38] sm:$0xff]
      %v3590 = vld [vmem:[#allocation3 + $0x40] sm:$0xff]
      %v3591 = vld [vmem:[#allocation3 + $0x48] sm:$0xff]
      %v3592 = vld [vmem:[#allocation3 + $0x50] sm:$0xff]
      %v3593 = vld [vmem:[#allocation3 + $0x58] sm:$0xff]
      %v3594 = vld [vmem:[#allocation3 + $0x60] sm:$0xff]
      %v3595 = vld [vmem:[#allocation3 + $0x68] sm:$0xff]
      %v3596 = vld [vmem:[#allocation3 + $0x70] sm:$0xff]
      %v3597 = vld [vmem:[#allocation3 + $0x78] sm:$0xff]
      %v3598 = vld [vmem:[#allocation3 + $0x80] sm:$0xff]
      %v3599 = vld [vmem:[#allocation3 + $0x88] sm:$0xff]
      %v3600 = vld [vmem:[#allocation3 + $0x90] sm:$0xff]
      %v3601 = vld [vmem:[#allocation3 + $0x98] sm:$0xff]
      %v3602 = vld [vmem:[#allocation3 + $0xa0] sm:$0xff]
      %v3603 = vld [vmem:[#allocation3 + $0xa8] sm:$0xff]
      %v3604 = vld [vmem:[#allocation3 + $0xb0] sm:$0xff]
      %v3605 = vld [vmem:[#allocation3 + $0xb8] sm:$0xff]
      %v3606 = vld [vmem:[#allocation3 + $0xc0] sm:$0xff]
      %v3607 = vld [vmem:[#allocation3 + $0xc8] sm:$0xff]
      %v3608 = vld [vmem:[#allocation3 + $0xd0] sm:$0xff]
      %v3609 = vld [vmem:[#allocation3 + $0xd8] sm:$0xff]
      %v3610 = vld [vmem:[#allocation3 + $0xe0] sm:$0xff]
      %v3611 = vld [vmem:[#allocation3 + $0xe8] sm:$0xff]
      %v3612 = vld [vmem:[#allocation3 + $0xf0] sm:$0xff]
      %v3613 = vld [vmem:[#allocation3 + $0xf8] sm:$0xff]
      %v3614 = vmax.f32 %v3582, 0.0
      %v3615 = vmax.f32 %v3583, 0.0
      %v3616 = vmax.f32 %v3584, 0.0
      %v3617 = vmax.f32 %v3585, 0.0
      %v3618 = vmax.f32 %v3586, 0.0
      %v3619 = vmax.f32 %v3587, 0.0
      %v3620 = vmax.f32 %v3588, 0.0
      %v3621 = vmax.f32 %v3589, 0.0
      %v3622 = vmax.f32 %v3590, 0.0
      %v3623 = vmax.f32 %v3591, 0.0
      %v3624 = vmax.f32 %v3592, 0.0
      %v3625 = vmax.f32 %v3593, 0.0
      %v3626 = vmax.f32 %v3594, 0.0
      %v3627 = vmax.f32 %v3595, 0.0
      %v3628 = vmax.f32 %v3596, 0.0
      %v3629 = vmax.f32 %v3597, 0.0
      %v3630 = vmax.f32 %v3598, 0.0
      %v3631 = vmax.f32 %v3599, 0.0
      %v3632 = vmax.f32 %v3600, 0.0
      %v3633 = vmax.f32 %v3601, 0.0
      %v3634 = vmax.f32 %v3602, 0.0
      %v3635 = vmax.f32 %v3603, 0.0
      %v3636 = vmax.f32 %v3604, 0.0
      %v3637 = vmax.f32 %v3605, 0.0
      %v3638 = vmax.f32 %v3606, 0.0
      %v3639 = vmax.f32 %v3607, 0.0
      %v3640 = vmax.f32 %v3608, 0.0
      %v3641 = vmax.f32 %v3609, 0.0
      %v3642 = vmax.f32 %v3610, 0.0
      %v3643 = vmax.f32 %v3611, 0.0
      %v3644 = vmax.f32 %v3612, 0.0
      %v3645 = vmax.f32 %v3613, 0.0
      %3646 = vst.msk [vmem:[%s208] sm:$0xff] %vm216, %v3614
      %3647 = vst.msk [vmem:[%s208 + $0x8] sm:$0xff] %vm216, %v3615
      %3648 = vst.msk [vmem:[%s208 + $0x10] sm:$0xff] %vm216, %v3616
      %3649 = vst.msk [vmem:[%s208 + $0x18] sm:$0xff] %vm216, %v3617
      %3650 = vst.msk [vmem:[%s208 + $0x20] sm:$0xff] %vm216, %v3618
      %3651 = vst.msk [vmem:[%s208 + $0x28] sm:$0xff] %vm216, %v3619
      %3652 = vst.msk [vmem:[%s208 + $0x30] sm:$0xff] %vm216, %v3620
      %3653 = vst.msk [vmem:[%s208 + $0x38] sm:$0xff] %vm216, %v3621
      %3654 = vst.msk [vmem:[%s208 + $0x40] sm:$0xff] %vm216, %v3622
      %3655 = vst.msk [vmem:[%s208 + $0x48] sm:$0xff] %vm216, %v3623
      %3656 = vst.msk [vmem:[%s208 + $0x50] sm:$0xff] %vm216, %v3624
      %3657 = vst.msk [vmem:[%s208 + $0x58] sm:$0xff] %vm216, %v3625
      %3658 = vst.msk [vmem:[%s208 + $0x60] sm:$0xff] %vm216, %v3626
      %3659 = vst.msk [vmem:[%s208 + $0x68] sm:$0xff] %vm216, %v3627
      %3660 = vst.msk [vmem:[%s208 + $0x70] sm:$0xff] %vm216, %v3628
      %3661 = vst.msk [vmem:[%s208 + $0x78] sm:$0xff] %vm216, %v3629
      %3662 = vst.msk [vmem:[%s208 + $0x80] sm:$0xff] %vm216, %v3630
      %3663 = vst.msk [vmem:[%s208 + $0x88] sm:$0xff] %vm216, %v3631
      %3664 = vst.msk [vmem:[%s208 + $0x90] sm:$0xff] %vm216, %v3632
      %3665 = vst.msk [vmem:[%s208 + $0x98] sm:$0xff] %vm216, %v3633
      %3666 = vst.msk [vmem:[%s208 + $0xa0] sm:$0xff] %vm216, %v3634
      %3667 = vst.msk [vmem:[%s208 + $0xa8] sm:$0xff] %vm216, %v3635
      %3668 = vst.msk [vmem:[%s208 + $0xb0] sm:$0xff] %vm216, %v3636
      %3669 = vst.msk [vmem:[%s208 + $0xb8] sm:$0xff] %vm216, %v3637
      %3670 = vst.msk [vmem:[%s208 + $0xc0] sm:$0xff] %vm216, %v3638
      %3671 = vst.msk [vmem:[%s208 + $0xc8] sm:$0xff] %vm216, %v3639
      %3672 = vst.msk [vmem:[%s208 + $0xd0] sm:$0xff] %vm216, %v3640
      %3673 = vst.msk [vmem:[%s208 + $0xd8] sm:$0xff] %vm216, %v3641
      %3674 = vst.msk [vmem:[%s208 + $0xe0] sm:$0xff] %vm216, %v3642
      %3675 = vst.msk [vmem:[%s208 + $0xe8] sm:$0xff] %vm216, %v3643
      %3676 = vst.msk [vmem:[%s208 + $0xf0] sm:$0xff] %vm216, %v3644
      %3677 = vst.msk [vmem:[%s208 + $0xf8] sm:$0xff] %vm216, %v3645
      %v3678 = vsel %vm216, %v3614, 0.0
      %v3679 = vsel %vm216, %v3615, 0.0
      %v3680 = vadd.f32 %v3678, %v3679
      %v3681 = vsel %vm216, %v3616, 0.0
      %v3682 = vadd.f32 %v3680, %v3681
      %v3683 = vsel %vm216, %v3617, 0.0
      %v3684 = vadd.f32 %v3682, %v3683
      %v3685 = vsel %vm216, %v3618, 0.0
      %v3686 = vadd.f32 %v3684, %v3685
      %v3687 = vsel %vm216, %v3619, 0.0
      %v3688 = vadd.f32 %v3686, %v3687
      %v3689 = vsel %vm216, %v3620, 0.0
      %v3690 = vadd.f32 %v3688, %v3689
      %v3691 = vsel %vm216, %v3621, 0.0
      %v3692 = vadd.f32 %v3690, %v3691
      %v3693 = vsel %vm216, %v3622, 0.0
      %v3694 = vadd.f32 %v3692, %v3693
      %v3695 = vsel %vm216, %v3623, 0.0
      %v3696 = vadd.f32 %v3694, %v3695
      %v3697 = vsel %vm216, %v3624, 0.0
      %v3698 = vadd.f32 %v3696, %v3697
      %v3699 = vsel %vm216, %v3625, 0.0
      %v3700 = vadd.f32 %v3698, %v3699
      %v3701 = vsel %vm216, %v3626, 0.0
      %v3702 = vadd.f32 %v3700, %v3701
      %v3703 = vsel %vm216, %v3627, 0.0
      %v3704 = vadd.f32 %v3702, %v3703
      %v3705 = vsel %vm216, %v3628, 0.0
      %v3706 = vadd.f32 %v3704, %v3705
      %v3707 = vsel %vm216, %v3629, 0.0
      %v3708 = vadd.f32 %v3706, %v3707
      %v3709 = vsel %vm216, %v3630, 0.0
      %v3710 = vadd.f32 %v3708, %v3709
      %v3711 = vsel %vm216, %v3631, 0.0
      %v3712 = vadd.f32 %v3710, %v3711
      %v3713 = vsel %vm216, %v3632, 0.0
      %v3714 = vadd.f32 %v3712, %v3713
      %v3715 = vsel %vm216, %v3633, 0.0
      %v3716 = vadd.f32 %v3714, %v3715
      %v3717 = vsel %vm216, %v3634, 0.0
      %v3718 = vadd.f32 %v3716, %v3717
      %v3719 = vsel %vm216, %v3635, 0.0
      %v3720 = vadd.f32 %v3718, %v3719
      %v3721 = vsel %vm216, %v3636, 0.0
      %v3722 = vadd.f32 %v3720, %v3721
      %v3723 = vsel %vm216, %v3637, 0.0
      %v3724 = vadd.f32 %v3722, %v3723
      %v3725 = vsel %vm216, %v3638, 0.0
      %v3726 = vadd.f32 %v3724, %v3725
      %v3727 = vsel %vm216, %v3639, 0.0
      %v3728 = vadd.f32 %v3726, %v3727
      %v3729 = vsel %vm216, %v3640, 0.0
      %v3730 = vadd.f32 %v3728, %v3729
      %v3731 = vsel %vm216, %v3641, 0.0
      %v3732 = vadd.f32 %v3730, %v3731
      %v3733 = vsel %vm216, %v3642, 0.0
      %v3734 = vadd.f32 %v3732, %v3733
      %v3735 = vsel %vm216, %v3643, 0.0
      %v3736 = vadd.f32 %v3734, %v3735
      %v3737 = vsel %vm216, %v3644, 0.0
      %v3738 = vadd.f32 %v3736, %v3737
      %v3739 = vsel %vm216, %v3645, 0.0
      %v3740 = vadd.f32 %v3738, %v3739
      %v3741 = vrot.slane %v3740, 4
      %v3742 = vadd.f32 %v3740, %v3741
      %v3743 = vrot.slane %v3742, 2
      %v3744 = vadd.f32 %v3742, %v3743
      %v3745 = vrot.slane %v3744, 1
      %v3746 = vadd.f32 %v3744, %v3745
      %3747 = vst.msk [vmem:[%s211] sm:$0x1] %vm225, %v3746
      %v3748 = vmul.f32 %v3614, %v3614
      %v3749 = vmul.f32 %v3615, %v3615
      %v3750 = vmul.f32 %v3616, %v3616
      %v3751 = vmul.f32 %v3617, %v3617
      %v3752 = vmul.f32 %v3618, %v3618
      %v3753 = vmul.f32 %v3619, %v3619
      %v3754 = vmul.f32 %v3620, %v3620
      %v3755 = vmul.f32 %v3621, %v3621
      %v3756 = vmul.f32 %v3622, %v3622
      %v3757 = vmul.f32 %v3623, %v3623
      %v3758 = vmul.f32 %v3624, %v3624
      %v3759 = vmul.f32 %v3625, %v3625
      %v3760 = vmul.f32 %v3626, %v3626
      %v3761 = vmul.f32 %v3627, %v3627
      %v3762 = vmul.f32 %v3628, %v3628
      %v3763 = vmul.f32 %v3629, %v3629
      %v3764 = vmul.f32 %v3630, %v3630
      %v3765 = vmul.f32 %v3631, %v3631
      %v3766 = vmul.f32 %v3632, %v3632
      %v3767 = vmul.f32 %v3633, %v3633
      %v3768 = vmul.f32 %v3634, %v3634
      %v3769 = vmul.f32 %v3635, %v3635
      %v3770 = vmul.f32 %v3636, %v3636
      %v3771 = vmul.f32 %v3637, %v3637
      %v3772 = vmul.f32 %v3638, %v3638
      %v3773 = vmul.f32 %v3639, %v3639
      %v3774 = vmul.f32 %v3640, %v3640
      %v3775 = vmul.f32 %v3641, %v3641
      %v3776 = vmul.f32 %v3642, %v3642
      %v3777 = vmul.f32 %v3643, %v3643
      %v3778 = vmul.f32 %v3644, %v3644
      %v3779 = vmul.f32 %v3645, %v3645
      %v3780 = vsel %vm216, %v3748, 0.0
      %v3781 = vsel %vm216, %v3749, 0.0
      %v3782 = vadd.f32 %v3780, %v3781
      %v3783 = vsel %vm216, %v3750, 0.0
      %v3784 = vadd.f32 %v3782, %v3783
      %v3785 = vsel %vm216, %v3751, 0.0
      %v3786 = vadd.f32 %v3784, %v3785
      %v3787 = vsel %vm216, %v3752, 0.0
      %v3788 = vadd.f32 %v3786, %v3787
      %v3789 = vsel %vm216, %v3753, 0.0
      %v3790 = vadd.f32 %v3788, %v3789
      %v3791 = vsel %vm216, %v3754, 0.0
      %v3792 = vadd.f32 %v3790, %v3791
      %v3793 = vsel %vm216, %v3755, 0.0
      %v3794 = vadd.f32 %v3792, %v3793
      %v3795 = vsel %vm216, %v3756, 0.0
      %v3796 = vadd.f32 %v3794, %v3795
      %v3797 = vsel %vm216, %v3757, 0.0
      %v3798 = vadd.f32 %v3796, %v3797
      %v3799 = vsel %vm216, %v3758, 0.0
      %v3800 = vadd.f32 %v3798, %v3799
      %v3801 = vsel %vm216, %v3759, 0.0
      %v3802 = vadd.f32 %v3800, %v3801
      %v3803 = vsel %vm216, %v3760, 0.0
      %v3804 = vadd.f32 %v3802, %v3803
      %v3805 = vsel %vm216, %v3761, 0.0
      %v3806 = vadd.f32 %v3804, %v3805
      %v3807 = vsel %vm216, %v3762, 0.0
      %v3808 = vadd.f32 %v3806, %v3807
      %v3809 = vsel %vm216, %v3763, 0.0
      %v3810 = vadd.f32 %v3808, %v3809
      %v3811 = vsel %vm216, %v3764, 0.0
      %v3812 = vadd.f32 %v3810, %v3811
      %v3813 = vsel %vm216, %v3765, 0.0
      %v3814 = vadd.f32 %v3812, %v3813
      %v3815 = vsel %vm216, %v3766, 0.0
      %v3816 = vadd.f32 %v3814, %v3815
      %v3817 = vsel %vm216, %v3767, 0.0
      %v3818 = vadd.f32 %v3816, %v3817
      %v3819 = vsel %vm216, %v3768, 0.0
      %v3820 = vadd.f32 %v3818, %v3819
      %v3821 = vsel %vm216, %v3769, 0.0
      %v3822 = vadd.f32 %v3820, %v3821
      %v3823 = vsel %vm216, %v3770, 0.0
      %v3824 = vadd.f32 %v3822, %v3823
      %v3825 = vsel %vm216, %v3771, 0.0
      %v3826 = vadd.f32 %v3824, %v3825
      %v3827 = vsel %vm216, %v3772, 0.0
      %v3828 = vadd.f32 %v3826, %v3827
      %v3829 = vsel %vm216, %v3773, 0.0
      %v3830 = vadd.f32 %v3828, %v3829
      %v3831 = vsel %vm216, %v3774, 0.0
      %v3832 = vadd.f32 %v3830, %v3831
      %v3833 = vsel %vm216, %v3775, 0.0
      %v3834 = vadd.f32 %v3832, %v3833
      %v3835 = vsel %vm216, %v3776, 0.0
      %v3836 = vadd.f32 %v3834, %v3835
      %v3837 = vsel %vm216, %v3777, 0.0
      %v3838 = vadd.f32 %v3836, %v3837
      %v3839 = vsel %vm216, %v3778, 0.0
      %v3840 = vadd.f32 %v3838, %v3839
      %v3841 = vsel %vm216, %v3779, 0.0
      %v3842 = vadd.f32 %v3840, %v3841
      %v3843 = vrot.slane %v3842, 4
      %v3844 = vadd.f32 %v3842, %v3843
      %v3845 = vrot.slane %v3844, 2
      %v3846 = vadd.f32 %v3844, %v3845
      %v3847 = vrot.slane %v3846, 1
      %v3848 = vadd.f32 %v3846, %v3847
      %3849 = vst.msk [vmem:[%s214] sm:$0x1] %vm225, %v3848
      %p3850 = scmp.lt.s32.totalorder %s16, 1
      %s3851 = scalar_select %p3850, %s16, 1
      %s3852 = smul.addr %s3851, 32
      %s3853 = smul.addr %s3852, 8
      %s3854 = scalar_lea.vmem %s2, %s3853
      %p3855 = scmp.lt.s32.totalorder %s16, 1
      %s3856 = scalar_select %p3855, %s16, 1
      %s3857 = scalar_lea.vmem %s3, %s3856
      %p3858 = scmp.lt.s32.totalorder %s16, 1
      %s3859 = scalar_select %p3858, %s16, 1
      %s3860 = scalar_lea.vmem %s4, %s3859
      // Predicated region
      $region29: #{_basic_block_nhwc.3} parent=27 // pred_check
        %p3861 = pneg %p81
      $region30: #{_basic_block_nhwc.3} parent=27 // pred_check_branch
        %3863 = sbr.rel (%p3861) target = $region32
      $region31: #{_basic_block_nhwc.3} parent=27 // pred_region
        _
      $region32: #{_basic_block_nhwc.3} parent=27 // pred_fallthru
        _
      // Predicated region
      $region33: #{_basic_block_nhwc.3} parent=27 // pred_check
        %p3864 = pneg %p107
      $region34: #{_basic_block_nhwc.3} parent=27 // pred_check_branch
        %3866 = sbr.rel (%p3864) target = $region36
      $region35: #{_basic_block_nhwc.3} parent=27 // pred_region
        _
      $region36: #{_basic_block_nhwc.3} parent=27 // pred_fallthru
        _
      // Predicated region
      $region37: #{_basic_block_nhwc.3} parent=27 // pred_check
        %p3867 = pneg %p133
      $region38: #{_basic_block_nhwc.3} parent=27 // pred_check_branch
        %3869 = sbr.rel (%p3867) target = $region40
      $region39: #{_basic_block_nhwc.3} parent=27 // pred_region
        _
      $region40: #{_basic_block_nhwc.3} parent=27 // pred_fallthru
        _
    $region28: #{_basic_block_nhwc.3} parent=5 // pred_fallthru
      _
    %p3870 = scmp.le.s32.totalorder 2, %s11
    // Predicated region
    $region41: #{_basic_block_nhwc.3} parent=5 // pred_check
      %p3871 = pneg %p3870
    $region42: #{_basic_block_nhwc.3} parent=5 // pred_check_branch
      %3873 = sbr.rel (%p3871) target = $region44
    $region43: #{_basic_block_nhwc.3} parent=5 // pred_region
      %s3874 = ssub.s32 %s11, 2
      // Predicated region
      $region45: #{_basic_block_nhwc.3} parent=43 // pred_check
        %p3875 = pneg %p87
      $region46: #{_basic_block_nhwc.3} parent=43 // pred_check_branch
        %3877 = sbr.rel (%p3875) target = $region48
      $region47: #{_basic_block_nhwc.3} parent=43 // pred_region
        %p3878 = scmp.lt.s32.totalorder %s17, 1
        %s3879 = scalar_select %p3878, %s17, 1
        %s3880 = smul.addr %s3879, 32
        %s3881 = smul.addr %s3880, 8
        %s3882 = scalar_lea.vmem %s2, %s3881
      $region48: #{_basic_block_nhwc.3} parent=43 // pred_fallthru
        _
      // Predicated region
      $region49: #{_basic_block_nhwc.3} parent=43 // pred_check
        %p3883 = pneg %p113
      $region50: #{_basic_block_nhwc.3} parent=43 // pred_check_branch
        %3885 = sbr.rel (%p3883) target = $region52
      $region51: #{_basic_block_nhwc.3} parent=43 // pred_region
        %p3886 = scmp.lt.s32.totalorder %s17, 1
        %s3887 = scalar_select %p3886, %s17, 1
        %s3888 = scalar_lea.vmem %s3, %s3887
      $region52: #{_basic_block_nhwc.3} parent=43 // pred_fallthru
        _
      // Predicated region
      $region53: #{_basic_block_nhwc.3} parent=43 // pred_check
        %p3889 = pneg %p139
      $region54: #{_basic_block_nhwc.3} parent=43 // pred_check_branch
        %3891 = sbr.rel (%p3889) target = $region56
      $region55: #{_basic_block_nhwc.3} parent=43 // pred_region
        %p3892 = scmp.lt.s32.totalorder %s17, 1
        %s3893 = scalar_select %p3892, %s17, 1
        %s3894 = scalar_lea.vmem %s4, %s3893
      $region56: #{_basic_block_nhwc.3} parent=43 // pred_fallthru
        _
    $region44: #{_basic_block_nhwc.3} parent=5 // pred_fallthru
      _
  $region6: #{_basic_block_nhwc.3} parent=0 // loop_footer
    %s15 = sadd.s32 1, %s11
  $region7: #{_basic_block_nhwc.3} parent=0 // loop_footer_branch
    %10 = sbr.rel target = $region3
  $region8: #{_basic_block_nhwc.3} parent=0 // loop_exit
    _

// kernel: _basic_block_nhwc.4
$region0: #{_basic_block_nhwc.4}
  #allocation0 [shape = 'u32[]', space=smem, size = 0x4, offset = 0x4, fixed_abs, tag = 'smem constant byte address 0x4 - core index']
  #allocation1 [shape = 'u32[144,128]{1,0:T(1,128)}', space=vmem, size = 0x12000, scoped, tag = 'internal scratch']
  #allocation2 [shape = 'f32[1,18,18,8]{3,2,1,0:T(8,128)}', space=vmem, size = 0x36000, scoped, tag = 'scratch operand']
  #allocation3 [shape = 'f32[256,8]{1,0:T(8,128)}', space=vmem, size = 0x20000, scoped, tag = 'scratch operand']
  %s0 = inlined_call_operand.vmem [shape: f32[2,16,16,8], index: 0, kind: input, shape index: {}]
  %s1 = inlined_call_operand.vmem [shape: f32[1,8], index: 1, kind: input, shape index: {}]
  %s2 = inlined_call_operand.vmem [shape: f32[1,8], index: 2, kind: input, shape index: {}]
  %s3 = inlined_call_operand.vmem [shape: bf16[9,8,8], index: 3, kind: input, shape index: {}]
  %s4 = inlined_call_operand.vmem [shape: f32[2,16,16,8], index: 4, kind: output, shape index: {0}]
  %s5 = inlined_call_operand.vmem [shape: f32[2,1,8], index: 5, kind: output, shape index: {1}]
  %s6 = inlined_call_operand.vmem [shape: f32[2,1,8], index: 6, kind: output, shape index: {2}]
  %s7 = inlined_call_operand.vmem [shape: f32[2,1,8], index: 7, kind: output, shape index: {3}]
  %8 = xla_tuple %s4, %s5, %s6, %s7
  %s9 = sld [smem:[#allocation0]]
  $region73: #{_basic_block_nhwc.4} parent=0
    _
  %s11 = ssub.s32 1, %s9
  %s12 = scalar_select 0, %s11, %s9
  loop: start=0, step=1, limit=4
  $region2: #{_basic_block_nhwc.4} parent=0 // loop_pre_header
    _
  $region3: #{_basic_block_nhwc.4} parent=0 // loop_header
    %s14 = sphi 0, %s18
    %p15 = scmp.ge.s32.totalorder %s14, 4
    %s24 = sphi 0, %s26
    %s27 = sphi 0, %s24
    %s28 = sphi 0, %s27
    %s44 = sphi 0, %s28
    %s48 = sphi 0, %s48
    %s50 = sphi 0, %s48
    %s51 = sphi 0, %s50
    %s65 = sphi 0, %s51
    %s69 = sphi 0, %s69
    %s71 = sphi 0, %s69
    %s72 = sphi 0, %s71
    %s86 = sphi 0, %s72
    %s90 = sphi 0, %s90
    %s92 = sphi 0, %s90
    %s93 = sphi 0, %s92
    %s107 = sphi 0, %s93
    %s113 = sphi 0, %s115
    %s116 = sphi 0, %s113
    %s117 = sphi 0, %s116
    %s133 = sphi 0, %s117
    %s139 = sphi 0, %s141
    %s142 = sphi 0, %s139
    %s143 = sphi 0, %s142
    %s159 = sphi 0, %s143
    %s165 = sphi 0, %s167
    %s168 = sphi 0, %s165
    %s169 = sphi 0, %s168
    %s185 = sphi 0, %s169
    %s191 = sphi 0, %s193
    %s194 = sphi 0, %s191
    %s195 = sphi 0, %s194
    %s211 = sphi 0, %s195
  $region4: #{_basic_block_nhwc.4} parent=0 // loop_header_branch
    %17 = sbr.rel (%p15) target = $region8
  $region5: #{_basic_block_nhwc.4} parent=0 // loop_body
    %s19 = ssub.s32 %s14, 1
    %s20 = ssub.s32 %s14, 2
    %s21 = sadd.s32 %s14, 1
    %s22 = ssub.s32 %s14, %s21
    %p23 = scmp.eq.s32.totalorder %s22, 0
    %s25 = sadd.s32 %s24, 1
    %s26 = scalar_select %p23, %s24, %s25
    %p29 = pneg %p23
    %p30 = scmp.eq.s32.totalorder %s14, 1
    %p31 = por %p29, %p30
    %p32 = scmp.ne.s32.totalorder %s24, %s27
    %p33 = scmp.eq.s32.totalorder %s14, 0
    %p34 = por %p32, %p33
    %p35 = scmp.ne.s32.totalorder %s24, %s27
    %p36 = scmp.eq.s32.totalorder %s19, 1
    %p37 = por %p35, %p36
    %p38 = scmp.ne.s32.totalorder %s27, %s28
    %p39 = scmp.eq.s32.totalorder %s19, 0
    %p40 = por %p38, %p39
    %p41 = scmp.ne.s32.totalorder %s27, %s28
    %p42 = scmp.eq.s32.totalorder %s20, 1
    %p43 = por %p41, %p42
    %p45 = scmp.ne.s32.totalorder %s28, %s44
    %p46 = scmp.eq.s32.totalorder %s20, 0
    %p47 = por %p45, %p46
    %s49 = sadd.s32 %s48, 1
    %p52 = scmp.eq.s32.totalorder %s14, 1
    %p53 = scmp.ne.s32.totalorder %s48, %s50
    %p54 = scmp.eq.s32.totalorder %s14, 0
    %p55 = por %p53, %p54
    %p56 = scmp.ne.s32.totalorder %s48, %s50
    %p57 = scmp.eq.s32.totalorder %s19, 1
    %p58 = por %p56, %p57
    %p59 = scmp.ne.s32.totalorder %s50, %s51
    %p60 = scmp.eq.s32.totalorder %s19, 0
    %p61 = por %p59, %p60
    %p62 = scmp.ne.s32.totalorder %s50, %s51
    %p63 = scmp.eq.s32.totalorder %s20, 1
    %p64 = por %p62, %p63
    %p66 = scmp.ne.s32.totalorder %s51, %s65
    %p67 = scmp.eq.s32.totalorder %s20, 0
    %p68 = por %p66, %p67
    %s70 = sadd.s32 %s69, 1
    %p73 = scmp.eq.s32.totalorder %s14, 1
    %p74 = scmp.ne.s32.totalorder %s69, %s71
    %p75 = scmp.eq.s32.totalorder %s14, 0
    %p76 = por %p74, %p75
    %p77 = scmp.ne.s32.totalorder %s69, %s71
    %p78 = scmp.eq.s32.totalorder %s19, 1
    %p79 = por %p77, %p78
    %p80 = scmp.ne.s32.totalorder %s71, %s72
    %p81 = scmp.eq.s32.totalorder %s19, 0
    %p82 = por %p80, %p81
    %p83 = scmp.ne.s32.totalorder %s71, %s72
    %p84 = scmp.eq.s32.totalorder %s20, 1
    %p85 = por %p83, %p84
    %p87 = scmp.ne.s32.totalorder %s72, %s86
    %p88 = scmp.eq.s32.totalorder %s20, 0
    %p89 = por %p87, %p88
    %s91 = sadd.s32 %s90, 1
    %p94 = scmp.eq.s32.totalorder %s14, 1
    %p95 = scmp.ne.s32.totalorder %s90, %s92
    %p96 = scmp.eq.s32.totalorder %s14, 0
    %p97 = por %p95, %p96
    %p98 = scmp.ne.s32.totalorder %s90, %s92
    %p99 = scmp.eq.s32.totalorder %s19, 1
    %p100 = por %p98, %p99
    %p101 = scmp.ne.s32.totalorder %s92, %s93
    %p102 = scmp.eq.s32.totalorder %s19, 0
    %p103 = por %p101, %p102
    %p104 = scmp.ne.s32.totalorder %s92, %s93
    %p105 = scmp.eq.s32.totalorder %s20, 1
    %p106 = por %p104, %p105
    %p108 = scmp.ne.s32.totalorder %s93, %s107
    %p109 = scmp.eq.s32.totalorder %s20, 0
    %p110 = por %p108, %p109
    %s111 = ssub.s32 %s14, %s21
    %p112 = scmp.eq.s32.totalorder %s111, 0
    %s114 = sadd.s32 %s113, 1
    %s115 = scalar_select %p112, %s113, %s114
    %p118 = pneg %p112
    %p119 = scmp.eq.s32.totalorder %s14, 1
    %p120 = por %p118, %p119
    %p121 = scmp.ne.s32.totalorder %s113, %s116
    %p122 = scmp.eq.s32.totalorder %s14, 0
    %p123 = por %p121, %p122
    %p124 = scmp.ne.s32.totalorder %s113, %s116
    %p125 = scmp.eq.s32.totalorder %s19, 1
    %p126 = por %p124, %p125
    %p127 = scmp.ne.s32.totalorder %s116, %s117
    %p128 = scmp.eq.s32.totalorder %s19, 0
    %p129 = por %p127, %p128
    %p130 = scmp.ne.s32.totalorder %s116, %s117
    %p131 = scmp.eq.s32.totalorder %s20, 1
    %p132 = por %p130, %p131
    %p134 = scmp.ne.s32.totalorder %s117, %s133
    %p135 = scmp.eq.s32.totalorder %s20, 0
    %p136 = por %p134, %p135
    %s137 = ssub.s32 %s14, %s21
    %p138 = scmp.eq.s32.totalorder %s137, 0
    %s140 = sadd.s32 %s139, 1
    %s141 = scalar_select %p138, %s139, %s140
    %p144 = pneg %p138
    %p145 = scmp.eq.s32.totalorder %s14, 1
    %p146 = por %p144, %p145
    %p147 = scmp.ne.s32.totalorder %s139, %s142
    %p148 = scmp.eq.s32.totalorder %s14, 0
    %p149 = por %p147, %p148
    %p150 = scmp.ne.s32.totalorder %s139, %s142
    %p151 = scmp.eq.s32.totalorder %s19, 1
    %p152 = por %p150, %p151
    %p153 = scmp.ne.s32.totalorder %s142, %s143
    %p154 = scmp.eq.s32.totalorder %s19, 0
    %p155 = por %p153, %p154
    %p156 = scmp.ne.s32.totalorder %s142, %s143
    %p157 = scmp.eq.s32.totalorder %s20, 1
    %p158 = por %p156, %p157
    %p160 = scmp.ne.s32.totalorder %s143, %s159
    %p161 = scmp.eq.s32.totalorder %s20, 0
    %p162 = por %p160, %p161
    %s163 = ssub.s32 %s14, %s21
    %p164 = scmp.eq.s32.totalorder %s163, 0
    %s166 = sadd.s32 %s165, 1
    %s167 = scalar_select %p164, %s165, %s166
    %p170 = pneg %p164
    %p171 = scmp.eq.s32.totalorder %s14, 1
    %p172 = por %p170, %p171
    %p173 = scmp.ne.s32.totalorder %s165, %s168
    %p174 = scmp.eq.s32.totalorder %s14, 0
    %p175 = por %p173, %p174
    %p176 = scmp.ne.s32.totalorder %s165, %s168
    %p177 = scmp.eq.s32.totalorder %s19, 1
    %p178 = por %p176, %p177
    %p179 = scmp.ne.s32.totalorder %s168, %s169
    %p180 = scmp.eq.s32.totalorder %s19, 0
    %p181 = por %p179, %p180
    %p182 = scmp.ne.s32.totalorder %s168, %s169
    %p183 = scmp.eq.s32.totalorder %s20, 1
    %p184 = por %p182, %p183
    %p186 = scmp.ne.s32.totalorder %s169, %s185
    %p187 = scmp.eq.s32.totalorder %s20, 0
    %p188 = por %p186, %p187
    %s189 = ssub.s32 %s14, %s21
    %p190 = scmp.eq.s32.totalorder %s189, 0
    %s192 = sadd.s32 %s191, 1
    %s193 = scalar_select %p190, %s191, %s192
    %p196 = pneg %p190
    %p197 = scmp.eq.s32.totalorder %s14, 1
    %p198 = por %p196, %p197
    %p199 = scmp.ne.s32.totalorder %s191, %s194
    %p200 = scmp.eq.s32.totalorder %s14, 0
    %p201 = por %p199, %p200
    %p202 = scmp.ne.s32.totalorder %s191, %s194
    %p203 = scmp.eq.s32.totalorder %s19, 1
    %p204 = por %p202, %p203
    %p205 = scmp.ne.s32.totalorder %s194, %s195
    %p206 = scmp.eq.s32.totalorder %s19, 0
    %p207 = por %p205, %p206
    %p208 = scmp.ne.s32.totalorder %s194, %s195
    %p209 = scmp.eq.s32.totalorder %s20, 1
    %p210 = por %p208, %p209
    %p212 = scmp.ne.s32.totalorder %s195, %s211
    %p213 = scmp.eq.s32.totalorder %s20, 0
    %p214 = por %p212, %p213
    %p215 = scmp.le.s32.totalorder 1, %s14
    %p216 = scmp.lt.s32.totalorder %s14, 3
    %p217 = pnand %p215, %p216
    %p218 = pneg %p217
    // Predicated region
    $region9: #{_basic_block_nhwc.4} parent=5 // pred_check
      _
    $region10: #{_basic_block_nhwc.4} parent=5 // pred_check_branch
      %220 = sbr.rel (%p217) target = $region12
    $region11: #{_basic_block_nhwc.4} parent=5 // pred_region
      %s221 = ssub.s32 %s14, 1
      // Predicated region
      $region13: #{_basic_block_nhwc.4} parent=11 // pred_check
        %p222 = pneg %p61
      $region14: #{_basic_block_nhwc.4} parent=11 // pred_check_branch
        %224 = sbr.rel (%p222) target = $region16
      $region15: #{_basic_block_nhwc.4} parent=11 // pred_region
        _
      $region16: #{_basic_block_nhwc.4} parent=11 // pred_fallthru
        _
      // Predicated region
      $region17: #{_basic_block_nhwc.4} parent=11 // pred_check
        %p225 = pneg %p82
      $region18: #{_basic_block_nhwc.4} parent=11 // pred_check_branch
        %227 = sbr.rel (%p225) target = $region20
      $region19: #{_basic_block_nhwc.4} parent=11 // pred_region
        _
      $region20: #{_basic_block_nhwc.4} parent=11 // pred_fallthru
        _
      // Predicated region
      $region21: #{_basic_block_nhwc.4} parent=11 // pred_check
        %p228 = pneg %p103
      $region22: #{_basic_block_nhwc.4} parent=11 // pred_check_branch
        %230 = sbr.rel (%p228) target = $region24
      $region23: #{_basic_block_nhwc.4} parent=11 // pred_region
        _
      $region24: #{_basic_block_nhwc.4} parent=11 // pred_fallthru
        _
    $region12: #{_basic_block_nhwc.4} parent=5 // pred_fallthru
      _
    %p231 = scmp.lt.s32.totalorder %s14, 2
    // Predicated region
    $region25: #{_basic_block_nhwc.4} parent=5 // pred_check
      %p232 = pneg %p231
    $region26: #{_basic_block_nhwc.4} parent=5 // pred_check_branch
      %234 = sbr.rel (%p232) target = $region28
    $region27: #{_basic_block_nhwc.4} parent=5 // pred_region
      // Predicated region
      $region29: #{_basic_block_nhwc.4} parent=27 // pred_check
        %p235 = pneg %p34
      $region30: #{_basic_block_nhwc.4} parent=27 // pred_check_branch
        %237 = sbr.rel (%p235) target = $region32
      $region31: #{_basic_block_nhwc.4} parent=27 // pred_region
        %p238 = scmp.lt.s32.totalorder %s14, 1
        %s239 = scalar_select %p238, %s14, 1
        %s240 = smul.addr %s239, 32
        %s241 = smul.addr %s240, 8
        %s242 = scalar_lea.vmem %s0, %s241
      $region32: #{_basic_block_nhwc.4} parent=27 // pred_fallthru
        _
    $region28: #{_basic_block_nhwc.4} parent=5 // pred_fallthru
      _
    %p243 = scmp.le.s32.totalorder 1, %s14
    %p244 = scmp.lt.s32.totalorder %s14, 3
    %p245 = pnand %p243, %p244
    %p246 = pneg %p245
    // Predicated region
    $region33: #{_basic_block_nhwc.4} parent=5 // pred_check
      _
    $region34: #{_basic_block_nhwc.4} parent=5 // pred_check_branch
      %248 = sbr.rel (%p245) target = $region36
    $region35: #{_basic_block_nhwc.4} parent=5 // pred_region
      %s249 = ssub.s32 %s14, 1
      %p250 = scmp.lt.s32.totalorder %s19, 1
      %s251 = scalar_select %p250, %s19, 1
      %s252 = smul.addr %s251, 32
      %s253 = smul.addr %s252, 8
      %s254 = scalar_lea.vmem %s0, %s253
      %p255 = pneg %p40
      %p256 = pneg %p37
      %p257 = pneg %p61
      %p258 = pneg %p58
      %p259 = pneg %p82
      %p260 = pneg %p79
      %p261 = pneg %p103
      %p262 = pneg %p100
      %p263 = pneg %p129
      %p264 = pneg %p126
      %p265 = scmp.lt.s32.totalorder %s19, 1
      %s266 = scalar_select %p265, %s19, 1
      %s267 = smul.addr %s266, 32
      %s268 = smul.addr %s267, 8
      %s269 = scalar_lea.vmem %s4, %s268
      %p270 = pneg %p155
      %p271 = pneg %p152
      %p272 = scmp.lt.s32.totalorder %s19, 1
      %s273 = scalar_select %p272, %s19, 1
      %s274 = scalar_lea.vmem %s5, %s273
      %p275 = pneg %p181
      %p276 = pneg %p178
      %p277 = scmp.lt.s32.totalorder %s19, 1
      %s278 = scalar_select %p277, %s19, 1
      %s279 = scalar_lea.vmem %s6, %s278
      %p280 = pneg %p207
      %p281 = pneg %p204
      %p282 = scmp.lt.s32.totalorder %s19, 1
      %s283 = scalar_select %p282, %s19, 1
      %s284 = scalar_lea.vmem %s7, %s283
      %p285 = scmp.lt.s32.totalorder %s19, 1
      %s286 = scalar_select %p285, %s19, 1
      %s287 = smul.addr %s286, 32
      %s288 = smul.addr %s287, 8
      %s289 = scalar_lea.vmem %s0, %s288
      %p290 = scmp.lt.s32.totalorder %s19, 1
      %s291 = scalar_select %p290, %s19, 1
      %s292 = smul.addr %s291, 32
      %s293 = smul.addr %s292, 8
      %s294 = scalar_lea.vmem %s4, %s293
      %p295 = scmp.lt.s32.totalorder %s19, 1
      %s296 = scalar_select %p295, %s19, 1
      %s297 = scalar_lea.vmem %s5, %s296
      %p298 = scmp.lt.s32.totalorder %s19, 1
      %s299 = scalar_select %p298, %s19, 1
      %s300 = scalar_lea.vmem %s6, %s299
      %p301 = scmp.lt.s32.totalorder %s19, 1
      %s302 = scalar_select %p301, %s19, 1
      %s303 = scalar_lea.vmem %s7, %s302
      %vm305 = vcmask 64512
      %306 = vst.msk [vmem:[#allocation2] sm:$0xff] %vm305, 0.0
      %307 = vst.msk [vmem:[#allocation2 + $0x8] sm:$0xff] %vm305, 0.0
      %vm308 = vcmask 58368
      %309 = vst.msk [vmem:[#allocation2 + $0x10] sm:$0x3] %vm308, 0.0
      %s310 = scalar_lea.vmem [#allocation2], 408
      %311 = vst.msk [vmem:[%s310] sm:$0xff] %vm305, 0.0
      %312 = vst.msk [vmem:[%s310 + $0x8] sm:$0xff] %vm305, 0.0
      %313 = vst.msk [vmem:[%s310 + $0x10] sm:$0x3] %vm308, 0.0
      %vm314 = vcmask 57344
      %315 = vst.msk [vmem:[#allocation2] sm:$0x1] %vm314, 0.0
      %316 = vst.msk [vmem:[#allocation2 + $0x18] sm:$0x1] %vm314, 0.0
      %317 = vst.msk [vmem:[#allocation2 + $0x30] sm:$0x1] %vm314, 0.0
      %318 = vst.msk [vmem:[#allocation2 + $0x48] sm:$0x1] %vm314, 0.0
      %319 = vst.msk [vmem:[#allocation2 + $0x60] sm:$0x1] %vm314, 0.0
      %320 = vst.msk [vmem:[#allocation2 + $0x78] sm:$0x1] %vm314, 0.0
      %321 = vst.msk [vmem:[#allocation2 + $0x90] sm:$0x1] %vm314, 0.0
      %322 = vst.msk [vmem:[#allocation2 + $0xa8] sm:$0x1] %vm314, 0.0
      %323 = vst.msk [vmem:[#allocation2 + $0xc0] sm:$0x1] %vm314, 0.0
      %324 = vst.msk [vmem:[#allocation2 + $0xd8] sm:$0x1] %vm314, 0.0
      %325 = vst.msk [vmem:[#allocation2 + $0xf0] sm:$0x1] %vm314, 0.0
      %326 = vst.msk [vmem:[#allocation2 + $0x108] sm:$0x1] %vm314, 0.0
      %327 = vst.msk [vmem:[#allocation2 + $0x120] sm:$0x1] %vm314, 0.0
      %328 = vst.msk [vmem:[#allocation2 + $0x138] sm:$0x1] %vm314, 0.0
      %329 = vst.msk [vmem:[#allocation2 + $0x150] sm:$0x1] %vm314, 0.0
      %330 = vst.msk [vmem:[#allocation2 + $0x168] sm:$0x1] %vm314, 0.0
      %331 = vst.msk [vmem:[#allocation2 + $0x180] sm:$0x1] %vm314, 0.0
      %332 = vst.msk [vmem:[#allocation2 + $0x198] sm:$0x1] %vm314, 0.0
      %333 = vst.msk [vmem:[#allocation2 + $0x11] sm:$0x1] %vm314, 0.0
      %334 = vst.msk [vmem:[#allocation2 + $0x29] sm:$0x1] %vm314, 0.0
      %335 = vst.msk [vmem:[#allocation2 + $0x41] sm:$0x1] %vm314, 0.0
      %336 = vst.msk [vmem:[#allocation2 + $0x59] sm:$0x1] %vm314, 0.0
      %337 = vst.msk [vmem:[#allocation2 + $0x71] sm:$0x1] %vm314, 0.0
      %338 = vst.msk [vmem:[#allocation2 + $0x89] sm:$0x1] %vm314, 0.0
      %339 = vst.msk [vmem:[#allocation2 + $0xa1] sm:$0x1] %vm314, 0.0
      %340 = vst.msk [vmem:[#allocation2 + $0xb9] sm:$0x1] %vm314, 0.0
      %341 = vst.msk [vmem:[#allocation2 + $0xd1] sm:$0x1] %vm314, 0.0
      %342 = vst.msk [vmem:[#allocation2 + $0xe9] sm:$0x1] %vm314, 0.0
      %343 = vst.msk [vmem:[#allocation2 + $0x101] sm:$0x1] %vm314, 0.0
      %344 = vst.msk [vmem:[#allocation2 + $0x119] sm:$0x1] %vm314, 0.0
      %345 = vst.msk [vmem:[#allocation2 + $0x131] sm:$0x1] %vm314, 0.0
      %346 = vst.msk [vmem:[#allocation2 + $0x149] sm:$0x1] %vm314, 0.0
      %347 = vst.msk [vmem:[#allocation2 + $0x161] sm:$0x1] %vm314, 0.0
      %348 = vst.msk [vmem:[#allocation2 + $0x179] sm:$0x1] %vm314, 0.0
      %349 = vst.msk [vmem:[#allocation2 + $0x191] sm:$0x1] %vm314, 0.0
      %350 = vst.msk [vmem:[#allocation2 + $0x1a9] sm:$0x1] %vm314, 0.0
      %v351 = vld [vmem:[%s1] sm:$0x1]
      %v352 = vld [vmem:[%s2] sm:$0x1]
      %v353 = vld [vmem:[%s289] sm:$0xff]
      %v354 = vld [vmem:[%s289 + $0x8] sm:$0xff]
      %v355 = vld [vmem:[%s289 + $0x10] sm:$0xff]
      %v356 = vld [vmem:[%s289 + $0x18] sm:$0xff]
      %v357 = vld [vmem:[%s289 + $0x20] sm:$0xff]
      %v358 = vld [vmem:[%s289 + $0x28] sm:$0xff]
      %v359 = vld [vmem:[%s289 + $0x30] sm:$0xff]
      %v360 = vld [vmem:[%s289 + $0x38] sm:$0xff]
      %v361 = vld [vmem:[%s289 + $0x40] sm:$0xff]
      %v362 = vld [vmem:[%s289 + $0x48] sm:$0xff]
      %v363 = vld [vmem:[%s289 + $0x50] sm:$0xff]
      %v364 = vld [vmem:[%s289 + $0x58] sm:$0xff]
      %v365 = vld [vmem:[%s289 + $0x60] sm:$0xff]
      %v366 = vld [vmem:[%s289 + $0x68] sm:$0xff]
      %v367 = vld [vmem:[%s289 + $0x70] sm:$0xff]
      %v368 = vld [vmem:[%s289 + $0x78] sm:$0xff]
      %v369 = vld [vmem:[%s289 + $0x80] sm:$0xff]
      %v370 = vld [vmem:[%s289 + $0x88] sm:$0xff]
      %v371 = vld [vmem:[%s289 + $0x90] sm:$0xff]
      %v372 = vld [vmem:[%s289 + $0x98] sm:$0xff]
      %v373 = vld [vmem:[%s289 + $0xa0] sm:$0xff]
      %v374 = vld [vmem:[%s289 + $0xa8] sm:$0xff]
      %v375 = vld [vmem:[%s289 + $0xb0] sm:$0xff]
      %v376 = vld [vmem:[%s289 + $0xb8] sm:$0xff]
      %v377 = vld [vmem:[%s289 + $0xc0] sm:$0xff]
      %v378 = vld [vmem:[%s289 + $0xc8] sm:$0xff]
      %v379 = vld [vmem:[%s289 + $0xd0] sm:$0xff]
      %v380 = vld [vmem:[%s289 + $0xd8] sm:$0xff]
      %v381 = vld [vmem:[%s289 + $0xe0] sm:$0xff]
      %v382 = vld [vmem:[%s289 + $0xe8] sm:$0xff]
      %v383 = vld [vmem:[%s289 + $0xf0] sm:$0xff]
      %v384 = vld [vmem:[%s289 + $0xf8] sm:$0xff]
      %v386 = vlaneseq
      %v387 = vshrl.u32 %v386, 7
      %v388 = vsub.s32 0, %v387
      %v389 = vrot.slane %v351, %v388
      %v391 = vmul.f32 %v353, %v389
      %v392 = vmul.f32 %v354, %v389
      %v393 = vmul.f32 %v355, %v389
      %v394 = vmul.f32 %v356, %v389
      %v395 = vmul.f32 %v357, %v389
      %v396 = vmul.f32 %v358, %v389
      %v397 = vmul.f32 %v359, %v389
      %v398 = vmul.f32 %v360, %v389
      %v399 = vmul.f32 %v361, %v389
      %v400 = vmul.f32 %v362, %v389
      %v401 = vmul.f32 %v363, %v389
      %v402 = vmul.f32 %v364, %v389
      %v403 = vmul.f32 %v365, %v389
      %v404 = vmul.f32 %v366, %v389
      %v405 = vmul.f32 %v367, %v389
      %v406 = vmul.f32 %v368, %v389
      %v407 = vmul.f32 %v369, %v389
      %v408 = vmul.f32 %v370, %v389
      %v409 = vmul.f32 %v371, %v389
      %v410 = vmul.f32 %v372, %v389
      %v411 = vmul.f32 %v373, %v389
      %v412 = vmul.f32 %v374, %v389
      %v413 = vmul.f32 %v375, %v389
      %v414 = vmul.f32 %v376, %v389
      %v415 = vmul.f32 %v377, %v389
      %v416 = vmul.f32 %v378, %v389
      %v417 = vmul.f32 %v379, %v389
      %v418 = vmul.f32 %v380, %v389
      %v419 = vmul.f32 %v381, %v389
      %v420 = vmul.f32 %v382, %v389
      %v421 = vmul.f32 %v383, %v389
      %v422 = vmul.f32 %v384, %v389
      %v424 = vlaneseq
      %v425 = vshrl.u32 %v424, 7
      %v426 = vsub.s32 0, %v425
      %v427 = vrot.slane %v352, %v426
      %v429 = vadd.f32 %v391, %v427
      %v430 = vadd.f32 %v392, %v427
      %v431 = vadd.f32 %v393, %v427
      %v432 = vadd.f32 %v394, %v427
      %v433 = vadd.f32 %v395, %v427
      %v434 = vadd.f32 %v396, %v427
      %v435 = vadd.f32 %v397, %v427
      %v436 = vadd.f32 %v398, %v427
      %v437 = vadd.f32 %v399, %v427
      %v438 = vadd.f32 %v400, %v427
      %v439 = vadd.f32 %v401, %v427
      %v440 = vadd.f32 %v402, %v427
      %v441 = vadd.f32 %v403, %v427
      %v442 = vadd.f32 %v404, %v427
      %v443 = vadd.f32 %v405, %v427
      %v444 = vadd.f32 %v406, %v427
      %v445 = vadd.f32 %v407, %v427
      %v446 = vadd.f32 %v408, %v427
      %v447 = vadd.f32 %v409, %v427
      %v448 = vadd.f32 %v410, %v427
      %v449 = vadd.f32 %v411, %v427
      %v450 = vadd.f32 %v412, %v427
      %v451 = vadd.f32 %v413, %v427
      %v452 = vadd.f32 %v414, %v427
      %v453 = vadd.f32 %v415, %v427
      %v454 = vadd.f32 %v416, %v427
      %v455 = vadd.f32 %v417, %v427
      %v456 = vadd.f32 %v418, %v427
      %v457 = vadd.f32 %v419, %v427
      %v458 = vadd.f32 %v420, %v427
      %v459 = vadd.f32 %v421, %v427
      %v460 = vadd.f32 %v422, %v427
      %s461 = scalar_lea.vmem [#allocation2], 24
      %462 = vst.msk [vmem:[%s461 + $0x1] sm:$0xff] %vm305, %v429
      %463 = vst.msk [vmem:[%s461 + $0x9] sm:$0xff] %vm305, %v430
      %464 = vst.msk [vmem:[%s461 + $0x19] sm:$0xff] %vm305, %v431
      %465 = vst.msk [vmem:[%s461 + $0x21] sm:$0xff] %vm305, %v432
      %466 = vst.msk [vmem:[%s461 + $0x31] sm:$0xff] %vm305, %v433
      %467 = vst.msk [vmem:[%s461 + $0x39] sm:$0xff] %vm305, %v434
      %468 = vst.msk [vmem:[%s461 + $0x49] sm:$0xff] %vm305, %v435
      %469 = vst.msk [vmem:[%s461 + $0x51] sm:$0xff] %vm305, %v436
      %470 = vst.msk [vmem:[%s461 + $0x61] sm:$0xff] %vm305, %v437
      %471 = vst.msk [vmem:[%s461 + $0x69] sm:$0xff] %vm305, %v438
      %472 = vst.msk [vmem:[%s461 + $0x79] sm:$0xff] %vm305, %v439
      %473 = vst.msk [vmem:[%s461 + $0x81] sm:$0xff] %vm305, %v440
      %474 = vst.msk [vmem:[%s461 + $0x91] sm:$0xff] %vm305, %v441
      %475 = vst.msk [vmem:[%s461 + $0x99] sm:$0xff] %vm305, %v442
      %476 = vst.msk [vmem:[%s461 + $0xa9] sm:$0xff] %vm305, %v443
      %477 = vst.msk [vmem:[%s461 + $0xb1] sm:$0xff] %vm305, %v444
      %478 = vst.msk [vmem:[%s461 + $0xc1] sm:$0xff] %vm305, %v445
      %479 = vst.msk [vmem:[%s461 + $0xc9] sm:$0xff] %vm305, %v446
      %480 = vst.msk [vmem:[%s461 + $0xd9] sm:$0xff] %vm305, %v447
      %481 = vst.msk [vmem:[%s461 + $0xe1] sm:$0xff] %vm305, %v448
      %482 = vst.msk [vmem:[%s461 + $0xf1] sm:$0xff] %vm305, %v449
      %483 = vst.msk [vmem:[%s461 + $0xf9] sm:$0xff] %vm305, %v450
      %484 = vst.msk [vmem:[%s461 + $0x109] sm:$0xff] %vm305, %v451
      %485 = vst.msk [vmem:[%s461 + $0x111] sm:$0xff] %vm305, %v452
      %486 = vst.msk [vmem:[%s461 + $0x121] sm:$0xff] %vm305, %v453
      %487 = vst.msk [vmem:[%s461 + $0x129] sm:$0xff] %vm305, %v454
      %488 = vst.msk [vmem:[%s461 + $0x139] sm:$0xff] %vm305, %v455
      %489 = vst.msk [vmem:[%s461 + $0x141] sm:$0xff] %vm305, %v456
      %490 = vst.msk [vmem:[%s461 + $0x151] sm:$0xff] %vm305, %v457
      %491 = vst.msk [vmem:[%s461 + $0x159] sm:$0xff] %vm305, %v458
      %492 = vst.msk [vmem:[%s461 + $0x169] sm:$0xff] %vm305, %v459
      %493 = vst.msk [vmem:[%s461 + $0x171] sm:$0xff] %vm305, %v460
      %494 = vst.msk [vmem:[#allocation3] sm:$0xff] %vm305, 0.0
      %495 = vst.msk [vmem:[#allocation3 + $0x8] sm:$0xff] %vm305, 0.0
      %496 = vst.msk [vmem:[#allocation3 + $0x10] sm:$0xff] %vm305, 0.0
      %497 = vst.msk [vmem:[#allocation3 + $0x18] sm:$0xff] %vm305, 0.0
      %498 = vst.msk [vmem:[#allocation3 + $0x20] sm:$0xff] %vm305, 0.0
      %499 = vst.msk [vmem:[#allocation3 + $0x28] sm:$0xff] %vm305, 0.0
      %500 = vst.msk [vmem:[#allocation3 + $0x30] sm:$0xff] %vm305, 0.0
      %501 = vst.msk [vmem:[#allocation3 + $0x38] sm:$0xff] %vm305, 0.0
      %502 = vst.msk [vmem:[#allocation3 + $0x40] sm:$0xff] %vm305, 0.0
      %503 = vst.msk [vmem:[#allocation3 + $0x48] sm:$0xff] %vm305, 0.0
      %504 = vst.msk [vmem:[#allocation3 + $0x50] sm:$0xff] %vm305, 0.0
      %505 = vst.msk [vmem:[#allocation3 + $0x58] sm:$0xff] %vm305, 0.0
      %506 = vst.msk [vmem:[#allocation3 + $0x60] sm:$0xff] %vm305, 0.0
      %507 = vst.msk [vmem:[#allocation3 + $0x68] sm:$0xff] %vm305, 0.0
      %508 = vst.msk [vmem:[#allocation3 + $0x70] sm:$0xff] %vm305, 0.0
      %509 = vst.msk [vmem:[#allocation3 + $0x78] sm:$0xff] %vm305, 0.0
      %510 = vst.msk [vmem:[#allocation3 + $0x80] sm:$0xff] %vm305, 0.0
      %511 = vst.msk [vmem:[#allocation3 + $0x88] sm:$0xff] %vm305, 0.0
      %512 = vst.msk [vmem:[#allocation3 + $0x90] sm:$0xff] %vm305, 0.0
      %513 = vst.msk [vmem:[#allocation3 + $0x98] sm:$0xff] %vm305, 0.0
      %514 = vst.msk [vmem:[#allocation3 + $0xa0] sm:$0xff] %vm305, 0.0
      %515 = vst.msk [vmem:[#allocation3 + $0xa8] sm:$0xff] %vm305, 0.0
      %516 = vst.msk [vmem:[#allocation3 + $0xb0] sm:$0xff] %vm305, 0.0
      %517 = vst.msk [vmem:[#allocation3 + $0xb8] sm:$0xff] %vm305, 0.0
      %518 = vst.msk [vmem:[#allocation3 + $0xc0] sm:$0xff] %vm305, 0.0
      %519 = vst.msk [vmem:[#allocation3 + $0xc8] sm:$0xff] %vm305, 0.0
      %520 = vst.msk [vmem:[#allocation3 + $0xd0] sm:$0xff] %vm305, 0.0
      %521 = vst.msk [vmem:[#allocation3 + $0xd8] sm:$0xff] %vm305, 0.0
      %522 = vst.msk [vmem:[#allocation3 + $0xe0] sm:$0xff] %vm305, 0.0
      %523 = vst.msk [vmem:[#allocation3 + $0xe8] sm:$0xff] %vm305, 0.0
      %524 = vst.msk [vmem:[#allocation3 + $0xf0] sm:$0xff] %vm305, 0.0
      %525 = vst.msk [vmem:[#allocation3 + $0xf8] sm:$0xff] %vm305, 0.0
      %v526 = vld [vmem:[#allocation2] sm:$0xff]
      %v527 = vld [vmem:[#allocation2 + $0x8] sm:$0xff]
      %v528 = vld [vmem:[#allocation2 + $0x18] sm:$0xff]
      %v529 = vld [vmem:[#allocation2 + $0x20] sm:$0xff]
      %v530 = vld [vmem:[#allocation2 + $0x30] sm:$0xff]
      %v531 = vld [vmem:[#allocation2 + $0x38] sm:$0xff]
      %v532 = vld [vmem:[#allocation2 + $0x48] sm:$0xff]
      %v533 = vld [vmem:[#allocation2 + $0x50] sm:$0xff]
      %v534 = vld [vmem:[#allocation2 + $0x60] sm:$0xff]
      %v535 = vld [vmem:[#allocation2 + $0x68] sm:$0xff]
      %v536 = vld [vmem:[#allocation2 + $0x78] sm:$0xff]
      %v537 = vld [vmem:[#allocation2 + $0x80] sm:$0xff]
      %v538 = vld [vmem:[#allocation2 + $0x90] sm:$0xff]
      %v539 = vld [vmem:[#allocation2 + $0x98] sm:$0xff]
      %v540 = vld [vmem:[#allocation2 + $0xa8] sm:$0xff]
      %v541 = vld [vmem:[#allocation2 + $0xb0] sm:$0xff]
      %v542 = vld [vmem:[#allocation2 + $0xc0] sm:$0xff]
      %v543 = vld [vmem:[#allocation2 + $0xc8] sm:$0xff]
      %v544 = vld [vmem:[#allocation2 + $0xd8] sm:$0xff]
      %v545 = vld [vmem:[#allocation2 + $0xe0] sm:$0xff]
      %v546 = vld [vmem:[#allocation2 + $0xf0] sm:$0xff]
      %v547 = vld [vmem:[#allocation2 + $0xf8] sm:$0xff]
      %v548 = vld [vmem:[#allocation2 + $0x108] sm:$0xff]
      %v549 = vld [vmem:[#allocation2 + $0x110] sm:$0xff]
      %v550 = vld [vmem:[#allocation2 + $0x120] sm:$0xff]
      %v551 = vld [vmem:[#allocation2 + $0x128] sm:$0xff]
      %v552 = vld [vmem:[#allocation2 + $0x138] sm:$0xff]
      %v553 = vld [vmem:[#allocation2 + $0x140] sm:$0xff]
      %v554 = vld [vmem:[#allocation2 + $0x150] sm:$0xff]
      %v555 = vld [vmem:[#allocation2 + $0x158] sm:$0xff]
      %v556 = vld [vmem:[#allocation2 + $0x168] sm:$0xff]
      %v557 = vld [vmem:[#allocation2 + $0x170] sm:$0xff]
      %v558 = vpack.c.bf16 %v527, %v526
      %v559 = vpack.c.bf16 %v529, %v528
      %v560 = vpack.c.bf16 %v531, %v530
      %v561 = vpack.c.bf16 %v533, %v532
      %v562 = vpack.c.bf16 %v535, %v534
      %v563 = vpack.c.bf16 %v537, %v536
      %v564 = vpack.c.bf16 %v539, %v538
      %v565 = vpack.c.bf16 %v541, %v540
      %v566 = vpack.c.bf16 %v543, %v542
      %v567 = vpack.c.bf16 %v545, %v544
      %v568 = vpack.c.bf16 %v547, %v546
      %v569 = vpack.c.bf16 %v549, %v548
      %v570 = vpack.c.bf16 %v551, %v550
      %v571 = vpack.c.bf16 %v553, %v552
      %v572 = vpack.c.bf16 %v555, %v554
      %v573 = vpack.c.bf16 %v557, %v556
      %v574 = vld [vmem:[#allocation3] sm:$0xff]
      %v575 = vld [vmem:[#allocation3 + $0x8] sm:$0xff]
      %v576 = vld [vmem:[#allocation3 + $0x10] sm:$0xff]
      %v577 = vld [vmem:[#allocation3 + $0x18] sm:$0xff]
      %v578 = vld [vmem:[#allocation3 + $0x20] sm:$0xff]
      %v579 = vld [vmem:[#allocation3 + $0x28] sm:$0xff]
      %v580 = vld [vmem:[#allocation3 + $0x30] sm:$0xff]
      %v581 = vld [vmem:[#allocation3 + $0x38] sm:$0xff]
      %v582 = vld [vmem:[#allocation3 + $0x40] sm:$0xff]
      %v583 = vld [vmem:[#allocation3 + $0x48] sm:$0xff]
      %v584 = vld [vmem:[#allocation3 + $0x50] sm:$0xff]
      %v585 = vld [vmem:[#allocation3 + $0x58] sm:$0xff]
      %v586 = vld [vmem:[#allocation3 + $0x60] sm:$0xff]
      %v587 = vld [vmem:[#allocation3 + $0x68] sm:$0xff]
      %v588 = vld [vmem:[#allocation3 + $0x70] sm:$0xff]
      %v589 = vld [vmem:[#allocation3 + $0x78] sm:$0xff]
      %v590 = vld [vmem:[#allocation3 + $0x80] sm:$0xff]
      %v591 = vld [vmem:[#allocation3 + $0x88] sm:$0xff]
      %v592 = vld [vmem:[#allocation3 + $0x90] sm:$0xff]
      %v593 = vld [vmem:[#allocation3 + $0x98] sm:$0xff]
      %v594 = vld [vmem:[#allocation3 + $0xa0] sm:$0xff]
      %v595 = vld [vmem:[#allocation3 + $0xa8] sm:$0xff]
      %v596 = vld [vmem:[#allocation3 + $0xb0] sm:$0xff]
      %v597 = vld [vmem:[#allocation3 + $0xb8] sm:$0xff]
      %v598 = vld [vmem:[#allocation3 + $0xc0] sm:$0xff]
      %v599 = vld [vmem:[#allocation3 + $0xc8] sm:$0xff]
      %v600 = vld [vmem:[#allocation3 + $0xd0] sm:$0xff]
      %v601 = vld [vmem:[#allocation3 + $0xd8] sm:$0xff]
      %v602 = vld [vmem:[#allocation3 + $0xe0] sm:$0xff]
      %v603 = vld [vmem:[#allocation3 + $0xe8] sm:$0xff]
      %v604 = vld [vmem:[#allocation3 + $0xf0] sm:$0xff]
      %v605 = vld [vmem:[#allocation3 + $0xf8] sm:$0xff]
      %v606 = vld [vmem:[%s3] sm:$0xf]
      %v608 = vsel %vm305, %v558, 0
      %v611 = vsel %vm305, %v559, 0
      %v614 = vsel %vm305, %v560, 0
      %v617 = vsel %vm305, %v561, 0
      %v620 = vsel %vm305, %v562, 0
      %v623 = vsel %vm305, %v563, 0
      %v626 = vsel %vm305, %v564, 0
      %v629 = vsel %vm305, %v565, 0
      %v632 = vsel %vm305, %v566, 0
      %v635 = vsel %vm305, %v567, 0
      %v638 = vsel %vm305, %v568, 0
      %v641 = vsel %vm305, %v569, 0
      %v644 = vsel %vm305, %v570, 0
      %v647 = vsel %vm305, %v571, 0
      %v650 = vsel %vm305, %v572, 0
      %v653 = vsel %vm305, %v573, 0
      %vm655 = vcmask 1043456
      %v657 = vsel %vm655, %v606, 0
      %659 = vmatprep.subr.bf16.mxu0 0
      %660 = vmatpush1.bf16.msra.mxu0 %v657
      %661 = vmatprep.subr.bf16.mxu0 0
      %662 = vmatpush1.bf16.msra.mxu0 0
      %663 = vmatprep.subr.bf16.mxu0 0
      %664 = vmatpush1.bf16.msra.mxu0 0
      %665 = vmatprep.subr.bf16.mxu0 0
      %666 = vmatpush1.bf16.msra.mxu0 0
      %667 = vmatprep.subr.bf16.mxu0 0
      %668 = vmatpush1.bf16.msra.mxu0 0
      %669 = vmatprep.subr.bf16.mxu0 0
      %670 = vmatpush1.bf16.msra.mxu0 0
      %671 = vmatprep.subr.bf16.mxu0 0
      %672 = vmatpush1.bf16.msra.mxu0 0
      %673 = vmatprep.subr.bf16.mxu0 0
      %674 = vmatpush1.bf16.msra.mxu0 0
      %675 = vmatprep.subr.bf16.mxu0 0
      %676 = vmatpush1.bf16.msra.mxu0 0
      %677 = vmatprep.subr.bf16.mxu0 0
      %678 = vmatpush1.bf16.msra.mxu0 0
      %679 = vmatprep.subr.bf16.mxu0 0
      %680 = vmatpush1.bf16.msra.mxu0 0
      %681 = vmatprep.subr.bf16.mxu0 0
      %682 = vmatpush1.bf16.msra.mxu0 0
      %683 = vmatprep.subr.bf16.mxu0 0
      %684 = vmatpush1.bf16.msra.mxu0 0
      %685 = vmatprep.subr.bf16.mxu0 0
      %686 = vmatpush1.bf16.msra.mxu0 0
      %687 = vmatprep.subr.bf16.mxu0 0
      %688 = vmatpush1.bf16.msra.mxu0 0
      %689 = vmatprep.subr.bf16.mxu0 0
      %690 = vmatpush1.bf16.msra.mxu0 0
      %691 = vmatprep.mubr.bf16.mxu0 0
      %692 = vmatmul.mubr.bf16.gmra.mrb[0].mxu0 %v608
      %v693 = vpop.f32.mrb[0].mxu0
      %v694 = vadd.f32 0.0, %v693
      %v695 = vpop.f32.mrb[0].mxu0
      %v696 = vpop.f32.mrb[0].mxu0
      %v697 = vadd.f32 0.0, %v696
      %v698 = vpop.f32.mrb[0].mxu0
      %699 = vmatprep.mubr.bf16.mxu0 0
      %700 = vmatmul.mubr.bf16.gmra.mrb[0].mxu0 %v611
      %v701 = vpop.f32.mrb[0].mxu0
      %v702 = vadd.f32 0.0, %v701
      %v703 = vpop.f32.mrb[0].mxu0
      %v704 = vpop.f32.mrb[0].mxu0
      %v705 = vadd.f32 0.0, %v704
      %v706 = vpop.f32.mrb[0].mxu0
      %707 = vmatprep.mubr.bf16.mxu0 0
      %708 = vmatmul.mubr.bf16.gmra.mrb[0].mxu0 %v614
      %v709 = vpop.f32.mrb[0].mxu0
      %v710 = vadd.f32 0.0, %v709
      %v711 = vpop.f32.mrb[0].mxu0
      %v712 = vpop.f32.mrb[0].mxu0
      %v713 = vadd.f32 0.0, %v712
      %v714 = vpop.f32.mrb[0].mxu0
      %715 = vmatprep.mubr.bf16.mxu0 0
      %716 = vmatmul.mubr.bf16.gmra.mrb[0].mxu0 %v617
      %v717 = vpop.f32.mrb[0].mxu0
      %v718 = vadd.f32 0.0, %v717
      %v719 = vpop.f32.mrb[0].mxu0
      %v720 = vpop.f32.mrb[0].mxu0
      %v721 = vadd.f32 0.0, %v720
      %v722 = vpop.f32.mrb[0].mxu0
      %723 = vmatprep.mubr.bf16.mxu0 0
      %724 = vmatmul.mubr.bf16.gmra.mrb[0].mxu0 %v620
      %v725 = vpop.f32.mrb[0].mxu0
      %v726 = vadd.f32 0.0, %v725
      %v727 = vpop.f32.mrb[0].mxu0
      %v728 = vpop.f32.mrb[0].mxu0
      %v729 = vadd.f32 0.0, %v728
      %v730 = vpop.f32.mrb[0].mxu0
      %731 = vmatprep.mubr.bf16.mxu0 0
      %732 = vmatmul.mubr.bf16.gmra.mrb[0].mxu0 %v623
      %v733 = vpop.f32.mrb[0].mxu0
      %v734 = vadd.f32 0.0, %v733
      %v735 = vpop.f32.mrb[0].mxu0
      %v736 = vpop.f32.mrb[0].mxu0
      %v737 = vadd.f32 0.0, %v736
      %v738 = vpop.f32.mrb[0].mxu0
      %739 = vmatprep.mubr.bf16.mxu0 0
      %740 = vmatmul.mubr.bf16.gmra.mrb[0].mxu0 %v626
      %v741 = vpop.f32.mrb[0].mxu0
      %v742 = vadd.f32 0.0, %v741
      %v743 = vpop.f32.mrb[0].mxu0
      %v744 = vpop.f32.mrb[0].mxu0
      %v745 = vadd.f32 0.0, %v744
      %v746 = vpop.f32.mrb[0].mxu0
      %747 = vmatprep.mubr.bf16.mxu0 0
      %748 = vmatmul.mubr.bf16.gmra.mrb[0].mxu0 %v629
      %v749 = vpop.f32.mrb[0].mxu0
      %v750 = vadd.f32 0.0, %v749
      %v751 = vpop.f32.mrb[0].mxu0
      %v752 = vpop.f32.mrb[0].mxu0
      %v753 = vadd.f32 0.0, %v752
      %v754 = vpop.f32.mrb[0].mxu0
      %755 = vmatprep.mubr.bf16.mxu0 0
      %756 = vmatmul.mubr.bf16.gmra.mrb[0].mxu0 %v632
      %v757 = vpop.f32.mrb[0].mxu0
      %v758 = vadd.f32 0.0, %v757
      %v759 = vpop.f32.mrb[0].mxu0
      %v760 = vpop.f32.mrb[0].mxu0
      %v761 = vadd.f32 0.0, %v760
      %v762 = vpop.f32.mrb[0].mxu0
      %763 = vmatprep.mubr.bf16.mxu0 0
      %764 = vmatmul.mubr.bf16.gmra.mrb[0].mxu0 %v635
      %v765 = vpop.f32.mrb[0].mxu0
      %v766 = vadd.f32 0.0, %v765
      %v767 = vpop.f32.mrb[0].mxu0
      %v768 = vpop.f32.mrb[0].mxu0
      %v769 = vadd.f32 0.0, %v768
      %v770 = vpop.f32.mrb[0].mxu0
      %771 = vmatprep.mubr.bf16.mxu0 0
      %772 = vmatmul.mubr.bf16.gmra.mrb[0].mxu0 %v638
      %v773 = vpop.f32.mrb[0].mxu0
      %v774 = vadd.f32 0.0, %v773
      %v775 = vpop.f32.mrb[0].mxu0
      %v776 = vpop.f32.mrb[0].mxu0
      %v777 = vadd.f32 0.0, %v776
      %v778 = vpop.f32.mrb[0].mxu0
      %779 = vmatprep.mubr.bf16.mxu0 0
      %780 = vmatmul.mubr.bf16.gmra.mrb[0].mxu0 %v641
      %v781 = vpop.f32.mrb[0].mxu0
      %v782 = vadd.f32 0.0, %v781
      %v783 = vpop.f32.mrb[0].mxu0
      %v784 = vpop.f32.mrb[0].mxu0
      %v785 = vadd.f32 0.0, %v784
      %v786 = vpop.f32.mrb[0].mxu0
      %787 = vmatprep.mubr.bf16.mxu0 0
      %788 = vmatmul.mubr.bf16.gmra.mrb[0].mxu0 %v644
      %v789 = vpop.f32.mrb[0].mxu0
      %v790 = vadd.f32 0.0, %v789
      %v791 = vpop.f32.mrb[0].mxu0
      %v792 = vpop.f32.mrb[0].mxu0
      %v793 = vadd.f32 0.0, %v792
      %v794 = vpop.f32.mrb[0].mxu0
      %795 = vmatprep.mubr.bf16.mxu0 0
      %796 = vmatmul.mubr.bf16.gmra.mrb[0].mxu0 %v647
      %v797 = vpop.f32.mrb[0].mxu0
      %v798 = vadd.f32 0.0, %v797
      %v799 = vpop.f32.mrb[0].mxu0
      %v800 = vpop.f32.mrb[0].mxu0
      %v801 = vadd.f32 0.0, %v800
      %v802 = vpop.f32.mrb[0].mxu0
      %803 = vmatprep.mubr.bf16.mxu0 0
      %804 = vmatmul.mubr.bf16.gmra.mrb[0].mxu0 %v650
      %v805 = vpop.f32.mrb[0].mxu0
      %v806 = vadd.f32 0.0, %v805
      %v807 = vpop.f32.mrb[0].mxu0
      %v808 = vpop.f32.mrb[0].mxu0
      %v809 = vadd.f32 0.0, %v808
      %v810 = vpop.f32.mrb[0].mxu0
      %811 = vmatprep.mubr.bf16.mxu0 0
      %812 = vmatmul.mubr.bf16.gmra.mrb[0].mxu0 %v653
      %v813 = vpop.f32.mrb[0].mxu0
      %v814 = vadd.f32 0.0, %v813
      %v815 = vpop.f32.mrb[0].mxu0
      %v816 = vpop.f32.mrb[0].mxu0
      %v817 = vadd.f32 0.0, %v816
      %v818 = vpop.f32.mrb[0].mxu0
      %819 = vdwg.mxu0
      %v820 = vadd.f32 %v574, %v694
      %v821 = vadd.f32 %v575, %v697
      %v822 = vadd.f32 %v576, %v702
      %v823 = vadd.f32 %v577, %v705
      %v824 = vadd.f32 %v578, %v710
      %v825 = vadd.f32 %v579, %v713
      %v826 = vadd.f32 %v580, %v718
      %v827 = vadd.f32 %v581, %v721
      %v828 = vadd.f32 %v582, %v726
      %v829 = vadd.f32 %v583, %v729
      %v830 = vadd.f32 %v584, %v734
      %v831 = vadd.f32 %v585, %v737
      %v832 = vadd.f32 %v586, %v742
      %v833 = vadd.f32 %v587, %v745
      %v834 = vadd.f32 %v588, %v750
      %v835 = vadd.f32 %v589, %v753
      %v836 = vadd.f32 %v590, %v758
      %v837 = vadd.f32 %v591, %v761
      %v838 = vadd.f32 %v592, %v766
      %v839 = vadd.f32 %v593, %v769
      %v840 = vadd.f32 %v594, %v774
      %v841 = vadd.f32 %v595, %v777
      %v842 = vadd.f32 %v596, %v782
      %v843 = vadd.f32 %v597, %v785
      %v844 = vadd.f32 %v598, %v790
      %v845 = vadd.f32 %v599, %v793
      %v846 = vadd.f32 %v600, %v798
      %v847 = vadd.f32 %v601, %v801
      %v848 = vadd.f32 %v602, %v806
      %v849 = vadd.f32 %v603, %v809
      %v850 = vadd.f32 %v604, %v814
      %v851 = vadd.f32 %v605, %v817
      %852 = vst.msk [vmem:[#allocation3] sm:$0xff] %vm305, %v820
      %853 = vst.msk [vmem:[#allocation3 + $0x8] sm:$0xff] %vm305, %v821
      %854 = vst.msk [vmem:[#allocation3 + $0x10] sm:$0xff] %vm305, %v822
      %855 = vst.msk [vmem:[#allocation3 + $0x18] sm:$0xff] %vm305, %v823
      %856 = vst.msk [vmem:[#allocation3 + $0x20] sm:$0xff] %vm305, %v824
      %857 = vst.msk [vmem:[#allocation3 + $0x28] sm:$0xff] %vm305, %v825
      %858 = vst.msk [vmem:[#allocation3 + $0x30] sm:$0xff] %vm305, %v826
      %859 = vst.msk [vmem:[#allocation3 + $0x38] sm:$0xff] %vm305, %v827
      %860 = vst.msk [vmem:[#allocation3 + $0x40] sm:$0xff] %vm305, %v828
      %861 = vst.msk [vmem:[#allocation3 + $0x48] sm:$0xff] %vm305, %v829
      %862 = vst.msk [vmem:[#allocation3 + $0x50] sm:$0xff] %vm305, %v830
      %863 = vst.msk [vmem:[#allocation3 + $0x58] sm:$0xff] %vm305, %v831
      %864 = vst.msk [vmem:[#allocation3 + $0x60] sm:$0xff] %vm305, %v832
      %865 = vst.msk [vmem:[#allocation3 + $0x68] sm:$0xff] %vm305, %v833
      %866 = vst.msk [vmem:[#allocation3 + $0x70] sm:$0xff] %vm305, %v834
      %867 = vst.msk [vmem:[#allocation3 + $0x78] sm:$0xff] %vm305, %v835
      %868 = vst.msk [vmem:[#allocation3 + $0x80] sm:$0xff] %vm305, %v836
      %869 = vst.msk [vmem:[#allocation3 + $0x88] sm:$0xff] %vm305, %v837
      %870 = vst.msk [vmem:[#allocation3 + $0x90] sm:$0xff] %vm305, %v838
      %871 = vst.msk [vmem:[#allocation3 + $0x98] sm:$0xff] %vm305, %v839
      %872 = vst.msk [vmem:[#allocation3 + $0xa0] sm:$0xff] %vm305, %v840
      %873 = vst.msk [vmem:[#allocation3 + $0xa8] sm:$0xff] %vm305, %v841
      %874 = vst.msk [vmem:[#allocation3 + $0xb0] sm:$0xff] %vm305, %v842
      %875 = vst.msk [vmem:[#allocation3 + $0xb8] sm:$0xff] %vm305, %v843
      %876 = vst.msk [vmem:[#allocation3 + $0xc0] sm:$0xff] %vm305, %v844
      %877 = vst.msk [vmem:[#allocation3 + $0xc8] sm:$0xff] %vm305, %v845
      %878 = vst.msk [vmem:[#allocation3 + $0xd0] sm:$0xff] %vm305, %v846
      %879 = vst.msk [vmem:[#allocation3 + $0xd8] sm:$0xff] %vm305, %v847
      %880 = vst.msk [vmem:[#allocation3 + $0xe0] sm:$0xff] %vm305, %v848
      %881 = vst.msk [vmem:[#allocation3 + $0xe8] sm:$0xff] %vm305, %v849
      %882 = vst.msk [vmem:[#allocation3 + $0xf0] sm:$0xff] %vm305, %v850
      %883 = vst.msk [vmem:[#allocation3 + $0xf8] sm:$0xff] %vm305, %v851
      %v884 = vld [vmem:[#allocation2 + $0x1] sm:$0xff]
      %v885 = vld [vmem:[#allocation2 + $0x9] sm:$0xff]
      %v886 = vld [vmem:[#allocation2 + $0x19] sm:$0xff]
      %v887 = vld [vmem:[#allocation2 + $0x21] sm:$0xff]
      %v888 = vld [vmem:[#allocation2 + $0x31] sm:$0xff]
      %v889 = vld [vmem:[#allocation2 + $0x39] sm:$0xff]
      %v890 = vld [vmem:[#allocation2 + $0x49] sm:$0xff]
      %v891 = vld [vmem:[#allocation2 + $0x51] sm:$0xff]
      %v892 = vld [vmem:[#allocation2 + $0x61] sm:$0xff]
      %v893 = vld [vmem:[#allocation2 + $0x69] sm:$0xff]
      %v894 = vld [vmem:[#allocation2 + $0x79] sm:$0xff]
      %v895 = vld [vmem:[#allocation2 + $0x81] sm:$0xff]
      %v896 = vld [vmem:[#allocation2 + $0x91] sm:$0xff]
      %v897 = vld [vmem:[#allocation2 + $0x99] sm:$0xff]
      %v898 = vld [vmem:[#allocation2 + $0xa9] sm:$0xff]
      %v899 = vld [vmem:[#allocation2 + $0xb1] sm:$0xff]
      %v900 = vld [vmem:[#allocation2 + $0xc1] sm:$0xff]
      %v901 = vld [vmem:[#allocation2 + $0xc9] sm:$0xff]
      %v902 = vld [vmem:[#allocation2 + $0xd9] sm:$0xff]
      %v903 = vld [vmem:[#allocation2 + $0xe1] sm:$0xff]
      %v904 = vld [vmem:[#allocation2 + $0xf1] sm:$0xff]
      %v905 = vld [vmem:[#allocation2 + $0xf9] sm:$0xff]
      %v906 = vld [vmem:[#allocation2 + $0x109] sm:$0xff]
      %v907 = vld [vmem:[#allocation2 + $0x111] sm:$0xff]
      %v908 = vld [vmem:[#allocation2 + $0x121] sm:$0xff]
      %v909 = vld [vmem:[#allocation2 + $0x129] sm:$0xff]
      %v910 = vld [vmem:[#allocation2 + $0x139] sm:$0xff]
      %v911 = vld [vmem:[#allocation2 + $0x141] sm:$0xff]
      %v912 = vld [vmem:[#allocation2 + $0x151] sm:$0xff]
      %v913 = vld [vmem:[#allocation2 + $0x159] sm:$0xff]
      %v914 = vld [vmem:[#allocation2 + $0x169] sm:$0xff]
      %v915 = vld [vmem:[#allocation2 + $0x171] sm:$0xff]
      %v916 = vpack.c.bf16 %v885, %v884
      %v917 = vpack.c.bf16 %v887, %v886
      %v918 = vpack.c.bf16 %v889, %v888
      %v919 = vpack.c.bf16 %v891, %v890
      %v920 = vpack.c.bf16 %v893, %v892
      %v921 = vpack.c.bf16 %v895, %v894
      %v922 = vpack.c.bf16 %v897, %v896
      %v923 = vpack.c.bf16 %v899, %v898
      %v924 = vpack.c.bf16 %v901, %v900
      %v925 = vpack.c.bf16 %v903, %v902
      %v926 = vpack.c.bf16 %v905, %v904
      %v927 = vpack.c.bf16 %v907, %v906
      %v928 = vpack.c.bf16 %v909, %v908
      %v929 = vpack.c.bf16 %v911, %v910
      %v930 = vpack.c.bf16 %v913, %v912
      %v931 = vpack.c.bf16 %v915, %v914
      %v932 = vld [vmem:[#allocation3] sm:$0xff]
      %v933 = vld [vmem:[#allocation3 + $0x8] sm:$0xff]
      %v934 = vld [vmem:[#allocation3 + $0x10] sm:$0xff]
      %v935 = vld [vmem:[#allocation3 + $0x18] sm:$0xff]
      %v936 = vld [vmem:[#allocation3 + $0x20] sm:$0xff]
      %v937 = vld [vmem:[#allocation3 + $0x28] sm:$0xff]
      %v938 = vld [vmem:[#allocation3 + $0x30] sm:$0xff]
      %v939 = vld [vmem:[#allocation3 + $0x38] sm:$0xff]
      %v940 = vld [vmem:[#allocation3 + $0x40] sm:$0xff]
      %v941 = vld [vmem:[#allocation3 + $0x48] sm:$0xff]
      %v942 = vld [vmem:[#allocation3 + $0x50] sm:$0xff]
      %v943 = vld [vmem:[#allocation3 + $0x58] sm:$0xff]
      %v944 = vld [vmem:[#allocation3 + $0x60] sm:$0xff]
      %v945 = vld [vmem:[#allocation3 + $0x68] sm:$0xff]
      %v946 = vld [vmem:[#allocation3 + $0x70] sm:$0xff]
      %v947 = vld [vmem:[#allocation3 + $0x78] sm:$0xff]
      %v948 = vld [vmem:[#allocation3 + $0x80] sm:$0xff]
      %v949 = vld [vmem:[#allocation3 + $0x88] sm:$0xff]
      %v950 = vld [vmem:[#allocation3 + $0x90] sm:$0xff]
      %v951 = vld [vmem:[#allocation3 + $0x98] sm:$0xff]
      %v952 = vld [vmem:[#allocation3 + $0xa0] sm:$0xff]
      %v953 = vld [vmem:[#allocation3 + $0xa8] sm:$0xff]
      %v954 = vld [vmem:[#allocation3 + $0xb0] sm:$0xff]
      %v955 = vld [vmem:[#allocation3 + $0xb8] sm:$0xff]
      %v956 = vld [vmem:[#allocation3 + $0xc0] sm:$0xff]
      %v957 = vld [vmem:[#allocation3 + $0xc8] sm:$0xff]
      %v958 = vld [vmem:[#allocation3 + $0xd0] sm:$0xff]
      %v959 = vld [vmem:[#allocation3 + $0xd8] sm:$0xff]
      %v960 = vld [vmem:[#allocation3 + $0xe0] sm:$0xff]
      %v961 = vld [vmem:[#allocation3 + $0xe8] sm:$0xff]
      %v962 = vld [vmem:[#allocation3 + $0xf0] sm:$0xff]
      %v963 = vld [vmem:[#allocation3 + $0xf8] sm:$0xff]
      %s964 = scalar_lea.vmem %s3, 4
      %v965 = vld [vmem:[%s964] sm:$0xf]
      %v967 = vsel %vm305, %v916, 0
      %v970 = vsel %vm305, %v917, 0
      %v973 = vsel %vm305, %v918, 0
      %v976 = vsel %vm305, %v919, 0
      %v979 = vsel %vm305, %v920, 0
      %v982 = vsel %vm305, %v921, 0
      %v985 = vsel %vm305, %v922, 0
      %v988 = vsel %vm305, %v923, 0
      %v991 = vsel %vm305, %v924, 0
      %v994 = vsel %vm305, %v925, 0
      %v997 = vsel %vm305, %v926, 0
      %v1000 = vsel %vm305, %v927, 0
      %v1003 = vsel %vm305, %v928, 0
      %v1006 = vsel %vm305, %v929, 0
      %v1009 = vsel %vm305, %v930, 0
      %v1012 = vsel %vm305, %v931, 0
      %v1015 = vsel %vm655, %v965, 0
      %1017 = vmatprep.subr.bf16.mxu0 0
      %1018 = vmatpush1.bf16.msra.mxu0 %v1015
      %1019 = vmatprep.subr.bf16.mxu0 0
      %1020 = vmatpush1.bf16.msra.mxu0 0
      %1021 = vmatprep.subr.bf16.mxu0 0
      %1022 = vmatpush1.bf16.msra.mxu0 0
      %1023 = vmatprep.subr.bf16.mxu0 0
      %1024 = vmatpush1.bf16.msra.mxu0 0
      %1025 = vmatprep.subr.bf16.mxu0 0
      %1026 = vmatpush1.bf16.msra.mxu0 0
      %1027 = vmatprep.subr.bf16.mxu0 0
      %1028 = vmatpush1.bf16.msra.mxu0 0
      %1029 = vmatprep.subr.bf16.mxu0 0
      %1030 = vmatpush1.bf16.msra.mxu0 0
      %1031 = vmatprep.subr.bf16.mxu0 0
      %1032 = vmatpush1.bf16.msra.mxu0 0
      %1033 = vmatprep.subr.bf16.mxu0 0
      %1034 = vmatpush1.bf16.msra.mxu0 0
      %1035 = vmatprep.subr.bf16.mxu0 0
      %1036 = vmatpush1.bf16.msra.mxu0 0
      %1037 = vmatprep.subr.bf16.mxu0 0
      %1038 = vmatpush1.bf16.msra.mxu0 0
      %1039 = vmatprep.subr.bf16.mxu0 0
      %1040 = vmatpush1.bf16.msra.mxu0 0
      %1041 = vmatprep.subr.bf16.mxu0 0
      %1042 = vmatpush1.bf16.msra.mxu0 0
      %1043 = vmatprep.subr.bf16.mxu0 0
      %1044 = vmatpush1.bf16.msra.mxu0 0
      %1045 = vmatprep.subr.bf16.mxu0 0
      %1046 = vmatpush1.bf16.msra.mxu0 0
      %1047 = vmatprep.subr.bf16.mxu0 0
      %1048 = vmatpush1.bf16.msra.mxu0 0
      %1049 = vmatprep.mubr.bf16.mxu0 0
      %1050 = vmatmul.mubr.bf16.gmra.mrb[0].mxu0 %v967
      %v1051 = vpop.f32.mrb[0].mxu0
      %v1052 = vadd.f32 0.0, %v1051
      %v1053 = vpop.f32.mrb[0].mxu0
      %v1054 = vpop.f32.mrb[0].mxu0
      %v1055 = vadd.f32 0.0, %v1054
      %v1056 = vpop.f32.mrb[0].mxu0
      %1057 = vmatprep.mubr.bf16.mxu0 0
      %1058 = vmatmul.mubr.bf16.gmra.mrb[0].mxu0 %v970
      %v1059 = vpop.f32.mrb[0].mxu0
      %v1060 = vadd.f32 0.0, %v1059
      %v1061 = vpop.f32.mrb[0].mxu0
      %v1062 = vpop.f32.mrb[0].mxu0
      %v1063 = vadd.f32 0.0, %v1062
      %v1064 = vpop.f32.mrb[0].mxu0
      %1065 = vmatprep.mubr.bf16.mxu0 0
      %1066 = vmatmul.mubr.bf16.gmra.mrb[0].mxu0 %v973
      %v1067 = vpop.f32.mrb[0].mxu0
      %v1068 = vadd.f32 0.0, %v1067
      %v1069 = vpop.f32.mrb[0].mxu0
      %v1070 = vpop.f32.mrb[0].mxu0
      %v1071 = vadd.f32 0.0, %v1070
      %v1072 = vpop.f32.mrb[0].mxu0
      %1073 = vmatprep.mubr.bf16.mxu0 0
      %1074 = vmatmul.mubr.bf16.gmra.mrb[0].mxu0 %v976
      %v1075 = vpop.f32.mrb[0].mxu0
      %v1076 = vadd.f32 0.0, %v1075
      %v1077 = vpop.f32.mrb[0].mxu0
      %v1078 = vpop.f32.mrb[0].mxu0
      %v1079 = vadd.f32 0.0, %v1078
      %v1080 = vpop.f32.mrb[0].mxu0
      %1081 = vmatprep.mubr.bf16.mxu0 0
      %1082 = vmatmul.mubr.bf16.gmra.mrb[0].mxu0 %v979
      %v1083 = vpop.f32.mrb[0].mxu0
      %v1084 = vadd.f32 0.0, %v1083
      %v1085 = vpop.f32.mrb[0].mxu0
      %v1086 = vpop.f32.mrb[0].mxu0
      %v1087 = vadd.f32 0.0, %v1086
      %v1088 = vpop.f32.mrb[0].mxu0
      %1089 = vmatprep.mubr.bf16.mxu0 0
      %1090 = vmatmul.mubr.bf16.gmra.mrb[0].mxu0 %v982
      %v1091 = vpop.f32.mrb[0].mxu0
      %v1092 = vadd.f32 0.0, %v1091
      %v1093 = vpop.f32.mrb[0].mxu0
      %v1094 = vpop.f32.mrb[0].mxu0
      %v1095 = vadd.f32 0.0, %v1094
      %v1096 = vpop.f32.mrb[0].mxu0
      %1097 = vmatprep.mubr.bf16.mxu0 0
      %1098 = vmatmul.mubr.bf16.gmra.mrb[0].mxu0 %v985
      %v1099 = vpop.f32.mrb[0].mxu0
      %v1100 = vadd.f32 0.0, %v1099
      %v1101 = vpop.f32.mrb[0].mxu0
      %v1102 = vpop.f32.mrb[0].mxu0
      %v1103 = vadd.f32 0.0, %v1102
      %v1104 = vpop.f32.mrb[0].mxu0
      %1105 = vmatprep.mubr.bf16.mxu0 0
      %1106 = vmatmul.mubr.bf16.gmra.mrb[0].mxu0 %v988
      %v1107 = vpop.f32.mrb[0].mxu0
      %v1108 = vadd.f32 0.0, %v1107
      %v1109 = vpop.f32.mrb[0].mxu0
      %v1110 = vpop.f32.mrb[0].mxu0
      %v1111 = vadd.f32 0.0, %v1110
      %v1112 = vpop.f32.mrb[0].mxu0
      %1113 = vmatprep.mubr.bf16.mxu0 0
      %1114 = vmatmul.mubr.bf16.gmra.mrb[0].mxu0 %v991
      %v1115 = vpop.f32.mrb[0].mxu0
      %v1116 = vadd.f32 0.0, %v1115
      %v1117 = vpop.f32.mrb[0].mxu0
      %v1118 = vpop.f32.mrb[0].mxu0
      %v1119 = vadd.f32 0.0, %v1118
      %v1120 = vpop.f32.mrb[0].mxu0
      %1121 = vmatprep.mubr.bf16.mxu0 0
      %1122 = vmatmul.mubr.bf16.gmra.mrb[0].mxu0 %v994
      %v1123 = vpop.f32.mrb[0].mxu0
      %v1124 = vadd.f32 0.0, %v1123
      %v1125 = vpop.f32.mrb[0].mxu0
      %v1126 = vpop.f32.mrb[0].mxu0
      %v1127 = vadd.f32 0.0, %v1126
      %v1128 = vpop.f32.mrb[0].mxu0
      %1129 = vmatprep.mubr.bf16.mxu0 0
      %1130 = vmatmul.mubr.bf16.gmra.mrb[0].mxu0 %v997
      %v1131 = vpop.f32.mrb[0].mxu0
      %v1132 = vadd.f32 0.0, %v1131
      %v1133 = vpop.f32.mrb[0].mxu0
      %v1134 = vpop.f32.mrb[0].mxu0
      %v1135 = vadd.f32 0.0, %v1134
      %v1136 = vpop.f32.mrb[0].mxu0
      %1137 = vmatprep.mubr.bf16.mxu0 0
      %1138 = vmatmul.mubr.bf16.gmra.mrb[0].mxu0 %v1000
      %v1139 = vpop.f32.mrb[0].mxu0
      %v1140 = vadd.f32 0.0, %v1139
      %v1141 = vpop.f32.mrb[0].mxu0
      %v1142 = vpop.f32.mrb[0].mxu0
      %v1143 = vadd.f32 0.0, %v1142
      %v1144 = vpop.f32.mrb[0].mxu0
      %1145 = vmatprep.mubr.bf16.mxu0 0
      %1146 = vmatmul.mubr.bf16.gmra.mrb[0].mxu0 %v1003
      %v1147 = vpop.f32.mrb[0].mxu0
      %v1148 = vadd.f32 0.0, %v1147
      %v1149 = vpop.f32.mrb[0].mxu0
      %v1150 = vpop.f32.mrb[0].mxu0
      %v1151 = vadd.f32 0.0, %v1150
      %v1152 = vpop.f32.mrb[0].mxu0
      %1153 = vmatprep.mubr.bf16.mxu0 0
      %1154 = vmatmul.mubr.bf16.gmra.mrb[0].mxu0 %v1006
      %v1155 = vpop.f32.mrb[0].mxu0
      %v1156 = vadd.f32 0.0, %v1155
      %v1157 = vpop.f32.mrb[0].mxu0
      %v1158 = vpop.f32.mrb[0].mxu0
      %v1159 = vadd.f32 0.0, %v1158
      %v1160 = vpop.f32.mrb[0].mxu0
      %1161 = vmatprep.mubr.bf16.mxu0 0
      %1162 = vmatmul.mubr.bf16.gmra.mrb[0].mxu0 %v1009
      %v1163 = vpop.f32.mrb[0].mxu0
      %v1164 = vadd.f32 0.0, %v1163
      %v1165 = vpop.f32.mrb[0].mxu0
      %v1166 = vpop.f32.mrb[0].mxu0
      %v1167 = vadd.f32 0.0, %v1166
      %v1168 = vpop.f32.mrb[0].mxu0
      %1169 = vmatprep.mubr.bf16.mxu0 0
      %1170 = vmatmul.mubr.bf16.gmra.mrb[0].mxu0 %v1012
      %v1171 = vpop.f32.mrb[0].mxu0
      %v1172 = vadd.f32 0.0, %v1171
      %v1173 = vpop.f32.mrb[0].mxu0
      %v1174 = vpop.f32.mrb[0].mxu0
      %v1175 = vadd.f32 0.0, %v1174
      %v1176 = vpop.f32.mrb[0].mxu0
      %1177 = vdwg.mxu0
      %v1178 = vadd.f32 %v932, %v1052
      %v1179 = vadd.f32 %v933, %v1055
      %v1180 = vadd.f32 %v934, %v1060
      %v1181 = vadd.f32 %v935, %v1063
      %v1182 = vadd.f32 %v936, %v1068
      %v1183 = vadd.f32 %v937, %v1071
      %v1184 = vadd.f32 %v938, %v1076
      %v1185 = vadd.f32 %v939, %v1079
      %v1186 = vadd.f32 %v940, %v1084
      %v1187 = vadd.f32 %v941, %v1087
      %v1188 = vadd.f32 %v942, %v1092
      %v1189 = vadd.f32 %v943, %v1095
      %v1190 = vadd.f32 %v944, %v1100
      %v1191 = vadd.f32 %v945, %v1103
      %v1192 = vadd.f32 %v946, %v1108
      %v1193 = vadd.f32 %v947, %v1111
      %v1194 = vadd.f32 %v948, %v1116
      %v1195 = vadd.f32 %v949, %v1119
      %v1196 = vadd.f32 %v950, %v1124
      %v1197 = vadd.f32 %v951, %v1127
      %v1198 = vadd.f32 %v952, %v1132
      %v1199 = vadd.f32 %v953, %v1135
      %v1200 = vadd.f32 %v954, %v1140
      %v1201 = vadd.f32 %v955, %v1143
      %v1202 = vadd.f32 %v956, %v1148
      %v1203 = vadd.f32 %v957, %v1151
      %v1204 = vadd.f32 %v958, %v1156
      %v1205 = vadd.f32 %v959, %v1159
      %v1206 = vadd.f32 %v960, %v1164
      %v1207 = vadd.f32 %v961, %v1167
      %v1208 = vadd.f32 %v962, %v1172
      %v1209 = vadd.f32 %v963, %v1175
      %1210 = vst.msk [vmem:[#allocation3] sm:$0xff] %vm305, %v1178
      %1211 = vst.msk [vmem:[#allocation3 + $0x8] sm:$0xff] %vm305, %v1179
      %1212 = vst.msk [vmem:[#allocation3 + $0x10] sm:$0xff] %vm305, %v1180
      %1213 = vst.msk [vmem:[#allocation3 + $0x18] sm:$0xff] %vm305, %v1181
      %1214 = vst.msk [vmem:[#allocation3 + $0x20] sm:$0xff] %vm305, %v1182
      %1215 = vst.msk [vmem:[#allocation3 + $0x28] sm:$0xff] %vm305, %v1183
      %1216 = vst.msk [vmem:[#allocation3 + $0x30] sm:$0xff] %vm305, %v1184
      %1217 = vst.msk [vmem:[#allocation3 + $0x38] sm:$0xff] %vm305, %v1185
      %1218 = vst.msk [vmem:[#allocation3 + $0x40] sm:$0xff] %vm305, %v1186
      %1219 = vst.msk [vmem:[#allocation3 + $0x48] sm:$0xff] %vm305, %v1187
      %1220 = vst.msk [vmem:[#allocation3 + $0x50] sm:$0xff] %vm305, %v1188
      %1221 = vst.msk [vmem:[#allocation3 + $0x58] sm:$0xff] %vm305, %v1189
      %1222 = vst.msk [vmem:[#allocation3 + $0x60] sm:$0xff] %vm305, %v1190
      %1223 = vst.msk [vmem:[#allocation3 + $0x68] sm:$0xff] %vm305, %v1191
      %1224 = vst.msk [vmem:[#allocation3 + $0x70] sm:$0xff] %vm305, %v1192
      %1225 = vst.msk [vmem:[#allocation3 + $0x78] sm:$0xff] %vm305, %v1193
      %1226 = vst.msk [vmem:[#allocation3 + $0x80] sm:$0xff] %vm305, %v1194
      %1227 = vst.msk [vmem:[#allocation3 + $0x88] sm:$0xff] %vm305, %v1195
      %1228 = vst.msk [vmem:[#allocation3 + $0x90] sm:$0xff] %vm305, %v1196
      %1229 = vst.msk [vmem:[#allocation3 + $0x98] sm:$0xff] %vm305, %v1197
      %1230 = vst.msk [vmem:[#allocation3 + $0xa0] sm:$0xff] %vm305, %v1198
      %1231 = vst.msk [vmem:[#allocation3 + $0xa8] sm:$0xff] %vm305, %v1199
      %1232 = vst.msk [vmem:[#allocation3 + $0xb0] sm:$0xff] %vm305, %v1200
      %1233 = vst.msk [vmem:[#allocation3 + $0xb8] sm:$0xff] %vm305, %v1201
      %1234 = vst.msk [vmem:[#allocation3 + $0xc0] sm:$0xff] %vm305, %v1202
      %1235 = vst.msk [vmem:[#allocation3 + $0xc8] sm:$0xff] %vm305, %v1203
      %1236 = vst.msk [vmem:[#allocation3 + $0xd0] sm:$0xff] %vm305, %v1204
      %1237 = vst.msk [vmem:[#allocation3 + $0xd8] sm:$0xff] %vm305, %v1205
      %1238 = vst.msk [vmem:[#allocation3 + $0xe0] sm:$0xff] %vm305, %v1206
      %1239 = vst.msk [vmem:[#allocation3 + $0xe8] sm:$0xff] %vm305, %v1207
      %1240 = vst.msk [vmem:[#allocation3 + $0xf0] sm:$0xff] %vm305, %v1208
      %1241 = vst.msk [vmem:[#allocation3 + $0xf8] sm:$0xff] %vm305, %v1209
      %v1242 = vld [vmem:[#allocation2 + $0x2] sm:$0xff]
      %v1243 = vld [vmem:[#allocation2 + $0xa] sm:$0xff]
      %v1244 = vld [vmem:[#allocation2 + $0x1a] sm:$0xff]
      %v1245 = vld [vmem:[#allocation2 + $0x22] sm:$0xff]
      %v1246 = vld [vmem:[#allocation2 + $0x32] sm:$0xff]
      %v1247 = vld [vmem:[#allocation2 + $0x3a] sm:$0xff]
      %v1248 = vld [vmem:[#allocation2 + $0x4a] sm:$0xff]
      %v1249 = vld [vmem:[#allocation2 + $0x52] sm:$0xff]
      %v1250 = vld [vmem:[#allocation2 + $0x62] sm:$0xff]
      %v1251 = vld [vmem:[#allocation2 + $0x6a] sm:$0xff]
      %v1252 = vld [vmem:[#allocation2 + $0x7a] sm:$0xff]
      %v1253 = vld [vmem:[#allocation2 + $0x82] sm:$0xff]
      %v1254 = vld [vmem:[#allocation2 + $0x92] sm:$0xff]
      %v1255 = vld [vmem:[#allocation2 + $0x9a] sm:$0xff]
      %v1256 = vld [vmem:[#allocation2 + $0xaa] sm:$0xff]
      %v1257 = vld [vmem:[#allocation2 + $0xb2] sm:$0xff]
      %v1258 = vld [vmem:[#allocation2 + $0xc2] sm:$0xff]
      %v1259 = vld [vmem:[#allocation2 + $0xca] sm:$0xff]
      %v1260 = vld [vmem:[#allocation2 + $0xda] sm:$0xff]
      %v1261 = vld [vmem:[#allocation2 + $0xe2] sm:$0xff]
      %v1262 = vld [vmem:[#allocation2 + $0xf2] sm:$0xff]
      %v1263 = vld [vmem:[#allocation2 + $0xfa] sm:$0xff]
      %v1264 = vld [vmem:[#allocation2 + $0x10a] sm:$0xff]
      %v1265 = vld [vmem:[#allocation2 + $0x112] sm:$0xff]
      %v1266 = vld [vmem:[#allocation2 + $0x122] sm:$0xff]
      %v1267 = vld [vmem:[#allocation2 + $0x12a] sm:$0xff]
      %v1268 = vld [vmem:[#allocation2 + $0x13a] sm:$0xff]
      %v1269 = vld [vmem:[#allocation2 + $0x142] sm:$0xff]
      %v1270 = vld [vmem:[#allocation2 + $0x152] sm:$0xff]
      %v1271 = vld [vmem:[#allocation2 + $0x15a] sm:$0xff]
      %v1272 = vld [vmem:[#allocation2 + $0x16a] sm:$0xff]
      %v1273 = vld [vmem:[#allocation2 + $0x172] sm:$0xff]
      %v1274 = vpack.c.bf16 %v1243, %v1242
      %v1275 = vpack.c.bf16 %v1245, %v1244
      %v1276 = vpack.c.bf16 %v1247, %v1246
      %v1277 = vpack.c.bf16 %v1249, %v1248
      %v1278 = vpack.c.bf16 %v1251, %v1250
      %v1279 = vpack.c.bf16 %v1253, %v1252
      %v1280 = vpack.c.bf16 %v1255, %v1254
      %v1281 = vpack.c.bf16 %v1257, %v1256
      %v1282 = vpack.c.bf16 %v1259, %v1258
      %v1283 = vpack.c.bf16 %v1261, %v1260
      %v1284 = vpack.c.bf16 %v1263, %v1262
      %v1285 = vpack.c.bf16 %v1265, %v1264
      %v1286 = vpack.c.bf16 %v1267, %v1266
      %v1287 = vpack.c.bf16 %v1269, %v1268
      %v1288 = vpack.c.bf16 %v1271, %v1270
      %v1289 = vpack.c.bf16 %v1273, %v1272
      %v1290 = vld [vmem:[#allocation3] sm:$0xff]
      %v1291 = vld [vmem:[#allocation3 + $0x8] sm:$0xff]
      %v1292 = vld [vmem:[#allocation3 + $0x10] sm:$0xff]
      %v1293 = vld [vmem:[#allocation3 + $0x18] sm:$0xff]
      %v1294 = vld [vmem:[#allocation3 + $0x20] sm:$0xff]
      %v1295 = vld [vmem:[#allocation3 + $0x28] sm:$0xff]
      %v1296 = vld [vmem:[#allocation3 + $0x30] sm:$0xff]
      %v1297 = vld [vmem:[#allocation3 + $0x38] sm:$0xff]
      %v1298 = vld [vmem:[#allocation3 + $0x40] sm:$0xff]
      %v1299 = vld [vmem:[#allocation3 + $0x48] sm:$0xff]
      %v1300 = vld [vmem:[#allocation3 + $0x50] sm:$0xff]
      %v1301 = vld [vmem:[#allocation3 + $0x58] sm:$0xff]
      %v1302 = vld [vmem:[#allocation3 + $0x60] sm:$0xff]
      %v1303 = vld [vmem:[#allocation3 + $0x68] sm:$0xff]
      %v1304 = vld [vmem:[#allocation3 + $0x70] sm:$0xff]
      %v1305 = vld [vmem:[#allocation3 + $0x78] sm:$0xff]
      %v1306 = vld [vmem:[#allocation3 + $0x80] sm:$0xff]
      %v1307 = vld [vmem:[#allocation3 + $0x88] sm:$0xff]
      %v1308 = vld [vmem:[#allocation3 + $0x90] sm:$0xff]
      %v1309 = vld [vmem:[#allocation3 + $0x98] sm:$0xff]
      %v1310 = vld [vmem:[#allocation3 + $0xa0] sm:$0xff]
      %v1311 = vld [vmem:[#allocation3 + $0xa8] sm:$0xff]
      %v1312 = vld [vmem:[#allocation3 + $0xb0] sm:$0xff]
      %v1313 = vld [vmem:[#allocation3 + $0xb8] sm:$0xff]
      %v1314 = vld [vmem:[#allocation3 + $0xc0] sm:$0xff]
      %v1315 = vld [vmem:[#allocation3 + $0xc8] sm:$0xff]
      %v1316 = vld [vmem:[#allocation3 + $0xd0] sm:$0xff]
      %v1317 = vld [vmem:[#allocation3 + $0xd8] sm:$0xff]
      %v1318 = vld [vmem:[#allocation3 + $0xe0] sm:$0xff]
      %v1319 = vld [vmem:[#allocation3 + $0xe8] sm:$0xff]
      %v1320 = vld [vmem:[#allocation3 + $0xf0] sm:$0xff]
      %v1321 = vld [vmem:[#allocation3 + $0xf8] sm:$0xff]
      %s1322 = scalar_lea.vmem %s3, 8
      %v1323 = vld [vmem:[%s1322] sm:$0xf]
      %v1325 = vsel %vm305, %v1274, 0
      %v1328 = vsel %vm305, %v1275, 0
      %v1331 = vsel %vm305, %v1276, 0
      %v1334 = vsel %vm305, %v1277, 0
      %v1337 = vsel %vm305, %v1278, 0
      %v1340 = vsel %vm305, %v1279, 0
      %v1343 = vsel %vm305, %v1280, 0
      %v1346 = vsel %vm305, %v1281, 0
      %v1349 = vsel %vm305, %v1282, 0
      %v1352 = vsel %vm305, %v1283, 0
      %v1355 = vsel %vm305, %v1284, 0
      %v1358 = vsel %vm305, %v1285, 0
      %v1361 = vsel %vm305, %v1286, 0
      %v1364 = vsel %vm305, %v1287, 0
      %v1367 = vsel %vm305, %v1288, 0
      %v1370 = vsel %vm305, %v1289, 0
      %v1373 = vsel %vm655, %v1323, 0
      %1375 = vmatprep.subr.bf16.mxu0 0
      %1376 = vmatpush1.bf16.msra.mxu0 %v1373
      %1377 = vmatprep.subr.bf16.mxu0 0
      %1378 = vmatpush1.bf16.msra.mxu0 0
      %1379 = vmatprep.subr.bf16.mxu0 0
      %1380 = vmatpush1.bf16.msra.mxu0 0
      %1381 = vmatprep.subr.bf16.mxu0 0
      %1382 = vmatpush1.bf16.msra.mxu0 0
      %1383 = vmatprep.subr.bf16.mxu0 0
      %1384 = vmatpush1.bf16.msra.mxu0 0
      %1385 = vmatprep.subr.bf16.mxu0 0
      %1386 = vmatpush1.bf16.msra.mxu0 0
      %1387 = vmatprep.subr.bf16.mxu0 0
      %1388 = vmatpush1.bf16.msra.mxu0 0
      %1389 = vmatprep.subr.bf16.mxu0 0
      %1390 = vmatpush1.bf16.msra.mxu0 0
      %1391 = vmatprep.subr.bf16.mxu0 0
      %1392 = vmatpush1.bf16.msra.mxu0 0
      %1393 = vmatprep.subr.bf16.mxu0 0
      %1394 = vmatpush1.bf16.msra.mxu0 0
      %1395 = vmatprep.subr.bf16.mxu0 0
      %1396 = vmatpush1.bf16.msra.mxu0 0
      %1397 = vmatprep.subr.bf16.mxu0 0
      %1398 = vmatpush1.bf16.msra.mxu0 0
      %1399 = vmatprep.subr.bf16.mxu0 0
      %1400 = vmatpush1.bf16.msra.mxu0 0
      %1401 = vmatprep.subr.bf16.mxu0 0
      %1402 = vmatpush1.bf16.msra.mxu0 0
      %1403 = vmatprep.subr.bf16.mxu0 0
      %1404 = vmatpush1.bf16.msra.mxu0 0
      %1405 = vmatprep.subr.bf16.mxu0 0
      %1406 = vmatpush1.bf16.msra.mxu0 0
      %1407 = vmatprep.mubr.bf16.mxu0 0
      %1408 = vmatmul.mubr.bf16.gmra.mrb[0].mxu0 %v1325
      %v1409 = vpop.f32.mrb[0].mxu0
      %v1410 = vadd.f32 0.0, %v1409
      %v1411 = vpop.f32.mrb[0].mxu0
      %v1412 = vpop.f32.mrb[0].mxu0
      %v1413 = vadd.f32 0.0, %v1412
      %v1414 = vpop.f32.mrb[0].mxu0
      %1415 = vmatprep.mubr.bf16.mxu0 0
      %1416 = vmatmul.mubr.bf16.gmra.mrb[0].mxu0 %v1328
      %v1417 = vpop.f32.mrb[0].mxu0
      %v1418 = vadd.f32 0.0, %v1417
      %v1419 = vpop.f32.mrb[0].mxu0
      %v1420 = vpop.f32.mrb[0].mxu0
      %v1421 = vadd.f32 0.0, %v1420
      %v1422 = vpop.f32.mrb[0].mxu0
      %1423 = vmatprep.mubr.bf16.mxu0 0
      %1424 = vmatmul.mubr.bf16.gmra.mrb[0].mxu0 %v1331
      %v1425 = vpop.f32.mrb[0].mxu0
      %v1426 = vadd.f32 0.0, %v1425
      %v1427 = vpop.f32.mrb[0].mxu0
      %v1428 = vpop.f32.mrb[0].mxu0
      %v1429 = vadd.f32 0.0, %v1428
      %v1430 = vpop.f32.mrb[0].mxu0
      %1431 = vmatprep.mubr.bf16.mxu0 0
      %1432 = vmatmul.mubr.bf16.gmra.mrb[0].mxu0 %v1334
      %v1433 = vpop.f32.mrb[0].mxu0
      %v1434 = vadd.f32 0.0, %v1433
      %v1435 = vpop.f32.mrb[0].mxu0
      %v1436 = vpop.f32.mrb[0].mxu0
      %v1437 = vadd.f32 0.0, %v1436
      %v1438 = vpop.f32.mrb[0].mxu0
      %1439 = vmatprep.mubr.bf16.mxu0 0
      %1440 = vmatmul.mubr.bf16.gmra.mrb[0].mxu0 %v1337
      %v1441 = vpop.f32.mrb[0].mxu0
      %v1442 = vadd.f32 0.0, %v1441
      %v1443 = vpop.f32.mrb[0].mxu0
      %v1444 = vpop.f32.mrb[0].mxu0
      %v1445 = vadd.f32 0.0, %v1444
      %v1446 = vpop.f32.mrb[0].mxu0
      %1447 = vmatprep.mubr.bf16.mxu0 0
      %1448 = vmatmul.mubr.bf16.gmra.mrb[0].mxu0 %v1340
      %v1449 = vpop.f32.mrb[0].mxu0
      %v1450 = vadd.f32 0.0, %v1449
      %v1451 = vpop.f32.mrb[0].mxu0
      %v1452 = vpop.f32.mrb[0].mxu0
      %v1453 = vadd.f32 0.0, %v1452
      %v1454 = vpop.f32.mrb[0].mxu0
      %1455 = vmatprep.mubr.bf16.mxu0 0
      %1456 = vmatmul.mubr.bf16.gmra.mrb[0].mxu0 %v1343
      %v1457 = vpop.f32.mrb[0].mxu0
      %v1458 = vadd.f32 0.0, %v1457
      %v1459 = vpop.f32.mrb[0].mxu0
      %v1460 = vpop.f32.mrb[0].mxu0
      %v1461 = vadd.f32 0.0, %v1460
      %v1462 = vpop.f32.mrb[0].mxu0
      %1463 = vmatprep.mubr.bf16.mxu0 0
      %1464 = vmatmul.mubr.bf16.gmra.mrb[0].mxu0 %v1346
      %v1465 = vpop.f32.mrb[0].mxu0
      %v1466 = vadd.f32 0.0, %v1465
      %v1467 = vpop.f32.mrb[0].mxu0
      %v1468 = vpop.f32.mrb[0].mxu0
      %v1469 = vadd.f32 0.0, %v1468
      %v1470 = vpop.f32.mrb[0].mxu0
      %1471 = vmatprep.mubr.bf16.mxu0 0
      %1472 = vmatmul.mubr.bf16.gmra.mrb[0].mxu0 %v1349
      %v1473 = vpop.f32.mrb[0].mxu0
      %v1474 = vadd.f32 0.0, %v1473
      %v1475 = vpop.f32.mrb[0].mxu0
      %v1476 = vpop.f32.mrb[0].mxu0
      %v1477 = vadd.f32 0.0, %v1476
      %v1478 = vpop.f32.mrb[0].mxu0
      %1479 = vmatprep.mubr.bf16.mxu0 0
      %1480 = vmatmul.mubr.bf16.gmra.mrb[0].mxu0 %v1352
      %v1481 = vpop.f32.mrb[0].mxu0
      %v1482 = vadd.f32 0.0, %v1481
      %v1483 = vpop.f32.mrb[0].mxu0
      %v1484 = vpop.f32.mrb[0].mxu0
      %v1485 = vadd.f32 0.0, %v1484
      %v1486 = vpop.f32.mrb[0].mxu0
      %1487 = vmatprep.mubr.bf16.mxu0 0
      %1488 = vmatmul.mubr.bf16.gmra.mrb[0].mxu0 %v1355
      %v1489 = vpop.f32.mrb[0].mxu0
      %v1490 = vadd.f32 0.0, %v1489
      %v1491 = vpop.f32.mrb[0].mxu0
      %v1492 = vpop.f32.mrb[0].mxu0
      %v1493 = vadd.f32 0.0, %v1492
      %v1494 = vpop.f32.mrb[0].mxu0
      %1495 = vmatprep.mubr.bf16.mxu0 0
      %1496 = vmatmul.mubr.bf16.gmra.mrb[0].mxu0 %v1358
      %v1497 = vpop.f32.mrb[0].mxu0
      %v1498 = vadd.f32 0.0, %v1497
      %v1499 = vpop.f32.mrb[0].mxu0
      %v1500 = vpop.f32.mrb[0].mxu0
      %v1501 = vadd.f32 0.0, %v1500
      %v1502 = vpop.f32.mrb[0].mxu0
      %1503 = vmatprep.mubr.bf16.mxu0 0
      %1504 = vmatmul.mubr.bf16.gmra.mrb[0].mxu0 %v1361
      %v1505 = vpop.f32.mrb[0].mxu0
      %v1506 = vadd.f32 0.0, %v1505
      %v1507 = vpop.f32.mrb[0].mxu0
      %v1508 = vpop.f32.mrb[0].mxu0
      %v1509 = vadd.f32 0.0, %v1508
      %v1510 = vpop.f32.mrb[0].mxu0
      %1511 = vmatprep.mubr.bf16.mxu0 0
      %1512 = vmatmul.mubr.bf16.gmra.mrb[0].mxu0 %v1364
      %v1513 = vpop.f32.mrb[0].mxu0
      %v1514 = vadd.f32 0.0, %v1513
      %v1515 = vpop.f32.mrb[0].mxu0
      %v1516 = vpop.f32.mrb[0].mxu0
      %v1517 = vadd.f32 0.0, %v1516
      %v1518 = vpop.f32.mrb[0].mxu0
      %1519 = vmatprep.mubr.bf16.mxu0 0
      %1520 = vmatmul.mubr.bf16.gmra.mrb[0].mxu0 %v1367
      %v1521 = vpop.f32.mrb[0].mxu0
      %v1522 = vadd.f32 0.0, %v1521
      %v1523 = vpop.f32.mrb[0].mxu0
      %v1524 = vpop.f32.mrb[0].mxu0
      %v1525 = vadd.f32 0.0, %v1524
      %v1526 = vpop.f32.mrb[0].mxu0
      %1527 = vmatprep.mubr.bf16.mxu0 0
      %1528 = vmatmul.mubr.bf16.gmra.mrb[0].mxu0 %v1370
      %v1529 = vpop.f32.mrb[0].mxu0
      %v1530 = vadd.f32 0.0, %v1529
      %v1531 = vpop.f32.mrb[0].mxu0
      %v1532 = vpop.f32.mrb[0].mxu0
      %v1533 = vadd.f32 0.0, %v1532
      %v1534 = vpop.f32.mrb[0].mxu0
      %1535 = vdwg.mxu0
      %v1536 = vadd.f32 %v1290, %v1410
      %v1537 = vadd.f32 %v1291, %v1413
      %v1538 = vadd.f32 %v1292, %v1418
      %v1539 = vadd.f32 %v1293, %v1421
      %v1540 = vadd.f32 %v1294, %v1426
      %v1541 = vadd.f32 %v1295, %v1429
      %v1542 = vadd.f32 %v1296, %v1434
      %v1543 = vadd.f32 %v1297, %v1437
      %v1544 = vadd.f32 %v1298, %v1442
      %v1545 = vadd.f32 %v1299, %v1445
      %v1546 = vadd.f32 %v1300, %v1450
      %v1547 = vadd.f32 %v1301, %v1453
      %v1548 = vadd.f32 %v1302, %v1458
      %v1549 = vadd.f32 %v1303, %v1461
      %v1550 = vadd.f32 %v1304, %v1466
      %v1551 = vadd.f32 %v1305, %v1469
      %v1552 = vadd.f32 %v1306, %v1474
      %v1553 = vadd.f32 %v1307, %v1477
      %v1554 = vadd.f32 %v1308, %v1482
      %v1555 = vadd.f32 %v1309, %v1485
      %v1556 = vadd.f32 %v1310, %v1490
      %v1557 = vadd.f32 %v1311, %v1493
      %v1558 = vadd.f32 %v1312, %v1498
      %v1559 = vadd.f32 %v1313, %v1501
      %v1560 = vadd.f32 %v1314, %v1506
      %v1561 = vadd.f32 %v1315, %v1509
      %v1562 = vadd.f32 %v1316, %v1514
      %v1563 = vadd.f32 %v1317, %v1517
      %v1564 = vadd.f32 %v1318, %v1522
      %v1565 = vadd.f32 %v1319, %v1525
      %v1566 = vadd.f32 %v1320, %v1530
      %v1567 = vadd.f32 %v1321, %v1533
      %1568 = vst.msk [vmem:[#allocation3] sm:$0xff] %vm305, %v1536
      %1569 = vst.msk [vmem:[#allocation3 + $0x8] sm:$0xff] %vm305, %v1537
      %1570 = vst.msk [vmem:[#allocation3 + $0x10] sm:$0xff] %vm305, %v1538
      %1571 = vst.msk [vmem:[#allocation3 + $0x18] sm:$0xff] %vm305, %v1539
      %1572 = vst.msk [vmem:[#allocation3 + $0x20] sm:$0xff] %vm305, %v1540
      %1573 = vst.msk [vmem:[#allocation3 + $0x28] sm:$0xff] %vm305, %v1541
      %1574 = vst.msk [vmem:[#allocation3 + $0x30] sm:$0xff] %vm305, %v1542
      %1575 = vst.msk [vmem:[#allocation3 + $0x38] sm:$0xff] %vm305, %v1543
      %1576 = vst.msk [vmem:[#allocation3 + $0x40] sm:$0xff] %vm305, %v1544
      %1577 = vst.msk [vmem:[#allocation3 + $0x48] sm:$0xff] %vm305, %v1545
      %1578 = vst.msk [vmem:[#allocation3 + $0x50] sm:$0xff] %vm305, %v1546
      %1579 = vst.msk [vmem:[#allocation3 + $0x58] sm:$0xff] %vm305, %v1547
      %1580 = vst.msk [vmem:[#allocation3 + $0x60] sm:$0xff] %vm305, %v1548
      %1581 = vst.msk [vmem:[#allocation3 + $0x68] sm:$0xff] %vm305, %v1549
      %1582 = vst.msk [vmem:[#allocation3 + $0x70] sm:$0xff] %vm305, %v1550
      %1583 = vst.msk [vmem:[#allocation3 + $0x78] sm:$0xff] %vm305, %v1551
      %1584 = vst.msk [vmem:[#allocation3 + $0x80] sm:$0xff] %vm305, %v1552
      %1585 = vst.msk [vmem:[#allocation3 + $0x88] sm:$0xff] %vm305, %v1553
      %1586 = vst.msk [vmem:[#allocation3 + $0x90] sm:$0xff] %vm305, %v1554
      %1587 = vst.msk [vmem:[#allocation3 + $0x98] sm:$0xff] %vm305, %v1555
      %1588 = vst.msk [vmem:[#allocation3 + $0xa0] sm:$0xff] %vm305, %v1556
      %1589 = vst.msk [vmem:[#allocation3 + $0xa8] sm:$0xff] %vm305, %v1557
      %1590 = vst.msk [vmem:[#allocation3 + $0xb0] sm:$0xff] %vm305, %v1558
      %1591 = vst.msk [vmem:[#allocation3 + $0xb8] sm:$0xff] %vm305, %v1559
      %1592 = vst.msk [vmem:[#allocation3 + $0xc0] sm:$0xff] %vm305, %v1560
      %1593 = vst.msk [vmem:[#allocation3 + $0xc8] sm:$0xff] %vm305, %v1561
      %1594 = vst.msk [vmem:[#allocation3 + $0xd0] sm:$0xff] %vm305, %v1562
      %1595 = vst.msk [vmem:[#allocation3 + $0xd8] sm:$0xff] %vm305, %v1563
      %1596 = vst.msk [vmem:[#allocation3 + $0xe0] sm:$0xff] %vm305, %v1564
      %1597 = vst.msk [vmem:[#allocation3 + $0xe8] sm:$0xff] %vm305, %v1565
      %1598 = vst.msk [vmem:[#allocation3 + $0xf0] sm:$0xff] %vm305, %v1566
      %1599 = vst.msk [vmem:[#allocation3 + $0xf8] sm:$0xff] %vm305, %v1567
      %v1600 = vld [vmem:[%s461] sm:$0xff]
      %v1601 = vld [vmem:[%s461 + $0x8] sm:$0xff]
      %v1602 = vld [vmem:[%s461 + $0x18] sm:$0xff]
      %v1603 = vld [vmem:[%s461 + $0x20] sm:$0xff]
      %v1604 = vld [vmem:[%s461 + $0x30] sm:$0xff]
      %v1605 = vld [vmem:[%s461 + $0x38] sm:$0xff]
      %v1606 = vld [vmem:[%s461 + $0x48] sm:$0xff]
      %v1607 = vld [vmem:[%s461 + $0x50] sm:$0xff]
      %v1608 = vld [vmem:[%s461 + $0x60] sm:$0xff]
      %v1609 = vld [vmem:[%s461 + $0x68] sm:$0xff]
      %v1610 = vld [vmem:[%s461 + $0x78] sm:$0xff]
      %v1611 = vld [vmem:[%s461 + $0x80] sm:$0xff]
      %v1612 = vld [vmem:[%s461 + $0x90] sm:$0xff]
      %v1613 = vld [vmem:[%s461 + $0x98] sm:$0xff]
      %v1614 = vld [vmem:[%s461 + $0xa8] sm:$0xff]
      %v1615 = vld [vmem:[%s461 + $0xb0] sm:$0xff]
      %v1616 = vld [vmem:[%s461 + $0xc0] sm:$0xff]
      %v1617 = vld [vmem:[%s461 + $0xc8] sm:$0xff]
      %v1618 = vld [vmem:[%s461 + $0xd8] sm:$0xff]
      %v1619 = vld [vmem:[%s461 + $0xe0] sm:$0xff]
      %v1620 = vld [vmem:[%s461 + $0xf0] sm:$0xff]
      %v1621 = vld [vmem:[%s461 + $0xf8] sm:$0xff]
      %v1622 = vld [vmem:[%s461 + $0x108] sm:$0xff]
      %v1623 = vld [vmem:[%s461 + $0x110] sm:$0xff]
      %v1624 = vld [vmem:[%s461 + $0x120] sm:$0xff]
      %v1625 = vld [vmem:[%s461 + $0x128] sm:$0xff]
      %v1626 = vld [vmem:[%s461 + $0x138] sm:$0xff]
      %v1627 = vld [vmem:[%s461 + $0x140] sm:$0xff]
      %v1628 = vld [vmem:[%s461 + $0x150] sm:$0xff]
      %v1629 = vld [vmem:[%s461 + $0x158] sm:$0xff]
      %v1630 = vld [vmem:[%s461 + $0x168] sm:$0xff]
      %v1631 = vld [vmem:[%s461 + $0x170] sm:$0xff]
      %v1632 = vpack.c.bf16 %v1601, %v1600
      %v1633 = vpack.c.bf16 %v1603, %v1602
      %v1634 = vpack.c.bf16 %v1605, %v1604
      %v1635 = vpack.c.bf16 %v1607, %v1606
      %v1636 = vpack.c.bf16 %v1609, %v1608
      %v1637 = vpack.c.bf16 %v1611, %v1610
      %v1638 = vpack.c.bf16 %v1613, %v1612
      %v1639 = vpack.c.bf16 %v1615, %v1614
      %v1640 = vpack.c.bf16 %v1617, %v1616
      %v1641 = vpack.c.bf16 %v1619, %v1618
      %v1642 = vpack.c.bf16 %v1621, %v1620
      %v1643 = vpack.c.bf16 %v1623, %v1622
      %v1644 = vpack.c.bf16 %v1625, %v1624
      %v1645 = vpack.c.bf16 %v1627, %v1626
      %v1646 = vpack.c.bf16 %v1629, %v1628
      %v1647 = vpack.c.bf16 %v1631, %v1630
      %v1648 = vld [vmem:[#allocation3] sm:$0xff]
      %v1649 = vld [vmem:[#allocation3 + $0x8] sm:$0xff]
      %v1650 = vld [vmem:[#allocation3 + $0x10] sm:$0xff]
      %v1651 = vld [vmem:[#allocation3 + $0x18] sm:$0xff]
      %v1652 = vld [vmem:[#allocation3 + $0x20] sm:$0xff]
      %v1653 = vld [vmem:[#allocation3 + $0x28] sm:$0xff]
      %v1654 = vld [vmem:[#allocation3 + $0x30] sm:$0xff]
      %v1655 = vld [vmem:[#allocation3 + $0x38] sm:$0xff]
      %v1656 = vld [vmem:[#allocation3 + $0x40] sm:$0xff]
      %v1657 = vld [vmem:[#allocation3 + $0x48] sm:$0xff]
      %v1658 = vld [vmem:[#allocation3 + $0x50] sm:$0xff]
      %v1659 = vld [vmem:[#allocation3 + $0x58] sm:$0xff]
      %v1660 = vld [vmem:[#allocation3 + $0x60] sm:$0xff]
      %v1661 = vld [vmem:[#allocation3 + $0x68] sm:$0xff]
      %v1662 = vld [vmem:[#allocation3 + $0x70] sm:$0xff]
      %v1663 = vld [vmem:[#allocation3 + $0x78] sm:$0xff]
      %v1664 = vld [vmem:[#allocation3 + $0x80] sm:$0xff]
      %v1665 = vld [vmem:[#allocation3 + $0x88] sm:$0xff]
      %v1666 = vld [vmem:[#allocation3 + $0x90] sm:$0xff]
      %v1667 = vld [vmem:[#allocation3 + $0x98] sm:$0xff]
      %v1668 = vld [vmem:[#allocation3 + $0xa0] sm:$0xff]
      %v1669 = vld [vmem:[#allocation3 + $0xa8] sm:$0xff]
      %v1670 = vld [vmem:[#allocation3 + $0xb0] sm:$0xff]
      %v1671 = vld [vmem:[#allocation3 + $0xb8] sm:$0xff]
      %v1672 = vld [vmem:[#allocation3 + $0xc0] sm:$0xff]
      %v1673 = vld [vmem:[#allocation3 + $0xc8] sm:$0xff]
      %v1674 = vld [vmem:[#allocation3 + $0xd0] sm:$0xff]
      %v1675 = vld [vmem:[#allocation3 + $0xd8] sm:$0xff]
      %v1676 = vld [vmem:[#allocation3 + $0xe0] sm:$0xff]
      %v1677 = vld [vmem:[#allocation3 + $0xe8] sm:$0xff]
      %v1678 = vld [vmem:[#allocation3 + $0xf0] sm:$0xff]
      %v1679 = vld [vmem:[#allocation3 + $0xf8] sm:$0xff]
      %s1680 = scalar_lea.vmem %s3, 12
      %v1681 = vld [vmem:[%s1680] sm:$0xf]
      %v1683 = vsel %vm305, %v1632, 0
      %v1686 = vsel %vm305, %v1633, 0
      %v1689 = vsel %vm305, %v1634, 0
      %v1692 = vsel %vm305, %v1635, 0
      %v1695 = vsel %vm305, %v1636, 0
      %v1698 = vsel %vm305, %v1637, 0
      %v1701 = vsel %vm305, %v1638, 0
      %v1704 = vsel %vm305, %v1639, 0
      %v1707 = vsel %vm305, %v1640, 0
      %v1710 = vsel %vm305, %v1641, 0
      %v1713 = vsel %vm305, %v1642, 0
      %v1716 = vsel %vm305, %v1643, 0
      %v1719 = vsel %vm305, %v1644, 0
      %v1722 = vsel %vm305, %v1645, 0
      %v1725 = vsel %vm305, %v1646, 0
      %v1728 = vsel %vm305, %v1647, 0
      %v1731 = vsel %vm655, %v1681, 0
      %1733 = vmatprep.subr.bf16.mxu0 0
      %1734 = vmatpush1.bf16.msra.mxu0 %v1731
      %1735 = vmatprep.subr.bf16.mxu0 0
      %1736 = vmatpush1.bf16.msra.mxu0 0
      %1737 = vmatprep.subr.bf16.mxu0 0
      %1738 = vmatpush1.bf16.msra.mxu0 0
      %1739 = vmatprep.subr.bf16.mxu0 0
      %1740 = vmatpush1.bf16.msra.mxu0 0
      %1741 = vmatprep.subr.bf16.mxu0 0
      %1742 = vmatpush1.bf16.msra.mxu0 0
      %1743 = vmatprep.subr.bf16.mxu0 0
      %1744 = vmatpush1.bf16.msra.mxu0 0
      %1745 = vmatprep.subr.bf16.mxu0 0
      %1746 = vmatpush1.bf16.msra.mxu0 0
      %1747 = vmatprep.subr.bf16.mxu0 0
      %1748 = vmatpush1.bf16.msra.mxu0 0
      %1749 = vmatprep.subr.bf16.mxu0 0
      %1750 = vmatpush1.bf16.msra.mxu0 0
      %1751 = vmatprep.subr.bf16.mxu0 0
      %1752 = vmatpush1.bf16.msra.mxu0 0
      %1753 = vmatprep.subr.bf16.mxu0 0
      %1754 = vmatpush1.bf16.msra.mxu0 0
      %1755 = vmatprep.subr.bf16.mxu0 0
      %1756 = vmatpush1.bf16.msra.mxu0 0
      %1757 = vmatprep.subr.bf16.mxu0 0
      %1758 = vmatpush1.bf16.msra.mxu0 0
      %1759 = vmatprep.subr.bf16.mxu0 0
      %1760 = vmatpush1.bf16.msra.mxu0 0
      %1761 = vmatprep.subr.bf16.mxu0 0
      %1762 = vmatpush1.bf16.msra.mxu0 0
      %1763 = vmatprep.subr.bf16.mxu0 0
      %1764 = vmatpush1.bf16.msra.mxu0 0
      %1765 = vmatprep.mubr.bf16.mxu0 0
      %1766 = vmatmul.mubr.bf16.gmra.mrb[0].mxu0 %v1683
      %v1767 = vpop.f32.mrb[0].mxu0
      %v1768 = vadd.f32 0.0, %v1767
      %v1769 = vpop.f32.mrb[0].mxu0
      %v1770 = vpop.f32.mrb[0].mxu0
      %v1771 = vadd.f32 0.0, %v1770
      %v1772 = vpop.f32.mrb[0].mxu0
      %1773 = vmatprep.mubr.bf16.mxu0 0
      %1774 = vmatmul.mubr.bf16.gmra.mrb[0].mxu0 %v1686
      %v1775 = vpop.f32.mrb[0].mxu0
      %v1776 = vadd.f32 0.0, %v1775
      %v1777 = vpop.f32.mrb[0].mxu0
      %v1778 = vpop.f32.mrb[0].mxu0
      %v1779 = vadd.f32 0.0, %v1778
      %v1780 = vpop.f32.mrb[0].mxu0
      %1781 = vmatprep.mubr.bf16.mxu0 0
      %1782 = vmatmul.mubr.bf16.gmra.mrb[0].mxu0 %v1689
      %v1783 = vpop.f32.mrb[0].mxu0
      %v1784 = vadd.f32 0.0, %v1783
      %v1785 = vpop.f32.mrb[0].mxu0
      %v1786 = vpop.f32.mrb[0].mxu0
      %v1787 = vadd.f32 0.0, %v1786
      %v1788 = vpop.f32.mrb[0].mxu0
      %1789 = vmatprep.mubr.bf16.mxu0 0
      %1790 = vmatmul.mubr.bf16.gmra.mrb[0].mxu0 %v1692
      %v1791 = vpop.f32.mrb[0].mxu0
      %v1792 = vadd.f32 0.0, %v1791
      %v1793 = vpop.f32.mrb[0].mxu0
      %v1794 = vpop.f32.mrb[0].mxu0
      %v1795 = vadd.f32 0.0, %v1794
      %v1796 = vpop.f32.mrb[0].mxu0
      %1797 = vmatprep.mubr.bf16.mxu0 0
      %1798 = vmatmul.mubr.bf16.gmra.mrb[0].mxu0 %v1695
      %v1799 = vpop.f32.mrb[0].mxu0
      %v1800 = vadd.f32 0.0, %v1799
      %v1801 = vpop.f32.mrb[0].mxu0
      %v1802 = vpop.f32.mrb[0].mxu0
      %v1803 = vadd.f32 0.0, %v1802
      %v1804 = vpop.f32.mrb[0].mxu0
      %1805 = vmatprep.mubr.bf16.mxu0 0
      %1806 = vmatmul.mubr.bf16.gmra.mrb[0].mxu0 %v1698
      %v1807 = vpop.f32.mrb[0].mxu0
      %v1808 = vadd.f32 0.0, %v1807
      %v1809 = vpop.f32.mrb[0].mxu0
      %v1810 = vpop.f32.mrb[0].mxu0
      %v1811 = vadd.f32 0.0, %v1810
      %v1812 = vpop.f32.mrb[0].mxu0
      %1813 = vmatprep.mubr.bf16.mxu0 0
      %1814 = vmatmul.mubr.bf16.gmra.mrb[0].mxu0 %v1701
      %v1815 = vpop.f32.mrb[0].mxu0
      %v1816 = vadd.f32 0.0, %v1815
      %v1817 = vpop.f32.mrb[0].mxu0
      %v1818 = vpop.f32.mrb[0].mxu0
      %v1819 = vadd.f32 0.0, %v1818
      %v1820 = vpop.f32.mrb[0].mxu0
      %1821 = vmatprep.mubr.bf16.mxu0 0
      %1822 = vmatmul.mubr.bf16.gmra.mrb[0].mxu0 %v1704
      %v1823 = vpop.f32.mrb[0].mxu0
      %v1824 = vadd.f32 0.0, %v1823
      %v1825 = vpop.f32.mrb[0].mxu0
      %v1826 = vpop.f32.mrb[0].mxu0
      %v1827 = vadd.f32 0.0, %v1826
      %v1828 = vpop.f32.mrb[0].mxu0
      %1829 = vmatprep.mubr.bf16.mxu0 0
      %1830 = vmatmul.mubr.bf16.gmra.mrb[0].mxu0 %v1707
      %v1831 = vpop.f32.mrb[0].mxu0
      %v1832 = vadd.f32 0.0, %v1831
      %v1833 = vpop.f32.mrb[0].mxu0
      %v1834 = vpop.f32.mrb[0].mxu0
      %v1835 = vadd.f32 0.0, %v1834
      %v1836 = vpop.f32.mrb[0].mxu0
      %1837 = vmatprep.mubr.bf16.mxu0 0
      %1838 = vmatmul.mubr.bf16.gmra.mrb[0].mxu0 %v1710
      %v1839 = vpop.f32.mrb[0].mxu0
      %v1840 = vadd.f32 0.0, %v1839
      %v1841 = vpop.f32.mrb[0].mxu0
      %v1842 = vpop.f32.mrb[0].mxu0
      %v1843 = vadd.f32 0.0, %v1842
      %v1844 = vpop.f32.mrb[0].mxu0
      %1845 = vmatprep.mubr.bf16.mxu0 0
      %1846 = vmatmul.mubr.bf16.gmra.mrb[0].mxu0 %v1713
      %v1847 = vpop.f32.mrb[0].mxu0
      %v1848 = vadd.f32 0.0, %v1847
      %v1849 = vpop.f32.mrb[0].mxu0
      %v1850 = vpop.f32.mrb[0].mxu0
      %v1851 = vadd.f32 0.0, %v1850
      %v1852 = vpop.f32.mrb[0].mxu0
      %1853 = vmatprep.mubr.bf16.mxu0 0
      %1854 = vmatmul.mubr.bf16.gmra.mrb[0].mxu0 %v1716
      %v1855 = vpop.f32.mrb[0].mxu0
      %v1856 = vadd.f32 0.0, %v1855
      %v1857 = vpop.f32.mrb[0].mxu0
      %v1858 = vpop.f32.mrb[0].mxu0
      %v1859 = vadd.f32 0.0, %v1858
      %v1860 = vpop.f32.mrb[0].mxu0
      %1861 = vmatprep.mubr.bf16.mxu0 0
      %1862 = vmatmul.mubr.bf16.gmra.mrb[0].mxu0 %v1719
      %v1863 = vpop.f32.mrb[0].mxu0
      %v1864 = vadd.f32 0.0, %v1863
      %v1865 = vpop.f32.mrb[0].mxu0
      %v1866 = vpop.f32.mrb[0].mxu0
      %v1867 = vadd.f32 0.0, %v1866
      %v1868 = vpop.f32.mrb[0].mxu0
      %1869 = vmatprep.mubr.bf16.mxu0 0
      %1870 = vmatmul.mubr.bf16.gmra.mrb[0].mxu0 %v1722
      %v1871 = vpop.f32.mrb[0].mxu0
      %v1872 = vadd.f32 0.0, %v1871
      %v1873 = vpop.f32.mrb[0].mxu0
      %v1874 = vpop.f32.mrb[0].mxu0
      %v1875 = vadd.f32 0.0, %v1874
      %v1876 = vpop.f32.mrb[0].mxu0
      %1877 = vmatprep.mubr.bf16.mxu0 0
      %1878 = vmatmul.mubr.bf16.gmra.mrb[0].mxu0 %v1725
      %v1879 = vpop.f32.mrb[0].mxu0
      %v1880 = vadd.f32 0.0, %v1879
      %v1881 = vpop.f32.mrb[0].mxu0
      %v1882 = vpop.f32.mrb[0].mxu0
      %v1883 = vadd.f32 0.0, %v1882
      %v1884 = vpop.f32.mrb[0].mxu0
      %1885 = vmatprep.mubr.bf16.mxu0 0
      %1886 = vmatmul.mubr.bf16.gmra.mrb[0].mxu0 %v1728
      %v1887 = vpop.f32.mrb[0].mxu0
      %v1888 = vadd.f32 0.0, %v1887
      %v1889 = vpop.f32.mrb[0].mxu0
      %v1890 = vpop.f32.mrb[0].mxu0
      %v1891 = vadd.f32 0.0, %v1890
      %v1892 = vpop.f32.mrb[0].mxu0
      %1893 = vdwg.mxu0
      %v1894 = vadd.f32 %v1648, %v1768
      %v1895 = vadd.f32 %v1649, %v1771
      %v1896 = vadd.f32 %v1650, %v1776
      %v1897 = vadd.f32 %v1651, %v1779
      %v1898 = vadd.f32 %v1652, %v1784
      %v1899 = vadd.f32 %v1653, %v1787
      %v1900 = vadd.f32 %v1654, %v1792
      %v1901 = vadd.f32 %v1655, %v1795
      %v1902 = vadd.f32 %v1656, %v1800
      %v1903 = vadd.f32 %v1657, %v1803
      %v1904 = vadd.f32 %v1658, %v1808
      %v1905 = vadd.f32 %v1659, %v1811
      %v1906 = vadd.f32 %v1660, %v1816
      %v1907 = vadd.f32 %v1661, %v1819
      %v1908 = vadd.f32 %v1662, %v1824
      %v1909 = vadd.f32 %v1663, %v1827
      %v1910 = vadd.f32 %v1664, %v1832
      %v1911 = vadd.f32 %v1665, %v1835
      %v1912 = vadd.f32 %v1666, %v1840
      %v1913 = vadd.f32 %v1667, %v1843
      %v1914 = vadd.f32 %v1668, %v1848
      %v1915 = vadd.f32 %v1669, %v1851
      %v1916 = vadd.f32 %v1670, %v1856
      %v1917 = vadd.f32 %v1671, %v1859
      %v1918 = vadd.f32 %v1672, %v1864
      %v1919 = vadd.f32 %v1673, %v1867
      %v1920 = vadd.f32 %v1674, %v1872
      %v1921 = vadd.f32 %v1675, %v1875
      %v1922 = vadd.f32 %v1676, %v1880
      %v1923 = vadd.f32 %v1677, %v1883
      %v1924 = vadd.f32 %v1678, %v1888
      %v1925 = vadd.f32 %v1679, %v1891
      %1926 = vst.msk [vmem:[#allocation3] sm:$0xff] %vm305, %v1894
      %1927 = vst.msk [vmem:[#allocation3 + $0x8] sm:$0xff] %vm305, %v1895
      %1928 = vst.msk [vmem:[#allocation3 + $0x10] sm:$0xff] %vm305, %v1896
      %1929 = vst.msk [vmem:[#allocation3 + $0x18] sm:$0xff] %vm305, %v1897
      %1930 = vst.msk [vmem:[#allocation3 + $0x20] sm:$0xff] %vm305, %v1898
      %1931 = vst.msk [vmem:[#allocation3 + $0x28] sm:$0xff] %vm305, %v1899
      %1932 = vst.msk [vmem:[#allocation3 + $0x30] sm:$0xff] %vm305, %v1900
      %1933 = vst.msk [vmem:[#allocation3 + $0x38] sm:$0xff] %vm305, %v1901
      %1934 = vst.msk [vmem:[#allocation3 + $0x40] sm:$0xff] %vm305, %v1902
      %1935 = vst.msk [vmem:[#allocation3 + $0x48] sm:$0xff] %vm305, %v1903
      %1936 = vst.msk [vmem:[#allocation3 + $0x50] sm:$0xff] %vm305, %v1904
      %1937 = vst.msk [vmem:[#allocation3 + $0x58] sm:$0xff] %vm305, %v1905
      %1938 = vst.msk [vmem:[#allocation3 + $0x60] sm:$0xff] %vm305, %v1906
      %1939 = vst.msk [vmem:[#allocation3 + $0x68] sm:$0xff] %vm305, %v1907
      %1940 = vst.msk [vmem:[#allocation3 + $0x70] sm:$0xff] %vm305, %v1908
      %1941 = vst.msk [vmem:[#allocation3 + $0x78] sm:$0xff] %vm305, %v1909
      %1942 = vst.msk [vmem:[#allocation3 + $0x80] sm:$0xff] %vm305, %v1910
      %1943 = vst.msk [vmem:[#allocation3 + $0x88] sm:$0xff] %vm305, %v1911
      %1944 = vst.msk [vmem:[#allocation3 + $0x90] sm:$0xff] %vm305, %v1912
      %1945 = vst.msk [vmem:[#allocation3 + $0x98] sm:$0xff] %vm305, %v1913
      %1946 = vst.msk [vmem:[#allocation3 + $0xa0] sm:$0xff] %vm305, %v1914
      %1947 = vst.msk [vmem:[#allocation3 + $0xa8] sm:$0xff] %vm305, %v1915
      %1948 = vst.msk [vmem:[#allocation3 + $0xb0] sm:$0xff] %vm305, %v1916
      %1949 = vst.msk [vmem:[#allocation3 + $0xb8] sm:$0xff] %vm305, %v1917
      %1950 = vst.msk [vmem:[#allocation3 + $0xc0] sm:$0xff] %vm305, %v1918
      %1951 = vst.msk [vmem:[#allocation3 + $0xc8] sm:$0xff] %vm305, %v1919
      %1952 = vst.msk [vmem:[#allocation3 + $0xd0] sm:$0xff] %vm305, %v1920
      %1953 = vst.msk [vmem:[#allocation3 + $0xd8] sm:$0xff] %vm305, %v1921
      %1954 = vst.msk [vmem:[#allocation3 + $0xe0] sm:$0xff] %vm305, %v1922
      %1955 = vst.msk [vmem:[#allocation3 + $0xe8] sm:$0xff] %vm305, %v1923
      %1956 = vst.msk [vmem:[#allocation3 + $0xf0] sm:$0xff] %vm305, %v1924
      %1957 = vst.msk [vmem:[#allocation3 + $0xf8] sm:$0xff] %vm305, %v1925
      %v1958 = vld [vmem:[%s461 + $0x1] sm:$0xff]
      %v1959 = vld [vmem:[%s461 + $0x9] sm:$0xff]
      %v1960 = vld [vmem:[%s461 + $0x19] sm:$0xff]
      %v1961 = vld [vmem:[%s461 + $0x21] sm:$0xff]
      %v1962 = vld [vmem:[%s461 + $0x31] sm:$0xff]
      %v1963 = vld [vmem:[%s461 + $0x39] sm:$0xff]
      %v1964 = vld [vmem:[%s461 + $0x49] sm:$0xff]
      %v1965 = vld [vmem:[%s461 + $0x51] sm:$0xff]
      %v1966 = vld [vmem:[%s461 + $0x61] sm:$0xff]
      %v1967 = vld [vmem:[%s461 + $0x69] sm:$0xff]
      %v1968 = vld [vmem:[%s461 + $0x79] sm:$0xff]
      %v1969 = vld [vmem:[%s461 + $0x81] sm:$0xff]
      %v1970 = vld [vmem:[%s461 + $0x91] sm:$0xff]
      %v1971 = vld [vmem:[%s461 + $0x99] sm:$0xff]
      %v1972 = vld [vmem:[%s461 + $0xa9] sm:$0xff]
      %v1973 = vld [vmem:[%s461 + $0xb1] sm:$0xff]
      %v1974 = vld [vmem:[%s461 + $0xc1] sm:$0xff]
      %v1975 = vld [vmem:[%s461 + $0xc9] sm:$0xff]
      %v1976 = vld [vmem:[%s461 + $0xd9] sm:$0xff]
      %v1977 = vld [vmem:[%s461 + $0xe1] sm:$0xff]
      %v1978 = vld [vmem:[%s461 + $0xf1] sm:$0xff]
      %v1979 = vld [vmem:[%s461 + $0xf9] sm:$0xff]
      %v1980 = vld [vmem:[%s461 + $0x109] sm:$0xff]
      %v1981 = vld [vmem:[%s461 + $0x111] sm:$0xff]
      %v1982 = vld [vmem:[%s461 + $0x121] sm:$0xff]
      %v1983 = vld [vmem:[%s461 + $0x129] sm:$0xff]
      %v1984 = vld [vmem:[%s461 + $0x139] sm:$0xff]
      %v1985 = vld [vmem:[%s461 + $0x141] sm:$0xff]
      %v1986 = vld [vmem:[%s461 + $0x151] sm:$0xff]
      %v1987 = vld [vmem:[%s461 + $0x159] sm:$0xff]
      %v1988 = vld [vmem:[%s461 + $0x169] sm:$0xff]
      %v1989 = vld [vmem:[%s461 + $0x171] sm:$0xff]
      %v1990 = vpack.c.bf16 %v1959, %v1958
      %v1991 = vpack.c.bf16 %v1961, %v1960
      %v1992 = vpack.c.bf16 %v1963, %v1962
      %v1993 = vpack.c.bf16 %v1965, %v1964
      %v1994 = vpack.c.bf16 %v1967, %v1966
      %v1995 = vpack.c.bf16 %v1969, %v1968
      %v1996 = vpack.c.bf16 %v1971, %v1970
      %v1997 = vpack.c.bf16 %v1973, %v1972
      %v1998 = vpack.c.bf16 %v1975, %v1974
      %v1999 = vpack.c.bf16 %v1977, %v1976
      %v2000 = vpack.c.bf16 %v1979, %v1978
      %v2001 = vpack.c.bf16 %v1981, %v1980
      %v2002 = vpack.c.bf16 %v1983, %v1982
      %v2003 = vpack.c.bf16 %v1985, %v1984
      %v2004 = vpack.c.bf16 %v1987, %v1986
      %v2005 = vpack.c.bf16 %v1989, %v1988
      %v2006 = vld [vmem:[#allocation3] sm:$0xff]
      %v2007 = vld [vmem:[#allocation3 + $0x8] sm:$0xff]
      %v2008 = vld [vmem:[#allocation3 + $0x10] sm:$0xff]
      %v2009 = vld [vmem:[#allocation3 + $0x18] sm:$0xff]
      %v2010 = vld [vmem:[#allocation3 + $0x20] sm:$0xff]
      %v2011 = vld [vmem:[#allocation3 + $0x28] sm:$0xff]
      %v2012 = vld [vmem:[#allocation3 + $0x30] sm:$0xff]
      %v2013 = vld [vmem:[#allocation3 + $0x38] sm:$0xff]
      %v2014 = vld [vmem:[#allocation3 + $0x40] sm:$0xff]
      %v2015 = vld [vmem:[#allocation3 + $0x48] sm:$0xff]
      %v2016 = vld [vmem:[#allocation3 + $0x50] sm:$0xff]
      %v2017 = vld [vmem:[#allocation3 + $0x58] sm:$0xff]
      %v2018 = vld [vmem:[#allocation3 + $0x60] sm:$0xff]
      %v2019 = vld [vmem:[#allocation3 + $0x68] sm:$0xff]
      %v2020 = vld [vmem:[#allocation3 + $0x70] sm:$0xff]
      %v2021 = vld [vmem:[#allocation3 + $0x78] sm:$0xff]
      %v2022 = vld [vmem:[#allocation3 + $0x80] sm:$0xff]
      %v2023 = vld [vmem:[#allocation3 + $0x88] sm:$0xff]
      %v2024 = vld [vmem:[#allocation3 + $0x90] sm:$0xff]
      %v2025 = vld [vmem:[#allocation3 + $0x98] sm:$0xff]
      %v2026 = vld [vmem:[#allocation3 + $0xa0] sm:$0xff]
      %v2027 = vld [vmem:[#allocation3 + $0xa8] sm:$0xff]
      %v2028 = vld [vmem:[#allocation3 + $0xb0] sm:$0xff]
      %v2029 = vld [vmem:[#allocation3 + $0xb8] sm:$0xff]
      %v2030 = vld [vmem:[#allocation3 + $0xc0] sm:$0xff]
      %v2031 = vld [vmem:[#allocation3 + $0xc8] sm:$0xff]
      %v2032 = vld [vmem:[#allocation3 + $0xd0] sm:$0xff]
      %v2033 = vld [vmem:[#allocation3 + $0xd8] sm:$0xff]
      %v2034 = vld [vmem:[#allocation3 + $0xe0] sm:$0xff]
      %v2035 = vld [vmem:[#allocation3 + $0xe8] sm:$0xff]
      %v2036 = vld [vmem:[#allocation3 + $0xf0] sm:$0xff]
      %v2037 = vld [vmem:[#allocation3 + $0xf8] sm:$0xff]
      %s2038 = scalar_lea.vmem %s3, 16
      %v2039 = vld [vmem:[%s2038] sm:$0xf]
      %v2041 = vsel %vm305, %v1990, 0
      %v2044 = vsel %vm305, %v1991, 0
      %v2047 = vsel %vm305, %v1992, 0
      %v2050 = vsel %vm305, %v1993, 0
      %v2053 = vsel %vm305, %v1994, 0
      %v2056 = vsel %vm305, %v1995, 0
      %v2059 = vsel %vm305, %v1996, 0
      %v2062 = vsel %vm305, %v1997, 0
      %v2065 = vsel %vm305, %v1998, 0
      %v2068 = vsel %vm305, %v1999, 0
      %v2071 = vsel %vm305, %v2000, 0
      %v2074 = vsel %vm305, %v2001, 0
      %v2077 = vsel %vm305, %v2002, 0
      %v2080 = vsel %vm305, %v2003, 0
      %v2083 = vsel %vm305, %v2004, 0
      %v2086 = vsel %vm305, %v2005, 0
      %v2089 = vsel %vm655, %v2039, 0
      %2091 = vmatprep.subr.bf16.mxu0 0
      %2092 = vmatpush1.bf16.msra.mxu0 %v2089
      %2093 = vmatprep.subr.bf16.mxu0 0
      %2094 = vmatpush1.bf16.msra.mxu0 0
      %2095 = vmatprep.subr.bf16.mxu0 0
      %2096 = vmatpush1.bf16.msra.mxu0 0
      %2097 = vmatprep.subr.bf16.mxu0 0
      %2098 = vmatpush1.bf16.msra.mxu0 0
      %2099 = vmatprep.subr.bf16.mxu0 0
      %2100 = vmatpush1.bf16.msra.mxu0 0
      %2101 = vmatprep.subr.bf16.mxu0 0
      %2102 = vmatpush1.bf16.msra.mxu0 0
      %2103 = vmatprep.subr.bf16.mxu0 0
      %2104 = vmatpush1.bf16.msra.mxu0 0
      %2105 = vmatprep.subr.bf16.mxu0 0
      %2106 = vmatpush1.bf16.msra.mxu0 0
      %2107 = vmatprep.subr.bf16.mxu0 0
      %2108 = vmatpush1.bf16.msra.mxu0 0
      %2109 = vmatprep.subr.bf16.mxu0 0
      %2110 = vmatpush1.bf16.msra.mxu0 0
      %2111 = vmatprep.subr.bf16.mxu0 0
      %2112 = vmatpush1.bf16.msra.mxu0 0
      %2113 = vmatprep.subr.bf16.mxu0 0
      %2114 = vmatpush1.bf16.msra.mxu0 0
      %2115 = vmatprep.subr.bf16.mxu0 0
      %2116 = vmatpush1.bf16.msra.mxu0 0
      %2117 = vmatprep.subr.bf16.mxu0 0
      %2118 = vmatpush1.bf16.msra.mxu0 0
      %2119 = vmatprep.subr.bf16.mxu0 0
      %2120 = vmatpush1.bf16.msra.mxu0 0
      %2121 = vmatprep.subr.bf16.mxu0 0
      %2122 = vmatpush1.bf16.msra.mxu0 0
      %2123 = vmatprep.mubr.bf16.mxu0 0
      %2124 = vmatmul.mubr.bf16.gmra.mrb[0].mxu0 %v2041
      %v2125 = vpop.f32.mrb[0].mxu0
      %v2126 = vadd.f32 0.0, %v2125
      %v2127 = vpop.f32.mrb[0].mxu0
      %v2128 = vpop.f32.mrb[0].mxu0
      %v2129 = vadd.f32 0.0, %v2128
      %v2130 = vpop.f32.mrb[0].mxu0
      %2131 = vmatprep.mubr.bf16.mxu0 0
      %2132 = vmatmul.mubr.bf16.gmra.mrb[0].mxu0 %v2044
      %v2133 = vpop.f32.mrb[0].mxu0
      %v2134 = vadd.f32 0.0, %v2133
      %v2135 = vpop.f32.mrb[0].mxu0
      %v2136 = vpop.f32.mrb[0].mxu0
      %v2137 = vadd.f32 0.0, %v2136
      %v2138 = vpop.f32.mrb[0].mxu0
      %2139 = vmatprep.mubr.bf16.mxu0 0
      %2140 = vmatmul.mubr.bf16.gmra.mrb[0].mxu0 %v2047
      %v2141 = vpop.f32.mrb[0].mxu0
      %v2142 = vadd.f32 0.0, %v2141
      %v2143 = vpop.f32.mrb[0].mxu0
      %v2144 = vpop.f32.mrb[0].mxu0
      %v2145 = vadd.f32 0.0, %v2144
      %v2146 = vpop.f32.mrb[0].mxu0
      %2147 = vmatprep.mubr.bf16.mxu0 0
      %2148 = vmatmul.mubr.bf16.gmra.mrb[0].mxu0 %v2050
      %v2149 = vpop.f32.mrb[0].mxu0
      %v2150 = vadd.f32 0.0, %v2149
      %v2151 = vpop.f32.mrb[0].mxu0
      %v2152 = vpop.f32.mrb[0].mxu0
      %v2153 = vadd.f32 0.0, %v2152
      %v2154 = vpop.f32.mrb[0].mxu0
      %2155 = vmatprep.mubr.bf16.mxu0 0
      %2156 = vmatmul.mubr.bf16.gmra.mrb[0].mxu0 %v2053
      %v2157 = vpop.f32.mrb[0].mxu0
      %v2158 = vadd.f32 0.0, %v2157
      %v2159 = vpop.f32.mrb[0].mxu0
      %v2160 = vpop.f32.mrb[0].mxu0
      %v2161 = vadd.f32 0.0, %v2160
      %v2162 = vpop.f32.mrb[0].mxu0
      %2163 = vmatprep.mubr.bf16.mxu0 0
      %2164 = vmatmul.mubr.bf16.gmra.mrb[0].mxu0 %v2056
      %v2165 = vpop.f32.mrb[0].mxu0
      %v2166 = vadd.f32 0.0, %v2165
      %v2167 = vpop.f32.mrb[0].mxu0
      %v2168 = vpop.f32.mrb[0].mxu0
      %v2169 = vadd.f32 0.0, %v2168
      %v2170 = vpop.f32.mrb[0].mxu0
      %2171 = vmatprep.mubr.bf16.mxu0 0
      %2172 = vmatmul.mubr.bf16.gmra.mrb[0].mxu0 %v2059
      %v2173 = vpop.f32.mrb[0].mxu0
      %v2174 = vadd.f32 0.0, %v2173
      %v2175 = vpop.f32.mrb[0].mxu0
      %v2176 = vpop.f32.mrb[0].mxu0
      %v2177 = vadd.f32 0.0, %v2176
      %v2178 = vpop.f32.mrb[0].mxu0
      %2179 = vmatprep.mubr.bf16.mxu0 0
      %2180 = vmatmul.mubr.bf16.gmra.mrb[0].mxu0 %v2062
      %v2181 = vpop.f32.mrb[0].mxu0
      %v2182 = vadd.f32 0.0, %v2181
      %v2183 = vpop.f32.mrb[0].mxu0
      %v2184 = vpop.f32.mrb[0].mxu0
      %v2185 = vadd.f32 0.0, %v2184
      %v2186 = vpop.f32.mrb[0].mxu0
      %2187 = vmatprep.mubr.bf16.mxu0 0
      %2188 = vmatmul.mubr.bf16.gmra.mrb[0].mxu0 %v2065
      %v2189 = vpop.f32.mrb[0].mxu0
      %v2190 = vadd.f32 0.0, %v2189
      %v2191 = vpop.f32.mrb[0].mxu0
      %v2192 = vpop.f32.mrb[0].mxu0
      %v2193 = vadd.f32 0.0, %v2192
      %v2194 = vpop.f32.mrb[0].mxu0
      %2195 = vmatprep.mubr.bf16.mxu0 0
      %2196 = vmatmul.mubr.bf16.gmra.mrb[0].mxu0 %v2068
      %v2197 = vpop.f32.mrb[0].mxu0
      %v2198 = vadd.f32 0.0, %v2197
      %v2199 = vpop.f32.mrb[0].mxu0
      %v2200 = vpop.f32.mrb[0].mxu0
      %v2201 = vadd.f32 0.0, %v2200
      %v2202 = vpop.f32.mrb[0].mxu0
      %2203 = vmatprep.mubr.bf16.mxu0 0
      %2204 = vmatmul.mubr.bf16.gmra.mrb[0].mxu0 %v2071
      %v2205 = vpop.f32.mrb[0].mxu0
      %v2206 = vadd.f32 0.0, %v2205
      %v2207 = vpop.f32.mrb[0].mxu0
      %v2208 = vpop.f32.mrb[0].mxu0
      %v2209 = vadd.f32 0.0, %v2208
      %v2210 = vpop.f32.mrb[0].mxu0
      %2211 = vmatprep.mubr.bf16.mxu0 0
      %2212 = vmatmul.mubr.bf16.gmra.mrb[0].mxu0 %v2074
      %v2213 = vpop.f32.mrb[0].mxu0
      %v2214 = vadd.f32 0.0, %v2213
      %v2215 = vpop.f32.mrb[0].mxu0
      %v2216 = vpop.f32.mrb[0].mxu0
      %v2217 = vadd.f32 0.0, %v2216
      %v2218 = vpop.f32.mrb[0].mxu0
      %2219 = vmatprep.mubr.bf16.mxu0 0
      %2220 = vmatmul.mubr.bf16.gmra.mrb[0].mxu0 %v2077
      %v2221 = vpop.f32.mrb[0].mxu0
      %v2222 = vadd.f32 0.0, %v2221
      %v2223 = vpop.f32.mrb[0].mxu0
      %v2224 = vpop.f32.mrb[0].mxu0
      %v2225 = vadd.f32 0.0, %v2224
      %v2226 = vpop.f32.mrb[0].mxu0
      %2227 = vmatprep.mubr.bf16.mxu0 0
      %2228 = vmatmul.mubr.bf16.gmra.mrb[0].mxu0 %v2080
      %v2229 = vpop.f32.mrb[0].mxu0
      %v2230 = vadd.f32 0.0, %v2229
      %v2231 = vpop.f32.mrb[0].mxu0
      %v2232 = vpop.f32.mrb[0].mxu0
      %v2233 = vadd.f32 0.0, %v2232
      %v2234 = vpop.f32.mrb[0].mxu0
      %2235 = vmatprep.mubr.bf16.mxu0 0
      %2236 = vmatmul.mubr.bf16.gmra.mrb[0].mxu0 %v2083
      %v2237 = vpop.f32.mrb[0].mxu0
      %v2238 = vadd.f32 0.0, %v2237
      %v2239 = vpop.f32.mrb[0].mxu0
      %v2240 = vpop.f32.mrb[0].mxu0
      %v2241 = vadd.f32 0.0, %v2240
      %v2242 = vpop.f32.mrb[0].mxu0
      %2243 = vmatprep.mubr.bf16.mxu0 0
      %2244 = vmatmul.mubr.bf16.gmra.mrb[0].mxu0 %v2086
      %v2245 = vpop.f32.mrb[0].mxu0
      %v2246 = vadd.f32 0.0, %v2245
      %v2247 = vpop.f32.mrb[0].mxu0
      %v2248 = vpop.f32.mrb[0].mxu0
      %v2249 = vadd.f32 0.0, %v2248
      %v2250 = vpop.f32.mrb[0].mxu0
      %2251 = vdwg.mxu0
      %v2252 = vadd.f32 %v2006, %v2126
      %v2253 = vadd.f32 %v2007, %v2129
      %v2254 = vadd.f32 %v2008, %v2134
      %v2255 = vadd.f32 %v2009, %v2137
      %v2256 = vadd.f32 %v2010, %v2142
      %v2257 = vadd.f32 %v2011, %v2145
      %v2258 = vadd.f32 %v2012, %v2150
      %v2259 = vadd.f32 %v2013, %v2153
      %v2260 = vadd.f32 %v2014, %v2158
      %v2261 = vadd.f32 %v2015, %v2161
      %v2262 = vadd.f32 %v2016, %v2166
      %v2263 = vadd.f32 %v2017, %v2169
      %v2264 = vadd.f32 %v2018, %v2174
      %v2265 = vadd.f32 %v2019, %v2177
      %v2266 = vadd.f32 %v2020, %v2182
      %v2267 = vadd.f32 %v2021, %v2185
      %v2268 = vadd.f32 %v2022, %v2190
      %v2269 = vadd.f32 %v2023, %v2193
      %v2270 = vadd.f32 %v2024, %v2198
      %v2271 = vadd.f32 %v2025, %v2201
      %v2272 = vadd.f32 %v2026, %v2206
      %v2273 = vadd.f32 %v2027, %v2209
      %v2274 = vadd.f32 %v2028, %v2214
      %v2275 = vadd.f32 %v2029, %v2217
      %v2276 = vadd.f32 %v2030, %v2222
      %v2277 = vadd.f32 %v2031, %v2225
      %v2278 = vadd.f32 %v2032, %v2230
      %v2279 = vadd.f32 %v2033, %v2233
      %v2280 = vadd.f32 %v2034, %v2238
      %v2281 = vadd.f32 %v2035, %v2241
      %v2282 = vadd.f32 %v2036, %v2246
      %v2283 = vadd.f32 %v2037, %v2249
      %2284 = vst.msk [vmem:[#allocation3] sm:$0xff] %vm305, %v2252
      %2285 = vst.msk [vmem:[#allocation3 + $0x8] sm:$0xff] %vm305, %v2253
      %2286 = vst.msk [vmem:[#allocation3 + $0x10] sm:$0xff] %vm305, %v2254
      %2287 = vst.msk [vmem:[#allocation3 + $0x18] sm:$0xff] %vm305, %v2255
      %2288 = vst.msk [vmem:[#allocation3 + $0x20] sm:$0xff] %vm305, %v2256
      %2289 = vst.msk [vmem:[#allocation3 + $0x28] sm:$0xff] %vm305, %v2257
      %2290 = vst.msk [vmem:[#allocation3 + $0x30] sm:$0xff] %vm305, %v2258
      %2291 = vst.msk [vmem:[#allocation3 + $0x38] sm:$0xff] %vm305, %v2259
      %2292 = vst.msk [vmem:[#allocation3 + $0x40] sm:$0xff] %vm305, %v2260
      %2293 = vst.msk [vmem:[#allocation3 + $0x48] sm:$0xff] %vm305, %v2261
      %2294 = vst.msk [vmem:[#allocation3 + $0x50] sm:$0xff] %vm305, %v2262
      %2295 = vst.msk [vmem:[#allocation3 + $0x58] sm:$0xff] %vm305, %v2263
      %2296 = vst.msk [vmem:[#allocation3 + $0x60] sm:$0xff] %vm305, %v2264
      %2297 = vst.msk [vmem:[#allocation3 + $0x68] sm:$0xff] %vm305, %v2265
      %2298 = vst.msk [vmem:[#allocation3 + $0x70] sm:$0xff] %vm305, %v2266
      %2299 = vst.msk [vmem:[#allocation3 + $0x78] sm:$0xff] %vm305, %v2267
      %2300 = vst.msk [vmem:[#allocation3 + $0x80] sm:$0xff] %vm305, %v2268
      %2301 = vst.msk [vmem:[#allocation3 + $0x88] sm:$0xff] %vm305, %v2269
      %2302 = vst.msk [vmem:[#allocation3 + $0x90] sm:$0xff] %vm305, %v2270
      %2303 = vst.msk [vmem:[#allocation3 + $0x98] sm:$0xff] %vm305, %v2271
      %2304 = vst.msk [vmem:[#allocation3 + $0xa0] sm:$0xff] %vm305, %v2272
      %2305 = vst.msk [vmem:[#allocation3 + $0xa8] sm:$0xff] %vm305, %v2273
      %2306 = vst.msk [vmem:[#allocation3 + $0xb0] sm:$0xff] %vm305, %v2274
      %2307 = vst.msk [vmem:[#allocation3 + $0xb8] sm:$0xff] %vm305, %v2275
      %2308 = vst.msk [vmem:[#allocation3 + $0xc0] sm:$0xff] %vm305, %v2276
      %2309 = vst.msk [vmem:[#allocation3 + $0xc8] sm:$0xff] %vm305, %v2277
      %2310 = vst.msk [vmem:[#allocation3 + $0xd0] sm:$0xff] %vm305, %v2278
      %2311 = vst.msk [vmem:[#allocation3 + $0xd8] sm:$0xff] %vm305, %v2279
      %2312 = vst.msk [vmem:[#allocation3 + $0xe0] sm:$0xff] %vm305, %v2280
      %2313 = vst.msk [vmem:[#allocation3 + $0xe8] sm:$0xff] %vm305, %v2281
      %2314 = vst.msk [vmem:[#allocation3 + $0xf0] sm:$0xff] %vm305, %v2282
      %2315 = vst.msk [vmem:[#allocation3 + $0xf8] sm:$0xff] %vm305, %v2283
      %v2316 = vld [vmem:[%s461 + $0x2] sm:$0xff]
      %v2317 = vld [vmem:[%s461 + $0xa] sm:$0xff]
      %v2318 = vld [vmem:[%s461 + $0x1a] sm:$0xff]
      %v2319 = vld [vmem:[%s461 + $0x22] sm:$0xff]
      %v2320 = vld [vmem:[%s461 + $0x32] sm:$0xff]
      %v2321 = vld [vmem:[%s461 + $0x3a] sm:$0xff]
      %v2322 = vld [vmem:[%s461 + $0x4a] sm:$0xff]
      %v2323 = vld [vmem:[%s461 + $0x52] sm:$0xff]
      %v2324 = vld [vmem:[%s461 + $0x62] sm:$0xff]
      %v2325 = vld [vmem:[%s461 + $0x6a] sm:$0xff]
      %v2326 = vld [vmem:[%s461 + $0x7a] sm:$0xff]
      %v2327 = vld [vmem:[%s461 + $0x82] sm:$0xff]
      %v2328 = vld [vmem:[%s461 + $0x92] sm:$0xff]
      %v2329 = vld [vmem:[%s461 + $0x9a] sm:$0xff]
      %v2330 = vld [vmem:[%s461 + $0xaa] sm:$0xff]
      %v2331 = vld [vmem:[%s461 + $0xb2] sm:$0xff]
      %v2332 = vld [vmem:[%s461 + $0xc2] sm:$0xff]
      %v2333 = vld [vmem:[%s461 + $0xca] sm:$0xff]
      %v2334 = vld [vmem:[%s461 + $0xda] sm:$0xff]
      %v2335 = vld [vmem:[%s461 + $0xe2] sm:$0xff]
      %v2336 = vld [vmem:[%s461 + $0xf2] sm:$0xff]
      %v2337 = vld [vmem:[%s461 + $0xfa] sm:$0xff]
      %v2338 = vld [vmem:[%s461 + $0x10a] sm:$0xff]
      %v2339 = vld [vmem:[%s461 + $0x112] sm:$0xff]
      %v2340 = vld [vmem:[%s461 + $0x122] sm:$0xff]
      %v2341 = vld [vmem:[%s461 + $0x12a] sm:$0xff]
      %v2342 = vld [vmem:[%s461 + $0x13a] sm:$0xff]
      %v2343 = vld [vmem:[%s461 + $0x142] sm:$0xff]
      %v2344 = vld [vmem:[%s461 + $0x152] sm:$0xff]
      %v2345 = vld [vmem:[%s461 + $0x15a] sm:$0xff]
      %v2346 = vld [vmem:[%s461 + $0x16a] sm:$0xff]
      %v2347 = vld [vmem:[%s461 + $0x172] sm:$0xff]
      %v2348 = vpack.c.bf16 %v2317, %v2316
      %v2349 = vpack.c.bf16 %v2319, %v2318
      %v2350 = vpack.c.bf16 %v2321, %v2320
      %v2351 = vpack.c.bf16 %v2323, %v2322
      %v2352 = vpack.c.bf16 %v2325, %v2324
      %v2353 = vpack.c.bf16 %v2327, %v2326
      %v2354 = vpack.c.bf16 %v2329, %v2328
      %v2355 = vpack.c.bf16 %v2331, %v2330
      %v2356 = vpack.c.bf16 %v2333, %v2332
      %v2357 = vpack.c.bf16 %v2335, %v2334
      %v2358 = vpack.c.bf16 %v2337, %v2336
      %v2359 = vpack.c.bf16 %v2339, %v2338
      %v2360 = vpack.c.bf16 %v2341, %v2340
      %v2361 = vpack.c.bf16 %v2343, %v2342
      %v2362 = vpack.c.bf16 %v2345, %v2344
      %v2363 = vpack.c.bf16 %v2347, %v2346
      %v2364 = vld [vmem:[#allocation3] sm:$0xff]
      %v2365 = vld [vmem:[#allocation3 + $0x8] sm:$0xff]
      %v2366 = vld [vmem:[#allocation3 + $0x10] sm:$0xff]
      %v2367 = vld [vmem:[#allocation3 + $0x18] sm:$0xff]
      %v2368 = vld [vmem:[#allocation3 + $0x20] sm:$0xff]
      %v2369 = vld [vmem:[#allocation3 + $0x28] sm:$0xff]
      %v2370 = vld [vmem:[#allocation3 + $0x30] sm:$0xff]
      %v2371 = vld [vmem:[#allocation3 + $0x38] sm:$0xff]
      %v2372 = vld [vmem:[#allocation3 + $0x40] sm:$0xff]
      %v2373 = vld [vmem:[#allocation3 + $0x48] sm:$0xff]
      %v2374 = vld [vmem:[#allocation3 + $0x50] sm:$0xff]
      %v2375 = vld [vmem:[#allocation3 + $0x58] sm:$0xff]
      %v2376 = vld [vmem:[#allocation3 + $0x60] sm:$0xff]
      %v2377 = vld [vmem:[#allocation3 + $0x68] sm:$0xff]
      %v2378 = vld [vmem:[#allocation3 + $0x70] sm:$0xff]
      %v2379 = vld [vmem:[#allocation3 + $0x78] sm:$0xff]
      %v2380 = vld [vmem:[#allocation3 + $0x80] sm:$0xff]
      %v2381 = vld [vmem:[#allocation3 + $0x88] sm:$0xff]
      %v2382 = vld [vmem:[#allocation3 + $0x90] sm:$0xff]
      %v2383 = vld [vmem:[#allocation3 + $0x98] sm:$0xff]
      %v2384 = vld [vmem:[#allocation3 + $0xa0] sm:$0xff]
      %v2385 = vld [vmem:[#allocation3 + $0xa8] sm:$0xff]
      %v2386 = vld [vmem:[#allocation3 + $0xb0] sm:$0xff]
      %v2387 = vld [vmem:[#allocation3 + $0xb8] sm:$0xff]
      %v2388 = vld [vmem:[#allocation3 + $0xc0] sm:$0xff]
      %v2389 = vld [vmem:[#allocation3 + $0xc8] sm:$0xff]
      %v2390 = vld [vmem:[#allocation3 + $0xd0] sm:$0xff]
      %v2391 = vld [vmem:[#allocation3 + $0xd8] sm:$0xff]
      %v2392 = vld [vmem:[#allocation3 + $0xe0] sm:$0xff]
      %v2393 = vld [vmem:[#allocation3 + $0xe8] sm:$0xff]
      %v2394 = vld [vmem:[#allocation3 + $0xf0] sm:$0xff]
      %v2395 = vld [vmem:[#allocation3 + $0xf8] sm:$0xff]
      %s2396 = scalar_lea.vmem %s3, 20
      %v2397 = vld [vmem:[%s2396] sm:$0xf]
      %v2399 = vsel %vm305, %v2348, 0
      %v2402 = vsel %vm305, %v2349, 0
      %v2405 = vsel %vm305, %v2350, 0
      %v2408 = vsel %vm305, %v2351, 0
      %v2411 = vsel %vm305, %v2352, 0
      %v2414 = vsel %vm305, %v2353, 0
      %v2417 = vsel %vm305, %v2354, 0
      %v2420 = vsel %vm305, %v2355, 0
      %v2423 = vsel %vm305, %v2356, 0
      %v2426 = vsel %vm305, %v2357, 0
      %v2429 = vsel %vm305, %v2358, 0
      %v2432 = vsel %vm305, %v2359, 0
      %v2435 = vsel %vm305, %v2360, 0
      %v2438 = vsel %vm305, %v2361, 0
      %v2441 = vsel %vm305, %v2362, 0
      %v2444 = vsel %vm305, %v2363, 0
      %v2447 = vsel %vm655, %v2397, 0
      %2449 = vmatprep.subr.bf16.mxu0 0
      %2450 = vmatpush1.bf16.msra.mxu0 %v2447
      %2451 = vmatprep.subr.bf16.mxu0 0
      %2452 = vmatpush1.bf16.msra.mxu0 0
      %2453 = vmatprep.subr.bf16.mxu0 0
      %2454 = vmatpush1.bf16.msra.mxu0 0
      %2455 = vmatprep.subr.bf16.mxu0 0
      %2456 = vmatpush1.bf16.msra.mxu0 0
      %2457 = vmatprep.subr.bf16.mxu0 0
      %2458 = vmatpush1.bf16.msra.mxu0 0
      %2459 = vmatprep.subr.bf16.mxu0 0
      %2460 = vmatpush1.bf16.msra.mxu0 0
      %2461 = vmatprep.subr.bf16.mxu0 0
      %2462 = vmatpush1.bf16.msra.mxu0 0
      %2463 = vmatprep.subr.bf16.mxu0 0
      %2464 = vmatpush1.bf16.msra.mxu0 0
      %2465 = vmatprep.subr.bf16.mxu0 0
      %2466 = vmatpush1.bf16.msra.mxu0 0
      %2467 = vmatprep.subr.bf16.mxu0 0
      %2468 = vmatpush1.bf16.msra.mxu0 0
      %2469 = vmatprep.subr.bf16.mxu0 0
      %2470 = vmatpush1.bf16.msra.mxu0 0
      %2471 = vmatprep.subr.bf16.mxu0 0
      %2472 = vmatpush1.bf16.msra.mxu0 0
      %2473 = vmatprep.subr.bf16.mxu0 0
      %2474 = vmatpush1.bf16.msra.mxu0 0
      %2475 = vmatprep.subr.bf16.mxu0 0
      %2476 = vmatpush1.bf16.msra.mxu0 0
      %2477 = vmatprep.subr.bf16.mxu0 0
      %2478 = vmatpush1.bf16.msra.mxu0 0
      %2479 = vmatprep.subr.bf16.mxu0 0
      %2480 = vmatpush1.bf16.msra.mxu0 0
      %2481 = vmatprep.mubr.bf16.mxu0 0
      %2482 = vmatmul.mubr.bf16.gmra.mrb[0].mxu0 %v2399
      %v2483 = vpop.f32.mrb[0].mxu0
      %v2484 = vadd.f32 0.0, %v2483
      %v2485 = vpop.f32.mrb[0].mxu0
      %v2486 = vpop.f32.mrb[0].mxu0
      %v2487 = vadd.f32 0.0, %v2486
      %v2488 = vpop.f32.mrb[0].mxu0
      %2489 = vmatprep.mubr.bf16.mxu0 0
      %2490 = vmatmul.mubr.bf16.gmra.mrb[0].mxu0 %v2402
      %v2491 = vpop.f32.mrb[0].mxu0
      %v2492 = vadd.f32 0.0, %v2491
      %v2493 = vpop.f32.mrb[0].mxu0
      %v2494 = vpop.f32.mrb[0].mxu0
      %v2495 = vadd.f32 0.0, %v2494
      %v2496 = vpop.f32.mrb[0].mxu0
      %2497 = vmatprep.mubr.bf16.mxu0 0
      %2498 = vmatmul.mubr.bf16.gmra.mrb[0].mxu0 %v2405
      %v2499 = vpop.f32.mrb[0].mxu0
      %v2500 = vadd.f32 0.0, %v2499
      %v2501 = vpop.f32.mrb[0].mxu0
      %v2502 = vpop.f32.mrb[0].mxu0
      %v2503 = vadd.f32 0.0, %v2502
      %v2504 = vpop.f32.mrb[0].mxu0
      %2505 = vmatprep.mubr.bf16.mxu0 0
      %2506 = vmatmul.mubr.bf16.gmra.mrb[0].mxu0 %v2408
      %v2507 = vpop.f32.mrb[0].mxu0
      %v2508 = vadd.f32 0.0, %v2507
      %v2509 = vpop.f32.mrb[0].mxu0
      %v2510 = vpop.f32.mrb[0].mxu0
      %v2511 = vadd.f32 0.0, %v2510
      %v2512 = vpop.f32.mrb[0].mxu0
      %2513 = vmatprep.mubr.bf16.mxu0 0
      %2514 = vmatmul.mubr.bf16.gmra.mrb[0].mxu0 %v2411
      %v2515 = vpop.f32.mrb[0].mxu0
      %v2516 = vadd.f32 0.0, %v2515
      %v2517 = vpop.f32.mrb[0].mxu0
      %v2518 = vpop.f32.mrb[0].mxu0
      %v2519 = vadd.f32 0.0, %v2518
      %v2520 = vpop.f32.mrb[0].mxu0
      %2521 = vmatprep.mubr.bf16.mxu0 0
      %2522 = vmatmul.mubr.bf16.gmra.mrb[0].mxu0 %v2414
      %v2523 = vpop.f32.mrb[0].mxu0
      %v2524 = vadd.f32 0.0, %v2523
      %v2525 = vpop.f32.mrb[0].mxu0
      %v2526 = vpop.f32.mrb[0].mxu0
      %v2527 = vadd.f32 0.0, %v2526
      %v2528 = vpop.f32.mrb[0].mxu0
      %2529 = vmatprep.mubr.bf16.mxu0 0
      %2530 = vmatmul.mubr.bf16.gmra.mrb[0].mxu0 %v2417
      %v2531 = vpop.f32.mrb[0].mxu0
      %v2532 = vadd.f32 0.0, %v2531
      %v2533 = vpop.f32.mrb[0].mxu0
      %v2534 = vpop.f32.mrb[0].mxu0
      %v2535 = vadd.f32 0.0, %v2534
      %v2536 = vpop.f32.mrb[0].mxu0
      %2537 = vmatprep.mubr.bf16.mxu0 0
      %2538 = vmatmul.mubr.bf16.gmra.mrb[0].mxu0 %v2420
      %v2539 = vpop.f32.mrb[0].mxu0
      %v2540 = vadd.f32 0.0, %v2539
      %v2541 = vpop.f32.mrb[0].mxu0
      %v2542 = vpop.f32.mrb[0].mxu0
      %v2543 = vadd.f32 0.0, %v2542
      %v2544 = vpop.f32.mrb[0].mxu0
      %2545 = vmatprep.mubr.bf16.mxu0 0
      %2546 = vmatmul.mubr.bf16.gmra.mrb[0].mxu0 %v2423
      %v2547 = vpop.f32.mrb[0].mxu0
      %v2548 = vadd.f32 0.0, %v2547
      %v2549 = vpop.f32.mrb[0].mxu0
      %v2550 = vpop.f32.mrb[0].mxu0
      %v2551 = vadd.f32 0.0, %v2550
      %v2552 = vpop.f32.mrb[0].mxu0
      %2553 = vmatprep.mubr.bf16.mxu0 0
      %2554 = vmatmul.mubr.bf16.gmra.mrb[0].mxu0 %v2426
      %v2555 = vpop.f32.mrb[0].mxu0
      %v2556 = vadd.f32 0.0, %v2555
      %v2557 = vpop.f32.mrb[0].mxu0
      %v2558 = vpop.f32.mrb[0].mxu0
      %v2559 = vadd.f32 0.0, %v2558
      %v2560 = vpop.f32.mrb[0].mxu0
      %2561 = vmatprep.mubr.bf16.mxu0 0
      %2562 = vmatmul.mubr.bf16.gmra.mrb[0].mxu0 %v2429
      %v2563 = vpop.f32.mrb[0].mxu0
      %v2564 = vadd.f32 0.0, %v2563
      %v2565 = vpop.f32.mrb[0].mxu0
      %v2566 = vpop.f32.mrb[0].mxu0
      %v2567 = vadd.f32 0.0, %v2566
      %v2568 = vpop.f32.mrb[0].mxu0
      %2569 = vmatprep.mubr.bf16.mxu0 0
      %2570 = vmatmul.mubr.bf16.gmra.mrb[0].mxu0 %v2432
      %v2571 = vpop.f32.mrb[0].mxu0
      %v2572 = vadd.f32 0.0, %v2571
      %v2573 = vpop.f32.mrb[0].mxu0
      %v2574 = vpop.f32.mrb[0].mxu0
      %v2575 = vadd.f32 0.0, %v2574
      %v2576 = vpop.f32.mrb[0].mxu0
      %2577 = vmatprep.mubr.bf16.mxu0 0
      %2578 = vmatmul.mubr.bf16.gmra.mrb[0].mxu0 %v2435
      %v2579 = vpop.f32.mrb[0].mxu0
      %v2580 = vadd.f32 0.0, %v2579
      %v2581 = vpop.f32.mrb[0].mxu0
      %v2582 = vpop.f32.mrb[0].mxu0
      %v2583 = vadd.f32 0.0, %v2582
      %v2584 = vpop.f32.mrb[0].mxu0
      %2585 = vmatprep.mubr.bf16.mxu0 0
      %2586 = vmatmul.mubr.bf16.gmra.mrb[0].mxu0 %v2438
      %v2587 = vpop.f32.mrb[0].mxu0
      %v2588 = vadd.f32 0.0, %v2587
      %v2589 = vpop.f32.mrb[0].mxu0
      %v2590 = vpop.f32.mrb[0].mxu0
      %v2591 = vadd.f32 0.0, %v2590
      %v2592 = vpop.f32.mrb[0].mxu0
      %2593 = vmatprep.mubr.bf16.mxu0 0
      %2594 = vmatmul.mubr.bf16.gmra.mrb[0].mxu0 %v2441
      %v2595 = vpop.f32.mrb[0].mxu0
      %v2596 = vadd.f32 0.0, %v2595
      %v2597 = vpop.f32.mrb[0].mxu0
      %v2598 = vpop.f32.mrb[0].mxu0
      %v2599 = vadd.f32 0.0, %v2598
      %v2600 = vpop.f32.mrb[0].mxu0
      %2601 = vmatprep.mubr.bf16.mxu0 0
      %2602 = vmatmul.mubr.bf16.gmra.mrb[0].mxu0 %v2444
      %v2603 = vpop.f32.mrb[0].mxu0
      %v2604 = vadd.f32 0.0, %v2603
      %v2605 = vpop.f32.mrb[0].mxu0
      %v2606 = vpop.f32.mrb[0].mxu0
      %v2607 = vadd.f32 0.0, %v2606
      %v2608 = vpop.f32.mrb[0].mxu0
      %2609 = vdwg.mxu0
      %v2610 = vadd.f32 %v2364, %v2484
      %v2611 = vadd.f32 %v2365, %v2487
      %v2612 = vadd.f32 %v2366, %v2492
      %v2613 = vadd.f32 %v2367, %v2495
      %v2614 = vadd.f32 %v2368, %v2500
      %v2615 = vadd.f32 %v2369, %v2503
      %v2616 = vadd.f32 %v2370, %v2508
      %v2617 = vadd.f32 %v2371, %v2511
      %v2618 = vadd.f32 %v2372, %v2516
      %v2619 = vadd.f32 %v2373, %v2519
      %v2620 = vadd.f32 %v2374, %v2524
      %v2621 = vadd.f32 %v2375, %v2527
      %v2622 = vadd.f32 %v2376, %v2532
      %v2623 = vadd.f32 %v2377, %v2535
      %v2624 = vadd.f32 %v2378, %v2540
      %v2625 = vadd.f32 %v2379, %v2543
      %v2626 = vadd.f32 %v2380, %v2548
      %v2627 = vadd.f32 %v2381, %v2551
      %v2628 = vadd.f32 %v2382, %v2556
      %v2629 = vadd.f32 %v2383, %v2559
      %v2630 = vadd.f32 %v2384, %v2564
      %v2631 = vadd.f32 %v2385, %v2567
      %v2632 = vadd.f32 %v2386, %v2572
      %v2633 = vadd.f32 %v2387, %v2575
      %v2634 = vadd.f32 %v2388, %v2580
      %v2635 = vadd.f32 %v2389, %v2583
      %v2636 = vadd.f32 %v2390, %v2588
      %v2637 = vadd.f32 %v2391, %v2591
      %v2638 = vadd.f32 %v2392, %v2596
      %v2639 = vadd.f32 %v2393, %v2599
      %v2640 = vadd.f32 %v2394, %v2604
      %v2641 = vadd.f32 %v2395, %v2607
      %2642 = vst.msk [vmem:[#allocation3] sm:$0xff] %vm305, %v2610
      %2643 = vst.msk [vmem:[#allocation3 + $0x8] sm:$0xff] %vm305, %v2611
      %2644 = vst.msk [vmem:[#allocation3 + $0x10] sm:$0xff] %vm305, %v2612
      %2645 = vst.msk [vmem:[#allocation3 + $0x18] sm:$0xff] %vm305, %v2613
      %2646 = vst.msk [vmem:[#allocation3 + $0x20] sm:$0xff] %vm305, %v2614
      %2647 = vst.msk [vmem:[#allocation3 + $0x28] sm:$0xff] %vm305, %v2615
      %2648 = vst.msk [vmem:[#allocation3 + $0x30] sm:$0xff] %vm305, %v2616
      %2649 = vst.msk [vmem:[#allocation3 + $0x38] sm:$0xff] %vm305, %v2617
      %2650 = vst.msk [vmem:[#allocation3 + $0x40] sm:$0xff] %vm305, %v2618
      %2651 = vst.msk [vmem:[#allocation3 + $0x48] sm:$0xff] %vm305, %v2619
      %2652 = vst.msk [vmem:[#allocation3 + $0x50] sm:$0xff] %vm305, %v2620
      %2653 = vst.msk [vmem:[#allocation3 + $0x58] sm:$0xff] %vm305, %v2621
      %2654 = vst.msk [vmem:[#allocation3 + $0x60] sm:$0xff] %vm305, %v2622
      %2655 = vst.msk [vmem:[#allocation3 + $0x68] sm:$0xff] %vm305, %v2623
      %2656 = vst.msk [vmem:[#allocation3 + $0x70] sm:$0xff] %vm305, %v2624
      %2657 = vst.msk [vmem:[#allocation3 + $0x78] sm:$0xff] %vm305, %v2625
      %2658 = vst.msk [vmem:[#allocation3 + $0x80] sm:$0xff] %vm305, %v2626
      %2659 = vst.msk [vmem:[#allocation3 + $0x88] sm:$0xff] %vm305, %v2627
      %2660 = vst.msk [vmem:[#allocation3 + $0x90] sm:$0xff] %vm305, %v2628
      %2661 = vst.msk [vmem:[#allocation3 + $0x98] sm:$0xff] %vm305, %v2629
      %2662 = vst.msk [vmem:[#allocation3 + $0xa0] sm:$0xff] %vm305, %v2630
      %2663 = vst.msk [vmem:[#allocation3 + $0xa8] sm:$0xff] %vm305, %v2631
      %2664 = vst.msk [vmem:[#allocation3 + $0xb0] sm:$0xff] %vm305, %v2632
      %2665 = vst.msk [vmem:[#allocation3 + $0xb8] sm:$0xff] %vm305, %v2633
      %2666 = vst.msk [vmem:[#allocation3 + $0xc0] sm:$0xff] %vm305, %v2634
      %2667 = vst.msk [vmem:[#allocation3 + $0xc8] sm:$0xff] %vm305, %v2635
      %2668 = vst.msk [vmem:[#allocation3 + $0xd0] sm:$0xff] %vm305, %v2636
      %2669 = vst.msk [vmem:[#allocation3 + $0xd8] sm:$0xff] %vm305, %v2637
      %2670 = vst.msk [vmem:[#allocation3 + $0xe0] sm:$0xff] %vm305, %v2638
      %2671 = vst.msk [vmem:[#allocation3 + $0xe8] sm:$0xff] %vm305, %v2639
      %2672 = vst.msk [vmem:[#allocation3 + $0xf0] sm:$0xff] %vm305, %v2640
      %2673 = vst.msk [vmem:[#allocation3 + $0xf8] sm:$0xff] %vm305, %v2641
      %s2674 = scalar_lea.vmem [#allocation2], 48
      %v2675 = vld [vmem:[%s2674] sm:$0xff]
      %v2676 = vld [vmem:[%s2674 + $0x8] sm:$0xff]
      %v2677 = vld [vmem:[%s2674 + $0x18] sm:$0xff]
      %v2678 = vld [vmem:[%s2674 + $0x20] sm:$0xff]
      %v2679 = vld [vmem:[%s2674 + $0x30] sm:$0xff]
      %v2680 = vld [vmem:[%s2674 + $0x38] sm:$0xff]
      %v2681 = vld [vmem:[%s2674 + $0x48] sm:$0xff]
      %v2682 = vld [vmem:[%s2674 + $0x50] sm:$0xff]
      %v2683 = vld [vmem:[%s2674 + $0x60] sm:$0xff]
      %v2684 = vld [vmem:[%s2674 + $0x68] sm:$0xff]
      %v2685 = vld [vmem:[%s2674 + $0x78] sm:$0xff]
      %v2686 = vld [vmem:[%s2674 + $0x80] sm:$0xff]
      %v2687 = vld [vmem:[%s2674 + $0x90] sm:$0xff]
      %v2688 = vld [vmem:[%s2674 + $0x98] sm:$0xff]
      %v2689 = vld [vmem:[%s2674 + $0xa8] sm:$0xff]
      %v2690 = vld [vmem:[%s2674 + $0xb0] sm:$0xff]
      %v2691 = vld [vmem:[%s2674 + $0xc0] sm:$0xff]
      %v2692 = vld [vmem:[%s2674 + $0xc8] sm:$0xff]
      %v2693 = vld [vmem:[%s2674 + $0xd8] sm:$0xff]
      %v2694 = vld [vmem:[%s2674 + $0xe0] sm:$0xff]
      %v2695 = vld [vmem:[%s2674 + $0xf0] sm:$0xff]
      %v2696 = vld [vmem:[%s2674 + $0xf8] sm:$0xff]
      %v2697 = vld [vmem:[%s2674 + $0x108] sm:$0xff]
      %v2698 = vld [vmem:[%s2674 + $0x110] sm:$0xff]
      %v2699 = vld [vmem:[%s2674 + $0x120] sm:$0xff]
      %v2700 = vld [vmem:[%s2674 + $0x128] sm:$0xff]
      %v2701 = vld [vmem:[%s2674 + $0x138] sm:$0xff]
      %v2702 = vld [vmem:[%s2674 + $0x140] sm:$0xff]
      %v2703 = vld [vmem:[%s2674 + $0x150] sm:$0xff]
      %v2704 = vld [vmem:[%s2674 + $0x158] sm:$0xff]
      %v2705 = vld [vmem:[%s2674 + $0x168] sm:$0xff]
      %v2706 = vld [vmem:[%s2674 + $0x170] sm:$0xff]
      %v2707 = vpack.c.bf16 %v2676, %v2675
      %v2708 = vpack.c.bf16 %v2678, %v2677
      %v2709 = vpack.c.bf16 %v2680, %v2679
      %v2710 = vpack.c.bf16 %v2682, %v2681
      %v2711 = vpack.c.bf16 %v2684, %v2683
      %v2712 = vpack.c.bf16 %v2686, %v2685
      %v2713 = vpack.c.bf16 %v2688, %v2687
      %v2714 = vpack.c.bf16 %v2690, %v2689
      %v2715 = vpack.c.bf16 %v2692, %v2691
      %v2716 = vpack.c.bf16 %v2694, %v2693
      %v2717 = vpack.c.bf16 %v2696, %v2695
      %v2718 = vpack.c.bf16 %v2698, %v2697
      %v2719 = vpack.c.bf16 %v2700, %v2699
      %v2720 = vpack.c.bf16 %v2702, %v2701
      %v2721 = vpack.c.bf16 %v2704, %v2703
      %v2722 = vpack.c.bf16 %v2706, %v2705
      %v2723 = vld [vmem:[#allocation3] sm:$0xff]
      %v2724 = vld [vmem:[#allocation3 + $0x8] sm:$0xff]
      %v2725 = vld [vmem:[#allocation3 + $0x10] sm:$0xff]
      %v2726 = vld [vmem:[#allocation3 + $0x18] sm:$0xff]
      %v2727 = vld [vmem:[#allocation3 + $0x20] sm:$0xff]
      %v2728 = vld [vmem:[#allocation3 + $0x28] sm:$0xff]
      %v2729 = vld [vmem:[#allocation3 + $0x30] sm:$0xff]
      %v2730 = vld [vmem:[#allocation3 + $0x38] sm:$0xff]
      %v2731 = vld [vmem:[#allocation3 + $0x40] sm:$0xff]
      %v2732 = vld [vmem:[#allocation3 + $0x48] sm:$0xff]
      %v2733 = vld [vmem:[#allocation3 + $0x50] sm:$0xff]
      %v2734 = vld [vmem:[#allocation3 + $0x58] sm:$0xff]
      %v2735 = vld [vmem:[#allocation3 + $0x60] sm:$0xff]
      %v2736 = vld [vmem:[#allocation3 + $0x68] sm:$0xff]
      %v2737 = vld [vmem:[#allocation3 + $0x70] sm:$0xff]
      %v2738 = vld [vmem:[#allocation3 + $0x78] sm:$0xff]
      %v2739 = vld [vmem:[#allocation3 + $0x80] sm:$0xff]
      %v2740 = vld [vmem:[#allocation3 + $0x88] sm:$0xff]
      %v2741 = vld [vmem:[#allocation3 + $0x90] sm:$0xff]
      %v2742 = vld [vmem:[#allocation3 + $0x98] sm:$0xff]
      %v2743 = vld [vmem:[#allocation3 + $0xa0] sm:$0xff]
      %v2744 = vld [vmem:[#allocation3 + $0xa8] sm:$0xff]
      %v2745 = vld [vmem:[#allocation3 + $0xb0] sm:$0xff]
      %v2746 = vld [vmem:[#allocation3 + $0xb8] sm:$0xff]
      %v2747 = vld [vmem:[#allocation3 + $0xc0] sm:$0xff]
      %v2748 = vld [vmem:[#allocation3 + $0xc8] sm:$0xff]
      %v2749 = vld [vmem:[#allocation3 + $0xd0] sm:$0xff]
      %v2750 = vld [vmem:[#allocation3 + $0xd8] sm:$0xff]
      %v2751 = vld [vmem:[#allocation3 + $0xe0] sm:$0xff]
      %v2752 = vld [vmem:[#allocation3 + $0xe8] sm:$0xff]
      %v2753 = vld [vmem:[#allocation3 + $0xf0] sm:$0xff]
      %v2754 = vld [vmem:[#allocation3 + $0xf8] sm:$0xff]
      %s2755 = scalar_lea.vmem %s3, 24
      %v2756 = vld [vmem:[%s2755] sm:$0xf]
      %v2758 = vsel %vm305, %v2707, 0
      %v2761 = vsel %vm305, %v2708, 0
      %v2764 = vsel %vm305, %v2709, 0
      %v2767 = vsel %vm305, %v2710, 0
      %v2770 = vsel %vm305, %v2711, 0
      %v2773 = vsel %vm305, %v2712, 0
      %v2776 = vsel %vm305, %v2713, 0
      %v2779 = vsel %vm305, %v2714, 0
      %v2782 = vsel %vm305, %v2715, 0
      %v2785 = vsel %vm305, %v2716, 0
      %v2788 = vsel %vm305, %v2717, 0
      %v2791 = vsel %vm305, %v2718, 0
      %v2794 = vsel %vm305, %v2719, 0
      %v2797 = vsel %vm305, %v2720, 0
      %v2800 = vsel %vm305, %v2721, 0
      %v2803 = vsel %vm305, %v2722, 0
      %v2806 = vsel %vm655, %v2756, 0
      %2808 = vmatprep.subr.bf16.mxu0 0
      %2809 = vmatpush1.bf16.msra.mxu0 %v2806
      %2810 = vmatprep.subr.bf16.mxu0 0
      %2811 = vmatpush1.bf16.msra.mxu0 0
      %2812 = vmatprep.subr.bf16.mxu0 0
      %2813 = vmatpush1.bf16.msra.mxu0 0
      %2814 = vmatprep.subr.bf16.mxu0 0
      %2815 = vmatpush1.bf16.msra.mxu0 0
      %2816 = vmatprep.subr.bf16.mxu0 0
      %2817 = vmatpush1.bf16.msra.mxu0 0
      %2818 = vmatprep.subr.bf16.mxu0 0
      %2819 = vmatpush1.bf16.msra.mxu0 0
      %2820 = vmatprep.subr.bf16.mxu0 0
      %2821 = vmatpush1.bf16.msra.mxu0 0
      %2822 = vmatprep.subr.bf16.mxu0 0
      %2823 = vmatpush1.bf16.msra.mxu0 0
      %2824 = vmatprep.subr.bf16.mxu0 0
      %2825 = vmatpush1.bf16.msra.mxu0 0
      %2826 = vmatprep.subr.bf16.mxu0 0
      %2827 = vmatpush1.bf16.msra.mxu0 0
      %2828 = vmatprep.subr.bf16.mxu0 0
      %2829 = vmatpush1.bf16.msra.mxu0 0
      %2830 = vmatprep.subr.bf16.mxu0 0
      %2831 = vmatpush1.bf16.msra.mxu0 0
      %2832 = vmatprep.subr.bf16.mxu0 0
      %2833 = vmatpush1.bf16.msra.mxu0 0
      %2834 = vmatprep.subr.bf16.mxu0 0
      %2835 = vmatpush1.bf16.msra.mxu0 0
      %2836 = vmatprep.subr.bf16.mxu0 0
      %2837 = vmatpush1.bf16.msra.mxu0 0
      %2838 = vmatprep.subr.bf16.mxu0 0
      %2839 = vmatpush1.bf16.msra.mxu0 0
      %2840 = vmatprep.mubr.bf16.mxu0 0
      %2841 = vmatmul.mubr.bf16.gmra.mrb[0].mxu0 %v2758
      %v2842 = vpop.f32.mrb[0].mxu0
      %v2843 = vadd.f32 0.0, %v2842
      %v2844 = vpop.f32.mrb[0].mxu0
      %v2845 = vpop.f32.mrb[0].mxu0
      %v2846 = vadd.f32 0.0, %v2845
      %v2847 = vpop.f32.mrb[0].mxu0
      %2848 = vmatprep.mubr.bf16.mxu0 0
      %2849 = vmatmul.mubr.bf16.gmra.mrb[0].mxu0 %v2761
      %v2850 = vpop.f32.mrb[0].mxu0
      %v2851 = vadd.f32 0.0, %v2850
      %v2852 = vpop.f32.mrb[0].mxu0
      %v2853 = vpop.f32.mrb[0].mxu0
      %v2854 = vadd.f32 0.0, %v2853
      %v2855 = vpop.f32.mrb[0].mxu0
      %2856 = vmatprep.mubr.bf16.mxu0 0
      %2857 = vmatmul.mubr.bf16.gmra.mrb[0].mxu0 %v2764
      %v2858 = vpop.f32.mrb[0].mxu0
      %v2859 = vadd.f32 0.0, %v2858
      %v2860 = vpop.f32.mrb[0].mxu0
      %v2861 = vpop.f32.mrb[0].mxu0
      %v2862 = vadd.f32 0.0, %v2861
      %v2863 = vpop.f32.mrb[0].mxu0
      %2864 = vmatprep.mubr.bf16.mxu0 0
      %2865 = vmatmul.mubr.bf16.gmra.mrb[0].mxu0 %v2767
      %v2866 = vpop.f32.mrb[0].mxu0
      %v2867 = vadd.f32 0.0, %v2866
      %v2868 = vpop.f32.mrb[0].mxu0
      %v2869 = vpop.f32.mrb[0].mxu0
      %v2870 = vadd.f32 0.0, %v2869
      %v2871 = vpop.f32.mrb[0].mxu0
      %2872 = vmatprep.mubr.bf16.mxu0 0
      %2873 = vmatmul.mubr.bf16.gmra.mrb[0].mxu0 %v2770
      %v2874 = vpop.f32.mrb[0].mxu0
      %v2875 = vadd.f32 0.0, %v2874
      %v2876 = vpop.f32.mrb[0].mxu0
      %v2877 = vpop.f32.mrb[0].mxu0
      %v2878 = vadd.f32 0.0, %v2877
      %v2879 = vpop.f32.mrb[0].mxu0
      %2880 = vmatprep.mubr.bf16.mxu0 0
      %2881 = vmatmul.mubr.bf16.gmra.mrb[0].mxu0 %v2773
      %v2882 = vpop.f32.mrb[0].mxu0
      %v2883 = vadd.f32 0.0, %v2882
      %v2884 = vpop.f32.mrb[0].mxu0
      %v2885 = vpop.f32.mrb[0].mxu0
      %v2886 = vadd.f32 0.0, %v2885
      %v2887 = vpop.f32.mrb[0].mxu0
      %2888 = vmatprep.mubr.bf16.mxu0 0
      %2889 = vmatmul.mubr.bf16.gmra.mrb[0].mxu0 %v2776
      %v2890 = vpop.f32.mrb[0].mxu0
      %v2891 = vadd.f32 0.0, %v2890
      %v2892 = vpop.f32.mrb[0].mxu0
      %v2893 = vpop.f32.mrb[0].mxu0
      %v2894 = vadd.f32 0.0, %v2893
      %v2895 = vpop.f32.mrb[0].mxu0
      %2896 = vmatprep.mubr.bf16.mxu0 0
      %2897 = vmatmul.mubr.bf16.gmra.mrb[0].mxu0 %v2779
      %v2898 = vpop.f32.mrb[0].mxu0
      %v2899 = vadd.f32 0.0, %v2898
      %v2900 = vpop.f32.mrb[0].mxu0
      %v2901 = vpop.f32.mrb[0].mxu0
      %v2902 = vadd.f32 0.0, %v2901
      %v2903 = vpop.f32.mrb[0].mxu0
      %2904 = vmatprep.mubr.bf16.mxu0 0
      %2905 = vmatmul.mubr.bf16.gmra.mrb[0].mxu0 %v2782
      %v2906 = vpop.f32.mrb[0].mxu0
      %v2907 = vadd.f32 0.0, %v2906
      %v2908 = vpop.f32.mrb[0].mxu0
      %v2909 = vpop.f32.mrb[0].mxu0
      %v2910 = vadd.f32 0.0, %v2909
      %v2911 = vpop.f32.mrb[0].mxu0
      %2912 = vmatprep.mubr.bf16.mxu0 0
      %2913 = vmatmul.mubr.bf16.gmra.mrb[0].mxu0 %v2785
      %v2914 = vpop.f32.mrb[0].mxu0
      %v2915 = vadd.f32 0.0, %v2914
      %v2916 = vpop.f32.mrb[0].mxu0
      %v2917 = vpop.f32.mrb[0].mxu0
      %v2918 = vadd.f32 0.0, %v2917
      %v2919 = vpop.f32.mrb[0].mxu0
      %2920 = vmatprep.mubr.bf16.mxu0 0
      %2921 = vmatmul.mubr.bf16.gmra.mrb[0].mxu0 %v2788
      %v2922 = vpop.f32.mrb[0].mxu0
      %v2923 = vadd.f32 0.0, %v2922
      %v2924 = vpop.f32.mrb[0].mxu0
      %v2925 = vpop.f32.mrb[0].mxu0
      %v2926 = vadd.f32 0.0, %v2925
      %v2927 = vpop.f32.mrb[0].mxu0
      %2928 = vmatprep.mubr.bf16.mxu0 0
      %2929 = vmatmul.mubr.bf16.gmra.mrb[0].mxu0 %v2791
      %v2930 = vpop.f32.mrb[0].mxu0
      %v2931 = vadd.f32 0.0, %v2930
      %v2932 = vpop.f32.mrb[0].mxu0
      %v2933 = vpop.f32.mrb[0].mxu0
      %v2934 = vadd.f32 0.0, %v2933
      %v2935 = vpop.f32.mrb[0].mxu0
      %2936 = vmatprep.mubr.bf16.mxu0 0
      %2937 = vmatmul.mubr.bf16.gmra.mrb[0].mxu0 %v2794
      %v2938 = vpop.f32.mrb[0].mxu0
      %v2939 = vadd.f32 0.0, %v2938
      %v2940 = vpop.f32.mrb[0].mxu0
      %v2941 = vpop.f32.mrb[0].mxu0
      %v2942 = vadd.f32 0.0, %v2941
      %v2943 = vpop.f32.mrb[0].mxu0
      %2944 = vmatprep.mubr.bf16.mxu0 0
      %2945 = vmatmul.mubr.bf16.gmra.mrb[0].mxu0 %v2797
      %v2946 = vpop.f32.mrb[0].mxu0
      %v2947 = vadd.f32 0.0, %v2946
      %v2948 = vpop.f32.mrb[0].mxu0
      %v2949 = vpop.f32.mrb[0].mxu0
      %v2950 = vadd.f32 0.0, %v2949
      %v2951 = vpop.f32.mrb[0].mxu0
      %2952 = vmatprep.mubr.bf16.mxu0 0
      %2953 = vmatmul.mubr.bf16.gmra.mrb[0].mxu0 %v2800
      %v2954 = vpop.f32.mrb[0].mxu0
      %v2955 = vadd.f32 0.0, %v2954
      %v2956 = vpop.f32.mrb[0].mxu0
      %v2957 = vpop.f32.mrb[0].mxu0
      %v2958 = vadd.f32 0.0, %v2957
      %v2959 = vpop.f32.mrb[0].mxu0
      %2960 = vmatprep.mubr.bf16.mxu0 0
      %2961 = vmatmul.mubr.bf16.gmra.mrb[0].mxu0 %v2803
      %v2962 = vpop.f32.mrb[0].mxu0
      %v2963 = vadd.f32 0.0, %v2962
      %v2964 = vpop.f32.mrb[0].mxu0
      %v2965 = vpop.f32.mrb[0].mxu0
      %v2966 = vadd.f32 0.0, %v2965
      %v2967 = vpop.f32.mrb[0].mxu0
      %2968 = vdwg.mxu0
      %v2969 = vadd.f32 %v2723, %v2843
      %v2970 = vadd.f32 %v2724, %v2846
      %v2971 = vadd.f32 %v2725, %v2851
      %v2972 = vadd.f32 %v2726, %v2854
      %v2973 = vadd.f32 %v2727, %v2859
      %v2974 = vadd.f32 %v2728, %v2862
      %v2975 = vadd.f32 %v2729, %v2867
      %v2976 = vadd.f32 %v2730, %v2870
      %v2977 = vadd.f32 %v2731, %v2875
      %v2978 = vadd.f32 %v2732, %v2878
      %v2979 = vadd.f32 %v2733, %v2883
      %v2980 = vadd.f32 %v2734, %v2886
      %v2981 = vadd.f32 %v2735, %v2891
      %v2982 = vadd.f32 %v2736, %v2894
      %v2983 = vadd.f32 %v2737, %v2899
      %v2984 = vadd.f32 %v2738, %v2902
      %v2985 = vadd.f32 %v2739, %v2907
      %v2986 = vadd.f32 %v2740, %v2910
      %v2987 = vadd.f32 %v2741, %v2915
      %v2988 = vadd.f32 %v2742, %v2918
      %v2989 = vadd.f32 %v2743, %v2923
      %v2990 = vadd.f32 %v2744, %v2926
      %v2991 = vadd.f32 %v2745, %v2931
      %v2992 = vadd.f32 %v2746, %v2934
      %v2993 = vadd.f32 %v2747, %v2939
      %v2994 = vadd.f32 %v2748, %v2942
      %v2995 = vadd.f32 %v2749, %v2947
      %v2996 = vadd.f32 %v2750, %v2950
      %v2997 = vadd.f32 %v2751, %v2955
      %v2998 = vadd.f32 %v2752, %v2958
      %v2999 = vadd.f32 %v2753, %v2963
      %v3000 = vadd.f32 %v2754, %v2966
      %3001 = vst.msk [vmem:[#allocation3] sm:$0xff] %vm305, %v2969
      %3002 = vst.msk [vmem:[#allocation3 + $0x8] sm:$0xff] %vm305, %v2970
      %3003 = vst.msk [vmem:[#allocation3 + $0x10] sm:$0xff] %vm305, %v2971
      %3004 = vst.msk [vmem:[#allocation3 + $0x18] sm:$0xff] %vm305, %v2972
      %3005 = vst.msk [vmem:[#allocation3 + $0x20] sm:$0xff] %vm305, %v2973
      %3006 = vst.msk [vmem:[#allocation3 + $0x28] sm:$0xff] %vm305, %v2974
      %3007 = vst.msk [vmem:[#allocation3 + $0x30] sm:$0xff] %vm305, %v2975
      %3008 = vst.msk [vmem:[#allocation3 + $0x38] sm:$0xff] %vm305, %v2976
      %3009 = vst.msk [vmem:[#allocation3 + $0x40] sm:$0xff] %vm305, %v2977
      %3010 = vst.msk [vmem:[#allocation3 + $0x48] sm:$0xff] %vm305, %v2978
      %3011 = vst.msk [vmem:[#allocation3 + $0x50] sm:$0xff] %vm305, %v2979
      %3012 = vst.msk [vmem:[#allocation3 + $0x58] sm:$0xff] %vm305, %v2980
      %3013 = vst.msk [vmem:[#allocation3 + $0x60] sm:$0xff] %vm305, %v2981
      %3014 = vst.msk [vmem:[#allocation3 + $0x68] sm:$0xff] %vm305, %v2982
      %3015 = vst.msk [vmem:[#allocation3 + $0x70] sm:$0xff] %vm305, %v2983
      %3016 = vst.msk [vmem:[#allocation3 + $0x78] sm:$0xff] %vm305, %v2984
      %3017 = vst.msk [vmem:[#allocation3 + $0x80] sm:$0xff] %vm305, %v2985
      %3018 = vst.msk [vmem:[#allocation3 + $0x88] sm:$0xff] %vm305, %v2986
      %3019 = vst.msk [vmem:[#allocation3 + $0x90] sm:$0xff] %vm305, %v2987
      %3020 = vst.msk [vmem:[#allocation3 + $0x98] sm:$0xff] %vm305, %v2988
      %3021 = vst.msk [vmem:[#allocation3 + $0xa0] sm:$0xff] %vm305, %v2989
      %3022 = vst.msk [vmem:[#allocation3 + $0xa8] sm:$0xff] %vm305, %v2990
      %3023 = vst.msk [vmem:[#allocation3 + $0xb0] sm:$0xff] %vm305, %v2991
      %3024 = vst.msk [vmem:[#allocation3 + $0xb8] sm:$0xff] %vm305, %v2992
      %3025 = vst.msk [vmem:[#allocation3 + $0xc0] sm:$0xff] %vm305, %v2993
      %3026 = vst.msk [vmem:[#allocation3 + $0xc8] sm:$0xff] %vm305, %v2994
      %3027 = vst.msk [vmem:[#allocation3 + $0xd0] sm:$0xff] %vm305, %v2995
      %3028 = vst.msk [vmem:[#allocation3 + $0xd8] sm:$0xff] %vm305, %v2996
      %3029 = vst.msk [vmem:[#allocation3 + $0xe0] sm:$0xff] %vm305, %v2997
      %3030 = vst.msk [vmem:[#allocation3 + $0xe8] sm:$0xff] %vm305, %v2998
      %3031 = vst.msk [vmem:[#allocation3 + $0xf0] sm:$0xff] %vm305, %v2999
      %3032 = vst.msk [vmem:[#allocation3 + $0xf8] sm:$0xff] %vm305, %v3000
      %v3033 = vld [vmem:[%s2674 + $0x1] sm:$0xff]
      %v3034 = vld [vmem:[%s2674 + $0x9] sm:$0xff]
      %v3035 = vld [vmem:[%s2674 + $0x19] sm:$0xff]
      %v3036 = vld [vmem:[%s2674 + $0x21] sm:$0xff]
      %v3037 = vld [vmem:[%s2674 + $0x31] sm:$0xff]
      %v3038 = vld [vmem:[%s2674 + $0x39] sm:$0xff]
      %v3039 = vld [vmem:[%s2674 + $0x49] sm:$0xff]
      %v3040 = vld [vmem:[%s2674 + $0x51] sm:$0xff]
      %v3041 = vld [vmem:[%s2674 + $0x61] sm:$0xff]
      %v3042 = vld [vmem:[%s2674 + $0x69] sm:$0xff]
      %v3043 = vld [vmem:[%s2674 + $0x79] sm:$0xff]
      %v3044 = vld [vmem:[%s2674 + $0x81] sm:$0xff]
      %v3045 = vld [vmem:[%s2674 + $0x91] sm:$0xff]
      %v3046 = vld [vmem:[%s2674 + $0x99] sm:$0xff]
      %v3047 = vld [vmem:[%s2674 + $0xa9] sm:$0xff]
      %v3048 = vld [vmem:[%s2674 + $0xb1] sm:$0xff]
      %v3049 = vld [vmem:[%s2674 + $0xc1] sm:$0xff]
      %v3050 = vld [vmem:[%s2674 + $0xc9] sm:$0xff]
      %v3051 = vld [vmem:[%s2674 + $0xd9] sm:$0xff]
      %v3052 = vld [vmem:[%s2674 + $0xe1] sm:$0xff]
      %v3053 = vld [vmem:[%s2674 + $0xf1] sm:$0xff]
      %v3054 = vld [vmem:[%s2674 + $0xf9] sm:$0xff]
      %v3055 = vld [vmem:[%s2674 + $0x109] sm:$0xff]
      %v3056 = vld [vmem:[%s2674 + $0x111] sm:$0xff]
      %v3057 = vld [vmem:[%s2674 + $0x121] sm:$0xff]
      %v3058 = vld [vmem:[%s2674 + $0x129] sm:$0xff]
      %v3059 = vld [vmem:[%s2674 + $0x139] sm:$0xff]
      %v3060 = vld [vmem:[%s2674 + $0x141] sm:$0xff]
      %v3061 = vld [vmem:[%s2674 + $0x151] sm:$0xff]
      %v3062 = vld [vmem:[%s2674 + $0x159] sm:$0xff]
      %v3063 = vld [vmem:[%s2674 + $0x169] sm:$0xff]
      %v3064 = vld [vmem:[%s2674 + $0x171] sm:$0xff]
      %v3065 = vpack.c.bf16 %v3034, %v3033
      %v3066 = vpack.c.bf16 %v3036, %v3035
      %v3067 = vpack.c.bf16 %v3038, %v3037
      %v3068 = vpack.c.bf16 %v3040, %v3039
      %v3069 = vpack.c.bf16 %v3042, %v3041
      %v3070 = vpack.c.bf16 %v3044, %v3043
      %v3071 = vpack.c.bf16 %v3046, %v3045
      %v3072 = vpack.c.bf16 %v3048, %v3047
      %v3073 = vpack.c.bf16 %v3050, %v3049
      %v3074 = vpack.c.bf16 %v3052, %v3051
      %v3075 = vpack.c.bf16 %v3054, %v3053
      %v3076 = vpack.c.bf16 %v3056, %v3055
      %v3077 = vpack.c.bf16 %v3058, %v3057
      %v3078 = vpack.c.bf16 %v3060, %v3059
      %v3079 = vpack.c.bf16 %v3062, %v3061
      %v3080 = vpack.c.bf16 %v3064, %v3063
      %v3081 = vld [vmem:[#allocation3] sm:$0xff]
      %v3082 = vld [vmem:[#allocation3 + $0x8] sm:$0xff]
      %v3083 = vld [vmem:[#allocation3 + $0x10] sm:$0xff]
      %v3084 = vld [vmem:[#allocation3 + $0x18] sm:$0xff]
      %v3085 = vld [vmem:[#allocation3 + $0x20] sm:$0xff]
      %v3086 = vld [vmem:[#allocation3 + $0x28] sm:$0xff]
      %v3087 = vld [vmem:[#allocation3 + $0x30] sm:$0xff]
      %v3088 = vld [vmem:[#allocation3 + $0x38] sm:$0xff]
      %v3089 = vld [vmem:[#allocation3 + $0x40] sm:$0xff]
      %v3090 = vld [vmem:[#allocation3 + $0x48] sm:$0xff]
      %v3091 = vld [vmem:[#allocation3 + $0x50] sm:$0xff]
      %v3092 = vld [vmem:[#allocation3 + $0x58] sm:$0xff]
      %v3093 = vld [vmem:[#allocation3 + $0x60] sm:$0xff]
      %v3094 = vld [vmem:[#allocation3 + $0x68] sm:$0xff]
      %v3095 = vld [vmem:[#allocation3 + $0x70] sm:$0xff]
      %v3096 = vld [vmem:[#allocation3 + $0x78] sm:$0xff]
      %v3097 = vld [vmem:[#allocation3 + $0x80] sm:$0xff]
      %v3098 = vld [vmem:[#allocation3 + $0x88] sm:$0xff]
      %v3099 = vld [vmem:[#allocation3 + $0x90] sm:$0xff]
      %v3100 = vld [vmem:[#allocation3 + $0x98] sm:$0xff]
      %v3101 = vld [vmem:[#allocation3 + $0xa0] sm:$0xff]
      %v3102 = vld [vmem:[#allocation3 + $0xa8] sm:$0xff]
      %v3103 = vld [vmem:[#allocation3 + $0xb0] sm:$0xff]
      %v3104 = vld [vmem:[#allocation3 + $0xb8] sm:$0xff]
      %v3105 = vld [vmem:[#allocation3 + $0xc0] sm:$0xff]
      %v3106 = vld [vmem:[#allocation3 + $0xc8] sm:$0xff]
      %v3107 = vld [vmem:[#allocation3 + $0xd0] sm:$0xff]
      %v3108 = vld [vmem:[#allocation3 + $0xd8] sm:$0xff]
      %v3109 = vld [vmem:[#allocation3 + $0xe0] sm:$0xff]
      %v3110 = vld [vmem:[#allocation3 + $0xe8] sm:$0xff]
      %v3111 = vld [vmem:[#allocation3 + $0xf0] sm:$0xff]
      %v3112 = vld [vmem:[#allocation3 + $0xf8] sm:$0xff]
      %s3113 = scalar_lea.vmem %s3, 28
      %v3114 = vld [vmem:[%s3113] sm:$0xf]
      %v3116 = vsel %vm305, %v3065, 0
      %v3119 = vsel %vm305, %v3066, 0
      %v3122 = vsel %vm305, %v3067, 0
      %v3125 = vsel %vm305, %v3068, 0
      %v3128 = vsel %vm305, %v3069, 0
      %v3131 = vsel %vm305, %v3070, 0
      %v3134 = vsel %vm305, %v3071, 0
      %v3137 = vsel %vm305, %v3072, 0
      %v3140 = vsel %vm305, %v3073, 0
      %v3143 = vsel %vm305, %v3074, 0
      %v3146 = vsel %vm305, %v3075, 0
      %v3149 = vsel %vm305, %v3076, 0
      %v3152 = vsel %vm305, %v3077, 0
      %v3155 = vsel %vm305, %v3078, 0
      %v3158 = vsel %vm305, %v3079, 0
      %v3161 = vsel %vm305, %v3080, 0
      %v3164 = vsel %vm655, %v3114, 0
      %3166 = vmatprep.subr.bf16.mxu0 0
      %3167 = vmatpush1.bf16.msra.mxu0 %v3164
      %3168 = vmatprep.subr.bf16.mxu0 0
      %3169 = vmatpush1.bf16.msra.mxu0 0
      %3170 = vmatprep.subr.bf16.mxu0 0
      %3171 = vmatpush1.bf16.msra.mxu0 0
      %3172 = vmatprep.subr.bf16.mxu0 0
      %3173 = vmatpush1.bf16.msra.mxu0 0
      %3174 = vmatprep.subr.bf16.mxu0 0
      %3175 = vmatpush1.bf16.msra.mxu0 0
      %3176 = vmatprep.subr.bf16.mxu0 0
      %3177 = vmatpush1.bf16.msra.mxu0 0
      %3178 = vmatprep.subr.bf16.mxu0 0
      %3179 = vmatpush1.bf16.msra.mxu0 0
      %3180 = vmatprep.subr.bf16.mxu0 0
      %3181 = vmatpush1.bf16.msra.mxu0 0
      %3182 = vmatprep.subr.bf16.mxu0 0
      %3183 = vmatpush1.bf16.msra.mxu0 0
      %3184 = vmatprep.subr.bf16.mxu0 0
      %3185 = vmatpush1.bf16.msra.mxu0 0
      %3186 = vmatprep.subr.bf16.mxu0 0
      %3187 = vmatpush1.bf16.msra.mxu0 0
      %3188 = vmatprep.subr.bf16.mxu0 0
      %3189 = vmatpush1.bf16.msra.mxu0 0
      %3190 = vmatprep.subr.bf16.mxu0 0
      %3191 = vmatpush1.bf16.msra.mxu0 0
      %3192 = vmatprep.subr.bf16.mxu0 0
      %3193 = vmatpush1.bf16.msra.mxu0 0
      %3194 = vmatprep.subr.bf16.mxu0 0
      %3195 = vmatpush1.bf16.msra.mxu0 0
      %3196 = vmatprep.subr.bf16.mxu0 0
      %3197 = vmatpush1.bf16.msra.mxu0 0
      %3198 = vmatprep.mubr.bf16.mxu0 0
      %3199 = vmatmul.mubr.bf16.gmra.mrb[0].mxu0 %v3116
      %v3200 = vpop.f32.mrb[0].mxu0
      %v3201 = vadd.f32 0.0, %v3200
      %v3202 = vpop.f32.mrb[0].mxu0
      %v3203 = vpop.f32.mrb[0].mxu0
      %v3204 = vadd.f32 0.0, %v3203
      %v3205 = vpop.f32.mrb[0].mxu0
      %3206 = vmatprep.mubr.bf16.mxu0 0
      %3207 = vmatmul.mubr.bf16.gmra.mrb[0].mxu0 %v3119
      %v3208 = vpop.f32.mrb[0].mxu0
      %v3209 = vadd.f32 0.0, %v3208
      %v3210 = vpop.f32.mrb[0].mxu0
      %v3211 = vpop.f32.mrb[0].mxu0
      %v3212 = vadd.f32 0.0, %v3211
      %v3213 = vpop.f32.mrb[0].mxu0
      %3214 = vmatprep.mubr.bf16.mxu0 0
      %3215 = vmatmul.mubr.bf16.gmra.mrb[0].mxu0 %v3122
      %v3216 = vpop.f32.mrb[0].mxu0
      %v3217 = vadd.f32 0.0, %v3216
      %v3218 = vpop.f32.mrb[0].mxu0
      %v3219 = vpop.f32.mrb[0].mxu0
      %v3220 = vadd.f32 0.0, %v3219
      %v3221 = vpop.f32.mrb[0].mxu0
      %3222 = vmatprep.mubr.bf16.mxu0 0
      %3223 = vmatmul.mubr.bf16.gmra.mrb[0].mxu0 %v3125
      %v3224 = vpop.f32.mrb[0].mxu0
      %v3225 = vadd.f32 0.0, %v3224
      %v3226 = vpop.f32.mrb[0].mxu0
      %v3227 = vpop.f32.mrb[0].mxu0
      %v3228 = vadd.f32 0.0, %v3227
      %v3229 = vpop.f32.mrb[0].mxu0
      %3230 = vmatprep.mubr.bf16.mxu0 0
      %3231 = vmatmul.mubr.bf16.gmra.mrb[0].mxu0 %v3128
      %v3232 = vpop.f32.mrb[0].mxu0
      %v3233 = vadd.f32 0.0, %v3232
      %v3234 = vpop.f32.mrb[0].mxu0
      %v3235 = vpop.f32.mrb[0].mxu0
      %v3236 = vadd.f32 0.0, %v3235
      %v3237 = vpop.f32.mrb[0].mxu0
      %3238 = vmatprep.mubr.bf16.mxu0 0
      %3239 = vmatmul.mubr.bf16.gmra.mrb[0].mxu0 %v3131
      %v3240 = vpop.f32.mrb[0].mxu0
      %v3241 = vadd.f32 0.0, %v3240
      %v3242 = vpop.f32.mrb[0].mxu0
      %v3243 = vpop.f32.mrb[0].mxu0
      %v3244 = vadd.f32 0.0, %v3243
      %v3245 = vpop.f32.mrb[0].mxu0
      %3246 = vmatprep.mubr.bf16.mxu0 0
      %3247 = vmatmul.mubr.bf16.gmra.mrb[0].mxu0 %v3134
      %v3248 = vpop.f32.mrb[0].mxu0
      %v3249 = vadd.f32 0.0, %v3248
      %v3250 = vpop.f32.mrb[0].mxu0
      %v3251 = vpop.f32.mrb[0].mxu0
      %v3252 = vadd.f32 0.0, %v3251
      %v3253 = vpop.f32.mrb[0].mxu0
      %3254 = vmatprep.mubr.bf16.mxu0 0
      %3255 = vmatmul.mubr.bf16.gmra.mrb[0].mxu0 %v3137
      %v3256 = vpop.f32.mrb[0].mxu0
      %v3257 = vadd.f32 0.0, %v3256
      %v3258 = vpop.f32.mrb[0].mxu0
      %v3259 = vpop.f32.mrb[0].mxu0
      %v3260 = vadd.f32 0.0, %v3259
      %v3261 = vpop.f32.mrb[0].mxu0
      %3262 = vmatprep.mubr.bf16.mxu0 0
      %3263 = vmatmul.mubr.bf16.gmra.mrb[0].mxu0 %v3140
      %v3264 = vpop.f32.mrb[0].mxu0
      %v3265 = vadd.f32 0.0, %v3264
      %v3266 = vpop.f32.mrb[0].mxu0
      %v3267 = vpop.f32.mrb[0].mxu0
      %v3268 = vadd.f32 0.0, %v3267
      %v3269 = vpop.f32.mrb[0].mxu0
      %3270 = vmatprep.mubr.bf16.mxu0 0
      %3271 = vmatmul.mubr.bf16.gmra.mrb[0].mxu0 %v3143
      %v3272 = vpop.f32.mrb[0].mxu0
      %v3273 = vadd.f32 0.0, %v3272
      %v3274 = vpop.f32.mrb[0].mxu0
      %v3275 = vpop.f32.mrb[0].mxu0
      %v3276 = vadd.f32 0.0, %v3275
      %v3277 = vpop.f32.mrb[0].mxu0
      %3278 = vmatprep.mubr.bf16.mxu0 0
      %3279 = vmatmul.mubr.bf16.gmra.mrb[0].mxu0 %v3146
      %v3280 = vpop.f32.mrb[0].mxu0
      %v3281 = vadd.f32 0.0, %v3280
      %v3282 = vpop.f32.mrb[0].mxu0
      %v3283 = vpop.f32.mrb[0].mxu0
      %v3284 = vadd.f32 0.0, %v3283
      %v3285 = vpop.f32.mrb[0].mxu0
      %3286 = vmatprep.mubr.bf16.mxu0 0
      %3287 = vmatmul.mubr.bf16.gmra.mrb[0].mxu0 %v3149
      %v3288 = vpop.f32.mrb[0].mxu0
      %v3289 = vadd.f32 0.0, %v3288
      %v3290 = vpop.f32.mrb[0].mxu0
      %v3291 = vpop.f32.mrb[0].mxu0
      %v3292 = vadd.f32 0.0, %v3291
      %v3293 = vpop.f32.mrb[0].mxu0
      %3294 = vmatprep.mubr.bf16.mxu0 0
      %3295 = vmatmul.mubr.bf16.gmra.mrb[0].mxu0 %v3152
      %v3296 = vpop.f32.mrb[0].mxu0
      %v3297 = vadd.f32 0.0, %v3296
      %v3298 = vpop.f32.mrb[0].mxu0
      %v3299 = vpop.f32.mrb[0].mxu0
      %v3300 = vadd.f32 0.0, %v3299
      %v3301 = vpop.f32.mrb[0].mxu0
      %3302 = vmatprep.mubr.bf16.mxu0 0
      %3303 = vmatmul.mubr.bf16.gmra.mrb[0].mxu0 %v3155
      %v3304 = vpop.f32.mrb[0].mxu0
      %v3305 = vadd.f32 0.0, %v3304
      %v3306 = vpop.f32.mrb[0].mxu0
      %v3307 = vpop.f32.mrb[0].mxu0
      %v3308 = vadd.f32 0.0, %v3307
      %v3309 = vpop.f32.mrb[0].mxu0
      %3310 = vmatprep.mubr.bf16.mxu0 0
      %3311 = vmatmul.mubr.bf16.gmra.mrb[0].mxu0 %v3158
      %v3312 = vpop.f32.mrb[0].mxu0
      %v3313 = vadd.f32 0.0, %v3312
      %v3314 = vpop.f32.mrb[0].mxu0
      %v3315 = vpop.f32.mrb[0].mxu0
      %v3316 = vadd.f32 0.0, %v3315
      %v3317 = vpop.f32.mrb[0].mxu0
      %3318 = vmatprep.mubr.bf16.mxu0 0
      %3319 = vmatmul.mubr.bf16.gmra.mrb[0].mxu0 %v3161
      %v3320 = vpop.f32.mrb[0].mxu0
      %v3321 = vadd.f32 0.0, %v3320
      %v3322 = vpop.f32.mrb[0].mxu0
      %v3323 = vpop.f32.mrb[0].mxu0
      %v3324 = vadd.f32 0.0, %v3323
      %v3325 = vpop.f32.mrb[0].mxu0
      %3326 = vdwg.mxu0
      %v3327 = vadd.f32 %v3081, %v3201
      %v3328 = vadd.f32 %v3082, %v3204
      %v3329 = vadd.f32 %v3083, %v3209
      %v3330 = vadd.f32 %v3084, %v3212
      %v3331 = vadd.f32 %v3085, %v3217
      %v3332 = vadd.f32 %v3086, %v3220
      %v3333 = vadd.f32 %v3087, %v3225
      %v3334 = vadd.f32 %v3088, %v3228
      %v3335 = vadd.f32 %v3089, %v3233
      %v3336 = vadd.f32 %v3090, %v3236
      %v3337 = vadd.f32 %v3091, %v3241
      %v3338 = vadd.f32 %v3092, %v3244
      %v3339 = vadd.f32 %v3093, %v3249
      %v3340 = vadd.f32 %v3094, %v3252
      %v3341 = vadd.f32 %v3095, %v3257
      %v3342 = vadd.f32 %v3096, %v3260
      %v3343 = vadd.f32 %v3097, %v3265
      %v3344 = vadd.f32 %v3098, %v3268
      %v3345 = vadd.f32 %v3099, %v3273
      %v3346 = vadd.f32 %v3100, %v3276
      %v3347 = vadd.f32 %v3101, %v3281
      %v3348 = vadd.f32 %v3102, %v3284
      %v3349 = vadd.f32 %v3103, %v3289
      %v3350 = vadd.f32 %v3104, %v3292
      %v3351 = vadd.f32 %v3105, %v3297
      %v3352 = vadd.f32 %v3106, %v3300
      %v3353 = vadd.f32 %v3107, %v3305
      %v3354 = vadd.f32 %v3108, %v3308
      %v3355 = vadd.f32 %v3109, %v3313
      %v3356 = vadd.f32 %v3110, %v3316
      %v3357 = vadd.f32 %v3111, %v3321
      %v3358 = vadd.f32 %v3112, %v3324
      %3359 = vst.msk [vmem:[#allocation3] sm:$0xff] %vm305, %v3327
      %3360 = vst.msk [vmem:[#allocation3 + $0x8] sm:$0xff] %vm305, %v3328
      %3361 = vst.msk [vmem:[#allocation3 + $0x10] sm:$0xff] %vm305, %v3329
      %3362 = vst.msk [vmem:[#allocation3 + $0x18] sm:$0xff] %vm305, %v3330
      %3363 = vst.msk [vmem:[#allocation3 + $0x20] sm:$0xff] %vm305, %v3331
      %3364 = vst.msk [vmem:[#allocation3 + $0x28] sm:$0xff] %vm305, %v3332
      %3365 = vst.msk [vmem:[#allocation3 + $0x30] sm:$0xff] %vm305, %v3333
      %3366 = vst.msk [vmem:[#allocation3 + $0x38] sm:$0xff] %vm305, %v3334
      %3367 = vst.msk [vmem:[#allocation3 + $0x40] sm:$0xff] %vm305, %v3335
      %3368 = vst.msk [vmem:[#allocation3 + $0x48] sm:$0xff] %vm305, %v3336
      %3369 = vst.msk [vmem:[#allocation3 + $0x50] sm:$0xff] %vm305, %v3337
      %3370 = vst.msk [vmem:[#allocation3 + $0x58] sm:$0xff] %vm305, %v3338
      %3371 = vst.msk [vmem:[#allocation3 + $0x60] sm:$0xff] %vm305, %v3339
      %3372 = vst.msk [vmem:[#allocation3 + $0x68] sm:$0xff] %vm305, %v3340
      %3373 = vst.msk [vmem:[#allocation3 + $0x70] sm:$0xff] %vm305, %v3341
      %3374 = vst.msk [vmem:[#allocation3 + $0x78] sm:$0xff] %vm305, %v3342
      %3375 = vst.msk [vmem:[#allocation3 + $0x80] sm:$0xff] %vm305, %v3343
      %3376 = vst.msk [vmem:[#allocation3 + $0x88] sm:$0xff] %vm305, %v3344
      %3377 = vst.msk [vmem:[#allocation3 + $0x90] sm:$0xff] %vm305, %v3345
      %3378 = vst.msk [vmem:[#allocation3 + $0x98] sm:$0xff] %vm305, %v3346
      %3379 = vst.msk [vmem:[#allocation3 + $0xa0] sm:$0xff] %vm305, %v3347
      %3380 = vst.msk [vmem:[#allocation3 + $0xa8] sm:$0xff] %vm305, %v3348
      %3381 = vst.msk [vmem:[#allocation3 + $0xb0] sm:$0xff] %vm305, %v3349
      %3382 = vst.msk [vmem:[#allocation3 + $0xb8] sm:$0xff] %vm305, %v3350
      %3383 = vst.msk [vmem:[#allocation3 + $0xc0] sm:$0xff] %vm305, %v3351
      %3384 = vst.msk [vmem:[#allocation3 + $0xc8] sm:$0xff] %vm305, %v3352
      %3385 = vst.msk [vmem:[#allocation3 + $0xd0] sm:$0xff] %vm305, %v3353
      %3386 = vst.msk [vmem:[#allocation3 + $0xd8] sm:$0xff] %vm305, %v3354
      %3387 = vst.msk [vmem:[#allocation3 + $0xe0] sm:$0xff] %vm305, %v3355
      %3388 = vst.msk [vmem:[#allocation3 + $0xe8] sm:$0xff] %vm305, %v3356
      %3389 = vst.msk [vmem:[#allocation3 + $0xf0] sm:$0xff] %vm305, %v3357
      %3390 = vst.msk [vmem:[#allocation3 + $0xf8] sm:$0xff] %vm305, %v3358
      %v3391 = vld [vmem:[%s2674 + $0x2] sm:$0xff]
      %v3392 = vld [vmem:[%s2674 + $0xa] sm:$0xff]
      %v3393 = vld [vmem:[%s2674 + $0x1a] sm:$0xff]
      %v3394 = vld [vmem:[%s2674 + $0x22] sm:$0xff]
      %v3395 = vld [vmem:[%s2674 + $0x32] sm:$0xff]
      %v3396 = vld [vmem:[%s2674 + $0x3a] sm:$0xff]
      %v3397 = vld [vmem:[%s2674 + $0x4a] sm:$0xff]
      %v3398 = vld [vmem:[%s2674 + $0x52] sm:$0xff]
      %v3399 = vld [vmem:[%s2674 + $0x62] sm:$0xff]
      %v3400 = vld [vmem:[%s2674 + $0x6a] sm:$0xff]
      %v3401 = vld [vmem:[%s2674 + $0x7a] sm:$0xff]
      %v3402 = vld [vmem:[%s2674 + $0x82] sm:$0xff]
      %v3403 = vld [vmem:[%s2674 + $0x92] sm:$0xff]
      %v3404 = vld [vmem:[%s2674 + $0x9a] sm:$0xff]
      %v3405 = vld [vmem:[%s2674 + $0xaa] sm:$0xff]
      %v3406 = vld [vmem:[%s2674 + $0xb2] sm:$0xff]
      %v3407 = vld [vmem:[%s2674 + $0xc2] sm:$0xff]
      %v3408 = vld [vmem:[%s2674 + $0xca] sm:$0xff]
      %v3409 = vld [vmem:[%s2674 + $0xda] sm:$0xff]
      %v3410 = vld [vmem:[%s2674 + $0xe2] sm:$0xff]
      %v3411 = vld [vmem:[%s2674 + $0xf2] sm:$0xff]
      %v3412 = vld [vmem:[%s2674 + $0xfa] sm:$0xff]
      %v3413 = vld [vmem:[%s2674 + $0x10a] sm:$0xff]
      %v3414 = vld [vmem:[%s2674 + $0x112] sm:$0xff]
      %v3415 = vld [vmem:[%s2674 + $0x122] sm:$0xff]
      %v3416 = vld [vmem:[%s2674 + $0x12a] sm:$0xff]
      %v3417 = vld [vmem:[%s2674 + $0x13a] sm:$0xff]
      %v3418 = vld [vmem:[%s2674 + $0x142] sm:$0xff]
      %v3419 = vld [vmem:[%s2674 + $0x152] sm:$0xff]
      %v3420 = vld [vmem:[%s2674 + $0x15a] sm:$0xff]
      %v3421 = vld [vmem:[%s2674 + $0x16a] sm:$0xff]
      %v3422 = vld [vmem:[%s2674 + $0x172] sm:$0xff]
      %v3423 = vpack.c.bf16 %v3392, %v3391
      %v3424 = vpack.c.bf16 %v3394, %v3393
      %v3425 = vpack.c.bf16 %v3396, %v3395
      %v3426 = vpack.c.bf16 %v3398, %v3397
      %v3427 = vpack.c.bf16 %v3400, %v3399
      %v3428 = vpack.c.bf16 %v3402, %v3401
      %v3429 = vpack.c.bf16 %v3404, %v3403
      %v3430 = vpack.c.bf16 %v3406, %v3405
      %v3431 = vpack.c.bf16 %v3408, %v3407
      %v3432 = vpack.c.bf16 %v3410, %v3409
      %v3433 = vpack.c.bf16 %v3412, %v3411
      %v3434 = vpack.c.bf16 %v3414, %v3413
      %v3435 = vpack.c.bf16 %v3416, %v3415
      %v3436 = vpack.c.bf16 %v3418, %v3417
      %v3437 = vpack.c.bf16 %v3420, %v3419
      %v3438 = vpack.c.bf16 %v3422, %v3421
      %v3439 = vld [vmem:[#allocation3] sm:$0xff]
      %v3440 = vld [vmem:[#allocation3 + $0x8] sm:$0xff]
      %v3441 = vld [vmem:[#allocation3 + $0x10] sm:$0xff]
      %v3442 = vld [vmem:[#allocation3 + $0x18] sm:$0xff]
      %v3443 = vld [vmem:[#allocation3 + $0x20] sm:$0xff]
      %v3444 = vld [vmem:[#allocation3 + $0x28] sm:$0xff]
      %v3445 = vld [vmem:[#allocation3 + $0x30] sm:$0xff]
      %v3446 = vld [vmem:[#allocation3 + $0x38] sm:$0xff]
      %v3447 = vld [vmem:[#allocation3 + $0x40] sm:$0xff]
      %v3448 = vld [vmem:[#allocation3 + $0x48] sm:$0xff]
      %v3449 = vld [vmem:[#allocation3 + $0x50] sm:$0xff]
      %v3450 = vld [vmem:[#allocation3 + $0x58] sm:$0xff]
      %v3451 = vld [vmem:[#allocation3 + $0x60] sm:$0xff]
      %v3452 = vld [vmem:[#allocation3 + $0x68] sm:$0xff]
      %v3453 = vld [vmem:[#allocation3 + $0x70] sm:$0xff]
      %v3454 = vld [vmem:[#allocation3 + $0x78] sm:$0xff]
      %v3455 = vld [vmem:[#allocation3 + $0x80] sm:$0xff]
      %v3456 = vld [vmem:[#allocation3 + $0x88] sm:$0xff]
      %v3457 = vld [vmem:[#allocation3 + $0x90] sm:$0xff]
      %v3458 = vld [vmem:[#allocation3 + $0x98] sm:$0xff]
      %v3459 = vld [vmem:[#allocation3 + $0xa0] sm:$0xff]
      %v3460 = vld [vmem:[#allocation3 + $0xa8] sm:$0xff]
      %v3461 = vld [vmem:[#allocation3 + $0xb0] sm:$0xff]
      %v3462 = vld [vmem:[#allocation3 + $0xb8] sm:$0xff]
      %v3463 = vld [vmem:[#allocation3 + $0xc0] sm:$0xff]
      %v3464 = vld [vmem:[#allocation3 + $0xc8] sm:$0xff]
      %v3465 = vld [vmem:[#allocation3 + $0xd0] sm:$0xff]
      %v3466 = vld [vmem:[#allocation3 + $0xd8] sm:$0xff]
      %v3467 = vld [vmem:[#allocation3 + $0xe0] sm:$0xff]
      %v3468 = vld [vmem:[#allocation3 + $0xe8] sm:$0xff]
      %v3469 = vld [vmem:[#allocation3 + $0xf0] sm:$0xff]
      %v3470 = vld [vmem:[#allocation3 + $0xf8] sm:$0xff]
      %s3471 = scalar_lea.vmem %s3, 32
      %v3472 = vld [vmem:[%s3471] sm:$0xf]
      %v3474 = vsel %vm305, %v3423, 0
      %v3477 = vsel %vm305, %v3424, 0
      %v3480 = vsel %vm305, %v3425, 0
      %v3483 = vsel %vm305, %v3426, 0
      %v3486 = vsel %vm305, %v3427, 0
      %v3489 = vsel %vm305, %v3428, 0
      %v3492 = vsel %vm305, %v3429, 0
      %v3495 = vsel %vm305, %v3430, 0
      %v3498 = vsel %vm305, %v3431, 0
      %v3501 = vsel %vm305, %v3432, 0
      %v3504 = vsel %vm305, %v3433, 0
      %v3507 = vsel %vm305, %v3434, 0
      %v3510 = vsel %vm305, %v3435, 0
      %v3513 = vsel %vm305, %v3436, 0
      %v3516 = vsel %vm305, %v3437, 0
      %v3519 = vsel %vm305, %v3438, 0
      %v3522 = vsel %vm655, %v3472, 0
      %3524 = vmatprep.subr.bf16.mxu0 0
      %3525 = vmatpush1.bf16.msra.mxu0 %v3522
      %3526 = vmatprep.subr.bf16.mxu0 0
      %3527 = vmatpush1.bf16.msra.mxu0 0
      %3528 = vmatprep.subr.bf16.mxu0 0
      %3529 = vmatpush1.bf16.msra.mxu0 0
      %3530 = vmatprep.subr.bf16.mxu0 0
      %3531 = vmatpush1.bf16.msra.mxu0 0
      %3532 = vmatprep.subr.bf16.mxu0 0
      %3533 = vmatpush1.bf16.msra.mxu0 0
      %3534 = vmatprep.subr.bf16.mxu0 0
      %3535 = vmatpush1.bf16.msra.mxu0 0
      %3536 = vmatprep.subr.bf16.mxu0 0
      %3537 = vmatpush1.bf16.msra.mxu0 0
      %3538 = vmatprep.subr.bf16.mxu0 0
      %3539 = vmatpush1.bf16.msra.mxu0 0
      %3540 = vmatprep.subr.bf16.mxu0 0
      %3541 = vmatpush1.bf16.msra.mxu0 0
      %3542 = vmatprep.subr.bf16.mxu0 0
      %3543 = vmatpush1.bf16.msra.mxu0 0
      %3544 = vmatprep.subr.bf16.mxu0 0
      %3545 = vmatpush1.bf16.msra.mxu0 0
      %3546 = vmatprep.subr.bf16.mxu0 0
      %3547 = vmatpush1.bf16.msra.mxu0 0
      %3548 = vmatprep.subr.bf16.mxu0 0
      %3549 = vmatpush1.bf16.msra.mxu0 0
      %3550 = vmatprep.subr.bf16.mxu0 0
      %3551 = vmatpush1.bf16.msra.mxu0 0
      %3552 = vmatprep.subr.bf16.mxu0 0
      %3553 = vmatpush1.bf16.msra.mxu0 0
      %3554 = vmatprep.subr.bf16.mxu0 0
      %3555 = vmatpush1.bf16.msra.mxu0 0
      %3556 = vmatprep.mubr.bf16.mxu0 0
      %3557 = vmatmul.mubr.bf16.gmra.mrb[0].mxu0 %v3474
      %v3558 = vpop.f32.mrb[0].mxu0
      %v3559 = vadd.f32 0.0, %v3558
      %v3560 = vpop.f32.mrb[0].mxu0
      %v3561 = vpop.f32.mrb[0].mxu0
      %v3562 = vadd.f32 0.0, %v3561
      %v3563 = vpop.f32.mrb[0].mxu0
      %3564 = vmatprep.mubr.bf16.mxu0 0
      %3565 = vmatmul.mubr.bf16.gmra.mrb[0].mxu0 %v3477
      %v3566 = vpop.f32.mrb[0].mxu0
      %v3567 = vadd.f32 0.0, %v3566
      %v3568 = vpop.f32.mrb[0].mxu0
      %v3569 = vpop.f32.mrb[0].mxu0
      %v3570 = vadd.f32 0.0, %v3569
      %v3571 = vpop.f32.mrb[0].mxu0
      %3572 = vmatprep.mubr.bf16.mxu0 0
      %3573 = vmatmul.mubr.bf16.gmra.mrb[0].mxu0 %v3480
      %v3574 = vpop.f32.mrb[0].mxu0
      %v3575 = vadd.f32 0.0, %v3574
      %v3576 = vpop.f32.mrb[0].mxu0
      %v3577 = vpop.f32.mrb[0].mxu0
      %v3578 = vadd.f32 0.0, %v3577
      %v3579 = vpop.f32.mrb[0].mxu0
      %3580 = vmatprep.mubr.bf16.mxu0 0
      %3581 = vmatmul.mubr.bf16.gmra.mrb[0].mxu0 %v3483
      %v3582 = vpop.f32.mrb[0].mxu0
      %v3583 = vadd.f32 0.0, %v3582
      %v3584 = vpop.f32.mrb[0].mxu0
      %v3585 = vpop.f32.mrb[0].mxu0
      %v3586 = vadd.f32 0.0, %v3585
      %v3587 = vpop.f32.mrb[0].mxu0
      %3588 = vmatprep.mubr.bf16.mxu0 0
      %3589 = vmatmul.mubr.bf16.gmra.mrb[0].mxu0 %v3486
      %v3590 = vpop.f32.mrb[0].mxu0
      %v3591 = vadd.f32 0.0, %v3590
      %v3592 = vpop.f32.mrb[0].mxu0
      %v3593 = vpop.f32.mrb[0].mxu0
      %v3594 = vadd.f32 0.0, %v3593
      %v3595 = vpop.f32.mrb[0].mxu0
      %3596 = vmatprep.mubr.bf16.mxu0 0
      %3597 = vmatmul.mubr.bf16.gmra.mrb[0].mxu0 %v3489
      %v3598 = vpop.f32.mrb[0].mxu0
      %v3599 = vadd.f32 0.0, %v3598
      %v3600 = vpop.f32.mrb[0].mxu0
      %v3601 = vpop.f32.mrb[0].mxu0
      %v3602 = vadd.f32 0.0, %v3601
      %v3603 = vpop.f32.mrb[0].mxu0
      %3604 = vmatprep.mubr.bf16.mxu0 0
      %3605 = vmatmul.mubr.bf16.gmra.mrb[0].mxu0 %v3492
      %v3606 = vpop.f32.mrb[0].mxu0
      %v3607 = vadd.f32 0.0, %v3606
      %v3608 = vpop.f32.mrb[0].mxu0
      %v3609 = vpop.f32.mrb[0].mxu0
      %v3610 = vadd.f32 0.0, %v3609
      %v3611 = vpop.f32.mrb[0].mxu0
      %3612 = vmatprep.mubr.bf16.mxu0 0
      %3613 = vmatmul.mubr.bf16.gmra.mrb[0].mxu0 %v3495
      %v3614 = vpop.f32.mrb[0].mxu0
      %v3615 = vadd.f32 0.0, %v3614
      %v3616 = vpop.f32.mrb[0].mxu0
      %v3617 = vpop.f32.mrb[0].mxu0
      %v3618 = vadd.f32 0.0, %v3617
      %v3619 = vpop.f32.mrb[0].mxu0
      %3620 = vmatprep.mubr.bf16.mxu0 0
      %3621 = vmatmul.mubr.bf16.gmra.mrb[0].mxu0 %v3498
      %v3622 = vpop.f32.mrb[0].mxu0
      %v3623 = vadd.f32 0.0, %v3622
      %v3624 = vpop.f32.mrb[0].mxu0
      %v3625 = vpop.f32.mrb[0].mxu0
      %v3626 = vadd.f32 0.0, %v3625
      %v3627 = vpop.f32.mrb[0].mxu0
      %3628 = vmatprep.mubr.bf16.mxu0 0
      %3629 = vmatmul.mubr.bf16.gmra.mrb[0].mxu0 %v3501
      %v3630 = vpop.f32.mrb[0].mxu0
      %v3631 = vadd.f32 0.0, %v3630
      %v3632 = vpop.f32.mrb[0].mxu0
      %v3633 = vpop.f32.mrb[0].mxu0
      %v3634 = vadd.f32 0.0, %v3633
      %v3635 = vpop.f32.mrb[0].mxu0
      %3636 = vmatprep.mubr.bf16.mxu0 0
      %3637 = vmatmul.mubr.bf16.gmra.mrb[0].mxu0 %v3504
      %v3638 = vpop.f32.mrb[0].mxu0
      %v3639 = vadd.f32 0.0, %v3638
      %v3640 = vpop.f32.mrb[0].mxu0
      %v3641 = vpop.f32.mrb[0].mxu0
      %v3642 = vadd.f32 0.0, %v3641
      %v3643 = vpop.f32.mrb[0].mxu0
      %3644 = vmatprep.mubr.bf16.mxu0 0
      %3645 = vmatmul.mubr.bf16.gmra.mrb[0].mxu0 %v3507
      %v3646 = vpop.f32.mrb[0].mxu0
      %v3647 = vadd.f32 0.0, %v3646
      %v3648 = vpop.f32.mrb[0].mxu0
      %v3649 = vpop.f32.mrb[0].mxu0
      %v3650 = vadd.f32 0.0, %v3649
      %v3651 = vpop.f32.mrb[0].mxu0
      %3652 = vmatprep.mubr.bf16.mxu0 0
      %3653 = vmatmul.mubr.bf16.gmra.mrb[0].mxu0 %v3510
      %v3654 = vpop.f32.mrb[0].mxu0
      %v3655 = vadd.f32 0.0, %v3654
      %v3656 = vpop.f32.mrb[0].mxu0
      %v3657 = vpop.f32.mrb[0].mxu0
      %v3658 = vadd.f32 0.0, %v3657
      %v3659 = vpop.f32.mrb[0].mxu0
      %3660 = vmatprep.mubr.bf16.mxu0 0
      %3661 = vmatmul.mubr.bf16.gmra.mrb[0].mxu0 %v3513
      %v3662 = vpop.f32.mrb[0].mxu0
      %v3663 = vadd.f32 0.0, %v3662
      %v3664 = vpop.f32.mrb[0].mxu0
      %v3665 = vpop.f32.mrb[0].mxu0
      %v3666 = vadd.f32 0.0, %v3665
      %v3667 = vpop.f32.mrb[0].mxu0
      %3668 = vmatprep.mubr.bf16.mxu0 0
      %3669 = vmatmul.mubr.bf16.gmra.mrb[0].mxu0 %v3516
      %v3670 = vpop.f32.mrb[0].mxu0
      %v3671 = vadd.f32 0.0, %v3670
      %v3672 = vpop.f32.mrb[0].mxu0
      %v3673 = vpop.f32.mrb[0].mxu0
      %v3674 = vadd.f32 0.0, %v3673
      %v3675 = vpop.f32.mrb[0].mxu0
      %3676 = vmatprep.mubr.bf16.mxu0 0
      %3677 = vmatmul.mubr.bf16.gmra.mrb[0].mxu0 %v3519
      %v3678 = vpop.f32.mrb[0].mxu0
      %v3679 = vadd.f32 0.0, %v3678
      %v3680 = vpop.f32.mrb[0].mxu0
      %v3681 = vpop.f32.mrb[0].mxu0
      %v3682 = vadd.f32 0.0, %v3681
      %v3683 = vpop.f32.mrb[0].mxu0
      %3684 = vdwg.mxu0
      %v3685 = vadd.f32 %v3439, %v3559
      %v3686 = vadd.f32 %v3440, %v3562
      %v3687 = vadd.f32 %v3441, %v3567
      %v3688 = vadd.f32 %v3442, %v3570
      %v3689 = vadd.f32 %v3443, %v3575
      %v3690 = vadd.f32 %v3444, %v3578
      %v3691 = vadd.f32 %v3445, %v3583
      %v3692 = vadd.f32 %v3446, %v3586
      %v3693 = vadd.f32 %v3447, %v3591
      %v3694 = vadd.f32 %v3448, %v3594
      %v3695 = vadd.f32 %v3449, %v3599
      %v3696 = vadd.f32 %v3450, %v3602
      %v3697 = vadd.f32 %v3451, %v3607
      %v3698 = vadd.f32 %v3452, %v3610
      %v3699 = vadd.f32 %v3453, %v3615
      %v3700 = vadd.f32 %v3454, %v3618
      %v3701 = vadd.f32 %v3455, %v3623
      %v3702 = vadd.f32 %v3456, %v3626
      %v3703 = vadd.f32 %v3457, %v3631
      %v3704 = vadd.f32 %v3458, %v3634
      %v3705 = vadd.f32 %v3459, %v3639
      %v3706 = vadd.f32 %v3460, %v3642
      %v3707 = vadd.f32 %v3461, %v3647
      %v3708 = vadd.f32 %v3462, %v3650
      %v3709 = vadd.f32 %v3463, %v3655
      %v3710 = vadd.f32 %v3464, %v3658
      %v3711 = vadd.f32 %v3465, %v3663
      %v3712 = vadd.f32 %v3466, %v3666
      %v3713 = vadd.f32 %v3467, %v3671
      %v3714 = vadd.f32 %v3468, %v3674
      %v3715 = vadd.f32 %v3469, %v3679
      %v3716 = vadd.f32 %v3470, %v3682
      %3717 = vst.msk [vmem:[#allocation3] sm:$0xff] %vm305, %v3685
      %3718 = vst.msk [vmem:[#allocation3 + $0x8] sm:$0xff] %vm305, %v3686
      %3719 = vst.msk [vmem:[#allocation3 + $0x10] sm:$0xff] %vm305, %v3687
      %3720 = vst.msk [vmem:[#allocation3 + $0x18] sm:$0xff] %vm305, %v3688
      %3721 = vst.msk [vmem:[#allocation3 + $0x20] sm:$0xff] %vm305, %v3689
      %3722 = vst.msk [vmem:[#allocation3 + $0x28] sm:$0xff] %vm305, %v3690
      %3723 = vst.msk [vmem:[#allocation3 + $0x30] sm:$0xff] %vm305, %v3691
      %3724 = vst.msk [vmem:[#allocation3 + $0x38] sm:$0xff] %vm305, %v3692
      %3725 = vst.msk [vmem:[#allocation3 + $0x40] sm:$0xff] %vm305, %v3693
      %3726 = vst.msk [vmem:[#allocation3 + $0x48] sm:$0xff] %vm305, %v3694
      %3727 = vst.msk [vmem:[#allocation3 + $0x50] sm:$0xff] %vm305, %v3695
      %3728 = vst.msk [vmem:[#allocation3 + $0x58] sm:$0xff] %vm305, %v3696
      %3729 = vst.msk [vmem:[#allocation3 + $0x60] sm:$0xff] %vm305, %v3697
      %3730 = vst.msk [vmem:[#allocation3 + $0x68] sm:$0xff] %vm305, %v3698
      %3731 = vst.msk [vmem:[#allocation3 + $0x70] sm:$0xff] %vm305, %v3699
      %3732 = vst.msk [vmem:[#allocation3 + $0x78] sm:$0xff] %vm305, %v3700
      %3733 = vst.msk [vmem:[#allocation3 + $0x80] sm:$0xff] %vm305, %v3701
      %3734 = vst.msk [vmem:[#allocation3 + $0x88] sm:$0xff] %vm305, %v3702
      %3735 = vst.msk [vmem:[#allocation3 + $0x90] sm:$0xff] %vm305, %v3703
      %3736 = vst.msk [vmem:[#allocation3 + $0x98] sm:$0xff] %vm305, %v3704
      %3737 = vst.msk [vmem:[#allocation3 + $0xa0] sm:$0xff] %vm305, %v3705
      %3738 = vst.msk [vmem:[#allocation3 + $0xa8] sm:$0xff] %vm305, %v3706
      %3739 = vst.msk [vmem:[#allocation3 + $0xb0] sm:$0xff] %vm305, %v3707
      %3740 = vst.msk [vmem:[#allocation3 + $0xb8] sm:$0xff] %vm305, %v3708
      %3741 = vst.msk [vmem:[#allocation3 + $0xc0] sm:$0xff] %vm305, %v3709
      %3742 = vst.msk [vmem:[#allocation3 + $0xc8] sm:$0xff] %vm305, %v3710
      %3743 = vst.msk [vmem:[#allocation3 + $0xd0] sm:$0xff] %vm305, %v3711
      %3744 = vst.msk [vmem:[#allocation3 + $0xd8] sm:$0xff] %vm305, %v3712
      %3745 = vst.msk [vmem:[#allocation3 + $0xe0] sm:$0xff] %vm305, %v3713
      %3746 = vst.msk [vmem:[#allocation3 + $0xe8] sm:$0xff] %vm305, %v3714
      %3747 = vst.msk [vmem:[#allocation3 + $0xf0] sm:$0xff] %vm305, %v3715
      %3748 = vst.msk [vmem:[#allocation3 + $0xf8] sm:$0xff] %vm305, %v3716
      %v3749 = vld [vmem:[#allocation3] sm:$0xff]
      %v3750 = vld [vmem:[#allocation3 + $0x8] sm:$0xff]
      %v3751 = vld [vmem:[#allocation3 + $0x10] sm:$0xff]
      %v3752 = vld [vmem:[#allocation3 + $0x18] sm:$0xff]
      %v3753 = vld [vmem:[#allocation3 + $0x20] sm:$0xff]
      %v3754 = vld [vmem:[#allocation3 + $0x28] sm:$0xff]
      %v3755 = vld [vmem:[#allocation3 + $0x30] sm:$0xff]
      %v3756 = vld [vmem:[#allocation3 + $0x38] sm:$0xff]
      %v3757 = vld [vmem:[#allocation3 + $0x40] sm:$0xff]
      %v3758 = vld [vmem:[#allocation3 + $0x48] sm:$0xff]
      %v3759 = vld [vmem:[#allocation3 + $0x50] sm:$0xff]
      %v3760 = vld [vmem:[#allocation3 + $0x58] sm:$0xff]
      %v3761 = vld [vmem:[#allocation3 + $0x60] sm:$0xff]
      %v3762 = vld [vmem:[#allocation3 + $0x68] sm:$0xff]
      %v3763 = vld [vmem:[#allocation3 + $0x70] sm:$0xff]
      %v3764 = vld [vmem:[#allocation3 + $0x78] sm:$0xff]
      %v3765 = vld [vmem:[#allocation3 + $0x80] sm:$0xff]
      %v3766 = vld [vmem:[#allocation3 + $0x88] sm:$0xff]
      %v3767 = vld [vmem:[#allocation3 + $0x90] sm:$0xff]
      %v3768 = vld [vmem:[#allocation3 + $0x98] sm:$0xff]
      %v3769 = vld [vmem:[#allocation3 + $0xa0] sm:$0xff]
      %v3770 = vld [vmem:[#allocation3 + $0xa8] sm:$0xff]
      %v3771 = vld [vmem:[#allocation3 + $0xb0] sm:$0xff]
      %v3772 = vld [vmem:[#allocation3 + $0xb8] sm:$0xff]
      %v3773 = vld [vmem:[#allocation3 + $0xc0] sm:$0xff]
      %v3774 = vld [vmem:[#allocation3 + $0xc8] sm:$0xff]
      %v3775 = vld [vmem:[#allocation3 + $0xd0] sm:$0xff]
      %v3776 = vld [vmem:[#allocation3 + $0xd8] sm:$0xff]
      %v3777 = vld [vmem:[#allocation3 + $0xe0] sm:$0xff]
      %v3778 = vld [vmem:[#allocation3 + $0xe8] sm:$0xff]
      %v3779 = vld [vmem:[#allocation3 + $0xf0] sm:$0xff]
      %v3780 = vld [vmem:[#allocation3 + $0xf8] sm:$0xff]
      %3781 = vst.msk [vmem:[%s294] sm:$0xff] %vm305, %v3749
      %3782 = vst.msk [vmem:[%s294 + $0x8] sm:$0xff] %vm305, %v3750
      %3783 = vst.msk [vmem:[%s294 + $0x10] sm:$0xff] %vm305, %v3751
      %3784 = vst.msk [vmem:[%s294 + $0x18] sm:$0xff] %vm305, %v3752
      %3785 = vst.msk [vmem:[%s294 + $0x20] sm:$0xff] %vm305, %v3753
      %3786 = vst.msk [vmem:[%s294 + $0x28] sm:$0xff] %vm305, %v3754
      %3787 = vst.msk [vmem:[%s294 + $0x30] sm:$0xff] %vm305, %v3755
      %3788 = vst.msk [vmem:[%s294 + $0x38] sm:$0xff] %vm305, %v3756
      %3789 = vst.msk [vmem:[%s294 + $0x40] sm:$0xff] %vm305, %v3757
      %3790 = vst.msk [vmem:[%s294 + $0x48] sm:$0xff] %vm305, %v3758
      %3791 = vst.msk [vmem:[%s294 + $0x50] sm:$0xff] %vm305, %v3759
      %3792 = vst.msk [vmem:[%s294 + $0x58] sm:$0xff] %vm305, %v3760
      %3793 = vst.msk [vmem:[%s294 + $0x60] sm:$0xff] %vm305, %v3761
      %3794 = vst.msk [vmem:[%s294 + $0x68] sm:$0xff] %vm305, %v3762
      %3795 = vst.msk [vmem:[%s294 + $0x70] sm:$0xff] %vm305, %v3763
      %3796 = vst.msk [vmem:[%s294 + $0x78] sm:$0xff] %vm305, %v3764
      %3797 = vst.msk [vmem:[%s294 + $0x80] sm:$0xff] %vm305, %v3765
      %3798 = vst.msk [vmem:[%s294 + $0x88] sm:$0xff] %vm305, %v3766
      %3799 = vst.msk [vmem:[%s294 + $0x90] sm:$0xff] %vm305, %v3767
      %3800 = vst.msk [vmem:[%s294 + $0x98] sm:$0xff] %vm305, %v3768
      %3801 = vst.msk [vmem:[%s294 + $0xa0] sm:$0xff] %vm305, %v3769
      %3802 = vst.msk [vmem:[%s294 + $0xa8] sm:$0xff] %vm305, %v3770
      %3803 = vst.msk [vmem:[%s294 + $0xb0] sm:$0xff] %vm305, %v3771
      %3804 = vst.msk [vmem:[%s294 + $0xb8] sm:$0xff] %vm305, %v3772
      %3805 = vst.msk [vmem:[%s294 + $0xc0] sm:$0xff] %vm305, %v3773
      %3806 = vst.msk [vmem:[%s294 + $0xc8] sm:$0xff] %vm305, %v3774
      %3807 = vst.msk [vmem:[%s294 + $0xd0] sm:$0xff] %vm305, %v3775
      %3808 = vst.msk [vmem:[%s294 + $0xd8] sm:$0xff] %vm305, %v3776
      %3809 = vst.msk [vmem:[%s294 + $0xe0] sm:$0xff] %vm305, %v3777
      %3810 = vst.msk [vmem:[%s294 + $0xe8] sm:$0xff] %vm305, %v3778
      %3811 = vst.msk [vmem:[%s294 + $0xf0] sm:$0xff] %vm305, %v3779
      %3812 = vst.msk [vmem:[%s294 + $0xf8] sm:$0xff] %vm305, %v3780
      %v3813 = vsel %vm305, %v3749, 0.0
      %v3814 = vsel %vm305, %v3750, 0.0
      %v3815 = vadd.f32 %v3813, %v3814
      %v3816 = vsel %vm305, %v3751, 0.0
      %v3817 = vadd.f32 %v3815, %v3816
      %v3818 = vsel %vm305, %v3752, 0.0
      %v3819 = vadd.f32 %v3817, %v3818
      %v3820 = vsel %vm305, %v3753, 0.0
      %v3821 = vadd.f32 %v3819, %v3820
      %v3822 = vsel %vm305, %v3754, 0.0
      %v3823 = vadd.f32 %v3821, %v3822
      %v3824 = vsel %vm305, %v3755, 0.0
      %v3825 = vadd.f32 %v3823, %v3824
      %v3826 = vsel %vm305, %v3756, 0.0
      %v3827 = vadd.f32 %v3825, %v3826
      %v3828 = vsel %vm305, %v3757, 0.0
      %v3829 = vadd.f32 %v3827, %v3828
      %v3830 = vsel %vm305, %v3758, 0.0
      %v3831 = vadd.f32 %v3829, %v3830
      %v3832 = vsel %vm305, %v3759, 0.0
      %v3833 = vadd.f32 %v3831, %v3832
      %v3834 = vsel %vm305, %v3760, 0.0
      %v3835 = vadd.f32 %v3833, %v3834
      %v3836 = vsel %vm305, %v3761, 0.0
      %v3837 = vadd.f32 %v3835, %v3836
      %v3838 = vsel %vm305, %v3762, 0.0
      %v3839 = vadd.f32 %v3837, %v3838
      %v3840 = vsel %vm305, %v3763, 0.0
      %v3841 = vadd.f32 %v3839, %v3840
      %v3842 = vsel %vm305, %v3764, 0.0
      %v3843 = vadd.f32 %v3841, %v3842
      %v3844 = vsel %vm305, %v3765, 0.0
      %v3845 = vadd.f32 %v3843, %v3844
      %v3846 = vsel %vm305, %v3766, 0.0
      %v3847 = vadd.f32 %v3845, %v3846
      %v3848 = vsel %vm305, %v3767, 0.0
      %v3849 = vadd.f32 %v3847, %v3848
      %v3850 = vsel %vm305, %v3768, 0.0
      %v3851 = vadd.f32 %v3849, %v3850
      %v3852 = vsel %vm305, %v3769, 0.0
      %v3853 = vadd.f32 %v3851, %v3852
      %v3854 = vsel %vm305, %v3770, 0.0
      %v3855 = vadd.f32 %v3853, %v3854
      %v3856 = vsel %vm305, %v3771, 0.0
      %v3857 = vadd.f32 %v3855, %v3856
      %v3858 = vsel %vm305, %v3772, 0.0
      %v3859 = vadd.f32 %v3857, %v3858
      %v3860 = vsel %vm305, %v3773, 0.0
      %v3861 = vadd.f32 %v3859, %v3860
      %v3862 = vsel %vm305, %v3774, 0.0
      %v3863 = vadd.f32 %v3861, %v3862
      %v3864 = vsel %vm305, %v3775, 0.0
      %v3865 = vadd.f32 %v3863, %v3864
      %v3866 = vsel %vm305, %v3776, 0.0
      %v3867 = vadd.f32 %v3865, %v3866
      %v3868 = vsel %vm305, %v3777, 0.0
      %v3869 = vadd.f32 %v3867, %v3868
      %v3870 = vsel %vm305, %v3778, 0.0
      %v3871 = vadd.f32 %v3869, %v3870
      %v3872 = vsel %vm305, %v3779, 0.0
      %v3873 = vadd.f32 %v3871, %v3872
      %v3874 = vsel %vm305, %v3780, 0.0
      %v3875 = vadd.f32 %v3873, %v3874
      %v3876 = vrot.slane %v3875, 4
      %v3877 = vadd.f32 %v3875, %v3876
      %v3878 = vrot.slane %v3877, 2
      %v3879 = vadd.f32 %v3877, %v3878
      %v3880 = vrot.slane %v3879, 1
      %v3881 = vadd.f32 %v3879, %v3880
      %3882 = vst.msk [vmem:[%s297] sm:$0x1] %vm314, %v3881
      %v3883 = vmul.f32 %v3749, %v3749
      %v3884 = vmul.f32 %v3750, %v3750
      %v3885 = vmul.f32 %v3751, %v3751
      %v3886 = vmul.f32 %v3752, %v3752
      %v3887 = vmul.f32 %v3753, %v3753
      %v3888 = vmul.f32 %v3754, %v3754
      %v3889 = vmul.f32 %v3755, %v3755
      %v3890 = vmul.f32 %v3756, %v3756
      %v3891 = vmul.f32 %v3757, %v3757
      %v3892 = vmul.f32 %v3758, %v3758
      %v3893 = vmul.f32 %v3759, %v3759
      %v3894 = vmul.f32 %v3760, %v3760
      %v3895 = vmul.f32 %v3761, %v3761
      %v3896 = vmul.f32 %v3762, %v3762
      %v3897 = vmul.f32 %v3763, %v3763
      %v3898 = vmul.f32 %v3764, %v3764
      %v3899 = vmul.f32 %v3765, %v3765
      %v3900 = vmul.f32 %v3766, %v3766
      %v3901 = vmul.f32 %v3767, %v3767
      %v3902 = vmul.f32 %v3768, %v3768
      %v3903 = vmul.f32 %v3769, %v3769
      %v3904 = vmul.f32 %v3770, %v3770
      %v3905 = vmul.f32 %v3771, %v3771
      %v3906 = vmul.f32 %v3772, %v3772
      %v3907 = vmul.f32 %v3773, %v3773
      %v3908 = vmul.f32 %v3774, %v3774
      %v3909 = vmul.f32 %v3775, %v3775
      %v3910 = vmul.f32 %v3776, %v3776
      %v3911 = vmul.f32 %v3777, %v3777
      %v3912 = vmul.f32 %v3778, %v3778
      %v3913 = vmul.f32 %v3779, %v3779
      %v3914 = vmul.f32 %v3780, %v3780
      %v3915 = vsel %vm305, %v3883, 0.0
      %v3916 = vsel %vm305, %v3884, 0.0
      %v3917 = vadd.f32 %v3915, %v3916
      %v3918 = vsel %vm305, %v3885, 0.0
      %v3919 = vadd.f32 %v3917, %v3918
      %v3920 = vsel %vm305, %v3886, 0.0
      %v3921 = vadd.f32 %v3919, %v3920
      %v3922 = vsel %vm305, %v3887, 0.0
      %v3923 = vadd.f32 %v3921, %v3922
      %v3924 = vsel %vm305, %v3888, 0.0
      %v3925 = vadd.f32 %v3923, %v3924
      %v3926 = vsel %vm305, %v3889, 0.0
      %v3927 = vadd.f32 %v3925, %v3926
      %v3928 = vsel %vm305, %v3890, 0.0
      %v3929 = vadd.f32 %v3927, %v3928
      %v3930 = vsel %vm305, %v3891, 0.0
      %v3931 = vadd.f32 %v3929, %v3930
      %v3932 = vsel %vm305, %v3892, 0.0
      %v3933 = vadd.f32 %v3931, %v3932
      %v3934 = vsel %vm305, %v3893, 0.0
      %v3935 = vadd.f32 %v3933, %v3934
      %v3936 = vsel %vm305, %v3894, 0.0
      %v3937 = vadd.f32 %v3935, %v3936
      %v3938 = vsel %vm305, %v3895, 0.0
      %v3939 = vadd.f32 %v3937, %v3938
      %v3940 = vsel %vm305, %v3896, 0.0
      %v3941 = vadd.f32 %v3939, %v3940
      %v3942 = vsel %vm305, %v3897, 0.0
      %v3943 = vadd.f32 %v3941, %v3942
      %v3944 = vsel %vm305, %v3898, 0.0
      %v3945 = vadd.f32 %v3943, %v3944
      %v3946 = vsel %vm305, %v3899, 0.0
      %v3947 = vadd.f32 %v3945, %v3946
      %v3948 = vsel %vm305, %v3900, 0.0
      %v3949 = vadd.f32 %v3947, %v3948
      %v3950 = vsel %vm305, %v3901, 0.0
      %v3951 = vadd.f32 %v3949, %v3950
      %v3952 = vsel %vm305, %v3902, 0.0
      %v3953 = vadd.f32 %v3951, %v3952
      %v3954 = vsel %vm305, %v3903, 0.0
      %v3955 = vadd.f32 %v3953, %v3954
      %v3956 = vsel %vm305, %v3904, 0.0
      %v3957 = vadd.f32 %v3955, %v3956
      %v3958 = vsel %vm305, %v3905, 0.0
      %v3959 = vadd.f32 %v3957, %v3958
      %v3960 = vsel %vm305, %v3906, 0.0
      %v3961 = vadd.f32 %v3959, %v3960
      %v3962 = vsel %vm305, %v3907, 0.0
      %v3963 = vadd.f32 %v3961, %v3962
      %v3964 = vsel %vm305, %v3908, 0.0
      %v3965 = vadd.f32 %v3963, %v3964
      %v3966 = vsel %vm305, %v3909, 0.0
      %v3967 = vadd.f32 %v3965, %v3966
      %v3968 = vsel %vm305, %v3910, 0.0
      %v3969 = vadd.f32 %v3967, %v3968
      %v3970 = vsel %vm305, %v3911, 0.0
      %v3971 = vadd.f32 %v3969, %v3970
      %v3972 = vsel %vm305, %v3912, 0.0
      %v3973 = vadd.f32 %v3971, %v3972
      %v3974 = vsel %vm305, %v3913, 0.0
      %v3975 = vadd.f32 %v3973, %v3974
      %v3976 = vsel %vm305, %v3914, 0.0
      %v3977 = vadd.f32 %v3975, %v3976
      %v3978 = vrot.slane %v3977, 4
      %v3979 = vadd.f32 %v3977, %v3978
      %v3980 = vrot.slane %v3979, 2
      %v3981 = vadd.f32 %v3979, %v3980
      %v3982 = vrot.slane %v3981, 1
      %v3983 = vadd.f32 %v3981, %v3982
      %3984 = vst.msk [vmem:[%s300] sm:$0x1] %vm314, %v3983
      %3985 = vst.msk [vmem:[%s303] sm:$0x1] %vm314, %v3881
      %p3986 = scmp.lt.s32.totalorder %s19, 1
      %s3987 = scalar_select %p3986, %s19, 1
      %s3988 = smul.addr %s3987, 32
      %s3989 = smul.addr %s3988, 8
      %s3990 = scalar_lea.vmem %s4, %s3989
      %p3991 = scmp.lt.s32.totalorder %s19, 1
      %s3992 = scalar_select %p3991, %s19, 1
      %s3993 = scalar_lea.vmem %s5, %s3992
      %p3994 = scmp.lt.s32.totalorder %s19, 1
      %s3995 = scalar_select %p3994, %s19, 1
      %s3996 = scalar_lea.vmem %s6, %s3995
      %p3997 = scmp.lt.s32.totalorder %s19, 1
      %s3998 = scalar_select %p3997, %s19, 1
      %s3999 = scalar_lea.vmem %s7, %s3998
      // Predicated region
      $region37: #{_basic_block_nhwc.4} parent=35 // pred_check
        %p4000 = pneg %p126
      $region38: #{_basic_block_nhwc.4} parent=35 // pred_check_branch
        %4002 = sbr.rel (%p4000) target = $region40
      $region39: #{_basic_block_nhwc.4} parent=35 // pred_region
        _
      $region40: #{_basic_block_nhwc.4} parent=35 // pred_fallthru
        _
      // Predicated region
      $region41: #{_basic_block_nhwc.4} parent=35 // pred_check
        %p4003 = pneg %p152
      $region42: #{_basic_block_nhwc.4} parent=35 // pred_check_branch
        %4005 = sbr.rel (%p4003) target = $region44
      $region43: #{_basic_block_nhwc.4} parent=35 // pred_region
        _
      $region44: #{_basic_block_nhwc.4} parent=35 // pred_fallthru
        _
      // Predicated region
      $region45: #{_basic_block_nhwc.4} parent=35 // pred_check
        %p4006 = pneg %p178
      $region46: #{_basic_block_nhwc.4} parent=35 // pred_check_branch
        %4008 = sbr.rel (%p4006) target = $region48
      $region47: #{_basic_block_nhwc.4} parent=35 // pred_region
        _
      $region48: #{_basic_block_nhwc.4} parent=35 // pred_fallthru
        _
      // Predicated region
      $region49: #{_basic_block_nhwc.4} parent=35 // pred_check
        %p4009 = pneg %p204
      $region50: #{_basic_block_nhwc.4} parent=35 // pred_check_branch
        %4011 = sbr.rel (%p4009) target = $region52
      $region51: #{_basic_block_nhwc.4} parent=35 // pred_region
        _
      $region52: #{_basic_block_nhwc.4} parent=35 // pred_fallthru
        _
    $region36: #{_basic_block_nhwc.4} parent=5 // pred_fallthru
      _
    %p4012 = scmp.le.s32.totalorder 2, %s14
    // Predicated region
    $region53: #{_basic_block_nhwc.4} parent=5 // pred_check
      %p4013 = pneg %p4012
    $region54: #{_basic_block_nhwc.4} parent=5 // pred_check_branch
      %4015 = sbr.rel (%p4013) target = $region56
    $region55: #{_basic_block_nhwc.4} parent=5 // pred_region
      %s4016 = ssub.s32 %s14, 2
      // Predicated region
      $region57: #{_basic_block_nhwc.4} parent=55 // pred_check
        %p4017 = pneg %p132
      $region58: #{_basic_block_nhwc.4} parent=55 // pred_check_branch
        %4019 = sbr.rel (%p4017) target = $region60
      $region59: #{_basic_block_nhwc.4} parent=55 // pred_region
        %p4020 = scmp.lt.s32.totalorder %s20, 1
        %s4021 = scalar_select %p4020, %s20, 1
        %s4022 = smul.addr %s4021, 32
        %s4023 = smul.addr %s4022, 8
        %s4024 = scalar_lea.vmem %s4, %s4023
      $region60: #{_basic_block_nhwc.4} parent=55 // pred_fallthru
        _
      // Predicated region
      $region61: #{_basic_block_nhwc.4} parent=55 // pred_check
        %p4025 = pneg %p158
      $region62: #{_basic_block_nhwc.4} parent=55 // pred_check_branch
        %4027 = sbr.rel (%p4025) target = $region64
      $region63: #{_basic_block_nhwc.4} parent=55 // pred_region
        %p4028 = scmp.lt.s32.totalorder %s20, 1
        %s4029 = scalar_select %p4028, %s20, 1
        %s4030 = scalar_lea.vmem %s5, %s4029
      $region64: #{_basic_block_nhwc.4} parent=55 // pred_fallthru
        _
      // Predicated region
      $region65: #{_basic_block_nhwc.4} parent=55 // pred_check
        %p4031 = pneg %p184
      $region66: #{_basic_block_nhwc.4} parent=55 // pred_check_branch
        %4033 = sbr.rel (%p4031) target = $region68
      $region67: #{_basic_block_nhwc.4} parent=55 // pred_region
        %p4034 = scmp.lt.s32.totalorder %s20, 1
        %s4035 = scalar_select %p4034, %s20, 1
        %s4036 = scalar_lea.vmem %s6, %s4035
      $region68: #{_basic_block_nhwc.4} parent=55 // pred_fallthru
        _
      // Predicated region
      $region69: #{_basic_block_nhwc.4} parent=55 // pred_check
        %p4037 = pneg %p210
      $region70: #{_basic_block_nhwc.4} parent=55 // pred_check_branch
        %4039 = sbr.rel (%p4037) target = $region72
      $region71: #{_basic_block_nhwc.4} parent=55 // pred_region
        %p4040 = scmp.lt.s32.totalorder %s20, 1
        %s4041 = scalar_select %p4040, %s20, 1
        %s4042 = scalar_lea.vmem %s7, %s4041
      $region72: #{_basic_block_nhwc.4} parent=55 // pred_fallthru
        _
    $region56: #{_basic_block_nhwc.4} parent=5 // pred_fallthru
      _
  $region6: #{_basic_block_nhwc.4} parent=0 // loop_footer
    %s18 = sadd.s32 1, %s14
  $region7: #{_basic_block_nhwc.4} parent=0 // loop_footer_branch
    %13 = sbr.rel target = $region3
  $region8: #{_basic_block_nhwc.4} parent=0 // loop_exit
    _

</llo_original>
